<compile_context>
chip_gen: v6e
topology: v6e:2x2x1
jax: 0.10.0
libtpu: 0.0.40
codegen_flags: <defaults>
</compile_context>

<pallas_src>
import functools

import jax
import jax.numpy as jnp
import numpy as np
from jax.experimental import pallas as pl
from jax.experimental.pallas import tpu as pltpu

EPS = 1e-5


# ----------------------------------------------------------------------------
# Fused Inception kernel (one grid step = one batch element)
# ----------------------------------------------------------------------------
def inception_kernel(x_ref,                       # (1, H, W, Cin)      f32
                     w_head_ref, s_head_ref, b_head_ref,   # fused 1x1 head
                     w3_ref, s3_ref, b3_ref,      # 3x3 branch (im2col weights)
                     w5_ref, s5_ref, b5_ref,      # 5x5 branch (im2col weights)
                     wp_ref, sp_ref, bp_ref,      # pool-proj 1x1
                     o_ref,                       # (H*W, Ctot)         f32
                     pad3_ref, pad5_ref, padp_ref,          # VMEM scratch
                     *, H, W, ch1x1, ch3x3red, ch5x5red):
    N = H * W
    Cin = x_ref.shape[-1]

    x = x_ref[0]                                  # (H, W, Cin) f32
    x_flat = x.reshape(N, Cin)

    # ---- branch1 + 3x3-reduce + 5x5-reduce: one fused 1x1 matmul -----------
    head = jnp.dot(x_flat.astype(jnp.bfloat16), w_head_ref[...],
                   preferred_element_type=jnp.float32)
    head = jnp.maximum(head * s_head_ref[...] + b_head_ref[...], 0.0)
    y1 = head[:, :ch1x1]                                          # (N, ch1x1)
    r2 = head[:, ch1x1:ch1x1 + ch3x3red]                          # (N, c3r)
    r3 = head[:, ch1x1 + ch3x3red:ch1x1 + ch3x3red + ch5x5red]    # (N, c5r)

    # ---- branch2: 3x3 conv, zero halo in VMEM scratch, single im2col matmul
    pad3_ref[...] = jnp.zeros(pad3_ref.shape, pad3_ref.dtype)
    pad3_ref[1:1 + H, 1:1 + W, :] = r2.reshape(H, W, ch3x3red)
    p3 = pad3_ref[...]
    cols3 = [p3[kh:kh + H, kw:kw + W, :].reshape(N, ch3x3red)
             for kh in range(3) for kw in range(3)]
    im3 = jnp.concatenate(cols3, axis=-1).astype(jnp.bfloat16)    # (N, 9*c3r)
    y2 = jnp.dot(im3, w3_ref[...], preferred_element_type=jnp.float32)
    y2 = jnp.maximum(y2 * s3_ref[...] + b3_ref[...], 0.0)

    # ---- branch3: 5x5 conv, same im2col scheme ------------------------------
    pad5_ref[...] = jnp.zeros(pad5_ref.shape, pad5_ref.dtype)
    pad5_ref[2:2 + H, 2:2 + W, :] = r3.reshape(H, W, ch5x5red)
    p5 = pad5_ref[...]
    cols5 = [p5[kh:kh + H, kw:kw + W, :].reshape(N, ch5x5red)
             for kh in range(5) for kw in range(5)]
    im5 = jnp.concatenate(cols5, axis=-1).astype(jnp.bfloat16)    # (N, 25*c5r)
    y3 = jnp.dot(im5, w5_ref[...], preferred_element_type=jnp.float32)
    y3 = jnp.maximum(y3 * s5_ref[...] + b5_ref[...], 0.0)

    # ---- branch4: 3x3/s1 max-pool (-inf halo) + 1x1 conv --------------------
    padp_ref[...] = jnp.full(padp_ref.shape, -jnp.inf, padp_ref.dtype)
    padp_ref[1:1 + H, 1:1 + W, :] = x
    pp = padp_ref[...]
    pooled = pp[0:H, 0:W, :]
    for kh in range(3):
        for kw in range(3):
            pooled = jnp.maximum(pooled, pp[kh:kh + H, kw:kw + W, :])
    y4 = jnp.dot(pooled.reshape(N, Cin).astype(jnp.bfloat16), wp_ref[...],
                 preferred_element_type=jnp.float32)
    y4 = jnp.maximum(y4 * sp_ref[...] + bp_ref[...], 0.0)

    # ---- channel-concatenated output (single 32-lane-wide store) ------------
    o_ref[...] = jnp.concatenate([y1, y2, y3, y4], axis=-1)


# ----------------------------------------------------------------------------
# Wrapper
# ----------------------------------------------------------------------------
def _fold_bn(p):
    scale = p["gamma"] / jnp.sqrt(p["var"] + EPS)
    bias = (p["b"] - p["mean"]) * scale + p["beta"]
    return scale, bias


def _inception_pallas(x, params):
    """x: (B, H, W, Cin) NHWC f32.  Returns (B, H, W, Ctot) f32."""
    B, H, W, Cin = x.shape
    ch1 = params["b1"]["w"].shape[-1]
    c3r = params["b2_red"]["w"].shape[-1]
    c3 = params["b2"]["w"].shape[-1]
    c5r = params["b3_red"]["w"].shape[-1]
    c5 = params["b3"]["w"].shape[-1]
    cp = params["b4"]["w"].shape[-1]
    c_head = ch1 + c3r + c5r
    c_tot = ch1 + c3 + c5 + cp

    s1, t1 = _fold_bn(params["b1"])
    s2r, t2r = _fold_bn(params["b2_red"])
    s3r, t3r = _fold_bn(params["b3_red"])
    s2, t2 = _fold_bn(params["b2"])
    s3, t3 = _fold_bn(params["b3"])
    sp, tp = _fold_bn(params["b4"])

    # Fuse the three 1x1 convs that share the input x into one weight matrix.
    w_head = jnp.concatenate(
        [params["b1"]["w"].reshape(Cin, ch1),
         params["b2_red"]["w"].reshape(Cin, c3r),
         params["b3_red"]["w"].reshape(Cin, c5r)],
        axis=-1).astype(jnp.bfloat16)
    s_head = jnp.concatenate([s1, s2r, s3r]).reshape(1, c_head)
    t_head = jnp.concatenate([t1, t2r, t3r]).reshape(1, c_head)

    # im2col weights: HWIO (K,K,Cin,Cout) -> (K*K*Cin, Cout), (kh,kw,ci) order.
    w3 = params["b2"]["w"].reshape(9 * c3r, c3).astype(jnp.bfloat16)
    w5 = params["b3"]["w"].reshape(25 * c5r, c5).astype(jnp.bfloat16)
    wp = params["b4"]["w"].reshape(Cin, cp).astype(jnp.bfloat16)

    kernel = functools.partial(inception_kernel, H=H, W=W,
                               ch1x1=ch1, ch3x3red=c3r, ch5x5red=c5r)

    def full2d(r, c):
        return pl.BlockSpec((r, c), lambda b: (0, 0))

    out2d = pl.pallas_call(
        kernel,
        out_shape=jax.ShapeDtypeStruct((B * H * W, c_tot), jnp.float32),
        grid=(B,),
        in_specs=[
            pl.BlockSpec((1, H, W, Cin), lambda b: (b, 0, 0, 0)),
            full2d(Cin, c_head), full2d(1, c_head), full2d(1, c_head),
            full2d(9 * c3r, c3), full2d(1, c3), full2d(1, c3),
            full2d(25 * c5r, c5), full2d(1, c5), full2d(1, c5),
            full2d(Cin, cp), full2d(1, cp), full2d(1, cp),
        ],
        out_specs=pl.BlockSpec((H * W, c_tot), lambda b: (b, 0)),
        scratch_shapes=[
            pltpu.VMEM((H + 2, W + 2, c3r), jnp.float32),   # 3x3 zero halo
            pltpu.VMEM((H + 4, W + 4, c5r), jnp.float32),   # 5x5 zero halo
            pltpu.VMEM((H + 2, W + 2, Cin), jnp.float32),   # max-pool -inf halo
        ],
        compiler_params=pltpu.CompilerParams(
            dimension_semantics=("parallel",)),
    )(x, w_head, s_head, t_head,
      w3, s2.reshape(1, c3), t2.reshape(1, c3),
      w5, s3.reshape(1, c5), t3.reshape(1, c5),
      wp, sp.reshape(1, cp), tp.reshape(1, cp))

    return out2d.reshape(B, H, W, c_tot)


@jax.jit
def inception_forward(x_nchw, params):
    # TODO(synk): fold the NCHW<->NHWC transposes into the kernel index_map to
    # save one HBM round-trip each at large sizes.
    x = jnp.transpose(x_nchw, (0, 2, 3, 1))       # NCHW -> NHWC
    out = _inception_pallas(x, params)
    return jnp.transpose(out, (0, 3, 1, 2))       # NHWC -> NCHW (torch.cat dim=1)


# ----------------------------------------------------------------------------
# Parameter construction
# ----------------------------------------------------------------------------
def make_basic_conv_params(key, cin, cout, K):
    ks = jax.random.split(key, 6)
    return {
        "w": 0.1 * jax.random.normal(ks[0], (K, K, cin, cout), jnp.float32),
        "b": 0.1 * jax.random.normal(ks[1], (cout,), jnp.float32),
        "gamma": 1.0 + 0.1 * jax.random.normal(ks[2], (cout,), jnp.float32),
        "beta": 0.1 * jax.random.normal(ks[3], (cout,), jnp.float32),
        "mean": 0.1 * jax.random.normal(ks[4], (cout,), jnp.float32),
        "var": jax.random.uniform(ks[5], (cout,), jnp.float32, 0.5, 1.5),
    }


def make_inception_params(key, in_ch, ch1x1, ch3x3red, ch3x3,
                          ch5x5red, ch5x5, pool_proj):
    ks = jax.random.split(key, 6)
    return {
        "b1": make_basic_conv_params(ks[0], in_ch, ch1x1, 1),
        "b2_red": make_basic_conv_params(ks[1], in_ch, ch3x3red, 1),
        "b2": make_basic_conv_params(ks[2], ch3x3red, ch3x3, 3),
        "b3_red": make_basic_conv_params(ks[3], in_ch, ch5x5red, 1),
        "b3": make_basic_conv_params(ks[4], ch5x5red, ch5x5, 5),
        "b4": make_basic_conv_params(ks[5], in_ch, pool_proj, 1),
    }


# ----------------------------------------------------------------------------
# Pure-JAX reference (for correctness check)
# ----------------------------------------------------------------------------
def ref_basic_conv(x, p, pad):
    y = jax.lax.conv_general_dilated(
        x, p["w"], window_strides=(1, 1),
        padding=[(pad, pad), (pad, pad)],
        dimension_numbers=("NHWC", "HWIO", "NHWC"))
    y = y + p["b"]
    y = p["gamma"] * (y - p["mean"]) / jnp.sqrt(p["var"] + EPS) + p["beta"]
    return jnp.maximum(y, 0.0)


def ref_inception(x_nchw, params):
    x = jnp.transpose(x_nchw, (0, 2, 3, 1))
    b1 = ref_basic_conv(x, params["b1"], 0)
    b2 = ref_basic_conv(ref_basic_conv(x, params["b2_red"], 0), params["b2"], 1)
    b3 = ref_basic_conv(ref_basic_conv(x, params["b3_red"], 0), params["b3"], 2)
    pooled = jax.lax.reduce_window(x, -jnp.inf, jax.lax.max,
                                   (1, 3, 3, 1), (1, 1, 1, 1), "SAME")
    b4 = ref_basic_conv(pooled, params["b4"], 0)
    out = jnp.concatenate([b1, b2, b3, b4], axis=-1)
    return jnp.transpose(out, (0, 3, 1, 2))


# ----------------------------------------------------------------------------
if __name__ == "__main__":
    key = jax.random.PRNGKey(0)
    k_x, k_p = jax.random.split(key)

    B, Cin, H, W = 2, 4, 16, 16
    ch1x1, ch3x3red, ch3x3, ch5x5red, ch5x5, pool_proj = 8, 4, 8, 4, 8, 8

    x = jax.random.normal(k_x, (B, Cin, H, W), jnp.float32)   # NCHW, like PyTorch
    params = make_inception_params(k_p, Cin, ch1x1, ch3x3red, ch3x3,
                                   ch5x5red, ch5x5, pool_proj)

    out = inception_forward(x, params)
    jax.block_until_ready(out)

    expected = ref_inception(x, params)
    assert out.shape == (B, ch1x1 + ch3x3 + ch5x5 + pool_proj, H, W), out.shape
    # bf16 MXU operands (f32 accumulation) -> loosened tolerance vs f32 reference.
    np.testing.assert_allclose(np.asarray(out), np.asarray(expected),
                               rtol=5e-2, atol=5e-2)
    print("KERNEL_OK")
</pallas_src>

<mosaic_0001>
module attributes {stable_mosaic.version = 11 : i64} {
  func.func @inception_kernel(%arg0: i32, %arg1: memref<1x16x16x4xf32, #tpu.memory_space<vmem>>, %arg2: memref<4x16xbf16, #tpu.memory_space<vmem>>, %arg3: memref<1x16xf32, #tpu.memory_space<vmem>>, %arg4: memref<1x16xf32, #tpu.memory_space<vmem>>, %arg5: memref<36x8xbf16, #tpu.memory_space<vmem>>, %arg6: memref<1x8xf32, #tpu.memory_space<vmem>>, %arg7: memref<1x8xf32, #tpu.memory_space<vmem>>, %arg8: memref<100x8xbf16, #tpu.memory_space<vmem>>, %arg9: memref<1x8xf32, #tpu.memory_space<vmem>>, %arg10: memref<1x8xf32, #tpu.memory_space<vmem>>, %arg11: memref<4x8xbf16, #tpu.memory_space<vmem>>, %arg12: memref<1x8xf32, #tpu.memory_space<vmem>>, %arg13: memref<1x8xf32, #tpu.memory_space<vmem>>, %arg14: memref<256x32xf32, #tpu.memory_space<vmem>>, %arg15: memref<18x18x4xf32, #tpu.memory_space<vmem>>, %arg16: memref<20x20x4xf32, #tpu.memory_space<vmem>>, %arg17: memref<18x18x4xf32, #tpu.memory_space<vmem>>) attributes {dimension_semantics = [#tpu.dimension_semantics<parallel>], iteration_bounds = array<i64: 2>, scalar_prefetch = 0 : i64, scratch_operands = 3 : i64, tpu.core_type = #tpu.core_type<tc>, window_params = [{transform_indices = @transform_0, window_bounds = array<i64: 1, 16, 16, 4>}, {pipeline_mode = #tpu.pipeline_mode<synchronous>, transform_indices = @transform_1, window_bounds = array<i64: 4, 16>}, {pipeline_mode = #tpu.pipeline_mode<synchronous>, transform_indices = @transform_2, window_bounds = array<i64: 1, 16>}, {pipeline_mode = #tpu.pipeline_mode<synchronous>, transform_indices = @transform_3, window_bounds = array<i64: 1, 16>}, {pipeline_mode = #tpu.pipeline_mode<synchronous>, transform_indices = @transform_4, window_bounds = array<i64: 36, 8>}, {pipeline_mode = #tpu.pipeline_mode<synchronous>, transform_indices = @transform_5, window_bounds = array<i64: 1, 8>}, {pipeline_mode = #tpu.pipeline_mode<synchronous>, transform_indices = @transform_6, window_bounds = array<i64: 1, 8>}, {pipeline_mode = #tpu.pipeline_mode<synchronous>, transform_indices = @transform_7, window_bounds = array<i64: 100, 8>}, {pipeline_mode = #tpu.pipeline_mode<synchronous>, transform_indices = @transform_8, window_bounds = array<i64: 1, 8>}, {pipeline_mode = #tpu.pipeline_mode<synchronous>, transform_indices = @transform_9, window_bounds = array<i64: 1, 8>}, {pipeline_mode = #tpu.pipeline_mode<synchronous>, transform_indices = @transform_10, window_bounds = array<i64: 4, 8>}, {pipeline_mode = #tpu.pipeline_mode<synchronous>, transform_indices = @transform_11, window_bounds = array<i64: 1, 8>}, {pipeline_mode = #tpu.pipeline_mode<synchronous>, transform_indices = @transform_12, window_bounds = array<i64: 1, 8>}, {transform_indices = @transform_13, window_bounds = array<i64: 256, 32>}]} {
    %c0 = arith.constant 0 : index
    %c0_0 = arith.constant 0 : index
    %c0_1 = arith.constant 0 : index
    %c0_2 = arith.constant 0 : index
    %0 = vector.load %arg1[%c0, %c0_0, %c0_1, %c0_2] : memref<1x16x16x4xf32, #tpu.memory_space<vmem>>, vector<1x16x16x4xf32>
    %1 = vector.shape_cast %0 : vector<1x16x16x4xf32> to vector<16x16x4xf32>
    %2 = vector.shape_cast %1 : vector<16x16x4xf32> to vector<256x4xf32>
    %3 = arith.truncf %2 : vector<256x4xf32> to vector<256x4xbf16>
    %c0_3 = arith.constant 0 : index
    %c0_4 = arith.constant 0 : index
    %4 = vector.load %arg2[%c0_3, %c0_4] : memref<4x16xbf16, #tpu.memory_space<vmem>>, vector<4x16xbf16>
    %cst = arith.constant dense<0.000000e+00> : vector<256x16xf32>
    %5 = tpu.matmul %3, %4, %cst {dimension_numbers = #tpu.dot_dimension_numbers<[1], [0], [0], [1], [0, 0, 1, 1], [], []>} : vector<256x4xbf16>, vector<4x16xbf16>, vector<256x16xf32> -> vector<256x16xf32>
    %c0_5 = arith.constant 0 : index
    %c0_6 = arith.constant 0 : index
    %6 = vector.load %arg3[%c0_5, %c0_6] : memref<1x16xf32, #tpu.memory_space<vmem>>, vector<1x16xf32>
    %7 = vector.broadcast %6 : vector<1x16xf32> to vector<256x16xf32>
    %8 = arith.mulf %5, %7 : vector<256x16xf32>
    %c0_7 = arith.constant 0 : index
    %c0_8 = arith.constant 0 : index
    %9 = vector.load %arg4[%c0_7, %c0_8] : memref<1x16xf32, #tpu.memory_space<vmem>>, vector<1x16xf32>
    %10 = vector.broadcast %9 : vector<1x16xf32> to vector<256x16xf32>
    %11 = arith.addf %8, %10 : vector<256x16xf32>
    %cst_9 = arith.constant 0.000000e+00 : f32
    %12 = vector.broadcast %cst_9 : f32 to vector<256x16xf32>
    %13 = arith.maximumf %11, %12 : vector<256x16xf32>
    %14 = vector.extract_strided_slice %13 {offsets = [0, 0], sizes = [256, 8], strides = [1, 1]} : vector<256x16xf32> to vector<256x8xf32>
    %15 = vector.extract_strided_slice %13 {offsets = [0, 8], sizes = [256, 4], strides = [1, 1]} : vector<256x16xf32> to vector<256x4xf32>
    %16 = vector.extract_strided_slice %13 {offsets = [0, 12], sizes = [256, 4], strides = [1, 1]} : vector<256x16xf32> to vector<256x4xf32>
    %cst_10 = arith.constant 0.000000e+00 : f32
    %17 = vector.broadcast %cst_10 : f32 to vector<18x18x4xf32>
    %c0_11 = arith.constant 0 : index
    %c0_12 = arith.constant 0 : index
    %c0_13 = arith.constant 0 : index
    %18 = vector.load %arg15[%c0_11, %c0_12, %c0_13] : memref<18x18x4xf32, #tpu.memory_space<vmem>>, vector<18x18x4xf32>
    tpu.vector_store %arg15[%c0_11, %c0_12, %c0_13], %17 {strides = array<i32>} : memref<18x18x4xf32, #tpu.memory_space<vmem>>, vector<18x18x4xf32>,
    %19 = vector.shape_cast %15 : vector<256x4xf32> to vector<16x16x4xf32>
    %c1 = arith.constant 1 : index
    %c1_14 = arith.constant 1 : index
    %c0_15 = arith.constant 0 : index
    %20 = vector.load %arg15[%c1, %c1_14, %c0_15] : memref<18x18x4xf32, #tpu.memory_space<vmem>>, vector<16x16x4xf32>
    tpu.vector_store %arg15[%c1, %c1_14, %c0_15], %19 {strides = array<i32>} : memref<18x18x4xf32, #tpu.memory_space<vmem>>, vector<16x16x4xf32>,
    %c0_16 = arith.constant 0 : index
    %c0_17 = arith.constant 0 : index
    %c0_18 = arith.constant 0 : index
    %21 = vector.load %arg15[%c0_16, %c0_17, %c0_18] : memref<18x18x4xf32, #tpu.memory_space<vmem>>, vector<18x18x4xf32>
    %22 = vector.extract_strided_slice %21 {offsets = [0, 0, 0], sizes = [16, 16, 4], strides = [1, 1, 1]} : vector<18x18x4xf32> to vector<16x16x4xf32>
    %23 = vector.shape_cast %22 : vector<16x16x4xf32> to vector<256x4xf32>
    %24 = vector.extract_strided_slice %21 {offsets = [0, 1, 0], sizes = [16, 16, 4], strides = [1, 1, 1]} : vector<18x18x4xf32> to vector<16x16x4xf32>
    %25 = vector.shape_cast %24 : vector<16x16x4xf32> to vector<256x4xf32>
    %26 = vector.extract_strided_slice %21 {offsets = [0, 2, 0], sizes = [16, 16, 4], strides = [1, 1, 1]} : vector<18x18x4xf32> to vector<16x16x4xf32>
    %27 = vector.shape_cast %26 : vector<16x16x4xf32> to vector<256x4xf32>
    %28 = vector.extract_strided_slice %21 {offsets = [1, 0, 0], sizes = [16, 16, 4], strides = [1, 1, 1]} : vector<18x18x4xf32> to vector<16x16x4xf32>
    %29 = vector.shape_cast %28 : vector<16x16x4xf32> to vector<256x4xf32>
    %30 = vector.extract_strided_slice %21 {offsets = [1, 1, 0], sizes = [16, 16, 4], strides = [1, 1, 1]} : vector<18x18x4xf32> to vector<16x16x4xf32>
    %31 = vector.shape_cast %30 : vector<16x16x4xf32> to vector<256x4xf32>
    %32 = vector.extract_strided_slice %21 {offsets = [1, 2, 0], sizes = [16, 16, 4], strides = [1, 1, 1]} : vector<18x18x4xf32> to vector<16x16x4xf32>
    %33 = vector.shape_cast %32 : vector<16x16x4xf32> to vector<256x4xf32>
    %34 = vector.extract_strided_slice %21 {offsets = [2, 0, 0], sizes = [16, 16, 4], strides = [1, 1, 1]} : vector<18x18x4xf32> to vector<16x16x4xf32>
    %35 = vector.shape_cast %34 : vector<16x16x4xf32> to vector<256x4xf32>
    %36 = vector.extract_strided_slice %21 {offsets = [2, 1, 0], sizes = [16, 16, 4], strides = [1, 1, 1]} : vector<18x18x4xf32> to vector<16x16x4xf32>
    %37 = vector.shape_cast %36 : vector<16x16x4xf32> to vector<256x4xf32>
    %38 = vector.extract_strided_slice %21 {offsets = [2, 2, 0], sizes = [16, 16, 4], strides = [1, 1, 1]} : vector<18x18x4xf32> to vector<16x16x4xf32>
    %39 = vector.shape_cast %38 : vector<16x16x4xf32> to vector<256x4xf32>
    %40 = tpu.concatenate %23, %25, %27, %29, %31, %33, %35, %37, %39 in 1 : vector<256x4xf32>, vector<256x4xf32>, vector<256x4xf32>, vector<256x4xf32>, vector<256x4xf32>, vector<256x4xf32>, vector<256x4xf32>, vector<256x4xf32>, vector<256x4xf32> -> vector<256x36xf32>
    %41 = arith.truncf %40 : vector<256x36xf32> to vector<256x36xbf16>
    %c0_19 = arith.constant 0 : index
    %c0_20 = arith.constant 0 : index
    %42 = vector.load %arg5[%c0_19, %c0_20] : memref<36x8xbf16, #tpu.memory_space<vmem>>, vector<36x8xbf16>
    %cst_21 = arith.constant dense<0.000000e+00> : vector<256x8xf32>
    %43 = tpu.matmul %41, %42, %cst_21 {dimension_numbers = #tpu.dot_dimension_numbers<[1], [0], [0], [1], [0, 0, 1, 1], [], []>} : vector<256x36xbf16>, vector<36x8xbf16>, vector<256x8xf32> -> vector<256x8xf32>
    %c0_22 = arith.constant 0 : index
    %c0_23 = arith.constant 0 : index
    %44 = vector.load %arg6[%c0_22, %c0_23] : memref<1x8xf32, #tpu.memory_space<vmem>>, vector<1x8xf32>
    %45 = vector.broadcast %44 : vector<1x8xf32> to vector<256x8xf32>
    %46 = arith.mulf %43, %45 : vector<256x8xf32>
    %c0_24 = arith.constant 0 : index
    %c0_25 = arith.constant 0 : index
    %47 = vector.load %arg7[%c0_24, %c0_25] : memref<1x8xf32, #tpu.memory_space<vmem>>, vector<1x8xf32>
    %48 = vector.broadcast %47 : vector<1x8xf32> to vector<256x8xf32>
    %49 = arith.addf %46, %48 : vector<256x8xf32>
    %cst_26 = arith.constant 0.000000e+00 : f32
    %50 = vector.broadcast %cst_26 : f32 to vector<256x8xf32>
    %51 = arith.maximumf %49, %50 : vector<256x8xf32>
    %cst_27 = arith.constant 0.000000e+00 : f32
    %52 = vector.broadcast %cst_27 : f32 to vector<20x20x4xf32>
    %c0_28 = arith.constant 0 : index
    %c0_29 = arith.constant 0 : index
    %c0_30 = arith.constant 0 : index
    %53 = vector.load %arg16[%c0_28, %c0_29, %c0_30] : memref<20x20x4xf32, #tpu.memory_space<vmem>>, vector<20x20x4xf32>
    tpu.vector_store %arg16[%c0_28, %c0_29, %c0_30], %52 {strides = array<i32>} : memref<20x20x4xf32, #tpu.memory_space<vmem>>, vector<20x20x4xf32>,
    %54 = vector.shape_cast %16 : vector<256x4xf32> to vector<16x16x4xf32>
    %c2 = arith.constant 2 : index
    %c2_31 = arith.constant 2 : index
    %c0_32 = arith.constant 0 : index
    %55 = vector.load %arg16[%c2, %c2_31, %c0_32] : memref<20x20x4xf32, #tpu.memory_space<vmem>>, vector<16x16x4xf32>
    tpu.vector_store %arg16[%c2, %c2_31, %c0_32], %54 {strides = array<i32>} : memref<20x20x4xf32, #tpu.memory_space<vmem>>, vector<16x16x4xf32>,
    %c0_33 = arith.constant 0 : index
    %c0_34 = arith.constant 0 : index
    %c0_35 = arith.constant 0 : index
    %56 = vector.load %arg16[%c0_33, %c0_34, %c0_35] : memref<20x20x4xf32, #tpu.memory_space<vmem>>, vector<20x20x4xf32>
    %57 = vector.extract_strided_slice %56 {offsets = [0, 0, 0], sizes = [16, 16, 4], strides = [1, 1, 1]} : vector<20x20x4xf32> to vector<16x16x4xf32>
    %58 = vector.shape_cast %57 : vector<16x16x4xf32> to vector<256x4xf32>
    %59 = vector.extract_strided_slice %56 {offsets = [0, 1, 0], sizes = [16, 16, 4], strides = [1, 1, 1]} : vector<20x20x4xf32> to vector<16x16x4xf32>
    %60 = vector.shape_cast %59 : vector<16x16x4xf32> to vector<256x4xf32>
    %61 = vector.extract_strided_slice %56 {offsets = [0, 2, 0], sizes = [16, 16, 4], strides = [1, 1, 1]} : vector<20x20x4xf32> to vector<16x16x4xf32>
    %62 = vector.shape_cast %61 : vector<16x16x4xf32> to vector<256x4xf32>
    %63 = vector.extract_strided_slice %56 {offsets = [0, 3, 0], sizes = [16, 16, 4], strides = [1, 1, 1]} : vector<20x20x4xf32> to vector<16x16x4xf32>
    %64 = vector.shape_cast %63 : vector<16x16x4xf32> to vector<256x4xf32>
    %65 = vector.extract_strided_slice %56 {offsets = [0, 4, 0], sizes = [16, 16, 4], strides = [1, 1, 1]} : vector<20x20x4xf32> to vector<16x16x4xf32>
    %66 = vector.shape_cast %65 : vector<16x16x4xf32> to vector<256x4xf32>
    %67 = vector.extract_strided_slice %56 {offsets = [1, 0, 0], sizes = [16, 16, 4], strides = [1, 1, 1]} : vector<20x20x4xf32> to vector<16x16x4xf32>
    %68 = vector.shape_cast %67 : vector<16x16x4xf32> to vector<256x4xf32>
    %69 = vector.extract_strided_slice %56 {offsets = [1, 1, 0], sizes = [16, 16, 4], strides = [1, 1, 1]} : vector<20x20x4xf32> to vector<16x16x4xf32>
    %70 = vector.shape_cast %69 : vector<16x16x4xf32> to vector<256x4xf32>
    %71 = vector.extract_strided_slice %56 {offsets = [1, 2, 0], sizes = [16, 16, 4], strides = [1, 1, 1]} : vector<20x20x4xf32> to vector<16x16x4xf32>
    %72 = vector.shape_cast %71 : vector<16x16x4xf32> to vector<256x4xf32>
    %73 = vector.extract_strided_slice %56 {offsets = [1, 3, 0], sizes = [16, 16, 4], strides = [1, 1, 1]} : vector<20x20x4xf32> to vector<16x16x4xf32>
    %74 = vector.shape_cast %73 : vector<16x16x4xf32> to vector<256x4xf32>
    %75 = vector.extract_strided_slice %56 {offsets = [1, 4, 0], sizes = [16, 16, 4], strides = [1, 1, 1]} : vector<20x20x4xf32> to vector<16x16x4xf32>
    %76 = vector.shape_cast %75 : vector<16x16x4xf32> to vector<256x4xf32>
    %77 = vector.extract_strided_slice %56 {offsets = [2, 0, 0], sizes = [16, 16, 4], strides = [1, 1, 1]} : vector<20x20x4xf32> to vector<16x16x4xf32>
    %78 = vector.shape_cast %77 : vector<16x16x4xf32> to vector<256x4xf32>
    %79 = vector.extract_strided_slice %56 {offsets = [2, 1, 0], sizes = [16, 16, 4], strides = [1, 1, 1]} : vector<20x20x4xf32> to vector<16x16x4xf32>
    %80 = vector.shape_cast %79 : vector<16x16x4xf32> to vector<256x4xf32>
    %81 = vector.extract_strided_slice %56 {offsets = [2, 2, 0], sizes = [16, 16, 4], strides = [1, 1, 1]} : vector<20x20x4xf32> to vector<16x16x4xf32>
    %82 = vector.shape_cast %81 : vector<16x16x4xf32> to vector<256x4xf32>
    %83 = vector.extract_strided_slice %56 {offsets = [2, 3, 0], sizes = [16, 16, 4], strides = [1, 1, 1]} : vector<20x20x4xf32> to vector<16x16x4xf32>
    %84 = vector.shape_cast %83 : vector<16x16x4xf32> to vector<256x4xf32>
    %85 = vector.extract_strided_slice %56 {offsets = [2, 4, 0], sizes = [16, 16, 4], strides = [1, 1, 1]} : vector<20x20x4xf32> to vector<16x16x4xf32>
    %86 = vector.shape_cast %85 : vector<16x16x4xf32> to vector<256x4xf32>
    %87 = vector.extract_strided_slice %56 {offsets = [3, 0, 0], sizes = [16, 16, 4], strides = [1, 1, 1]} : vector<20x20x4xf32> to vector<16x16x4xf32>
    %88 = vector.shape_cast %87 : vector<16x16x4xf32> to vector<256x4xf32>
    %89 = vector.extract_strided_slice %56 {offsets = [3, 1, 0], sizes = [16, 16, 4], strides = [1, 1, 1]} : vector<20x20x4xf32> to vector<16x16x4xf32>
    %90 = vector.shape_cast %89 : vector<16x16x4xf32> to vector<256x4xf32>
    %91 = vector.extract_strided_slice %56 {offsets = [3, 2, 0], sizes = [16, 16, 4], strides = [1, 1, 1]} : vector<20x20x4xf32> to vector<16x16x4xf32>
    %92 = vector.shape_cast %91 : vector<16x16x4xf32> to vector<256x4xf32>
    %93 = vector.extract_strided_slice %56 {offsets = [3, 3, 0], sizes = [16, 16, 4], strides = [1, 1, 1]} : vector<20x20x4xf32> to vector<16x16x4xf32>
    %94 = vector.shape_cast %93 : vector<16x16x4xf32> to vector<256x4xf32>
    %95 = vector.extract_strided_slice %56 {offsets = [3, 4, 0], sizes = [16, 16, 4], strides = [1, 1, 1]} : vector<20x20x4xf32> to vector<16x16x4xf32>
    %96 = vector.shape_cast %95 : vector<16x16x4xf32> to vector<256x4xf32>
    %97 = vector.extract_strided_slice %56 {offsets = [4, 0, 0], sizes = [16, 16, 4], strides = [1, 1, 1]} : vector<20x20x4xf32> to vector<16x16x4xf32>
    %98 = vector.shape_cast %97 : vector<16x16x4xf32> to vector<256x4xf32>
    %99 = vector.extract_strided_slice %56 {offsets = [4, 1, 0], sizes = [16, 16, 4], strides = [1, 1, 1]} : vector<20x20x4xf32> to vector<16x16x4xf32>
    %100 = vector.shape_cast %99 : vector<16x16x4xf32> to vector<256x4xf32>
    %101 = vector.extract_strided_slice %56 {offsets = [4, 2, 0], sizes = [16, 16, 4], strides = [1, 1, 1]} : vector<20x20x4xf32> to vector<16x16x4xf32>
    %102 = vector.shape_cast %101 : vector<16x16x4xf32> to vector<256x4xf32>
    %103 = vector.extract_strided_slice %56 {offsets = [4, 3, 0], sizes = [16, 16, 4], strides = [1, 1, 1]} : vector<20x20x4xf32> to vector<16x16x4xf32>
    %104 = vector.shape_cast %103 : vector<16x16x4xf32> to vector<256x4xf32>
    %105 = vector.extract_strided_slice %56 {offsets = [4, 4, 0], sizes = [16, 16, 4], strides = [1, 1, 1]} : vector<20x20x4xf32> to vector<16x16x4xf32>
    %106 = vector.shape_cast %105 : vector<16x16x4xf32> to vector<256x4xf32>
    %107 = tpu.concatenate %58, %60, %62, %64, %66, %68, %70, %72, %74, %76, %78, %80, %82, %84, %86, %88 in 1 : vector<256x4xf32>, vector<256x4xf32>, vector<256x4xf32>, vector<256x4xf32>, vector<256x4xf32>, vector<256x4xf32>, vector<256x4xf32>, vector<256x4xf32>, vector<256x4xf32>, vector<256x4xf32>, vector<256x4xf32>, vector<256x4xf32>, vector<256x4xf32>, vector<256x4xf32>, vector<256x4xf32>, vector<256x4xf32> -> vector<256x64xf32>
    %108 = tpu.concatenate %90, %92, %94, %96, %98, %100, %102, %104, %106 in 1 : vector<256x4xf32>, vector<256x4xf32>, vector<256x4xf32>, vector<256x4xf32>, vector<256x4xf32>, vector<256x4xf32>, vector<256x4xf32>, vector<256x4xf32>, vector<256x4xf32> -> vector<256x36xf32>
    %109 = tpu.concatenate %107, %108 in 1 : vector<256x64xf32>, vector<256x36xf32> -> vector<256x100xf32>
    %110 = arith.truncf %109 : vector<256x100xf32> to vector<256x100xbf16>
    %c0_36 = arith.constant 0 : index
    %c0_37 = arith.constant 0 : index
    %111 = vector.load %arg8[%c0_36, %c0_37] : memref<100x8xbf16, #tpu.memory_space<vmem>>, vector<100x8xbf16>
    %cst_38 = arith.constant dense<0.000000e+00> : vector<256x8xf32>
    %112 = tpu.matmul %110, %111, %cst_38 {dimension_numbers = #tpu.dot_dimension_numbers<[1], [0], [0], [1], [0, 0, 1, 1], [], []>} : vector<256x100xbf16>, vector<100x8xbf16>, vector<256x8xf32> -> vector<256x8xf32>
    %c0_39 = arith.constant 0 : index
    %c0_40 = arith.constant 0 : index
    %113 = vector.load %arg9[%c0_39, %c0_40] : memref<1x8xf32, #tpu.memory_space<vmem>>, vector<1x8xf32>
    %114 = vector.broadcast %113 : vector<1x8xf32> to vector<256x8xf32>
    %115 = arith.mulf %112, %114 : vector<256x8xf32>
    %c0_41 = arith.constant 0 : index
    %c0_42 = arith.constant 0 : index
    %116 = vector.load %arg10[%c0_41, %c0_42] : memref<1x8xf32, #tpu.memory_space<vmem>>, vector<1x8xf32>
    %117 = vector.broadcast %116 : vector<1x8xf32> to vector<256x8xf32>
    %118 = arith.addf %115, %117 : vector<256x8xf32>
    %cst_43 = arith.constant 0.000000e+00 : f32
    %119 = vector.broadcast %cst_43 : f32 to vector<256x8xf32>
    %120 = arith.maximumf %118, %119 : vector<256x8xf32>
    %cst_44 = arith.constant 0xFF800000 : f32
    %121 = vector.broadcast %cst_44 : f32 to vector<18x18x4xf32>
    %c0_45 = arith.constant 0 : index
    %c0_46 = arith.constant 0 : index
    %c0_47 = arith.constant 0 : index
    %122 = vector.load %arg17[%c0_45, %c0_46, %c0_47] : memref<18x18x4xf32, #tpu.memory_space<vmem>>, vector<18x18x4xf32>
    tpu.vector_store %arg17[%c0_45, %c0_46, %c0_47], %121 {strides = array<i32>} : memref<18x18x4xf32, #tpu.memory_space<vmem>>, vector<18x18x4xf32>,
    %c1_48 = arith.constant 1 : index
    %c1_49 = arith.constant 1 : index
    %c0_50 = arith.constant 0 : index
    %123 = vector.load %arg17[%c1_48, %c1_49, %c0_50] : memref<18x18x4xf32, #tpu.memory_space<vmem>>, vector<16x16x4xf32>
    tpu.vector_store %arg17[%c1_48, %c1_49, %c0_50], %1 {strides = array<i32>} : memref<18x18x4xf32, #tpu.memory_space<vmem>>, vector<16x16x4xf32>,
    %c0_51 = arith.constant 0 : index
    %c0_52 = arith.constant 0 : index
    %c0_53 = arith.constant 0 : index
    %124 = vector.load %arg17[%c0_51, %c0_52, %c0_53] : memref<18x18x4xf32, #tpu.memory_space<vmem>>, vector<18x18x4xf32>
    %125 = vector.extract_strided_slice %124 {offsets = [0, 0, 0], sizes = [16, 16, 4], strides = [1, 1, 1]} : vector<18x18x4xf32> to vector<16x16x4xf32>
    %126 = vector.extract_strided_slice %124 {offsets = [0, 0, 0], sizes = [16, 16, 4], strides = [1, 1, 1]} : vector<18x18x4xf32> to vector<16x16x4xf32>
    %127 = arith.maximumf %125, %126 : vector<16x16x4xf32>
    %128 = vector.extract_strided_slice %124 {offsets = [0, 1, 0], sizes = [16, 16, 4], strides = [1, 1, 1]} : vector<18x18x4xf32> to vector<16x16x4xf32>
    %129 = arith.maximumf %127, %128 : vector<16x16x4xf32>
    %130 = vector.extract_strided_slice %124 {offsets = [0, 2, 0], sizes = [16, 16, 4], strides = [1, 1, 1]} : vector<18x18x4xf32> to vector<16x16x4xf32>
    %131 = arith.maximumf %129, %130 : vector<16x16x4xf32>
    %132 = vector.extract_strided_slice %124 {offsets = [1, 0, 0], sizes = [16, 16, 4], strides = [1, 1, 1]} : vector<18x18x4xf32> to vector<16x16x4xf32>
    %133 = arith.maximumf %131, %132 : vector<16x16x4xf32>
    %134 = vector.extract_strided_slice %124 {offsets = [1, 1, 0], sizes = [16, 16, 4], strides = [1, 1, 1]} : vector<18x18x4xf32> to vector<16x16x4xf32>
    %135 = arith.maximumf %133, %134 : vector<16x16x4xf32>
    %136 = vector.extract_strided_slice %124 {offsets = [1, 2, 0], sizes = [16, 16, 4], strides = [1, 1, 1]} : vector<18x18x4xf32> to vector<16x16x4xf32>
    %137 = arith.maximumf %135, %136 : vector<16x16x4xf32>
    %138 = vector.extract_strided_slice %124 {offsets = [2, 0, 0], sizes = [16, 16, 4], strides = [1, 1, 1]} : vector<18x18x4xf32> to vector<16x16x4xf32>
    %139 = arith.maximumf %137, %138 : vector<16x16x4xf32>
    %140 = vector.extract_strided_slice %124 {offsets = [2, 1, 0], sizes = [16, 16, 4], strides = [1, 1, 1]} : vector<18x18x4xf32> to vector<16x16x4xf32>
    %141 = arith.maximumf %139, %140 : vector<16x16x4xf32>
    %142 = vector.extract_strided_slice %124 {offsets = [2, 2, 0], sizes = [16, 16, 4], strides = [1, 1, 1]} : vector<18x18x4xf32> to vector<16x16x4xf32>
    %143 = arith.maximumf %141, %142 : vector<16x16x4xf32>
    %144 = vector.shape_cast %143 : vector<16x16x4xf32> to vector<256x4xf32>
    %145 = arith.truncf %144 : vector<256x4xf32> to vector<256x4xbf16>
    %c0_54 = arith.constant 0 : index
    %c0_55 = arith.constant 0 : index
    %146 = vector.load %arg11[%c0_54, %c0_55] : memref<4x8xbf16, #tpu.memory_space<vmem>>, vector<4x8xbf16>
    %cst_56 = arith.constant dense<0.000000e+00> : vector<256x8xf32>
    %147 = tpu.matmul %145, %146, %cst_56 {dimension_numbers = #tpu.dot_dimension_numbers<[1], [0], [0], [1], [0, 0, 1, 1], [], []>} : vector<256x4xbf16>, vector<4x8xbf16>, vector<256x8xf32> -> vector<256x8xf32>
    %c0_57 = arith.constant 0 : index
    %c0_58 = arith.constant 0 : index
    %148 = vector.load %arg12[%c0_57, %c0_58] : memref<1x8xf32, #tpu.memory_space<vmem>>, vector<1x8xf32>
    %149 = vector.broadcast %148 : vector<1x8xf32> to vector<256x8xf32>
    %150 = arith.mulf %147, %149 : vector<256x8xf32>
    %c0_59 = arith.constant 0 : index
    %c0_60 = arith.constant 0 : index
    %151 = vector.load %arg13[%c0_59, %c0_60] : memref<1x8xf32, #tpu.memory_space<vmem>>, vector<1x8xf32>
    %152 = vector.broadcast %151 : vector<1x8xf32> to vector<256x8xf32>
    %153 = arith.addf %150, %152 : vector<256x8xf32>
    %cst_61 = arith.constant 0.000000e+00 : f32
    %154 = vector.broadcast %cst_61 : f32 to vector<256x8xf32>
    %155 = arith.maximumf %153, %154 : vector<256x8xf32>
    %156 = tpu.concatenate %14, %51, %120, %155 in 1 : vector<256x8xf32>, vector<256x8xf32>, vector<256x8xf32>, vector<256x8xf32> -> vector<256x32xf32>
    %c0_62 = arith.constant 0 : index
    %c0_63 = arith.constant 0 : index
    %157 = vector.load %arg14[%c0_62, %c0_63] : memref<256x32xf32, #tpu.memory_space<vmem>>, vector<256x32xf32>
    tpu.vector_store %arg14[%c0_62, %c0_63], %156 {strides = array<i32>} : memref<256x32xf32, #tpu.memory_space<vmem>>, vector<256x32xf32>,
    return
  }
  func.func @transform_0(%arg0: i32) -> (i32, i32, i32, i32) {
    %c0_i32 = arith.constant 0 : i32
    %c0_i32_0 = arith.constant 0 : i32
    %c0_i32_1 = arith.constant 0 : i32
    %c0_i32_2 = arith.constant 0 : i32
    return %arg0, %c0_i32, %c0_i32_0, %c0_i32_1 : i32, i32, i32, i32
  }
  func.func @transform_1(%arg0: i32) -> (i32, i32) {
    %c0_i32 = arith.constant 0 : i32
    %c0_i32_0 = arith.constant 0 : i32
    %c0_i32_1 = arith.constant 0 : i32
    return %c0_i32, %c0_i32_0 : i32, i32
  }
  func.func @transform_2(%arg0: i32) -> (i32, i32) {
    %c0_i32 = arith.constant 0 : i32
    %c0_i32_0 = arith.constant 0 : i32
    %c0_i32_1 = arith.constant 0 : i32
    return %c0_i32, %c0_i32_0 : i32, i32
  }
  func.func @transform_3(%arg0: i32) -> (i32, i32) {
    %c0_i32 = arith.constant 0 : i32
    %c0_i32_0 = arith.constant 0 : i32
    %c0_i32_1 = arith.constant 0 : i32
    return %c0_i32, %c0_i32_0 : i32, i32
  }
  func.func @transform_4(%arg0: i32) -> (i32, i32) {
    %c0_i32 = arith.constant 0 : i32
    %c0_i32_0 = arith.constant 0 : i32
    %c0_i32_1 = arith.constant 0 : i32
    return %c0_i32, %c0_i32_0 : i32, i32
  }
  func.func @transform_5(%arg0: i32) -> (i32, i32) {
    %c0_i32 = arith.constant 0 : i32
    %c0_i32_0 = arith.constant 0 : i32
    %c0_i32_1 = arith.constant 0 : i32
    return %c0_i32, %c0_i32_0 : i32, i32
  }
  func.func @transform_6(%arg0: i32) -> (i32, i32) {
    %c0_i32 = arith.constant 0 : i32
    %c0_i32_0 = arith.constant 0 : i32
    %c0_i32_1 = arith.constant 0 : i32
    return %c0_i32, %c0_i32_0 : i32, i32
  }
  func.func @transform_7(%arg0: i32) -> (i32, i32) {
    %c0_i32 = arith.constant 0 : i32
    %c0_i32_0 = arith.constant 0 : i32
    %c0_i32_1 = arith.constant 0 : i32
    return %c0_i32, %c0_i32_0 : i32, i32
  }
  func.func @transform_8(%arg0: i32) -> (i32, i32) {
    %c0_i32 = arith.constant 0 : i32
    %c0_i32_0 = arith.constant 0 : i32
    %c0_i32_1 = arith.constant 0 : i32
    return %c0_i32, %c0_i32_0 : i32, i32
  }
  func.func @transform_9(%arg0: i32) -> (i32, i32) {
    %c0_i32 = arith.constant 0 : i32
    %c0_i32_0 = arith.constant 0 : i32
    %c0_i32_1 = arith.constant 0 : i32
    return %c0_i32, %c0_i32_0 : i32, i32
  }
  func.func @transform_10(%arg0: i32) -> (i32, i32) {
    %c0_i32 = arith.constant 0 : i32
    %c0_i32_0 = arith.constant 0 : i32
    %c0_i32_1 = arith.constant 0 : i32
    return %c0_i32, %c0_i32_0 : i32, i32
  }
  func.func @transform_11(%arg0: i32) -> (i32, i32) {
    %c0_i32 = arith.constant 0 : i32
    %c0_i32_0 = arith.constant 0 : i32
    %c0_i32_1 = arith.constant 0 : i32
    return %c0_i32, %c0_i32_0 : i32, i32
  }
  func.func @transform_12(%arg0: i32) -> (i32, i32) {
    %c0_i32 = arith.constant 0 : i32
    %c0_i32_0 = arith.constant 0 : i32
    %c0_i32_1 = arith.constant 0 : i32
    return %c0_i32, %c0_i32_0 : i32, i32
  }
  func.func @transform_13(%arg0: i32) -> (i32, i32) {
    %c0_i32 = arith.constant 0 : i32
    %c0_i32_0 = arith.constant 0 : i32
    return %arg0, %c0_i32 : i32, i32
  }
}

</mosaic_0001>

<llo_original>
// kernel: inception_forward.1
$region0: #{inception_forward.1}
  #allocation0 [shape = 'u32[]', space=smem, size = 0x4, offset = 0x4, fixed_abs, tag = 'smem constant byte address 0x4 - core index']
  #allocation1 [shape = 'u32[144,128]{1,0:T(1,128)}', space=vmem, size = 0x12000, scoped, tag = 'internal scratch']
  #allocation2 [shape = 'f32[18,18,4]{2,1,0:T(8,128)}', space=vmem, size = 0x36000, scoped, tag = 'scratch operand']
  #allocation3 [shape = 'f32[20,20,4]{2,1,0:T(8,128)}', space=vmem, size = 0x3c000, scoped, tag = 'scratch operand']
  #allocation4 [shape = 'f32[18,18,4]{2,1,0:T(8,128)}', space=vmem, size = 0x36000, scoped, tag = 'scratch operand']
  %s0 = inlined_call_operand.vmem [shape: f32[2,16,16,4], index: 0, kind: input, shape index: {}]
  %s1 = inlined_call_operand.vmem [shape: bf16[4,16], index: 1, kind: input, shape index: {}]
  %s2 = inlined_call_operand.vmem [shape: f32[1,16], index: 2, kind: input, shape index: {}]
  %s3 = inlined_call_operand.vmem [shape: f32[1,16], index: 3, kind: input, shape index: {}]
  %s4 = inlined_call_operand.vmem [shape: bf16[36,8], index: 4, kind: input, shape index: {}]
  %s5 = inlined_call_operand.vmem [shape: f32[1,8], index: 5, kind: input, shape index: {}]
  %s6 = inlined_call_operand.vmem [shape: f32[1,8], index: 6, kind: input, shape index: {}]
  %s7 = inlined_call_operand.vmem [shape: bf16[100,8], index: 7, kind: input, shape index: {}]
  %s8 = inlined_call_operand.vmem [shape: f32[1,8], index: 8, kind: input, shape index: {}]
  %s9 = inlined_call_operand.vmem [shape: f32[1,8], index: 9, kind: input, shape index: {}]
  %s10 = inlined_call_operand.vmem [shape: bf16[4,8], index: 10, kind: input, shape index: {}]
  %s11 = inlined_call_operand.vmem [shape: f32[1,8], index: 11, kind: input, shape index: {}]
  %s12 = inlined_call_operand.vmem [shape: f32[1,8], index: 12, kind: input, shape index: {}]
  %s13 = inlined_call_operand.hbm [shape: f32[512,32], index: 13, kind: output, shape index: {}]
  %s14 = sld [smem:[#allocation0]]
  $region85: #{inception_forward.1} parent=0
    _
  %s16 = ssub.s32 1, %s14
  %s17 = scalar_select 0, %s16, %s14
  $region1: #{inception_forward.1} parent=0
    #allocation5 [shape = 'u8[262144]{0}', space=vmem, size = 0x40000, scoped, tag = 'output window, operand 0']
    #allocation6 [shape = 's32[2]{0}', space=sflag, size = 0x8, scoped, tag = 'scoped memory for inception_forward.1']
    %18 = vsyncpa [#allocation6], 0
    %s19 = scalar_lea.sflag [#allocation6], 1
    %20 = vsyncpa %s19, 0
    loop: start=0, step=1, limit=4
    $region2: #{inception_forward.1} parent=1 // loop_pre_header
      _
    $region3: #{inception_forward.1} parent=1 // loop_header
      %s22 = sphi 0, %s26
      %p23 = scmp.ge.s32.totalorder %s22, 4
      %s32 = sphi 0, %s34
      %s35 = sphi 0, %s32
      %s36 = sphi 0, %s35
      %s52 = sphi 0, %s36
      %s56 = sphi 0, %s56
      %s58 = sphi 0, %s56
      %s59 = sphi 0, %s58
      %s73 = sphi 0, %s59
      %s77 = sphi 0, %s77
      %s79 = sphi 0, %s77
      %s80 = sphi 0, %s79
      %s94 = sphi 0, %s80
      %s98 = sphi 0, %s98
      %s100 = sphi 0, %s98
      %s101 = sphi 0, %s100
      %s115 = sphi 0, %s101
      %s119 = sphi 0, %s119
      %s121 = sphi 0, %s119
      %s122 = sphi 0, %s121
      %s136 = sphi 0, %s122
      %s140 = sphi 0, %s140
      %s142 = sphi 0, %s140
      %s143 = sphi 0, %s142
      %s157 = sphi 0, %s143
      %s161 = sphi 0, %s161
      %s163 = sphi 0, %s161
      %s164 = sphi 0, %s163
      %s178 = sphi 0, %s164
      %s182 = sphi 0, %s182
      %s184 = sphi 0, %s182
      %s185 = sphi 0, %s184
      %s199 = sphi 0, %s185
      %s203 = sphi 0, %s203
      %s205 = sphi 0, %s203
      %s206 = sphi 0, %s205
      %s220 = sphi 0, %s206
      %s224 = sphi 0, %s224
      %s226 = sphi 0, %s224
      %s227 = sphi 0, %s226
      %s241 = sphi 0, %s227
      %s245 = sphi 0, %s245
      %s247 = sphi 0, %s245
      %s248 = sphi 0, %s247
      %s262 = sphi 0, %s248
      %s266 = sphi 0, %s266
      %s268 = sphi 0, %s266
      %s269 = sphi 0, %s268
      %s283 = sphi 0, %s269
      %s287 = sphi 0, %s287
      %s289 = sphi 0, %s287
      %s290 = sphi 0, %s289
      %s304 = sphi 0, %s290
      %s310 = sphi 0, %s312
      %s313 = sphi 0, %s310
      %s314 = sphi 0, %s313
      %s330 = sphi 0, %s314
    $region4: #{inception_forward.1} parent=1 // loop_header_branch
      %25 = sbr.rel (%p23) target = $region8
    $region5: #{inception_forward.1} parent=1 // loop_body
      %s27 = ssub.s32 %s22, 1
      %s28 = ssub.s32 %s22, 2
      %s29 = sadd.s32 %s22, 1
      %s30 = ssub.s32 %s22, %s29
      %p31 = scmp.eq.s32.totalorder %s30, 0
      %s33 = sadd.s32 %s32, 1
      %s34 = scalar_select %p31, %s32, %s33
      %p37 = pneg %p31
      %p38 = scmp.eq.s32.totalorder %s22, 1
      %p39 = por %p37, %p38
      %p40 = scmp.ne.s32.totalorder %s32, %s35
      %p41 = scmp.eq.s32.totalorder %s22, 0
      %p42 = por %p40, %p41
      %p43 = scmp.ne.s32.totalorder %s32, %s35
      %p44 = scmp.eq.s32.totalorder %s27, 1
      %p45 = por %p43, %p44
      %p46 = scmp.ne.s32.totalorder %s35, %s36
      %p47 = scmp.eq.s32.totalorder %s27, 0
      %p48 = por %p46, %p47
      %p49 = scmp.ne.s32.totalorder %s35, %s36
      %p50 = scmp.eq.s32.totalorder %s28, 1
      %p51 = por %p49, %p50
      %p53 = scmp.ne.s32.totalorder %s36, %s52
      %p54 = scmp.eq.s32.totalorder %s28, 0
      %p55 = por %p53, %p54
      %s57 = sadd.s32 %s56, 1
      %p60 = scmp.eq.s32.totalorder %s22, 1
      %p61 = scmp.ne.s32.totalorder %s56, %s58
      %p62 = scmp.eq.s32.totalorder %s22, 0
      %p63 = por %p61, %p62
      %p64 = scmp.ne.s32.totalorder %s56, %s58
      %p65 = scmp.eq.s32.totalorder %s27, 1
      %p66 = por %p64, %p65
      %p67 = scmp.ne.s32.totalorder %s58, %s59
      %p68 = scmp.eq.s32.totalorder %s27, 0
      %p69 = por %p67, %p68
      %p70 = scmp.ne.s32.totalorder %s58, %s59
      %p71 = scmp.eq.s32.totalorder %s28, 1
      %p72 = por %p70, %p71
      %p74 = scmp.ne.s32.totalorder %s59, %s73
      %p75 = scmp.eq.s32.totalorder %s28, 0
      %p76 = por %p74, %p75
      %s78 = sadd.s32 %s77, 1
      %p81 = scmp.eq.s32.totalorder %s22, 1
      %p82 = scmp.ne.s32.totalorder %s77, %s79
      %p83 = scmp.eq.s32.totalorder %s22, 0
      %p84 = por %p82, %p83
      %p85 = scmp.ne.s32.totalorder %s77, %s79
      %p86 = scmp.eq.s32.totalorder %s27, 1
      %p87 = por %p85, %p86
      %p88 = scmp.ne.s32.totalorder %s79, %s80
      %p89 = scmp.eq.s32.totalorder %s27, 0
      %p90 = por %p88, %p89
      %p91 = scmp.ne.s32.totalorder %s79, %s80
      %p92 = scmp.eq.s32.totalorder %s28, 1
      %p93 = por %p91, %p92
      %p95 = scmp.ne.s32.totalorder %s80, %s94
      %p96 = scmp.eq.s32.totalorder %s28, 0
      %p97 = por %p95, %p96
      %s99 = sadd.s32 %s98, 1
      %p102 = scmp.eq.s32.totalorder %s22, 1
      %p103 = scmp.ne.s32.totalorder %s98, %s100
      %p104 = scmp.eq.s32.totalorder %s22, 0
      %p105 = por %p103, %p104
      %p106 = scmp.ne.s32.totalorder %s98, %s100
      %p107 = scmp.eq.s32.totalorder %s27, 1
      %p108 = por %p106, %p107
      %p109 = scmp.ne.s32.totalorder %s100, %s101
      %p110 = scmp.eq.s32.totalorder %s27, 0
      %p111 = por %p109, %p110
      %p112 = scmp.ne.s32.totalorder %s100, %s101
      %p113 = scmp.eq.s32.totalorder %s28, 1
      %p114 = por %p112, %p113
      %p116 = scmp.ne.s32.totalorder %s101, %s115
      %p117 = scmp.eq.s32.totalorder %s28, 0
      %p118 = por %p116, %p117
      %s120 = sadd.s32 %s119, 1
      %p123 = scmp.eq.s32.totalorder %s22, 1
      %p124 = scmp.ne.s32.totalorder %s119, %s121
      %p125 = scmp.eq.s32.totalorder %s22, 0
      %p126 = por %p124, %p125
      %p127 = scmp.ne.s32.totalorder %s119, %s121
      %p128 = scmp.eq.s32.totalorder %s27, 1
      %p129 = por %p127, %p128
      %p130 = scmp.ne.s32.totalorder %s121, %s122
      %p131 = scmp.eq.s32.totalorder %s27, 0
      %p132 = por %p130, %p131
      %p133 = scmp.ne.s32.totalorder %s121, %s122
      %p134 = scmp.eq.s32.totalorder %s28, 1
      %p135 = por %p133, %p134
      %p137 = scmp.ne.s32.totalorder %s122, %s136
      %p138 = scmp.eq.s32.totalorder %s28, 0
      %p139 = por %p137, %p138
      %s141 = sadd.s32 %s140, 1
      %p144 = scmp.eq.s32.totalorder %s22, 1
      %p145 = scmp.ne.s32.totalorder %s140, %s142
      %p146 = scmp.eq.s32.totalorder %s22, 0
      %p147 = por %p145, %p146
      %p148 = scmp.ne.s32.totalorder %s140, %s142
      %p149 = scmp.eq.s32.totalorder %s27, 1
      %p150 = por %p148, %p149
      %p151 = scmp.ne.s32.totalorder %s142, %s143
      %p152 = scmp.eq.s32.totalorder %s27, 0
      %p153 = por %p151, %p152
      %p154 = scmp.ne.s32.totalorder %s142, %s143
      %p155 = scmp.eq.s32.totalorder %s28, 1
      %p156 = por %p154, %p155
      %p158 = scmp.ne.s32.totalorder %s143, %s157
      %p159 = scmp.eq.s32.totalorder %s28, 0
      %p160 = por %p158, %p159
      %s162 = sadd.s32 %s161, 1
      %p165 = scmp.eq.s32.totalorder %s22, 1
      %p166 = scmp.ne.s32.totalorder %s161, %s163
      %p167 = scmp.eq.s32.totalorder %s22, 0
      %p168 = por %p166, %p167
      %p169 = scmp.ne.s32.totalorder %s161, %s163
      %p170 = scmp.eq.s32.totalorder %s27, 1
      %p171 = por %p169, %p170
      %p172 = scmp.ne.s32.totalorder %s163, %s164
      %p173 = scmp.eq.s32.totalorder %s27, 0
      %p174 = por %p172, %p173
      %p175 = scmp.ne.s32.totalorder %s163, %s164
      %p176 = scmp.eq.s32.totalorder %s28, 1
      %p177 = por %p175, %p176
      %p179 = scmp.ne.s32.totalorder %s164, %s178
      %p180 = scmp.eq.s32.totalorder %s28, 0
      %p181 = por %p179, %p180
      %s183 = sadd.s32 %s182, 1
      %p186 = scmp.eq.s32.totalorder %s22, 1
      %p187 = scmp.ne.s32.totalorder %s182, %s184
      %p188 = scmp.eq.s32.totalorder %s22, 0
      %p189 = por %p187, %p188
      %p190 = scmp.ne.s32.totalorder %s182, %s184
      %p191 = scmp.eq.s32.totalorder %s27, 1
      %p192 = por %p190, %p191
      %p193 = scmp.ne.s32.totalorder %s184, %s185
      %p194 = scmp.eq.s32.totalorder %s27, 0
      %p195 = por %p193, %p194
      %p196 = scmp.ne.s32.totalorder %s184, %s185
      %p197 = scmp.eq.s32.totalorder %s28, 1
      %p198 = por %p196, %p197
      %p200 = scmp.ne.s32.totalorder %s185, %s199
      %p201 = scmp.eq.s32.totalorder %s28, 0
      %p202 = por %p200, %p201
      %s204 = sadd.s32 %s203, 1
      %p207 = scmp.eq.s32.totalorder %s22, 1
      %p208 = scmp.ne.s32.totalorder %s203, %s205
      %p209 = scmp.eq.s32.totalorder %s22, 0
      %p210 = por %p208, %p209
      %p211 = scmp.ne.s32.totalorder %s203, %s205
      %p212 = scmp.eq.s32.totalorder %s27, 1
      %p213 = por %p211, %p212
      %p214 = scmp.ne.s32.totalorder %s205, %s206
      %p215 = scmp.eq.s32.totalorder %s27, 0
      %p216 = por %p214, %p215
      %p217 = scmp.ne.s32.totalorder %s205, %s206
      %p218 = scmp.eq.s32.totalorder %s28, 1
      %p219 = por %p217, %p218
      %p221 = scmp.ne.s32.totalorder %s206, %s220
      %p222 = scmp.eq.s32.totalorder %s28, 0
      %p223 = por %p221, %p222
      %s225 = sadd.s32 %s224, 1
      %p228 = scmp.eq.s32.totalorder %s22, 1
      %p229 = scmp.ne.s32.totalorder %s224, %s226
      %p230 = scmp.eq.s32.totalorder %s22, 0
      %p231 = por %p229, %p230
      %p232 = scmp.ne.s32.totalorder %s224, %s226
      %p233 = scmp.eq.s32.totalorder %s27, 1
      %p234 = por %p232, %p233
      %p235 = scmp.ne.s32.totalorder %s226, %s227
      %p236 = scmp.eq.s32.totalorder %s27, 0
      %p237 = por %p235, %p236
      %p238 = scmp.ne.s32.totalorder %s226, %s227
      %p239 = scmp.eq.s32.totalorder %s28, 1
      %p240 = por %p238, %p239
      %p242 = scmp.ne.s32.totalorder %s227, %s241
      %p243 = scmp.eq.s32.totalorder %s28, 0
      %p244 = por %p242, %p243
      %s246 = sadd.s32 %s245, 1
      %p249 = scmp.eq.s32.totalorder %s22, 1
      %p250 = scmp.ne.s32.totalorder %s245, %s247
      %p251 = scmp.eq.s32.totalorder %s22, 0
      %p252 = por %p250, %p251
      %p253 = scmp.ne.s32.totalorder %s245, %s247
      %p254 = scmp.eq.s32.totalorder %s27, 1
      %p255 = por %p253, %p254
      %p256 = scmp.ne.s32.totalorder %s247, %s248
      %p257 = scmp.eq.s32.totalorder %s27, 0
      %p258 = por %p256, %p257
      %p259 = scmp.ne.s32.totalorder %s247, %s248
      %p260 = scmp.eq.s32.totalorder %s28, 1
      %p261 = por %p259, %p260
      %p263 = scmp.ne.s32.totalorder %s248, %s262
      %p264 = scmp.eq.s32.totalorder %s28, 0
      %p265 = por %p263, %p264
      %s267 = sadd.s32 %s266, 1
      %p270 = scmp.eq.s32.totalorder %s22, 1
      %p271 = scmp.ne.s32.totalorder %s266, %s268
      %p272 = scmp.eq.s32.totalorder %s22, 0
      %p273 = por %p271, %p272
      %p274 = scmp.ne.s32.totalorder %s266, %s268
      %p275 = scmp.eq.s32.totalorder %s27, 1
      %p276 = por %p274, %p275
      %p277 = scmp.ne.s32.totalorder %s268, %s269
      %p278 = scmp.eq.s32.totalorder %s27, 0
      %p279 = por %p277, %p278
      %p280 = scmp.ne.s32.totalorder %s268, %s269
      %p281 = scmp.eq.s32.totalorder %s28, 1
      %p282 = por %p280, %p281
      %p284 = scmp.ne.s32.totalorder %s269, %s283
      %p285 = scmp.eq.s32.totalorder %s28, 0
      %p286 = por %p284, %p285
      %s288 = sadd.s32 %s287, 1
      %p291 = scmp.eq.s32.totalorder %s22, 1
      %p292 = scmp.ne.s32.totalorder %s287, %s289
      %p293 = scmp.eq.s32.totalorder %s22, 0
      %p294 = por %p292, %p293
      %p295 = scmp.ne.s32.totalorder %s287, %s289
      %p296 = scmp.eq.s32.totalorder %s27, 1
      %p297 = por %p295, %p296
      %p298 = scmp.ne.s32.totalorder %s289, %s290
      %p299 = scmp.eq.s32.totalorder %s27, 0
      %p300 = por %p298, %p299
      %p301 = scmp.ne.s32.totalorder %s289, %s290
      %p302 = scmp.eq.s32.totalorder %s28, 1
      %p303 = por %p301, %p302
      %p305 = scmp.ne.s32.totalorder %s290, %s304
      %p306 = scmp.eq.s32.totalorder %s28, 0
      %p307 = por %p305, %p306
      %s308 = ssub.s32 %s22, %s29
      %p309 = scmp.eq.s32.totalorder %s308, 0
      %s311 = sadd.s32 %s310, 1
      %s312 = scalar_select %p309, %s310, %s311
      %p315 = pneg %p309
      %p316 = scmp.eq.s32.totalorder %s22, 1
      %p317 = por %p315, %p316
      %p318 = scmp.ne.s32.totalorder %s310, %s313
      %p319 = scmp.eq.s32.totalorder %s22, 0
      %p320 = por %p318, %p319
      %p321 = scmp.ne.s32.totalorder %s310, %s313
      %p322 = scmp.eq.s32.totalorder %s27, 1
      %p323 = por %p321, %p322
      %p324 = scmp.ne.s32.totalorder %s313, %s314
      %p325 = scmp.eq.s32.totalorder %s27, 0
      %p326 = por %p324, %p325
      %p327 = scmp.ne.s32.totalorder %s313, %s314
      %p328 = scmp.eq.s32.totalorder %s28, 1
      %p329 = por %p327, %p328
      %p331 = scmp.ne.s32.totalorder %s314, %s330
      %p332 = scmp.eq.s32.totalorder %s28, 0
      %p333 = por %p331, %p332
      %p334 = scmp.le.s32.totalorder 1, %s22
      %p335 = scmp.lt.s32.totalorder %s22, 3
      %p336 = pnand %p334, %p335
      %p337 = pneg %p336
      // Predicated region
      $region9: #{inception_forward.1} parent=5 // pred_check
        _
      $region10: #{inception_forward.1} parent=5 // pred_check_branch
        %339 = sbr.rel (%p336) target = $region12
      $region11: #{inception_forward.1} parent=5 // pred_region
        %s340 = ssub.s32 %s22, 1
        // Predicated region
        $region13: #{inception_forward.1} parent=11 // pred_check
          %p341 = pneg %p69
        $region14: #{inception_forward.1} parent=11 // pred_check_branch
          %343 = sbr.rel (%p341) target = $region16
        $region15: #{inception_forward.1} parent=11 // pred_region
          _
        $region16: #{inception_forward.1} parent=11 // pred_fallthru
          _
        // Predicated region
        $region17: #{inception_forward.1} parent=11 // pred_check
          %p344 = pneg %p90
        $region18: #{inception_forward.1} parent=11 // pred_check_branch
          %346 = sbr.rel (%p344) target = $region20
        $region19: #{inception_forward.1} parent=11 // pred_region
          _
        $region20: #{inception_forward.1} parent=11 // pred_fallthru
          _
        // Predicated region
        $region21: #{inception_forward.1} parent=11 // pred_check
          %p347 = pneg %p111
        $region22: #{inception_forward.1} parent=11 // pred_check_branch
          %349 = sbr.rel (%p347) target = $region24
        $region23: #{inception_forward.1} parent=11 // pred_region
          _
        $region24: #{inception_forward.1} parent=11 // pred_fallthru
          _
        // Predicated region
        $region25: #{inception_forward.1} parent=11 // pred_check
          %p350 = pneg %p132
        $region26: #{inception_forward.1} parent=11 // pred_check_branch
          %352 = sbr.rel (%p350) target = $region28
        $region27: #{inception_forward.1} parent=11 // pred_region
          _
        $region28: #{inception_forward.1} parent=11 // pred_fallthru
          _
        // Predicated region
        $region29: #{inception_forward.1} parent=11 // pred_check
          %p353 = pneg %p153
        $region30: #{inception_forward.1} parent=11 // pred_check_branch
          %355 = sbr.rel (%p353) target = $region32
        $region31: #{inception_forward.1} parent=11 // pred_region
          _
        $region32: #{inception_forward.1} parent=11 // pred_fallthru
          _
        // Predicated region
        $region33: #{inception_forward.1} parent=11 // pred_check
          %p356 = pneg %p174
        $region34: #{inception_forward.1} parent=11 // pred_check_branch
          %358 = sbr.rel (%p356) target = $region36
        $region35: #{inception_forward.1} parent=11 // pred_region
          _
        $region36: #{inception_forward.1} parent=11 // pred_fallthru
          _
        // Predicated region
        $region37: #{inception_forward.1} parent=11 // pred_check
          %p359 = pneg %p195
        $region38: #{inception_forward.1} parent=11 // pred_check_branch
          %361 = sbr.rel (%p359) target = $region40
        $region39: #{inception_forward.1} parent=11 // pred_region
          _
        $region40: #{inception_forward.1} parent=11 // pred_fallthru
          _
        // Predicated region
        $region41: #{inception_forward.1} parent=11 // pred_check
          %p362 = pneg %p216
        $region42: #{inception_forward.1} parent=11 // pred_check_branch
          %364 = sbr.rel (%p362) target = $region44
        $region43: #{inception_forward.1} parent=11 // pred_region
          _
        $region44: #{inception_forward.1} parent=11 // pred_fallthru
          _
        // Predicated region
        $region45: #{inception_forward.1} parent=11 // pred_check
          %p365 = pneg %p237
        $region46: #{inception_forward.1} parent=11 // pred_check_branch
          %367 = sbr.rel (%p365) target = $region48
        $region47: #{inception_forward.1} parent=11 // pred_region
          _
        $region48: #{inception_forward.1} parent=11 // pred_fallthru
          _
        // Predicated region
        $region49: #{inception_forward.1} parent=11 // pred_check
          %p368 = pneg %p258
        $region50: #{inception_forward.1} parent=11 // pred_check_branch
          %370 = sbr.rel (%p368) target = $region52
        $region51: #{inception_forward.1} parent=11 // pred_region
          _
        $region52: #{inception_forward.1} parent=11 // pred_fallthru
          _
        // Predicated region
        $region53: #{inception_forward.1} parent=11 // pred_check
          %p371 = pneg %p279
        $region54: #{inception_forward.1} parent=11 // pred_check_branch
          %373 = sbr.rel (%p371) target = $region56
        $region55: #{inception_forward.1} parent=11 // pred_region
          _
        $region56: #{inception_forward.1} parent=11 // pred_fallthru
          _
        // Predicated region
        $region57: #{inception_forward.1} parent=11 // pred_check
          %p374 = pneg %p300
        $region58: #{inception_forward.1} parent=11 // pred_check_branch
          %376 = sbr.rel (%p374) target = $region60
        $region59: #{inception_forward.1} parent=11 // pred_region
          _
        $region60: #{inception_forward.1} parent=11 // pred_fallthru
          _
      $region12: #{inception_forward.1} parent=5 // pred_fallthru
        _
      %p377 = scmp.lt.s32.totalorder %s22, 2
      // Predicated region
      $region61: #{inception_forward.1} parent=5 // pred_check
        %p378 = pneg %p377
      $region62: #{inception_forward.1} parent=5 // pred_check_branch
        %380 = sbr.rel (%p378) target = $region64
      $region63: #{inception_forward.1} parent=5 // pred_region
        // Predicated region
        $region65: #{inception_forward.1} parent=63 // pred_check
          %p381 = pneg %p42
        $region66: #{inception_forward.1} parent=63 // pred_check_branch
          %383 = sbr.rel (%p381) target = $region68
        $region67: #{inception_forward.1} parent=63 // pred_region
          %p384 = scmp.lt.s32.totalorder %s22, 1
          %s385 = scalar_select %p384, %s22, 1
          %s386 = smul.addr %s385, 32
          %s387 = smul.addr %s386, 8
          %s388 = scalar_lea.vmem %s0, %s387
        $region68: #{inception_forward.1} parent=63 // pred_fallthru
          _
      $region64: #{inception_forward.1} parent=5 // pred_fallthru
        _
      %p389 = scmp.le.s32.totalorder 1, %s22
      %p390 = scmp.lt.s32.totalorder %s22, 3
      %p391 = pnand %p389, %p390
      %p392 = pneg %p391
      // Predicated region
      $region69: #{inception_forward.1} parent=5 // pred_check
        _
      $region70: #{inception_forward.1} parent=5 // pred_check_branch
        %394 = sbr.rel (%p391) target = $region72
      $region71: #{inception_forward.1} parent=5 // pred_region
        %s395 = ssub.s32 %s22, 1
        %p396 = scmp.lt.s32.totalorder %s27, 1
        %s397 = scalar_select %p396, %s27, 1
        %s398 = smul.addr %s397, 32
        %s399 = smul.addr %s398, 8
        %s400 = scalar_lea.vmem %s0, %s399
        %p401 = pneg %p48
        %p402 = pneg %p45
        %p403 = pneg %p69
        %p404 = pneg %p66
        %p405 = pneg %p90
        %p406 = pneg %p87
        %p407 = pneg %p111
        %p408 = pneg %p108
        %p409 = pneg %p132
        %p410 = pneg %p129
        %p411 = pneg %p153
        %p412 = pneg %p150
        %p413 = pneg %p174
        %p414 = pneg %p171
        %p415 = pneg %p195
        %p416 = pneg %p192
        %p417 = pneg %p216
        %p418 = pneg %p213
        %p419 = pneg %p237
        %p420 = pneg %p234
        %p421 = pneg %p258
        %p422 = pneg %p255
        %p423 = pneg %p279
        %p424 = pneg %p276
        %p425 = pneg %p300
        %p426 = pneg %p297
        %p427 = pneg %p326
        %p428 = pneg %p323
        %s429 = sand.u32 %s313, 1
        %s430 = scalar_lea.sflag [#allocation6], %s429
        %s431 = sand.u32 %s313, 1
        %s432 = smul.addr %s431, 256
        %s433 = scalar_lea.vmem [#allocation5], %s432
        %p434 = scmp.lt.s32.totalorder %s27, 1
        %s435 = scalar_select %p434, %s27, 1
        %s436 = smul.addr %s435, 32
        %s437 = smul.addr %s436, 8
        %s438 = scalar_lea.vmem %s0, %s437
        %s439 = smul.u32 32, %s27
        %v441 = vld [vmem:[%s438] sm:$0xff]
        %v442 = vld [vmem:[%s438 + $0x8] sm:$0xff]
        %v443 = vld [vmem:[%s438 + $0x10] sm:$0xff]
        %v444 = vld [vmem:[%s438 + $0x18] sm:$0xff]
        %v445 = vld [vmem:[%s438 + $0x20] sm:$0xff]
        %v446 = vld [vmem:[%s438 + $0x28] sm:$0xff]
        %v447 = vld [vmem:[%s438 + $0x30] sm:$0xff]
        %v448 = vld [vmem:[%s438 + $0x38] sm:$0xff]
        %v449 = vld [vmem:[%s438 + $0x40] sm:$0xff]
        %v450 = vld [vmem:[%s438 + $0x48] sm:$0xff]
        %v451 = vld [vmem:[%s438 + $0x50] sm:$0xff]
        %v452 = vld [vmem:[%s438 + $0x58] sm:$0xff]
        %v453 = vld [vmem:[%s438 + $0x60] sm:$0xff]
        %v454 = vld [vmem:[%s438 + $0x68] sm:$0xff]
        %v455 = vld [vmem:[%s438 + $0x70] sm:$0xff]
        %v456 = vld [vmem:[%s438 + $0x78] sm:$0xff]
        %v457 = vld [vmem:[%s438 + $0x80] sm:$0xff]
        %v458 = vld [vmem:[%s438 + $0x88] sm:$0xff]
        %v459 = vld [vmem:[%s438 + $0x90] sm:$0xff]
        %v460 = vld [vmem:[%s438 + $0x98] sm:$0xff]
        %v461 = vld [vmem:[%s438 + $0xa0] sm:$0xff]
        %v462 = vld [vmem:[%s438 + $0xa8] sm:$0xff]
        %v463 = vld [vmem:[%s438 + $0xb0] sm:$0xff]
        %v464 = vld [vmem:[%s438 + $0xb8] sm:$0xff]
        %v465 = vld [vmem:[%s438 + $0xc0] sm:$0xff]
        %v466 = vld [vmem:[%s438 + $0xc8] sm:$0xff]
        %v467 = vld [vmem:[%s438 + $0xd0] sm:$0xff]
        %v468 = vld [vmem:[%s438 + $0xd8] sm:$0xff]
        %v469 = vld [vmem:[%s438 + $0xe0] sm:$0xff]
        %v470 = vld [vmem:[%s438 + $0xe8] sm:$0xff]
        %v471 = vld [vmem:[%s438 + $0xf0] sm:$0xff]
        %v472 = vld [vmem:[%s438 + $0xf8] sm:$0xff]
        %v473 = vpack.c.bf16 %v442, %v441
        %v474 = vpack.c.bf16 %v444, %v443
        %v475 = vpack.c.bf16 %v446, %v445
        %v476 = vpack.c.bf16 %v448, %v447
        %v477 = vpack.c.bf16 %v450, %v449
        %v478 = vpack.c.bf16 %v452, %v451
        %v479 = vpack.c.bf16 %v454, %v453
        %v480 = vpack.c.bf16 %v456, %v455
        %v481 = vpack.c.bf16 %v458, %v457
        %v482 = vpack.c.bf16 %v460, %v459
        %v483 = vpack.c.bf16 %v462, %v461
        %v484 = vpack.c.bf16 %v464, %v463
        %v485 = vpack.c.bf16 %v466, %v465
        %v486 = vpack.c.bf16 %v468, %v467
        %v487 = vpack.c.bf16 %v470, %v469
        %v488 = vpack.c.bf16 %v472, %v471
        %v489 = vld [vmem:[%s1] sm:$0x3]
        %vm490 = vcmask 31744
        %v492 = vsel %vm490, %v473, 0
        %v495 = vsel %vm490, %v474, 0
        %v498 = vsel %vm490, %v475, 0
        %v501 = vsel %vm490, %v476, 0
        %v504 = vsel %vm490, %v477, 0
        %v507 = vsel %vm490, %v478, 0
        %v510 = vsel %vm490, %v479, 0
        %v513 = vsel %vm490, %v480, 0
        %v516 = vsel %vm490, %v481, 0
        %v519 = vsel %vm490, %v482, 0
        %v522 = vsel %vm490, %v483, 0
        %v525 = vsel %vm490, %v484, 0
        %v528 = vsel %vm490, %v485, 0
        %v531 = vsel %vm490, %v486, 0
        %v534 = vsel %vm490, %v487, 0
        %v537 = vsel %vm490, %v488, 0
        %vm539 = vcmask 1041408
        %v541 = vsel %vm539, %v489, 0
        %543 = vmatprep.subr.bf16.mxu0 0
        %544 = vmatpush1.bf16.msra.mxu0 0
        %545 = vmatprep.subr.bf16.mxu0 0
        %546 = vmatpush1.bf16.msra.mxu0 0
        %547 = vmatprep.subr.bf16.mxu0 0
        %548 = vmatpush1.bf16.msra.mxu0 0
        %549 = vmatprep.subr.bf16.mxu0 0
        %550 = vmatpush1.bf16.msra.mxu0 0
        %551 = vmatprep.subr.bf16.mxu0 0
        %552 = vmatpush1.bf16.msra.mxu0 0
        %553 = vmatprep.subr.bf16.mxu0 0
        %554 = vmatpush1.bf16.msra.mxu0 0
        %555 = vmatprep.subr.bf16.mxu0 0
        %556 = vmatpush1.bf16.msra.mxu0 0
        %557 = vmatprep.subr.bf16.mxu0 0
        %558 = vmatpush1.bf16.msra.mxu0 %v541
        %559 = vmatprep.subr.bf16.mxu0 0
        %560 = vmatpush2.bf16.msra.mxu0 0
        %561 = vmatprep.subr.bf16.mxu0 0
        %562 = vmatpush2.bf16.msra.mxu0 0
        %563 = vmatprep.subr.bf16.mxu0 0
        %564 = vmatpush2.bf16.msra.mxu0 0
        %565 = vmatprep.subr.bf16.mxu0 0
        %566 = vmatpush2.bf16.msra.mxu0 0
        %567 = vmatprep.subr.bf16.mxu0 0
        %568 = vmatpush2.bf16.msra.mxu0 0
        %569 = vmatprep.subr.bf16.mxu0 0
        %570 = vmatpush2.bf16.msra.mxu0 0
        %571 = vmatprep.subr.bf16.mxu0 0
        %572 = vmatpush2.bf16.msra.mxu0 0
        %573 = vmatprep.subr.bf16.mxu0 0
        %574 = vmatpush2.bf16.msra.mxu0 0
        %575 = vmatprep.mubr.bf16.mxu0 0
        %576 = vmatmul.mubr.bf16.gmra.mxu0 %v492
        %v577 = vpop.f32.mrf.mxu0
        %v578 = vadd.f32 0.0, %v577
        %v579 = vpop.f32.mrf.mxu0
        %v580 = vpop.f32.mrf.mxu0
        %v581 = vadd.f32 0.0, %v580
        %v582 = vpop.f32.mrf.mxu0
        %583 = vmatprep.mubr.bf16.mxu0 0
        %584 = vmatmul.mubr.bf16.gmra.mxu0 %v495
        %v585 = vpop.f32.mrf.mxu0
        %v586 = vadd.f32 0.0, %v585
        %v587 = vpop.f32.mrf.mxu0
        %v588 = vpop.f32.mrf.mxu0
        %v589 = vadd.f32 0.0, %v588
        %v590 = vpop.f32.mrf.mxu0
        %591 = vmatprep.mubr.bf16.mxu0 0
        %592 = vmatmul.mubr.bf16.gmra.mxu0 %v498
        %v593 = vpop.f32.mrf.mxu0
        %v594 = vadd.f32 0.0, %v593
        %v595 = vpop.f32.mrf.mxu0
        %v596 = vpop.f32.mrf.mxu0
        %v597 = vadd.f32 0.0, %v596
        %v598 = vpop.f32.mrf.mxu0
        %599 = vmatprep.mubr.bf16.mxu0 0
        %600 = vmatmul.mubr.bf16.gmra.mxu0 %v501
        %v601 = vpop.f32.mrf.mxu0
        %v602 = vadd.f32 0.0, %v601
        %v603 = vpop.f32.mrf.mxu0
        %v604 = vpop.f32.mrf.mxu0
        %v605 = vadd.f32 0.0, %v604
        %v606 = vpop.f32.mrf.mxu0
        %607 = vmatprep.mubr.bf16.mxu0 0
        %608 = vmatmul.mubr.bf16.gmra.mxu0 %v504
        %v609 = vpop.f32.mrf.mxu0
        %v610 = vadd.f32 0.0, %v609
        %v611 = vpop.f32.mrf.mxu0
        %v612 = vpop.f32.mrf.mxu0
        %v613 = vadd.f32 0.0, %v612
        %v614 = vpop.f32.mrf.mxu0
        %615 = vmatprep.mubr.bf16.mxu0 0
        %616 = vmatmul.mubr.bf16.gmra.mxu0 %v507
        %v617 = vpop.f32.mrf.mxu0
        %v618 = vadd.f32 0.0, %v617
        %v619 = vpop.f32.mrf.mxu0
        %v620 = vpop.f32.mrf.mxu0
        %v621 = vadd.f32 0.0, %v620
        %v622 = vpop.f32.mrf.mxu0
        %623 = vmatprep.mubr.bf16.mxu0 0
        %624 = vmatmul.mubr.bf16.gmra.mxu0 %v510
        %v625 = vpop.f32.mrf.mxu0
        %v626 = vadd.f32 0.0, %v625
        %v627 = vpop.f32.mrf.mxu0
        %v628 = vpop.f32.mrf.mxu0
        %v629 = vadd.f32 0.0, %v628
        %v630 = vpop.f32.mrf.mxu0
        %631 = vmatprep.mubr.bf16.mxu0 0
        %632 = vmatmul.mubr.bf16.gmra.mxu0 %v513
        %v633 = vpop.f32.mrf.mxu0
        %v634 = vadd.f32 0.0, %v633
        %v635 = vpop.f32.mrf.mxu0
        %v636 = vpop.f32.mrf.mxu0
        %v637 = vadd.f32 0.0, %v636
        %v638 = vpop.f32.mrf.mxu0
        %639 = vmatprep.mubr.bf16.mxu0 0
        %640 = vmatmul.mubr.bf16.gmra.mxu0 %v516
        %v641 = vpop.f32.mrf.mxu0
        %v642 = vadd.f32 0.0, %v641
        %v643 = vpop.f32.mrf.mxu0
        %v644 = vpop.f32.mrf.mxu0
        %v645 = vadd.f32 0.0, %v644
        %v646 = vpop.f32.mrf.mxu0
        %647 = vmatprep.mubr.bf16.mxu0 0
        %648 = vmatmul.mubr.bf16.gmra.mxu0 %v519
        %v649 = vpop.f32.mrf.mxu0
        %v650 = vadd.f32 0.0, %v649
        %v651 = vpop.f32.mrf.mxu0
        %v652 = vpop.f32.mrf.mxu0
        %v653 = vadd.f32 0.0, %v652
        %v654 = vpop.f32.mrf.mxu0
        %655 = vmatprep.mubr.bf16.mxu0 0
        %656 = vmatmul.mubr.bf16.gmra.mxu0 %v522
        %v657 = vpop.f32.mrf.mxu0
        %v658 = vadd.f32 0.0, %v657
        %v659 = vpop.f32.mrf.mxu0
        %v660 = vpop.f32.mrf.mxu0
        %v661 = vadd.f32 0.0, %v660
        %v662 = vpop.f32.mrf.mxu0
        %663 = vmatprep.mubr.bf16.mxu0 0
        %664 = vmatmul.mubr.bf16.gmra.mxu0 %v525
        %v665 = vpop.f32.mrf.mxu0
        %v666 = vadd.f32 0.0, %v665
        %v667 = vpop.f32.mrf.mxu0
        %v668 = vpop.f32.mrf.mxu0
        %v669 = vadd.f32 0.0, %v668
        %v670 = vpop.f32.mrf.mxu0
        %671 = vmatprep.mubr.bf16.mxu0 0
        %672 = vmatmul.mubr.bf16.gmra.mxu0 %v528
        %v673 = vpop.f32.mrf.mxu0
        %v674 = vadd.f32 0.0, %v673
        %v675 = vpop.f32.mrf.mxu0
        %v676 = vpop.f32.mrf.mxu0
        %v677 = vadd.f32 0.0, %v676
        %v678 = vpop.f32.mrf.mxu0
        %679 = vmatprep.mubr.bf16.mxu0 0
        %680 = vmatmul.mubr.bf16.gmra.mxu0 %v531
        %v681 = vpop.f32.mrf.mxu0
        %v682 = vadd.f32 0.0, %v681
        %v683 = vpop.f32.mrf.mxu0
        %v684 = vpop.f32.mrf.mxu0
        %v685 = vadd.f32 0.0, %v684
        %v686 = vpop.f32.mrf.mxu0
        %687 = vmatprep.mubr.bf16.mxu0 0
        %688 = vmatmul.mubr.bf16.gmra.mxu0 %v534
        %v689 = vpop.f32.mrf.mxu0
        %v690 = vadd.f32 0.0, %v689
        %v691 = vpop.f32.mrf.mxu0
        %v692 = vpop.f32.mrf.mxu0
        %v693 = vadd.f32 0.0, %v692
        %v694 = vpop.f32.mrf.mxu0
        %695 = vmatprep.mubr.bf16.mxu0 0
        %696 = vmatmul.mubr.bf16.gmra.mxu0 %v537
        %v697 = vpop.f32.mrf.mxu0
        %v698 = vadd.f32 0.0, %v697
        %v699 = vpop.f32.mrf.mxu0
        %v700 = vpop.f32.mrf.mxu0
        %v701 = vadd.f32 0.0, %v700
        %v702 = vpop.f32.mrf.mxu0
        %703 = vdwg.mxu0
        %v704 = vld [vmem:[%s2] sm:$0x1]
        %v706 = vlaneseq
        %v707 = vshrl.u32 %v706, 7
        %v708 = vsub.s32 0, %v707
        %v709 = vrot.slane %v704, %v708
        %v711 = vmul.f32 %v578, %v709
        %v712 = vmul.f32 %v581, %v709
        %v713 = vmul.f32 %v586, %v709
        %v714 = vmul.f32 %v589, %v709
        %v715 = vmul.f32 %v594, %v709
        %v716 = vmul.f32 %v597, %v709
        %v717 = vmul.f32 %v602, %v709
        %v718 = vmul.f32 %v605, %v709
        %v719 = vmul.f32 %v610, %v709
        %v720 = vmul.f32 %v613, %v709
        %v721 = vmul.f32 %v618, %v709
        %v722 = vmul.f32 %v621, %v709
        %v723 = vmul.f32 %v626, %v709
        %v724 = vmul.f32 %v629, %v709
        %v725 = vmul.f32 %v634, %v709
        %v726 = vmul.f32 %v637, %v709
        %v727 = vmul.f32 %v642, %v709
        %v728 = vmul.f32 %v645, %v709
        %v729 = vmul.f32 %v650, %v709
        %v730 = vmul.f32 %v653, %v709
        %v731 = vmul.f32 %v658, %v709
        %v732 = vmul.f32 %v661, %v709
        %v733 = vmul.f32 %v666, %v709
        %v734 = vmul.f32 %v669, %v709
        %v735 = vmul.f32 %v674, %v709
        %v736 = vmul.f32 %v677, %v709
        %v737 = vmul.f32 %v682, %v709
        %v738 = vmul.f32 %v685, %v709
        %v739 = vmul.f32 %v690, %v709
        %v740 = vmul.f32 %v693, %v709
        %v741 = vmul.f32 %v698, %v709
        %v742 = vmul.f32 %v701, %v709
        %v743 = vld [vmem:[%s3] sm:$0x1]
        %v745 = vlaneseq
        %v746 = vshrl.u32 %v745, 7
        %v747 = vsub.s32 0, %v746
        %v748 = vrot.slane %v743, %v747
        %v750 = vadd.f32 %v711, %v748
        %v751 = vadd.f32 %v712, %v748
        %v752 = vadd.f32 %v713, %v748
        %v753 = vadd.f32 %v714, %v748
        %v754 = vadd.f32 %v715, %v748
        %v755 = vadd.f32 %v716, %v748
        %v756 = vadd.f32 %v717, %v748
        %v757 = vadd.f32 %v718, %v748
        %v758 = vadd.f32 %v719, %v748
        %v759 = vadd.f32 %v720, %v748
        %v760 = vadd.f32 %v721, %v748
        %v761 = vadd.f32 %v722, %v748
        %v762 = vadd.f32 %v723, %v748
        %v763 = vadd.f32 %v724, %v748
        %v764 = vadd.f32 %v725, %v748
        %v765 = vadd.f32 %v726, %v748
        %v766 = vadd.f32 %v727, %v748
        %v767 = vadd.f32 %v728, %v748
        %v768 = vadd.f32 %v729, %v748
        %v769 = vadd.f32 %v730, %v748
        %v770 = vadd.f32 %v731, %v748
        %v771 = vadd.f32 %v732, %v748
        %v772 = vadd.f32 %v733, %v748
        %v773 = vadd.f32 %v734, %v748
        %v774 = vadd.f32 %v735, %v748
        %v775 = vadd.f32 %v736, %v748
        %v776 = vadd.f32 %v737, %v748
        %v777 = vadd.f32 %v738, %v748
        %v778 = vadd.f32 %v739, %v748
        %v779 = vadd.f32 %v740, %v748
        %v780 = vadd.f32 %v741, %v748
        %v781 = vadd.f32 %v742, %v748
        %v782 = vmax.f32 %v750, 0.0
        %v783 = vmax.f32 %v751, 0.0
        %v784 = vmax.f32 %v752, 0.0
        %v785 = vmax.f32 %v753, 0.0
        %v786 = vmax.f32 %v754, 0.0
        %v787 = vmax.f32 %v755, 0.0
        %v788 = vmax.f32 %v756, 0.0
        %v789 = vmax.f32 %v757, 0.0
        %v790 = vmax.f32 %v758, 0.0
        %v791 = vmax.f32 %v759, 0.0
        %v792 = vmax.f32 %v760, 0.0
        %v793 = vmax.f32 %v761, 0.0
        %v794 = vmax.f32 %v762, 0.0
        %v795 = vmax.f32 %v763, 0.0
        %v796 = vmax.f32 %v764, 0.0
        %v797 = vmax.f32 %v765, 0.0
        %v798 = vmax.f32 %v766, 0.0
        %v799 = vmax.f32 %v767, 0.0
        %v800 = vmax.f32 %v768, 0.0
        %v801 = vmax.f32 %v769, 0.0
        %v802 = vmax.f32 %v770, 0.0
        %v803 = vmax.f32 %v771, 0.0
        %v804 = vmax.f32 %v772, 0.0
        %v805 = vmax.f32 %v773, 0.0
        %v806 = vmax.f32 %v774, 0.0
        %v807 = vmax.f32 %v775, 0.0
        %v808 = vmax.f32 %v776, 0.0
        %v809 = vmax.f32 %v777, 0.0
        %v810 = vmax.f32 %v778, 0.0
        %v811 = vmax.f32 %v779, 0.0
        %v812 = vmax.f32 %v780, 0.0
        %v813 = vmax.f32 %v781, 0.0
        %814 = vst.msk [vmem:[#allocation2] sm:$0xff] %vm490, 0.0
        %815 = vst.msk [vmem:[#allocation2 + $0x8] sm:$0xff] %vm490, 0.0
        %vm816 = vcmask 25600
        %817 = vst.msk [vmem:[#allocation2 + $0x10] sm:$0x3] %vm816, 0.0
        %818 = vst.msk [vmem:[#allocation2 + $0x18] sm:$0xff] %vm490, 0.0
        %819 = vst.msk [vmem:[#allocation2 + $0x20] sm:$0xff] %vm490, 0.0
        %820 = vst.msk [vmem:[#allocation2 + $0x28] sm:$0x3] %vm816, 0.0
        %821 = vst.msk [vmem:[#allocation2 + $0x30] sm:$0xff] %vm490, 0.0
        %822 = vst.msk [vmem:[#allocation2 + $0x38] sm:$0xff] %vm490, 0.0
        %823 = vst.msk [vmem:[#allocation2 + $0x40] sm:$0x3] %vm816, 0.0
        %824 = vst.msk [vmem:[#allocation2 + $0x48] sm:$0xff] %vm490, 0.0
        %825 = vst.msk [vmem:[#allocation2 + $0x50] sm:$0xff] %vm490, 0.0
        %826 = vst.msk [vmem:[#allocation2 + $0x58] sm:$0x3] %vm816, 0.0
        %827 = vst.msk [vmem:[#allocation2 + $0x60] sm:$0xff] %vm490, 0.0
        %828 = vst.msk [vmem:[#allocation2 + $0x68] sm:$0xff] %vm490, 0.0
        %829 = vst.msk [vmem:[#allocation2 + $0x70] sm:$0x3] %vm816, 0.0
        %830 = vst.msk [vmem:[#allocation2 + $0x78] sm:$0xff] %vm490, 0.0
        %831 = vst.msk [vmem:[#allocation2 + $0x80] sm:$0xff] %vm490, 0.0
        %832 = vst.msk [vmem:[#allocation2 + $0x88] sm:$0x3] %vm816, 0.0
        %833 = vst.msk [vmem:[#allocation2 + $0x90] sm:$0xff] %vm490, 0.0
        %834 = vst.msk [vmem:[#allocation2 + $0x98] sm:$0xff] %vm490, 0.0
        %835 = vst.msk [vmem:[#allocation2 + $0xa0] sm:$0x3] %vm816, 0.0
        %836 = vst.msk [vmem:[#allocation2 + $0xa8] sm:$0xff] %vm490, 0.0
        %837 = vst.msk [vmem:[#allocation2 + $0xb0] sm:$0xff] %vm490, 0.0
        %838 = vst.msk [vmem:[#allocation2 + $0xb8] sm:$0x3] %vm816, 0.0
        %839 = vst.msk [vmem:[#allocation2 + $0xc0] sm:$0xff] %vm490, 0.0
        %840 = vst.msk [vmem:[#allocation2 + $0xc8] sm:$0xff] %vm490, 0.0
        %841 = vst.msk [vmem:[#allocation2 + $0xd0] sm:$0x3] %vm816, 0.0
        %842 = vst.msk [vmem:[#allocation2 + $0xd8] sm:$0xff] %vm490, 0.0
        %843 = vst.msk [vmem:[#allocation2 + $0xe0] sm:$0xff] %vm490, 0.0
        %844 = vst.msk [vmem:[#allocation2 + $0xe8] sm:$0x3] %vm816, 0.0
        %845 = vst.msk [vmem:[#allocation2 + $0xf0] sm:$0xff] %vm490, 0.0
        %846 = vst.msk [vmem:[#allocation2 + $0xf8] sm:$0xff] %vm490, 0.0
        %847 = vst.msk [vmem:[#allocation2 + $0x100] sm:$0x3] %vm816, 0.0
        %848 = vst.msk [vmem:[#allocation2 + $0x108] sm:$0xff] %vm490, 0.0
        %849 = vst.msk [vmem:[#allocation2 + $0x110] sm:$0xff] %vm490, 0.0
        %850 = vst.msk [vmem:[#allocation2 + $0x118] sm:$0x3] %vm816, 0.0
        %851 = vst.msk [vmem:[#allocation2 + $0x120] sm:$0xff] %vm490, 0.0
        %852 = vst.msk [vmem:[#allocation2 + $0x128] sm:$0xff] %vm490, 0.0
        %853 = vst.msk [vmem:[#allocation2 + $0x130] sm:$0x3] %vm816, 0.0
        %854 = vst.msk [vmem:[#allocation2 + $0x138] sm:$0xff] %vm490, 0.0
        %855 = vst.msk [vmem:[#allocation2 + $0x140] sm:$0xff] %vm490, 0.0
        %856 = vst.msk [vmem:[#allocation2 + $0x148] sm:$0x3] %vm816, 0.0
        %857 = vst.msk [vmem:[#allocation2 + $0x150] sm:$0xff] %vm490, 0.0
        %858 = vst.msk [vmem:[#allocation2 + $0x158] sm:$0xff] %vm490, 0.0
        %859 = vst.msk [vmem:[#allocation2 + $0x160] sm:$0x3] %vm816, 0.0
        %860 = vst.msk [vmem:[#allocation2 + $0x168] sm:$0xff] %vm490, 0.0
        %861 = vst.msk [vmem:[#allocation2 + $0x170] sm:$0xff] %vm490, 0.0
        %862 = vst.msk [vmem:[#allocation2 + $0x178] sm:$0x3] %vm816, 0.0
        %863 = vst.msk [vmem:[#allocation2 + $0x180] sm:$0xff] %vm490, 0.0
        %864 = vst.msk [vmem:[#allocation2 + $0x188] sm:$0xff] %vm490, 0.0
        %865 = vst.msk [vmem:[#allocation2 + $0x190] sm:$0x3] %vm816, 0.0
        %866 = vst.msk [vmem:[#allocation2 + $0x198] sm:$0xff] %vm490, 0.0
        %867 = vst.msk [vmem:[#allocation2 + $0x1a0] sm:$0xff] %vm490, 0.0
        %868 = vst.msk [vmem:[#allocation2 + $0x1a8] sm:$0x3] %vm816, 0.0
        %901 = vrot.lane.b32.xlu0 %v782, 120
        %v902 = vpop.permute.xlu0 %901
        %903 = vrot.lane.b32.xlu0 %v783, 120
        %v904 = vpop.permute.xlu0 %903
        %905 = vrot.lane.b32.xlu0 %v784, 120
        %v906 = vpop.permute.xlu0 %905
        %907 = vrot.lane.b32.xlu0 %v785, 120
        %v908 = vpop.permute.xlu0 %907
        %909 = vrot.lane.b32.xlu0 %v786, 120
        %v910 = vpop.permute.xlu0 %909
        %911 = vrot.lane.b32.xlu0 %v787, 120
        %v912 = vpop.permute.xlu0 %911
        %913 = vrot.lane.b32.xlu0 %v788, 120
        %v914 = vpop.permute.xlu0 %913
        %915 = vrot.lane.b32.xlu0 %v789, 120
        %v916 = vpop.permute.xlu0 %915
        %917 = vrot.lane.b32.xlu0 %v790, 120
        %v918 = vpop.permute.xlu0 %917
        %919 = vrot.lane.b32.xlu0 %v791, 120
        %v920 = vpop.permute.xlu0 %919
        %921 = vrot.lane.b32.xlu0 %v792, 120
        %v922 = vpop.permute.xlu0 %921
        %923 = vrot.lane.b32.xlu0 %v793, 120
        %v924 = vpop.permute.xlu0 %923
        %925 = vrot.lane.b32.xlu0 %v794, 120
        %v926 = vpop.permute.xlu0 %925
        %927 = vrot.lane.b32.xlu0 %v795, 120
        %v928 = vpop.permute.xlu0 %927
        %929 = vrot.lane.b32.xlu0 %v796, 120
        %v930 = vpop.permute.xlu0 %929
        %931 = vrot.lane.b32.xlu0 %v797, 120
        %v932 = vpop.permute.xlu0 %931
        %933 = vrot.lane.b32.xlu0 %v798, 120
        %v934 = vpop.permute.xlu0 %933
        %935 = vrot.lane.b32.xlu0 %v799, 120
        %v936 = vpop.permute.xlu0 %935
        %937 = vrot.lane.b32.xlu0 %v800, 120
        %v938 = vpop.permute.xlu0 %937
        %939 = vrot.lane.b32.xlu0 %v801, 120
        %v940 = vpop.permute.xlu0 %939
        %941 = vrot.lane.b32.xlu0 %v802, 120
        %v942 = vpop.permute.xlu0 %941
        %943 = vrot.lane.b32.xlu0 %v803, 120
        %v944 = vpop.permute.xlu0 %943
        %945 = vrot.lane.b32.xlu0 %v804, 120
        %v946 = vpop.permute.xlu0 %945
        %947 = vrot.lane.b32.xlu0 %v805, 120
        %v948 = vpop.permute.xlu0 %947
        %949 = vrot.lane.b32.xlu0 %v806, 120
        %v950 = vpop.permute.xlu0 %949
        %951 = vrot.lane.b32.xlu0 %v807, 120
        %v952 = vpop.permute.xlu0 %951
        %953 = vrot.lane.b32.xlu0 %v808, 120
        %v954 = vpop.permute.xlu0 %953
        %955 = vrot.lane.b32.xlu0 %v809, 120
        %v956 = vpop.permute.xlu0 %955
        %957 = vrot.lane.b32.xlu0 %v810, 120
        %v958 = vpop.permute.xlu0 %957
        %959 = vrot.lane.b32.xlu0 %v811, 120
        %v960 = vpop.permute.xlu0 %959
        %961 = vrot.lane.b32.xlu0 %v812, 120
        %v962 = vpop.permute.xlu0 %961
        %963 = vrot.lane.b32.xlu0 %v813, 120
        %v964 = vpop.permute.xlu0 %963
        %s997 = scalar_lea.vmem [#allocation2], 24
        %998 = vst.msk [vmem:[%s997 + $0x1] sm:$0xff] %vm490, %v902
        %999 = vst.msk [vmem:[%s997 + $0x9] sm:$0xff] %vm490, %v904
        %1000 = vst.msk [vmem:[%s997 + $0x19] sm:$0xff] %vm490, %v906
        %1001 = vst.msk [vmem:[%s997 + $0x21] sm:$0xff] %vm490, %v908
        %1002 = vst.msk [vmem:[%s997 + $0x31] sm:$0xff] %vm490, %v910
        %1003 = vst.msk [vmem:[%s997 + $0x39] sm:$0xff] %vm490, %v912
        %1004 = vst.msk [vmem:[%s997 + $0x49] sm:$0xff] %vm490, %v914
        %1005 = vst.msk [vmem:[%s997 + $0x51] sm:$0xff] %vm490, %v916
        %1006 = vst.msk [vmem:[%s997 + $0x61] sm:$0xff] %vm490, %v918
        %1007 = vst.msk [vmem:[%s997 + $0x69] sm:$0xff] %vm490, %v920
        %1008 = vst.msk [vmem:[%s997 + $0x79] sm:$0xff] %vm490, %v922
        %1009 = vst.msk [vmem:[%s997 + $0x81] sm:$0xff] %vm490, %v924
        %1010 = vst.msk [vmem:[%s997 + $0x91] sm:$0xff] %vm490, %v926
        %1011 = vst.msk [vmem:[%s997 + $0x99] sm:$0xff] %vm490, %v928
        %1012 = vst.msk [vmem:[%s997 + $0xa9] sm:$0xff] %vm490, %v930
        %1013 = vst.msk [vmem:[%s997 + $0xb1] sm:$0xff] %vm490, %v932
        %1014 = vst.msk [vmem:[%s997 + $0xc1] sm:$0xff] %vm490, %v934
        %1015 = vst.msk [vmem:[%s997 + $0xc9] sm:$0xff] %vm490, %v936
        %1016 = vst.msk [vmem:[%s997 + $0xd9] sm:$0xff] %vm490, %v938
        %1017 = vst.msk [vmem:[%s997 + $0xe1] sm:$0xff] %vm490, %v940
        %1018 = vst.msk [vmem:[%s997 + $0xf1] sm:$0xff] %vm490, %v942
        %1019 = vst.msk [vmem:[%s997 + $0xf9] sm:$0xff] %vm490, %v944
        %1020 = vst.msk [vmem:[%s997 + $0x109] sm:$0xff] %vm490, %v946
        %1021 = vst.msk [vmem:[%s997 + $0x111] sm:$0xff] %vm490, %v948
        %1022 = vst.msk [vmem:[%s997 + $0x121] sm:$0xff] %vm490, %v950
        %1023 = vst.msk [vmem:[%s997 + $0x129] sm:$0xff] %vm490, %v952
        %1024 = vst.msk [vmem:[%s997 + $0x139] sm:$0xff] %vm490, %v954
        %1025 = vst.msk [vmem:[%s997 + $0x141] sm:$0xff] %vm490, %v956
        %1026 = vst.msk [vmem:[%s997 + $0x151] sm:$0xff] %vm490, %v958
        %1027 = vst.msk [vmem:[%s997 + $0x159] sm:$0xff] %vm490, %v960
        %1028 = vst.msk [vmem:[%s997 + $0x169] sm:$0xff] %vm490, %v962
        %1029 = vst.msk [vmem:[%s997 + $0x171] sm:$0xff] %vm490, %v964
        %v1030 = vld [vmem:[#allocation2] sm:$0xff]
        %v1031 = vld [vmem:[#allocation2 + $0x8] sm:$0xff]
        %v1032 = vld [vmem:[#allocation2 + $0x10] sm:$0x3]
        %v1033 = vld [vmem:[#allocation2 + $0x18] sm:$0xff]
        %v1034 = vld [vmem:[#allocation2 + $0x20] sm:$0xff]
        %v1035 = vld [vmem:[#allocation2 + $0x28] sm:$0x3]
        %v1036 = vld [vmem:[#allocation2 + $0x30] sm:$0xff]
        %v1037 = vld [vmem:[#allocation2 + $0x38] sm:$0xff]
        %v1038 = vld [vmem:[#allocation2 + $0x40] sm:$0x3]
        %v1039 = vld [vmem:[#allocation2 + $0x48] sm:$0xff]
        %v1040 = vld [vmem:[#allocation2 + $0x50] sm:$0xff]
        %v1041 = vld [vmem:[#allocation2 + $0x58] sm:$0x3]
        %v1042 = vld [vmem:[#allocation2 + $0x60] sm:$0xff]
        %v1043 = vld [vmem:[#allocation2 + $0x68] sm:$0xff]
        %v1044 = vld [vmem:[#allocation2 + $0x70] sm:$0x3]
        %v1045 = vld [vmem:[#allocation2 + $0x78] sm:$0xff]
        %v1046 = vld [vmem:[#allocation2 + $0x80] sm:$0xff]
        %v1047 = vld [vmem:[#allocation2 + $0x88] sm:$0x3]
        %v1048 = vld [vmem:[#allocation2 + $0x90] sm:$0xff]
        %v1049 = vld [vmem:[#allocation2 + $0x98] sm:$0xff]
        %v1050 = vld [vmem:[#allocation2 + $0xa0] sm:$0x3]
        %v1051 = vld [vmem:[#allocation2 + $0xa8] sm:$0xff]
        %v1052 = vld [vmem:[#allocation2 + $0xb0] sm:$0xff]
        %v1053 = vld [vmem:[#allocation2 + $0xb8] sm:$0x3]
        %v1054 = vld [vmem:[#allocation2 + $0xc0] sm:$0xff]
        %v1055 = vld [vmem:[#allocation2 + $0xc8] sm:$0xff]
        %v1056 = vld [vmem:[#allocation2 + $0xd0] sm:$0x3]
        %v1057 = vld [vmem:[#allocation2 + $0xd8] sm:$0xff]
        %v1058 = vld [vmem:[#allocation2 + $0xe0] sm:$0xff]
        %v1059 = vld [vmem:[#allocation2 + $0xe8] sm:$0x3]
        %v1060 = vld [vmem:[#allocation2 + $0xf0] sm:$0xff]
        %v1061 = vld [vmem:[#allocation2 + $0xf8] sm:$0xff]
        %v1062 = vld [vmem:[#allocation2 + $0x100] sm:$0x3]
        %v1063 = vld [vmem:[#allocation2 + $0x108] sm:$0xff]
        %v1064 = vld [vmem:[#allocation2 + $0x110] sm:$0xff]
        %v1065 = vld [vmem:[#allocation2 + $0x118] sm:$0x3]
        %v1066 = vld [vmem:[#allocation2 + $0x120] sm:$0xff]
        %v1067 = vld [vmem:[#allocation2 + $0x128] sm:$0xff]
        %v1068 = vld [vmem:[#allocation2 + $0x130] sm:$0x3]
        %v1069 = vld [vmem:[#allocation2 + $0x138] sm:$0xff]
        %v1070 = vld [vmem:[#allocation2 + $0x140] sm:$0xff]
        %v1071 = vld [vmem:[#allocation2 + $0x148] sm:$0x3]
        %v1072 = vld [vmem:[#allocation2 + $0x150] sm:$0xff]
        %v1073 = vld [vmem:[#allocation2 + $0x158] sm:$0xff]
        %v1074 = vld [vmem:[#allocation2 + $0x160] sm:$0x3]
        %v1075 = vld [vmem:[#allocation2 + $0x168] sm:$0xff]
        %v1076 = vld [vmem:[#allocation2 + $0x170] sm:$0xff]
        %v1077 = vld [vmem:[#allocation2 + $0x178] sm:$0x3]
        %v1078 = vld [vmem:[#allocation2 + $0x180] sm:$0xff]
        %v1079 = vld [vmem:[#allocation2 + $0x188] sm:$0xff]
        %v1080 = vld [vmem:[#allocation2 + $0x190] sm:$0x3]
        %v1081 = vld [vmem:[#allocation2 + $0x198] sm:$0xff]
        %v1082 = vld [vmem:[#allocation2 + $0x1a0] sm:$0xff]
        %v1083 = vld [vmem:[#allocation2 + $0x1a8] sm:$0x3]
        %vm1132 = vcmask 1046528
        %v1133 = vrot.slane %v1030, 1
        %v1134 = vrot.slane %v1031, 1
        %v1135 = vsel %vm1132, %v1133, %v1134
        %v1136 = vrot.slane %v1032, 1
        %v1137 = vsel %vm1132, %v1134, %v1136
        %v1138 = vrot.slane %v1033, 1
        %v1139 = vrot.slane %v1034, 1
        %v1140 = vsel %vm1132, %v1138, %v1139
        %v1141 = vrot.slane %v1035, 1
        %v1142 = vsel %vm1132, %v1139, %v1141
        %v1143 = vrot.slane %v1036, 1
        %v1144 = vrot.slane %v1037, 1
        %v1145 = vsel %vm1132, %v1143, %v1144
        %v1146 = vrot.slane %v1038, 1
        %v1147 = vsel %vm1132, %v1144, %v1146
        %v1148 = vrot.slane %v1039, 1
        %v1149 = vrot.slane %v1040, 1
        %v1150 = vsel %vm1132, %v1148, %v1149
        %v1151 = vrot.slane %v1041, 1
        %v1152 = vsel %vm1132, %v1149, %v1151
        %v1153 = vrot.slane %v1042, 1
        %v1154 = vrot.slane %v1043, 1
        %v1155 = vsel %vm1132, %v1153, %v1154
        %v1156 = vrot.slane %v1044, 1
        %v1157 = vsel %vm1132, %v1154, %v1156
        %v1158 = vrot.slane %v1045, 1
        %v1159 = vrot.slane %v1046, 1
        %v1160 = vsel %vm1132, %v1158, %v1159
        %v1161 = vrot.slane %v1047, 1
        %v1162 = vsel %vm1132, %v1159, %v1161
        %v1163 = vrot.slane %v1048, 1
        %v1164 = vrot.slane %v1049, 1
        %v1165 = vsel %vm1132, %v1163, %v1164
        %v1166 = vrot.slane %v1050, 1
        %v1167 = vsel %vm1132, %v1164, %v1166
        %v1168 = vrot.slane %v1051, 1
        %v1169 = vrot.slane %v1052, 1
        %v1170 = vsel %vm1132, %v1168, %v1169
        %v1171 = vrot.slane %v1053, 1
        %v1172 = vsel %vm1132, %v1169, %v1171
        %v1173 = vrot.slane %v1054, 1
        %v1174 = vrot.slane %v1055, 1
        %v1175 = vsel %vm1132, %v1173, %v1174
        %v1176 = vrot.slane %v1056, 1
        %v1177 = vsel %vm1132, %v1174, %v1176
        %v1178 = vrot.slane %v1057, 1
        %v1179 = vrot.slane %v1058, 1
        %v1180 = vsel %vm1132, %v1178, %v1179
        %v1181 = vrot.slane %v1059, 1
        %v1182 = vsel %vm1132, %v1179, %v1181
        %v1183 = vrot.slane %v1060, 1
        %v1184 = vrot.slane %v1061, 1
        %v1185 = vsel %vm1132, %v1183, %v1184
        %v1186 = vrot.slane %v1062, 1
        %v1187 = vsel %vm1132, %v1184, %v1186
        %v1188 = vrot.slane %v1063, 1
        %v1189 = vrot.slane %v1064, 1
        %v1190 = vsel %vm1132, %v1188, %v1189
        %v1191 = vrot.slane %v1065, 1
        %v1192 = vsel %vm1132, %v1189, %v1191
        %v1193 = vrot.slane %v1066, 1
        %v1194 = vrot.slane %v1067, 1
        %v1195 = vsel %vm1132, %v1193, %v1194
        %v1196 = vrot.slane %v1068, 1
        %v1197 = vsel %vm1132, %v1194, %v1196
        %v1198 = vrot.slane %v1069, 1
        %v1199 = vrot.slane %v1070, 1
        %v1200 = vsel %vm1132, %v1198, %v1199
        %v1201 = vrot.slane %v1071, 1
        %v1202 = vsel %vm1132, %v1199, %v1201
        %v1203 = vrot.slane %v1072, 1
        %v1204 = vrot.slane %v1073, 1
        %v1205 = vsel %vm1132, %v1203, %v1204
        %v1206 = vrot.slane %v1074, 1
        %v1207 = vsel %vm1132, %v1204, %v1206
        %v1208 = vrot.slane %v1075, 1
        %v1209 = vrot.slane %v1076, 1
        %v1210 = vsel %vm1132, %v1208, %v1209
        %v1211 = vrot.slane %v1077, 1
        %v1212 = vsel %vm1132, %v1209, %v1211
        %vm1213 = vcmask 1045504
        %v1214 = vrot.slane %v1030, 2
        %v1215 = vrot.slane %v1031, 2
        %v1216 = vsel %vm1213, %v1214, %v1215
        %v1217 = vrot.slane %v1032, 2
        %v1218 = vsel %vm1213, %v1215, %v1217
        %v1219 = vrot.slane %v1033, 2
        %v1220 = vrot.slane %v1034, 2
        %v1221 = vsel %vm1213, %v1219, %v1220
        %v1222 = vrot.slane %v1035, 2
        %v1223 = vsel %vm1213, %v1220, %v1222
        %v1224 = vrot.slane %v1036, 2
        %v1225 = vrot.slane %v1037, 2
        %v1226 = vsel %vm1213, %v1224, %v1225
        %v1227 = vrot.slane %v1038, 2
        %v1228 = vsel %vm1213, %v1225, %v1227
        %v1229 = vrot.slane %v1039, 2
        %v1230 = vrot.slane %v1040, 2
        %v1231 = vsel %vm1213, %v1229, %v1230
        %v1232 = vrot.slane %v1041, 2
        %v1233 = vsel %vm1213, %v1230, %v1232
        %v1234 = vrot.slane %v1042, 2
        %v1235 = vrot.slane %v1043, 2
        %v1236 = vsel %vm1213, %v1234, %v1235
        %v1237 = vrot.slane %v1044, 2
        %v1238 = vsel %vm1213, %v1235, %v1237
        %v1239 = vrot.slane %v1045, 2
        %v1240 = vrot.slane %v1046, 2
        %v1241 = vsel %vm1213, %v1239, %v1240
        %v1242 = vrot.slane %v1047, 2
        %v1243 = vsel %vm1213, %v1240, %v1242
        %v1244 = vrot.slane %v1048, 2
        %v1245 = vrot.slane %v1049, 2
        %v1246 = vsel %vm1213, %v1244, %v1245
        %v1247 = vrot.slane %v1050, 2
        %v1248 = vsel %vm1213, %v1245, %v1247
        %v1249 = vrot.slane %v1051, 2
        %v1250 = vrot.slane %v1052, 2
        %v1251 = vsel %vm1213, %v1249, %v1250
        %v1252 = vrot.slane %v1053, 2
        %v1253 = vsel %vm1213, %v1250, %v1252
        %v1254 = vrot.slane %v1054, 2
        %v1255 = vrot.slane %v1055, 2
        %v1256 = vsel %vm1213, %v1254, %v1255
        %v1257 = vrot.slane %v1056, 2
        %v1258 = vsel %vm1213, %v1255, %v1257
        %v1259 = vrot.slane %v1057, 2
        %v1260 = vrot.slane %v1058, 2
        %v1261 = vsel %vm1213, %v1259, %v1260
        %v1262 = vrot.slane %v1059, 2
        %v1263 = vsel %vm1213, %v1260, %v1262
        %v1264 = vrot.slane %v1060, 2
        %v1265 = vrot.slane %v1061, 2
        %v1266 = vsel %vm1213, %v1264, %v1265
        %v1267 = vrot.slane %v1062, 2
        %v1268 = vsel %vm1213, %v1265, %v1267
        %v1269 = vrot.slane %v1063, 2
        %v1270 = vrot.slane %v1064, 2
        %v1271 = vsel %vm1213, %v1269, %v1270
        %v1272 = vrot.slane %v1065, 2
        %v1273 = vsel %vm1213, %v1270, %v1272
        %v1274 = vrot.slane %v1066, 2
        %v1275 = vrot.slane %v1067, 2
        %v1276 = vsel %vm1213, %v1274, %v1275
        %v1277 = vrot.slane %v1068, 2
        %v1278 = vsel %vm1213, %v1275, %v1277
        %v1279 = vrot.slane %v1069, 2
        %v1280 = vrot.slane %v1070, 2
        %v1281 = vsel %vm1213, %v1279, %v1280
        %v1282 = vrot.slane %v1071, 2
        %v1283 = vsel %vm1213, %v1280, %v1282
        %v1284 = vrot.slane %v1072, 2
        %v1285 = vrot.slane %v1073, 2
        %v1286 = vsel %vm1213, %v1284, %v1285
        %v1287 = vrot.slane %v1074, 2
        %v1288 = vsel %vm1213, %v1285, %v1287
        %v1289 = vrot.slane %v1075, 2
        %v1290 = vrot.slane %v1076, 2
        %v1291 = vsel %vm1213, %v1289, %v1290
        %v1292 = vrot.slane %v1077, 2
        %v1293 = vsel %vm1213, %v1290, %v1292
        %v1297 = vrot.slane %v1078, 1
        %v1298 = vrot.slane %v1079, 1
        %v1299 = vsel %vm1132, %v1297, %v1298
        %v1300 = vrot.slane %v1080, 1
        %v1301 = vsel %vm1132, %v1298, %v1300
        %v1302 = vrot.slane %v1078, 2
        %v1303 = vrot.slane %v1079, 2
        %v1304 = vsel %vm1213, %v1302, %v1303
        %v1305 = vrot.slane %v1080, 2
        %v1306 = vsel %vm1213, %v1303, %v1305
        %v1310 = vrot.slane %v1081, 1
        %v1311 = vrot.slane %v1082, 1
        %v1312 = vsel %vm1132, %v1310, %v1311
        %v1313 = vrot.slane %v1083, 1
        %v1314 = vsel %vm1132, %v1311, %v1313
        %v1315 = vrot.slane %v1081, 2
        %v1316 = vrot.slane %v1082, 2
        %v1317 = vsel %vm1213, %v1315, %v1316
        %v1318 = vrot.slane %v1083, 2
        %v1319 = vsel %vm1213, %v1316, %v1318
        %1320 = vrot.lane.b32.xlu0 %v1135, 4
        %v1321 = vpop.permute.xlu0 %1320
        %1322 = vrot.lane.b32.xlu0 %v1137, 4
        %v1323 = vpop.permute.xlu0 %1322
        %1324 = vrot.lane.b32.xlu0 %v1140, 4
        %v1325 = vpop.permute.xlu0 %1324
        %1326 = vrot.lane.b32.xlu0 %v1142, 4
        %v1327 = vpop.permute.xlu0 %1326
        %1328 = vrot.lane.b32.xlu0 %v1145, 4
        %v1329 = vpop.permute.xlu0 %1328
        %1330 = vrot.lane.b32.xlu0 %v1147, 4
        %v1331 = vpop.permute.xlu0 %1330
        %1332 = vrot.lane.b32.xlu0 %v1150, 4
        %v1333 = vpop.permute.xlu0 %1332
        %1334 = vrot.lane.b32.xlu0 %v1152, 4
        %v1335 = vpop.permute.xlu0 %1334
        %1336 = vrot.lane.b32.xlu0 %v1155, 4
        %v1337 = vpop.permute.xlu0 %1336
        %1338 = vrot.lane.b32.xlu0 %v1157, 4
        %v1339 = vpop.permute.xlu0 %1338
        %1340 = vrot.lane.b32.xlu0 %v1160, 4
        %v1341 = vpop.permute.xlu0 %1340
        %1342 = vrot.lane.b32.xlu0 %v1162, 4
        %v1343 = vpop.permute.xlu0 %1342
        %1344 = vrot.lane.b32.xlu0 %v1165, 4
        %v1345 = vpop.permute.xlu0 %1344
        %1346 = vrot.lane.b32.xlu0 %v1167, 4
        %v1347 = vpop.permute.xlu0 %1346
        %1348 = vrot.lane.b32.xlu0 %v1170, 4
        %v1349 = vpop.permute.xlu0 %1348
        %1350 = vrot.lane.b32.xlu0 %v1172, 4
        %v1351 = vpop.permute.xlu0 %1350
        %1352 = vrot.lane.b32.xlu0 %v1175, 4
        %v1353 = vpop.permute.xlu0 %1352
        %1354 = vrot.lane.b32.xlu0 %v1177, 4
        %v1355 = vpop.permute.xlu0 %1354
        %1356 = vrot.lane.b32.xlu0 %v1180, 4
        %v1357 = vpop.permute.xlu0 %1356
        %1358 = vrot.lane.b32.xlu0 %v1182, 4
        %v1359 = vpop.permute.xlu0 %1358
        %1360 = vrot.lane.b32.xlu0 %v1185, 4
        %v1361 = vpop.permute.xlu0 %1360
        %1362 = vrot.lane.b32.xlu0 %v1187, 4
        %v1363 = vpop.permute.xlu0 %1362
        %1364 = vrot.lane.b32.xlu0 %v1190, 4
        %v1365 = vpop.permute.xlu0 %1364
        %1366 = vrot.lane.b32.xlu0 %v1192, 4
        %v1367 = vpop.permute.xlu0 %1366
        %1368 = vrot.lane.b32.xlu0 %v1195, 4
        %v1369 = vpop.permute.xlu0 %1368
        %1370 = vrot.lane.b32.xlu0 %v1197, 4
        %v1371 = vpop.permute.xlu0 %1370
        %1372 = vrot.lane.b32.xlu0 %v1200, 4
        %v1373 = vpop.permute.xlu0 %1372
        %1374 = vrot.lane.b32.xlu0 %v1202, 4
        %v1375 = vpop.permute.xlu0 %1374
        %1376 = vrot.lane.b32.xlu0 %v1205, 4
        %v1377 = vpop.permute.xlu0 %1376
        %1378 = vrot.lane.b32.xlu0 %v1207, 4
        %v1379 = vpop.permute.xlu0 %1378
        %1380 = vrot.lane.b32.xlu0 %v1210, 4
        %v1381 = vpop.permute.xlu0 %1380
        %1382 = vrot.lane.b32.xlu0 %v1212, 4
        %v1383 = vpop.permute.xlu0 %1382
        %1416 = vrot.lane.b32.xlu0 %v1216, 8
        %v1417 = vpop.permute.xlu0 %1416
        %1418 = vrot.lane.b32.xlu0 %v1218, 8
        %v1419 = vpop.permute.xlu0 %1418
        %1420 = vrot.lane.b32.xlu0 %v1221, 8
        %v1421 = vpop.permute.xlu0 %1420
        %1422 = vrot.lane.b32.xlu0 %v1223, 8
        %v1423 = vpop.permute.xlu0 %1422
        %1424 = vrot.lane.b32.xlu0 %v1226, 8
        %v1425 = vpop.permute.xlu0 %1424
        %1426 = vrot.lane.b32.xlu0 %v1228, 8
        %v1427 = vpop.permute.xlu0 %1426
        %1428 = vrot.lane.b32.xlu0 %v1231, 8
        %v1429 = vpop.permute.xlu0 %1428
        %1430 = vrot.lane.b32.xlu0 %v1233, 8
        %v1431 = vpop.permute.xlu0 %1430
        %1432 = vrot.lane.b32.xlu0 %v1236, 8
        %v1433 = vpop.permute.xlu0 %1432
        %1434 = vrot.lane.b32.xlu0 %v1238, 8
        %v1435 = vpop.permute.xlu0 %1434
        %1436 = vrot.lane.b32.xlu0 %v1241, 8
        %v1437 = vpop.permute.xlu0 %1436
        %1438 = vrot.lane.b32.xlu0 %v1243, 8
        %v1439 = vpop.permute.xlu0 %1438
        %1440 = vrot.lane.b32.xlu0 %v1246, 8
        %v1441 = vpop.permute.xlu0 %1440
        %1442 = vrot.lane.b32.xlu0 %v1248, 8
        %v1443 = vpop.permute.xlu0 %1442
        %1444 = vrot.lane.b32.xlu0 %v1251, 8
        %v1445 = vpop.permute.xlu0 %1444
        %1446 = vrot.lane.b32.xlu0 %v1253, 8
        %v1447 = vpop.permute.xlu0 %1446
        %1448 = vrot.lane.b32.xlu0 %v1256, 8
        %v1449 = vpop.permute.xlu0 %1448
        %1450 = vrot.lane.b32.xlu0 %v1258, 8
        %v1451 = vpop.permute.xlu0 %1450
        %1452 = vrot.lane.b32.xlu0 %v1261, 8
        %v1453 = vpop.permute.xlu0 %1452
        %1454 = vrot.lane.b32.xlu0 %v1263, 8
        %v1455 = vpop.permute.xlu0 %1454
        %1456 = vrot.lane.b32.xlu0 %v1266, 8
        %v1457 = vpop.permute.xlu0 %1456
        %1458 = vrot.lane.b32.xlu0 %v1268, 8
        %v1459 = vpop.permute.xlu0 %1458
        %1460 = vrot.lane.b32.xlu0 %v1271, 8
        %v1461 = vpop.permute.xlu0 %1460
        %1462 = vrot.lane.b32.xlu0 %v1273, 8
        %v1463 = vpop.permute.xlu0 %1462
        %1464 = vrot.lane.b32.xlu0 %v1276, 8
        %v1465 = vpop.permute.xlu0 %1464
        %1466 = vrot.lane.b32.xlu0 %v1278, 8
        %v1467 = vpop.permute.xlu0 %1466
        %1468 = vrot.lane.b32.xlu0 %v1281, 8
        %v1469 = vpop.permute.xlu0 %1468
        %1470 = vrot.lane.b32.xlu0 %v1283, 8
        %v1471 = vpop.permute.xlu0 %1470
        %1472 = vrot.lane.b32.xlu0 %v1286, 8
        %v1473 = vpop.permute.xlu0 %1472
        %1474 = vrot.lane.b32.xlu0 %v1288, 8
        %v1475 = vpop.permute.xlu0 %1474
        %1476 = vrot.lane.b32.xlu0 %v1291, 8
        %v1477 = vpop.permute.xlu0 %1476
        %1478 = vrot.lane.b32.xlu0 %v1293, 8
        %v1479 = vpop.permute.xlu0 %1478
        %1512 = vrot.lane.b32.xlu0 %v1033, 12
        %v1513 = vpop.permute.xlu0 %1512
        %1514 = vrot.lane.b32.xlu0 %v1034, 12
        %v1515 = vpop.permute.xlu0 %1514
        %1516 = vrot.lane.b32.xlu0 %v1036, 12
        %v1517 = vpop.permute.xlu0 %1516
        %1518 = vrot.lane.b32.xlu0 %v1037, 12
        %v1519 = vpop.permute.xlu0 %1518
        %1520 = vrot.lane.b32.xlu0 %v1039, 12
        %v1521 = vpop.permute.xlu0 %1520
        %1522 = vrot.lane.b32.xlu0 %v1040, 12
        %v1523 = vpop.permute.xlu0 %1522
        %1524 = vrot.lane.b32.xlu0 %v1042, 12
        %v1525 = vpop.permute.xlu0 %1524
        %1526 = vrot.lane.b32.xlu0 %v1043, 12
        %v1527 = vpop.permute.xlu0 %1526
        %1528 = vrot.lane.b32.xlu0 %v1045, 12
        %v1529 = vpop.permute.xlu0 %1528
        %1530 = vrot.lane.b32.xlu0 %v1046, 12
        %v1531 = vpop.permute.xlu0 %1530
        %1532 = vrot.lane.b32.xlu0 %v1048, 12
        %v1533 = vpop.permute.xlu0 %1532
        %1534 = vrot.lane.b32.xlu0 %v1049, 12
        %v1535 = vpop.permute.xlu0 %1534
        %1536 = vrot.lane.b32.xlu0 %v1051, 12
        %v1537 = vpop.permute.xlu0 %1536
        %1538 = vrot.lane.b32.xlu0 %v1052, 12
        %v1539 = vpop.permute.xlu0 %1538
        %1540 = vrot.lane.b32.xlu0 %v1054, 12
        %v1541 = vpop.permute.xlu0 %1540
        %1542 = vrot.lane.b32.xlu0 %v1055, 12
        %v1543 = vpop.permute.xlu0 %1542
        %1544 = vrot.lane.b32.xlu0 %v1057, 12
        %v1545 = vpop.permute.xlu0 %1544
        %1546 = vrot.lane.b32.xlu0 %v1058, 12
        %v1547 = vpop.permute.xlu0 %1546
        %1548 = vrot.lane.b32.xlu0 %v1060, 12
        %v1549 = vpop.permute.xlu0 %1548
        %1550 = vrot.lane.b32.xlu0 %v1061, 12
        %v1551 = vpop.permute.xlu0 %1550
        %1552 = vrot.lane.b32.xlu0 %v1063, 12
        %v1553 = vpop.permute.xlu0 %1552
        %1554 = vrot.lane.b32.xlu0 %v1064, 12
        %v1555 = vpop.permute.xlu0 %1554
        %1556 = vrot.lane.b32.xlu0 %v1066, 12
        %v1557 = vpop.permute.xlu0 %1556
        %1558 = vrot.lane.b32.xlu0 %v1067, 12
        %v1559 = vpop.permute.xlu0 %1558
        %1560 = vrot.lane.b32.xlu0 %v1069, 12
        %v1561 = vpop.permute.xlu0 %1560
        %1562 = vrot.lane.b32.xlu0 %v1070, 12
        %v1563 = vpop.permute.xlu0 %1562
        %1564 = vrot.lane.b32.xlu0 %v1072, 12
        %v1565 = vpop.permute.xlu0 %1564
        %1566 = vrot.lane.b32.xlu0 %v1073, 12
        %v1567 = vpop.permute.xlu0 %1566
        %1568 = vrot.lane.b32.xlu0 %v1075, 12
        %v1569 = vpop.permute.xlu0 %1568
        %1570 = vrot.lane.b32.xlu0 %v1076, 12
        %v1571 = vpop.permute.xlu0 %1570
        %1572 = vrot.lane.b32.xlu0 %v1078, 12
        %v1573 = vpop.permute.xlu0 %1572
        %1574 = vrot.lane.b32.xlu0 %v1079, 12
        %v1575 = vpop.permute.xlu0 %1574
        %1608 = vrot.lane.b32.xlu0 %v1140, 16
        %v1609 = vpop.permute.xlu0 %1608
        %1610 = vrot.lane.b32.xlu0 %v1142, 16
        %v1611 = vpop.permute.xlu0 %1610
        %1612 = vrot.lane.b32.xlu0 %v1145, 16
        %v1613 = vpop.permute.xlu0 %1612
        %1614 = vrot.lane.b32.xlu0 %v1147, 16
        %v1615 = vpop.permute.xlu0 %1614
        %1616 = vrot.lane.b32.xlu0 %v1150, 16
        %v1617 = vpop.permute.xlu0 %1616
        %1618 = vrot.lane.b32.xlu0 %v1152, 16
        %v1619 = vpop.permute.xlu0 %1618
        %1620 = vrot.lane.b32.xlu0 %v1155, 16
        %v1621 = vpop.permute.xlu0 %1620
        %1622 = vrot.lane.b32.xlu0 %v1157, 16
        %v1623 = vpop.permute.xlu0 %1622
        %1624 = vrot.lane.b32.xlu0 %v1160, 16
        %v1625 = vpop.permute.xlu0 %1624
        %1626 = vrot.lane.b32.xlu0 %v1162, 16
        %v1627 = vpop.permute.xlu0 %1626
        %1628 = vrot.lane.b32.xlu0 %v1165, 16
        %v1629 = vpop.permute.xlu0 %1628
        %1630 = vrot.lane.b32.xlu0 %v1167, 16
        %v1631 = vpop.permute.xlu0 %1630
        %1632 = vrot.lane.b32.xlu0 %v1170, 16
        %v1633 = vpop.permute.xlu0 %1632
        %1634 = vrot.lane.b32.xlu0 %v1172, 16
        %v1635 = vpop.permute.xlu0 %1634
        %1636 = vrot.lane.b32.xlu0 %v1175, 16
        %v1637 = vpop.permute.xlu0 %1636
        %1638 = vrot.lane.b32.xlu0 %v1177, 16
        %v1639 = vpop.permute.xlu0 %1638
        %1640 = vrot.lane.b32.xlu0 %v1180, 16
        %v1641 = vpop.permute.xlu0 %1640
        %1642 = vrot.lane.b32.xlu0 %v1182, 16
        %v1643 = vpop.permute.xlu0 %1642
        %1644 = vrot.lane.b32.xlu0 %v1185, 16
        %v1645 = vpop.permute.xlu0 %1644
        %1646 = vrot.lane.b32.xlu0 %v1187, 16
        %v1647 = vpop.permute.xlu0 %1646
        %1648 = vrot.lane.b32.xlu0 %v1190, 16
        %v1649 = vpop.permute.xlu0 %1648
        %1650 = vrot.lane.b32.xlu0 %v1192, 16
        %v1651 = vpop.permute.xlu0 %1650
        %1652 = vrot.lane.b32.xlu0 %v1195, 16
        %v1653 = vpop.permute.xlu0 %1652
        %1654 = vrot.lane.b32.xlu0 %v1197, 16
        %v1655 = vpop.permute.xlu0 %1654
        %1656 = vrot.lane.b32.xlu0 %v1200, 16
        %v1657 = vpop.permute.xlu0 %1656
        %1658 = vrot.lane.b32.xlu0 %v1202, 16
        %v1659 = vpop.permute.xlu0 %1658
        %1660 = vrot.lane.b32.xlu0 %v1205, 16
        %v1661 = vpop.permute.xlu0 %1660
        %1662 = vrot.lane.b32.xlu0 %v1207, 16
        %v1663 = vpop.permute.xlu0 %1662
        %1664 = vrot.lane.b32.xlu0 %v1210, 16
        %v1665 = vpop.permute.xlu0 %1664
        %1666 = vrot.lane.b32.xlu0 %v1212, 16
        %v1667 = vpop.permute.xlu0 %1666
        %1668 = vrot.lane.b32.xlu0 %v1299, 16
        %v1669 = vpop.permute.xlu0 %1668
        %1670 = vrot.lane.b32.xlu0 %v1301, 16
        %v1671 = vpop.permute.xlu0 %1670
        %1704 = vrot.lane.b32.xlu0 %v1221, 20
        %v1705 = vpop.permute.xlu0 %1704
        %1706 = vrot.lane.b32.xlu0 %v1223, 20
        %v1707 = vpop.permute.xlu0 %1706
        %1708 = vrot.lane.b32.xlu0 %v1226, 20
        %v1709 = vpop.permute.xlu0 %1708
        %1710 = vrot.lane.b32.xlu0 %v1228, 20
        %v1711 = vpop.permute.xlu0 %1710
        %1712 = vrot.lane.b32.xlu0 %v1231, 20
        %v1713 = vpop.permute.xlu0 %1712
        %1714 = vrot.lane.b32.xlu0 %v1233, 20
        %v1715 = vpop.permute.xlu0 %1714
        %1716 = vrot.lane.b32.xlu0 %v1236, 20
        %v1717 = vpop.permute.xlu0 %1716
        %1718 = vrot.lane.b32.xlu0 %v1238, 20
        %v1719 = vpop.permute.xlu0 %1718
        %1720 = vrot.lane.b32.xlu0 %v1241, 20
        %v1721 = vpop.permute.xlu0 %1720
        %1722 = vrot.lane.b32.xlu0 %v1243, 20
        %v1723 = vpop.permute.xlu0 %1722
        %1724 = vrot.lane.b32.xlu0 %v1246, 20
        %v1725 = vpop.permute.xlu0 %1724
        %1726 = vrot.lane.b32.xlu0 %v1248, 20
        %v1727 = vpop.permute.xlu0 %1726
        %1728 = vrot.lane.b32.xlu0 %v1251, 20
        %v1729 = vpop.permute.xlu0 %1728
        %1730 = vrot.lane.b32.xlu0 %v1253, 20
        %v1731 = vpop.permute.xlu0 %1730
        %1732 = vrot.lane.b32.xlu0 %v1256, 20
        %v1733 = vpop.permute.xlu0 %1732
        %1734 = vrot.lane.b32.xlu0 %v1258, 20
        %v1735 = vpop.permute.xlu0 %1734
        %1736 = vrot.lane.b32.xlu0 %v1261, 20
        %v1737 = vpop.permute.xlu0 %1736
        %1738 = vrot.lane.b32.xlu0 %v1263, 20
        %v1739 = vpop.permute.xlu0 %1738
        %1740 = vrot.lane.b32.xlu0 %v1266, 20
        %v1741 = vpop.permute.xlu0 %1740
        %1742 = vrot.lane.b32.xlu0 %v1268, 20
        %v1743 = vpop.permute.xlu0 %1742
        %1744 = vrot.lane.b32.xlu0 %v1271, 20
        %v1745 = vpop.permute.xlu0 %1744
        %1746 = vrot.lane.b32.xlu0 %v1273, 20
        %v1747 = vpop.permute.xlu0 %1746
        %1748 = vrot.lane.b32.xlu0 %v1276, 20
        %v1749 = vpop.permute.xlu0 %1748
        %1750 = vrot.lane.b32.xlu0 %v1278, 20
        %v1751 = vpop.permute.xlu0 %1750
        %1752 = vrot.lane.b32.xlu0 %v1281, 20
        %v1753 = vpop.permute.xlu0 %1752
        %1754 = vrot.lane.b32.xlu0 %v1283, 20
        %v1755 = vpop.permute.xlu0 %1754
        %1756 = vrot.lane.b32.xlu0 %v1286, 20
        %v1757 = vpop.permute.xlu0 %1756
        %1758 = vrot.lane.b32.xlu0 %v1288, 20
        %v1759 = vpop.permute.xlu0 %1758
        %1760 = vrot.lane.b32.xlu0 %v1291, 20
        %v1761 = vpop.permute.xlu0 %1760
        %1762 = vrot.lane.b32.xlu0 %v1293, 20
        %v1763 = vpop.permute.xlu0 %1762
        %1764 = vrot.lane.b32.xlu0 %v1304, 20
        %v1765 = vpop.permute.xlu0 %1764
        %1766 = vrot.lane.b32.xlu0 %v1306, 20
        %v1767 = vpop.permute.xlu0 %1766
        %1800 = vrot.lane.b32.xlu0 %v1036, 24
        %v1801 = vpop.permute.xlu0 %1800
        %1802 = vrot.lane.b32.xlu0 %v1037, 24
        %v1803 = vpop.permute.xlu0 %1802
        %1804 = vrot.lane.b32.xlu0 %v1039, 24
        %v1805 = vpop.permute.xlu0 %1804
        %1806 = vrot.lane.b32.xlu0 %v1040, 24
        %v1807 = vpop.permute.xlu0 %1806
        %1808 = vrot.lane.b32.xlu0 %v1042, 24
        %v1809 = vpop.permute.xlu0 %1808
        %1810 = vrot.lane.b32.xlu0 %v1043, 24
        %v1811 = vpop.permute.xlu0 %1810
        %1812 = vrot.lane.b32.xlu0 %v1045, 24
        %v1813 = vpop.permute.xlu0 %1812
        %1814 = vrot.lane.b32.xlu0 %v1046, 24
        %v1815 = vpop.permute.xlu0 %1814
        %1816 = vrot.lane.b32.xlu0 %v1048, 24
        %v1817 = vpop.permute.xlu0 %1816
        %1818 = vrot.lane.b32.xlu0 %v1049, 24
        %v1819 = vpop.permute.xlu0 %1818
        %1820 = vrot.lane.b32.xlu0 %v1051, 24
        %v1821 = vpop.permute.xlu0 %1820
        %1822 = vrot.lane.b32.xlu0 %v1052, 24
        %v1823 = vpop.permute.xlu0 %1822
        %1824 = vrot.lane.b32.xlu0 %v1054, 24
        %v1825 = vpop.permute.xlu0 %1824
        %1826 = vrot.lane.b32.xlu0 %v1055, 24
        %v1827 = vpop.permute.xlu0 %1826
        %1828 = vrot.lane.b32.xlu0 %v1057, 24
        %v1829 = vpop.permute.xlu0 %1828
        %1830 = vrot.lane.b32.xlu0 %v1058, 24
        %v1831 = vpop.permute.xlu0 %1830
        %1832 = vrot.lane.b32.xlu0 %v1060, 24
        %v1833 = vpop.permute.xlu0 %1832
        %1834 = vrot.lane.b32.xlu0 %v1061, 24
        %v1835 = vpop.permute.xlu0 %1834
        %1836 = vrot.lane.b32.xlu0 %v1063, 24
        %v1837 = vpop.permute.xlu0 %1836
        %1838 = vrot.lane.b32.xlu0 %v1064, 24
        %v1839 = vpop.permute.xlu0 %1838
        %1840 = vrot.lane.b32.xlu0 %v1066, 24
        %v1841 = vpop.permute.xlu0 %1840
        %1842 = vrot.lane.b32.xlu0 %v1067, 24
        %v1843 = vpop.permute.xlu0 %1842
        %1844 = vrot.lane.b32.xlu0 %v1069, 24
        %v1845 = vpop.permute.xlu0 %1844
        %1846 = vrot.lane.b32.xlu0 %v1070, 24
        %v1847 = vpop.permute.xlu0 %1846
        %1848 = vrot.lane.b32.xlu0 %v1072, 24
        %v1849 = vpop.permute.xlu0 %1848
        %1850 = vrot.lane.b32.xlu0 %v1073, 24
        %v1851 = vpop.permute.xlu0 %1850
        %1852 = vrot.lane.b32.xlu0 %v1075, 24
        %v1853 = vpop.permute.xlu0 %1852
        %1854 = vrot.lane.b32.xlu0 %v1076, 24
        %v1855 = vpop.permute.xlu0 %1854
        %1856 = vrot.lane.b32.xlu0 %v1078, 24
        %v1857 = vpop.permute.xlu0 %1856
        %1858 = vrot.lane.b32.xlu0 %v1079, 24
        %v1859 = vpop.permute.xlu0 %1858
        %1860 = vrot.lane.b32.xlu0 %v1081, 24
        %v1861 = vpop.permute.xlu0 %1860
        %1862 = vrot.lane.b32.xlu0 %v1082, 24
        %v1863 = vpop.permute.xlu0 %1862
        %1896 = vrot.lane.b32.xlu0 %v1145, 28
        %v1897 = vpop.permute.xlu0 %1896
        %1898 = vrot.lane.b32.xlu0 %v1147, 28
        %v1899 = vpop.permute.xlu0 %1898
        %1900 = vrot.lane.b32.xlu0 %v1150, 28
        %v1901 = vpop.permute.xlu0 %1900
        %1902 = vrot.lane.b32.xlu0 %v1152, 28
        %v1903 = vpop.permute.xlu0 %1902
        %1904 = vrot.lane.b32.xlu0 %v1155, 28
        %v1905 = vpop.permute.xlu0 %1904
        %1906 = vrot.lane.b32.xlu0 %v1157, 28
        %v1907 = vpop.permute.xlu0 %1906
        %1908 = vrot.lane.b32.xlu0 %v1160, 28
        %v1909 = vpop.permute.xlu0 %1908
        %1910 = vrot.lane.b32.xlu0 %v1162, 28
        %v1911 = vpop.permute.xlu0 %1910
        %1912 = vrot.lane.b32.xlu0 %v1165, 28
        %v1913 = vpop.permute.xlu0 %1912
        %1914 = vrot.lane.b32.xlu0 %v1167, 28
        %v1915 = vpop.permute.xlu0 %1914
        %1916 = vrot.lane.b32.xlu0 %v1170, 28
        %v1917 = vpop.permute.xlu0 %1916
        %1918 = vrot.lane.b32.xlu0 %v1172, 28
        %v1919 = vpop.permute.xlu0 %1918
        %1920 = vrot.lane.b32.xlu0 %v1175, 28
        %v1921 = vpop.permute.xlu0 %1920
        %1922 = vrot.lane.b32.xlu0 %v1177, 28
        %v1923 = vpop.permute.xlu0 %1922
        %1924 = vrot.lane.b32.xlu0 %v1180, 28
        %v1925 = vpop.permute.xlu0 %1924
        %1926 = vrot.lane.b32.xlu0 %v1182, 28
        %v1927 = vpop.permute.xlu0 %1926
        %1928 = vrot.lane.b32.xlu0 %v1185, 28
        %v1929 = vpop.permute.xlu0 %1928
        %1930 = vrot.lane.b32.xlu0 %v1187, 28
        %v1931 = vpop.permute.xlu0 %1930
        %1932 = vrot.lane.b32.xlu0 %v1190, 28
        %v1933 = vpop.permute.xlu0 %1932
        %1934 = vrot.lane.b32.xlu0 %v1192, 28
        %v1935 = vpop.permute.xlu0 %1934
        %1936 = vrot.lane.b32.xlu0 %v1195, 28
        %v1937 = vpop.permute.xlu0 %1936
        %1938 = vrot.lane.b32.xlu0 %v1197, 28
        %v1939 = vpop.permute.xlu0 %1938
        %1940 = vrot.lane.b32.xlu0 %v1200, 28
        %v1941 = vpop.permute.xlu0 %1940
        %1942 = vrot.lane.b32.xlu0 %v1202, 28
        %v1943 = vpop.permute.xlu0 %1942
        %1944 = vrot.lane.b32.xlu0 %v1205, 28
        %v1945 = vpop.permute.xlu0 %1944
        %1946 = vrot.lane.b32.xlu0 %v1207, 28
        %v1947 = vpop.permute.xlu0 %1946
        %1948 = vrot.lane.b32.xlu0 %v1210, 28
        %v1949 = vpop.permute.xlu0 %1948
        %1950 = vrot.lane.b32.xlu0 %v1212, 28
        %v1951 = vpop.permute.xlu0 %1950
        %1952 = vrot.lane.b32.xlu0 %v1299, 28
        %v1953 = vpop.permute.xlu0 %1952
        %1954 = vrot.lane.b32.xlu0 %v1301, 28
        %v1955 = vpop.permute.xlu0 %1954
        %1956 = vrot.lane.b32.xlu0 %v1312, 28
        %v1957 = vpop.permute.xlu0 %1956
        %1958 = vrot.lane.b32.xlu0 %v1314, 28
        %v1959 = vpop.permute.xlu0 %1958
        %1992 = vrot.lane.b32.xlu0 %v1226, 32
        %v1993 = vpop.permute.xlu0 %1992
        %1994 = vrot.lane.b32.xlu0 %v1228, 32
        %v1995 = vpop.permute.xlu0 %1994
        %1996 = vrot.lane.b32.xlu0 %v1231, 32
        %v1997 = vpop.permute.xlu0 %1996
        %1998 = vrot.lane.b32.xlu0 %v1233, 32
        %v1999 = vpop.permute.xlu0 %1998
        %2000 = vrot.lane.b32.xlu0 %v1236, 32
        %v2001 = vpop.permute.xlu0 %2000
        %2002 = vrot.lane.b32.xlu0 %v1238, 32
        %v2003 = vpop.permute.xlu0 %2002
        %2004 = vrot.lane.b32.xlu0 %v1241, 32
        %v2005 = vpop.permute.xlu0 %2004
        %2006 = vrot.lane.b32.xlu0 %v1243, 32
        %v2007 = vpop.permute.xlu0 %2006
        %2008 = vrot.lane.b32.xlu0 %v1246, 32
        %v2009 = vpop.permute.xlu0 %2008
        %2010 = vrot.lane.b32.xlu0 %v1248, 32
        %v2011 = vpop.permute.xlu0 %2010
        %2012 = vrot.lane.b32.xlu0 %v1251, 32
        %v2013 = vpop.permute.xlu0 %2012
        %2014 = vrot.lane.b32.xlu0 %v1253, 32
        %v2015 = vpop.permute.xlu0 %2014
        %2016 = vrot.lane.b32.xlu0 %v1256, 32
        %v2017 = vpop.permute.xlu0 %2016
        %2018 = vrot.lane.b32.xlu0 %v1258, 32
        %v2019 = vpop.permute.xlu0 %2018
        %2020 = vrot.lane.b32.xlu0 %v1261, 32
        %v2021 = vpop.permute.xlu0 %2020
        %2022 = vrot.lane.b32.xlu0 %v1263, 32
        %v2023 = vpop.permute.xlu0 %2022
        %2024 = vrot.lane.b32.xlu0 %v1266, 32
        %v2025 = vpop.permute.xlu0 %2024
        %2026 = vrot.lane.b32.xlu0 %v1268, 32
        %v2027 = vpop.permute.xlu0 %2026
        %2028 = vrot.lane.b32.xlu0 %v1271, 32
        %v2029 = vpop.permute.xlu0 %2028
        %2030 = vrot.lane.b32.xlu0 %v1273, 32
        %v2031 = vpop.permute.xlu0 %2030
        %2032 = vrot.lane.b32.xlu0 %v1276, 32
        %v2033 = vpop.permute.xlu0 %2032
        %2034 = vrot.lane.b32.xlu0 %v1278, 32
        %v2035 = vpop.permute.xlu0 %2034
        %2036 = vrot.lane.b32.xlu0 %v1281, 32
        %v2037 = vpop.permute.xlu0 %2036
        %2038 = vrot.lane.b32.xlu0 %v1283, 32
        %v2039 = vpop.permute.xlu0 %2038
        %2040 = vrot.lane.b32.xlu0 %v1286, 32
        %v2041 = vpop.permute.xlu0 %2040
        %2042 = vrot.lane.b32.xlu0 %v1288, 32
        %v2043 = vpop.permute.xlu0 %2042
        %2044 = vrot.lane.b32.xlu0 %v1291, 32
        %v2045 = vpop.permute.xlu0 %2044
        %2046 = vrot.lane.b32.xlu0 %v1293, 32
        %v2047 = vpop.permute.xlu0 %2046
        %2048 = vrot.lane.b32.xlu0 %v1304, 32
        %v2049 = vpop.permute.xlu0 %2048
        %2050 = vrot.lane.b32.xlu0 %v1306, 32
        %v2051 = vpop.permute.xlu0 %2050
        %2052 = vrot.lane.b32.xlu0 %v1317, 32
        %v2053 = vpop.permute.xlu0 %2052
        %2054 = vrot.lane.b32.xlu0 %v1319, 32
        %v2055 = vpop.permute.xlu0 %2054
        %v2088 = vsel %vm490, %v1030, %v1321
        %v2089 = vsel %vm490, %v1031, %v1323
        %v2090 = vsel %vm490, %v1033, %v1325
        %v2091 = vsel %vm490, %v1034, %v1327
        %v2092 = vsel %vm490, %v1036, %v1329
        %v2093 = vsel %vm490, %v1037, %v1331
        %v2094 = vsel %vm490, %v1039, %v1333
        %v2095 = vsel %vm490, %v1040, %v1335
        %v2096 = vsel %vm490, %v1042, %v1337
        %v2097 = vsel %vm490, %v1043, %v1339
        %v2098 = vsel %vm490, %v1045, %v1341
        %v2099 = vsel %vm490, %v1046, %v1343
        %v2100 = vsel %vm490, %v1048, %v1345
        %v2101 = vsel %vm490, %v1049, %v1347
        %v2102 = vsel %vm490, %v1051, %v1349
        %v2103 = vsel %vm490, %v1052, %v1351
        %v2104 = vsel %vm490, %v1054, %v1353
        %v2105 = vsel %vm490, %v1055, %v1355
        %v2106 = vsel %vm490, %v1057, %v1357
        %v2107 = vsel %vm490, %v1058, %v1359
        %v2108 = vsel %vm490, %v1060, %v1361
        %v2109 = vsel %vm490, %v1061, %v1363
        %v2110 = vsel %vm490, %v1063, %v1365
        %v2111 = vsel %vm490, %v1064, %v1367
        %v2112 = vsel %vm490, %v1066, %v1369
        %v2113 = vsel %vm490, %v1067, %v1371
        %v2114 = vsel %vm490, %v1069, %v1373
        %v2115 = vsel %vm490, %v1070, %v1375
        %v2116 = vsel %vm490, %v1072, %v1377
        %v2117 = vsel %vm490, %v1073, %v1379
        %v2118 = vsel %vm490, %v1075, %v1381
        %v2119 = vsel %vm490, %v1076, %v1383
        %vm2120 = vcmask 64512
        %v2121 = vsel %vm2120, %v2088, %v1417
        %v2122 = vsel %vm2120, %v2089, %v1419
        %v2123 = vsel %vm2120, %v2090, %v1421
        %v2124 = vsel %vm2120, %v2091, %v1423
        %v2125 = vsel %vm2120, %v2092, %v1425
        %v2126 = vsel %vm2120, %v2093, %v1427
        %v2127 = vsel %vm2120, %v2094, %v1429
        %v2128 = vsel %vm2120, %v2095, %v1431
        %v2129 = vsel %vm2120, %v2096, %v1433
        %v2130 = vsel %vm2120, %v2097, %v1435
        %v2131 = vsel %vm2120, %v2098, %v1437
        %v2132 = vsel %vm2120, %v2099, %v1439
        %v2133 = vsel %vm2120, %v2100, %v1441
        %v2134 = vsel %vm2120, %v2101, %v1443
        %v2135 = vsel %vm2120, %v2102, %v1445
        %v2136 = vsel %vm2120, %v2103, %v1447
        %v2137 = vsel %vm2120, %v2104, %v1449
        %v2138 = vsel %vm2120, %v2105, %v1451
        %v2139 = vsel %vm2120, %v2106, %v1453
        %v2140 = vsel %vm2120, %v2107, %v1455
        %v2141 = vsel %vm2120, %v2108, %v1457
        %v2142 = vsel %vm2120, %v2109, %v1459
        %v2143 = vsel %vm2120, %v2110, %v1461
        %v2144 = vsel %vm2120, %v2111, %v1463
        %v2145 = vsel %vm2120, %v2112, %v1465
        %v2146 = vsel %vm2120, %v2113, %v1467
        %v2147 = vsel %vm2120, %v2114, %v1469
        %v2148 = vsel %vm2120, %v2115, %v1471
        %v2149 = vsel %vm2120, %v2116, %v1473
        %v2150 = vsel %vm2120, %v2117, %v1475
        %v2151 = vsel %vm2120, %v2118, %v1477
        %v2152 = vsel %vm2120, %v2119, %v1479
        %vm2153 = vcmask 97280
        %v2154 = vsel %vm2153, %v2121, %v1513
        %v2155 = vsel %vm2153, %v2122, %v1515
        %v2156 = vsel %vm2153, %v2123, %v1517
        %v2157 = vsel %vm2153, %v2124, %v1519
        %v2158 = vsel %vm2153, %v2125, %v1521
        %v2159 = vsel %vm2153, %v2126, %v1523
        %v2160 = vsel %vm2153, %v2127, %v1525
        %v2161 = vsel %vm2153, %v2128, %v1527
        %v2162 = vsel %vm2153, %v2129, %v1529
        %v2163 = vsel %vm2153, %v2130, %v1531
        %v2164 = vsel %vm2153, %v2131, %v1533
        %v2165 = vsel %vm2153, %v2132, %v1535
        %v2166 = vsel %vm2153, %v2133, %v1537
        %v2167 = vsel %vm2153, %v2134, %v1539
        %v2168 = vsel %vm2153, %v2135, %v1541
        %v2169 = vsel %vm2153, %v2136, %v1543
        %v2170 = vsel %vm2153, %v2137, %v1545
        %v2171 = vsel %vm2153, %v2138, %v1547
        %v2172 = vsel %vm2153, %v2139, %v1549
        %v2173 = vsel %vm2153, %v2140, %v1551
        %v2174 = vsel %vm2153, %v2141, %v1553
        %v2175 = vsel %vm2153, %v2142, %v1555
        %v2176 = vsel %vm2153, %v2143, %v1557
        %v2177 = vsel %vm2153, %v2144, %v1559
        %v2178 = vsel %vm2153, %v2145, %v1561
        %v2179 = vsel %vm2153, %v2146, %v1563
        %v2180 = vsel %vm2153, %v2147, %v1565
        %v2181 = vsel %vm2153, %v2148, %v1567
        %v2182 = vsel %vm2153, %v2149, %v1569
        %v2183 = vsel %vm2153, %v2150, %v1571
        %v2184 = vsel %vm2153, %v2151, %v1573
        %v2185 = vsel %vm2153, %v2152, %v1575
        %vm2186 = vcmask 130048
        %v2187 = vsel %vm2186, %v2154, %v1609
        %v2188 = vsel %vm2186, %v2155, %v1611
        %v2189 = vsel %vm2186, %v2156, %v1613
        %v2190 = vsel %vm2186, %v2157, %v1615
        %v2191 = vsel %vm2186, %v2158, %v1617
        %v2192 = vsel %vm2186, %v2159, %v1619
        %v2193 = vsel %vm2186, %v2160, %v1621
        %v2194 = vsel %vm2186, %v2161, %v1623
        %v2195 = vsel %vm2186, %v2162, %v1625
        %v2196 = vsel %vm2186, %v2163, %v1627
        %v2197 = vsel %vm2186, %v2164, %v1629
        %v2198 = vsel %vm2186, %v2165, %v1631
        %v2199 = vsel %vm2186, %v2166, %v1633
        %v2200 = vsel %vm2186, %v2167, %v1635
        %v2201 = vsel %vm2186, %v2168, %v1637
        %v2202 = vsel %vm2186, %v2169, %v1639
        %v2203 = vsel %vm2186, %v2170, %v1641
        %v2204 = vsel %vm2186, %v2171, %v1643
        %v2205 = vsel %vm2186, %v2172, %v1645
        %v2206 = vsel %vm2186, %v2173, %v1647
        %v2207 = vsel %vm2186, %v2174, %v1649
        %v2208 = vsel %vm2186, %v2175, %v1651
        %v2209 = vsel %vm2186, %v2176, %v1653
        %v2210 = vsel %vm2186, %v2177, %v1655
        %v2211 = vsel %vm2186, %v2178, %v1657
        %v2212 = vsel %vm2186, %v2179, %v1659
        %v2213 = vsel %vm2186, %v2180, %v1661
        %v2214 = vsel %vm2186, %v2181, %v1663
        %v2215 = vsel %vm2186, %v2182, %v1665
        %v2216 = vsel %vm2186, %v2183, %v1667
        %v2217 = vsel %vm2186, %v2184, %v1669
        %v2218 = vsel %vm2186, %v2185, %v1671
        %vm2219 = vcmask 162816
        %v2220 = vsel %vm2219, %v2187, %v1705
        %v2221 = vsel %vm2219, %v2188, %v1707
        %v2222 = vsel %vm2219, %v2189, %v1709
        %v2223 = vsel %vm2219, %v2190, %v1711
        %v2224 = vsel %vm2219, %v2191, %v1713
        %v2225 = vsel %vm2219, %v2192, %v1715
        %v2226 = vsel %vm2219, %v2193, %v1717
        %v2227 = vsel %vm2219, %v2194, %v1719
        %v2228 = vsel %vm2219, %v2195, %v1721
        %v2229 = vsel %vm2219, %v2196, %v1723
        %v2230 = vsel %vm2219, %v2197, %v1725
        %v2231 = vsel %vm2219, %v2198, %v1727
        %v2232 = vsel %vm2219, %v2199, %v1729
        %v2233 = vsel %vm2219, %v2200, %v1731
        %v2234 = vsel %vm2219, %v2201, %v1733
        %v2235 = vsel %vm2219, %v2202, %v1735
        %v2236 = vsel %vm2219, %v2203, %v1737
        %v2237 = vsel %vm2219, %v2204, %v1739
        %v2238 = vsel %vm2219, %v2205, %v1741
        %v2239 = vsel %vm2219, %v2206, %v1743
        %v2240 = vsel %vm2219, %v2207, %v1745
        %v2241 = vsel %vm2219, %v2208, %v1747
        %v2242 = vsel %vm2219, %v2209, %v1749
        %v2243 = vsel %vm2219, %v2210, %v1751
        %v2244 = vsel %vm2219, %v2211, %v1753
        %v2245 = vsel %vm2219, %v2212, %v1755
        %v2246 = vsel %vm2219, %v2213, %v1757
        %v2247 = vsel %vm2219, %v2214, %v1759
        %v2248 = vsel %vm2219, %v2215, %v1761
        %v2249 = vsel %vm2219, %v2216, %v1763
        %v2250 = vsel %vm2219, %v2217, %v1765
        %v2251 = vsel %vm2219, %v2218, %v1767
        %vm2252 = vcmask 195584
        %v2253 = vsel %vm2252, %v2220, %v1801
        %v2254 = vsel %vm2252, %v2221, %v1803
        %v2255 = vsel %vm2252, %v2222, %v1805
        %v2256 = vsel %vm2252, %v2223, %v1807
        %v2257 = vsel %vm2252, %v2224, %v1809
        %v2258 = vsel %vm2252, %v2225, %v1811
        %v2259 = vsel %vm2252, %v2226, %v1813
        %v2260 = vsel %vm2252, %v2227, %v1815
        %v2261 = vsel %vm2252, %v2228, %v1817
        %v2262 = vsel %vm2252, %v2229, %v1819
        %v2263 = vsel %vm2252, %v2230, %v1821
        %v2264 = vsel %vm2252, %v2231, %v1823
        %v2265 = vsel %vm2252, %v2232, %v1825
        %v2266 = vsel %vm2252, %v2233, %v1827
        %v2267 = vsel %vm2252, %v2234, %v1829
        %v2268 = vsel %vm2252, %v2235, %v1831
        %v2269 = vsel %vm2252, %v2236, %v1833
        %v2270 = vsel %vm2252, %v2237, %v1835
        %v2271 = vsel %vm2252, %v2238, %v1837
        %v2272 = vsel %vm2252, %v2239, %v1839
        %v2273 = vsel %vm2252, %v2240, %v1841
        %v2274 = vsel %vm2252, %v2241, %v1843
        %v2275 = vsel %vm2252, %v2242, %v1845
        %v2276 = vsel %vm2252, %v2243, %v1847
        %v2277 = vsel %vm2252, %v2244, %v1849
        %v2278 = vsel %vm2252, %v2245, %v1851
        %v2279 = vsel %vm2252, %v2246, %v1853
        %v2280 = vsel %vm2252, %v2247, %v1855
        %v2281 = vsel %vm2252, %v2248, %v1857
        %v2282 = vsel %vm2252, %v2249, %v1859
        %v2283 = vsel %vm2252, %v2250, %v1861
        %v2284 = vsel %vm2252, %v2251, %v1863
        %vm2285 = vcmask 228352
        %v2286 = vsel %vm2285, %v2253, %v1897
        %v2287 = vsel %vm2285, %v2254, %v1899
        %v2288 = vsel %vm2285, %v2255, %v1901
        %v2289 = vsel %vm2285, %v2256, %v1903
        %v2290 = vsel %vm2285, %v2257, %v1905
        %v2291 = vsel %vm2285, %v2258, %v1907
        %v2292 = vsel %vm2285, %v2259, %v1909
        %v2293 = vsel %vm2285, %v2260, %v1911
        %v2294 = vsel %vm2285, %v2261, %v1913
        %v2295 = vsel %vm2285, %v2262, %v1915
        %v2296 = vsel %vm2285, %v2263, %v1917
        %v2297 = vsel %vm2285, %v2264, %v1919
        %v2298 = vsel %vm2285, %v2265, %v1921
        %v2299 = vsel %vm2285, %v2266, %v1923
        %v2300 = vsel %vm2285, %v2267, %v1925
        %v2301 = vsel %vm2285, %v2268, %v1927
        %v2302 = vsel %vm2285, %v2269, %v1929
        %v2303 = vsel %vm2285, %v2270, %v1931
        %v2304 = vsel %vm2285, %v2271, %v1933
        %v2305 = vsel %vm2285, %v2272, %v1935
        %v2306 = vsel %vm2285, %v2273, %v1937
        %v2307 = vsel %vm2285, %v2274, %v1939
        %v2308 = vsel %vm2285, %v2275, %v1941
        %v2309 = vsel %vm2285, %v2276, %v1943
        %v2310 = vsel %vm2285, %v2277, %v1945
        %v2311 = vsel %vm2285, %v2278, %v1947
        %v2312 = vsel %vm2285, %v2279, %v1949
        %v2313 = vsel %vm2285, %v2280, %v1951
        %v2314 = vsel %vm2285, %v2281, %v1953
        %v2315 = vsel %vm2285, %v2282, %v1955
        %v2316 = vsel %vm2285, %v2283, %v1957
        %v2317 = vsel %vm2285, %v2284, %v1959
        %vm2318 = vcmask 261120
        %v2319 = vsel %vm2318, %v2286, %v1993
        %v2320 = vsel %vm2318, %v2287, %v1995
        %v2321 = vsel %vm2318, %v2288, %v1997
        %v2322 = vsel %vm2318, %v2289, %v1999
        %v2323 = vsel %vm2318, %v2290, %v2001
        %v2324 = vsel %vm2318, %v2291, %v2003
        %v2325 = vsel %vm2318, %v2292, %v2005
        %v2326 = vsel %vm2318, %v2293, %v2007
        %v2327 = vsel %vm2318, %v2294, %v2009
        %v2328 = vsel %vm2318, %v2295, %v2011
        %v2329 = vsel %vm2318, %v2296, %v2013
        %v2330 = vsel %vm2318, %v2297, %v2015
        %v2331 = vsel %vm2318, %v2298, %v2017
        %v2332 = vsel %vm2318, %v2299, %v2019
        %v2333 = vsel %vm2318, %v2300, %v2021
        %v2334 = vsel %vm2318, %v2301, %v2023
        %v2335 = vsel %vm2318, %v2302, %v2025
        %v2336 = vsel %vm2318, %v2303, %v2027
        %v2337 = vsel %vm2318, %v2304, %v2029
        %v2338 = vsel %vm2318, %v2305, %v2031
        %v2339 = vsel %vm2318, %v2306, %v2033
        %v2340 = vsel %vm2318, %v2307, %v2035
        %v2341 = vsel %vm2318, %v2308, %v2037
        %v2342 = vsel %vm2318, %v2309, %v2039
        %v2343 = vsel %vm2318, %v2310, %v2041
        %v2344 = vsel %vm2318, %v2311, %v2043
        %v2345 = vsel %vm2318, %v2312, %v2045
        %v2346 = vsel %vm2318, %v2313, %v2047
        %v2347 = vsel %vm2318, %v2314, %v2049
        %v2348 = vsel %vm2318, %v2315, %v2051
        %v2349 = vsel %vm2318, %v2316, %v2053
        %v2350 = vsel %vm2318, %v2317, %v2055
        %v2351 = vpack.c.bf16 %v2320, %v2319
        %v2352 = vpack.c.bf16 %v2322, %v2321
        %v2353 = vpack.c.bf16 %v2324, %v2323
        %v2354 = vpack.c.bf16 %v2326, %v2325
        %v2355 = vpack.c.bf16 %v2328, %v2327
        %v2356 = vpack.c.bf16 %v2330, %v2329
        %v2357 = vpack.c.bf16 %v2332, %v2331
        %v2358 = vpack.c.bf16 %v2334, %v2333
        %v2359 = vpack.c.bf16 %v2336, %v2335
        %v2360 = vpack.c.bf16 %v2338, %v2337
        %v2361 = vpack.c.bf16 %v2340, %v2339
        %v2362 = vpack.c.bf16 %v2342, %v2341
        %v2363 = vpack.c.bf16 %v2344, %v2343
        %v2364 = vpack.c.bf16 %v2346, %v2345
        %v2365 = vpack.c.bf16 %v2348, %v2347
        %v2366 = vpack.c.bf16 %v2350, %v2349
        %v2367 = vld [vmem:[%s4] sm:$0xf]
        %v2368 = vld [vmem:[%s4 + $0x4] sm:$0xf]
        %v2369 = vld [vmem:[%s4 + $0x8] sm:$0xf]
        %v2370 = vld [vmem:[%s4 + $0xc] sm:$0xf]
        %v2371 = vld [vmem:[%s4 + $0x10] sm:$0x3]
        %v2377 = vunpack.c.l.b16 %v2367
        %v2378 = vunpack.c.l.b16 %v2368
        %v2379 = vunpack.c.l.b16 %v2369
        %v2380 = vunpack.c.l.b16 %v2370
        %v2381 = vunpack.c.l.b16 %v2371
        %v2382 = vpack.c.b16 %v2378, %v2377
        %v2383 = vpack.c.b16 %v2380, %v2379
        %v2384 = vpack.c.b16 %v2381, %v2381
        %vm2387 = vcmask 293888
        %v2389 = vsel %vm2387, %v2351, 0
        %v2392 = vsel %vm2387, %v2352, 0
        %v2395 = vsel %vm2387, %v2353, 0
        %v2398 = vsel %vm2387, %v2354, 0
        %v2401 = vsel %vm2387, %v2355, 0
        %v2404 = vsel %vm2387, %v2356, 0
        %v2407 = vsel %vm2387, %v2357, 0
        %v2410 = vsel %vm2387, %v2358, 0
        %v2413 = vsel %vm2387, %v2359, 0
        %v2416 = vsel %vm2387, %v2360, 0
        %v2419 = vsel %vm2387, %v2361, 0
        %v2422 = vsel %vm2387, %v2362, 0
        %v2425 = vsel %vm2387, %v2363, 0
        %v2428 = vsel %vm2387, %v2364, 0
        %v2431 = vsel %vm2387, %v2365, 0
        %v2434 = vsel %vm2387, %v2366, 0
        %v2437 = vsel %vm539, %v2384, 0
        %2439 = vmatprep.subr.bf16.mxu0 0
        %2440 = vmatpush1.bf16.msra.mxu0 0
        %2441 = vmatprep.subr.bf16.mxu0 0
        %2442 = vmatpush1.bf16.msra.mxu0 0
        %2443 = vmatprep.subr.bf16.mxu0 0
        %2444 = vmatpush1.bf16.msra.mxu0 0
        %2445 = vmatprep.subr.bf16.mxu0 0
        %2446 = vmatpush1.bf16.msra.mxu0 0
        %2447 = vmatprep.subr.bf16.mxu0 0
        %2448 = vmatpush1.bf16.msra.mxu0 0
        %2449 = vmatprep.subr.bf16.mxu0 0
        %2450 = vmatpush1.bf16.msra.mxu0 %v2437
        %2451 = vmatprep.subr.bf16.mxu0 0
        %2452 = vmatpush1.bf16.msra.mxu0 %v2383
        %2453 = vmatprep.subr.bf16.mxu0 0
        %2454 = vmatpush1.bf16.msra.mxu0 %v2382
        %2455 = vmatprep.subr.bf16.mxu0 0
        %2456 = vmatpush2.bf16.msra.mxu0 0
        %2457 = vmatprep.subr.bf16.mxu0 0
        %2458 = vmatpush2.bf16.msra.mxu0 0
        %2459 = vmatprep.subr.bf16.mxu0 0
        %2460 = vmatpush2.bf16.msra.mxu0 0
        %2461 = vmatprep.subr.bf16.mxu0 0
        %2462 = vmatpush2.bf16.msra.mxu0 0
        %2463 = vmatprep.subr.bf16.mxu0 0
        %2464 = vmatpush2.bf16.msra.mxu0 0
        %2465 = vmatprep.subr.bf16.mxu0 0
        %2466 = vmatpush2.bf16.msra.mxu0 0
        %2467 = vmatprep.subr.bf16.mxu0 0
        %2468 = vmatpush2.bf16.msra.mxu0 0
        %2469 = vmatprep.subr.bf16.mxu0 0
        %2470 = vmatpush2.bf16.msra.mxu0 0
        %2471 = vmatprep.mubr.bf16.mxu0 0
        %2472 = vmatmul.mubr.bf16.gmra.mxu0 %v2389
        %v2473 = vpop.f32.mrf.mxu0
        %v2474 = vadd.f32 0.0, %v2473
        %v2475 = vpop.f32.mrf.mxu0
        %v2476 = vpop.f32.mrf.mxu0
        %v2477 = vadd.f32 0.0, %v2476
        %v2478 = vpop.f32.mrf.mxu0
        %2479 = vmatprep.mubr.bf16.mxu0 0
        %2480 = vmatmul.mubr.bf16.gmra.mxu0 %v2392
        %v2481 = vpop.f32.mrf.mxu0
        %v2482 = vadd.f32 0.0, %v2481
        %v2483 = vpop.f32.mrf.mxu0
        %v2484 = vpop.f32.mrf.mxu0
        %v2485 = vadd.f32 0.0, %v2484
        %v2486 = vpop.f32.mrf.mxu0
        %2487 = vmatprep.mubr.bf16.mxu0 0
        %2488 = vmatmul.mubr.bf16.gmra.mxu0 %v2395
        %v2489 = vpop.f32.mrf.mxu0
        %v2490 = vadd.f32 0.0, %v2489
        %v2491 = vpop.f32.mrf.mxu0
        %v2492 = vpop.f32.mrf.mxu0
        %v2493 = vadd.f32 0.0, %v2492
        %v2494 = vpop.f32.mrf.mxu0
        %2495 = vmatprep.mubr.bf16.mxu0 0
        %2496 = vmatmul.mubr.bf16.gmra.mxu0 %v2398
        %v2497 = vpop.f32.mrf.mxu0
        %v2498 = vadd.f32 0.0, %v2497
        %v2499 = vpop.f32.mrf.mxu0
        %v2500 = vpop.f32.mrf.mxu0
        %v2501 = vadd.f32 0.0, %v2500
        %v2502 = vpop.f32.mrf.mxu0
        %2503 = vmatprep.mubr.bf16.mxu0 0
        %2504 = vmatmul.mubr.bf16.gmra.mxu0 %v2401
        %v2505 = vpop.f32.mrf.mxu0
        %v2506 = vadd.f32 0.0, %v2505
        %v2507 = vpop.f32.mrf.mxu0
        %v2508 = vpop.f32.mrf.mxu0
        %v2509 = vadd.f32 0.0, %v2508
        %v2510 = vpop.f32.mrf.mxu0
        %2511 = vmatprep.mubr.bf16.mxu0 0
        %2512 = vmatmul.mubr.bf16.gmra.mxu0 %v2404
        %v2513 = vpop.f32.mrf.mxu0
        %v2514 = vadd.f32 0.0, %v2513
        %v2515 = vpop.f32.mrf.mxu0
        %v2516 = vpop.f32.mrf.mxu0
        %v2517 = vadd.f32 0.0, %v2516
        %v2518 = vpop.f32.mrf.mxu0
        %2519 = vmatprep.mubr.bf16.mxu0 0
        %2520 = vmatmul.mubr.bf16.gmra.mxu0 %v2407
        %v2521 = vpop.f32.mrf.mxu0
        %v2522 = vadd.f32 0.0, %v2521
        %v2523 = vpop.f32.mrf.mxu0
        %v2524 = vpop.f32.mrf.mxu0
        %v2525 = vadd.f32 0.0, %v2524
        %v2526 = vpop.f32.mrf.mxu0
        %2527 = vmatprep.mubr.bf16.mxu0 0
        %2528 = vmatmul.mubr.bf16.gmra.mxu0 %v2410
        %v2529 = vpop.f32.mrf.mxu0
        %v2530 = vadd.f32 0.0, %v2529
        %v2531 = vpop.f32.mrf.mxu0
        %v2532 = vpop.f32.mrf.mxu0
        %v2533 = vadd.f32 0.0, %v2532
        %v2534 = vpop.f32.mrf.mxu0
        %2535 = vmatprep.mubr.bf16.mxu0 0
        %2536 = vmatmul.mubr.bf16.gmra.mxu0 %v2413
        %v2537 = vpop.f32.mrf.mxu0
        %v2538 = vadd.f32 0.0, %v2537
        %v2539 = vpop.f32.mrf.mxu0
        %v2540 = vpop.f32.mrf.mxu0
        %v2541 = vadd.f32 0.0, %v2540
        %v2542 = vpop.f32.mrf.mxu0
        %2543 = vmatprep.mubr.bf16.mxu0 0
        %2544 = vmatmul.mubr.bf16.gmra.mxu0 %v2416
        %v2545 = vpop.f32.mrf.mxu0
        %v2546 = vadd.f32 0.0, %v2545
        %v2547 = vpop.f32.mrf.mxu0
        %v2548 = vpop.f32.mrf.mxu0
        %v2549 = vadd.f32 0.0, %v2548
        %v2550 = vpop.f32.mrf.mxu0
        %2551 = vmatprep.mubr.bf16.mxu0 0
        %2552 = vmatmul.mubr.bf16.gmra.mxu0 %v2419
        %v2553 = vpop.f32.mrf.mxu0
        %v2554 = vadd.f32 0.0, %v2553
        %v2555 = vpop.f32.mrf.mxu0
        %v2556 = vpop.f32.mrf.mxu0
        %v2557 = vadd.f32 0.0, %v2556
        %v2558 = vpop.f32.mrf.mxu0
        %2559 = vmatprep.mubr.bf16.mxu0 0
        %2560 = vmatmul.mubr.bf16.gmra.mxu0 %v2422
        %v2561 = vpop.f32.mrf.mxu0
        %v2562 = vadd.f32 0.0, %v2561
        %v2563 = vpop.f32.mrf.mxu0
        %v2564 = vpop.f32.mrf.mxu0
        %v2565 = vadd.f32 0.0, %v2564
        %v2566 = vpop.f32.mrf.mxu0
        %2567 = vmatprep.mubr.bf16.mxu0 0
        %2568 = vmatmul.mubr.bf16.gmra.mxu0 %v2425
        %v2569 = vpop.f32.mrf.mxu0
        %v2570 = vadd.f32 0.0, %v2569
        %v2571 = vpop.f32.mrf.mxu0
        %v2572 = vpop.f32.mrf.mxu0
        %v2573 = vadd.f32 0.0, %v2572
        %v2574 = vpop.f32.mrf.mxu0
        %2575 = vmatprep.mubr.bf16.mxu0 0
        %2576 = vmatmul.mubr.bf16.gmra.mxu0 %v2428
        %v2577 = vpop.f32.mrf.mxu0
        %v2578 = vadd.f32 0.0, %v2577
        %v2579 = vpop.f32.mrf.mxu0
        %v2580 = vpop.f32.mrf.mxu0
        %v2581 = vadd.f32 0.0, %v2580
        %v2582 = vpop.f32.mrf.mxu0
        %2583 = vmatprep.mubr.bf16.mxu0 0
        %2584 = vmatmul.mubr.bf16.gmra.mxu0 %v2431
        %v2585 = vpop.f32.mrf.mxu0
        %v2586 = vadd.f32 0.0, %v2585
        %v2587 = vpop.f32.mrf.mxu0
        %v2588 = vpop.f32.mrf.mxu0
        %v2589 = vadd.f32 0.0, %v2588
        %v2590 = vpop.f32.mrf.mxu0
        %2591 = vmatprep.mubr.bf16.mxu0 0
        %2592 = vmatmul.mubr.bf16.gmra.mxu0 %v2434
        %v2593 = vpop.f32.mrf.mxu0
        %v2594 = vadd.f32 0.0, %v2593
        %v2595 = vpop.f32.mrf.mxu0
        %v2596 = vpop.f32.mrf.mxu0
        %v2597 = vadd.f32 0.0, %v2596
        %v2598 = vpop.f32.mrf.mxu0
        %2599 = vdwg.mxu0
        %v2600 = vld [vmem:[%s5] sm:$0x1]
        %v2602 = vlaneseq
        %v2603 = vshrl.u32 %v2602, 7
        %v2604 = vsub.s32 0, %v2603
        %v2605 = vrot.slane %v2600, %v2604
        %v2607 = vmul.f32 %v2474, %v2605
        %v2608 = vmul.f32 %v2477, %v2605
        %v2609 = vmul.f32 %v2482, %v2605
        %v2610 = vmul.f32 %v2485, %v2605
        %v2611 = vmul.f32 %v2490, %v2605
        %v2612 = vmul.f32 %v2493, %v2605
        %v2613 = vmul.f32 %v2498, %v2605
        %v2614 = vmul.f32 %v2501, %v2605
        %v2615 = vmul.f32 %v2506, %v2605
        %v2616 = vmul.f32 %v2509, %v2605
        %v2617 = vmul.f32 %v2514, %v2605
        %v2618 = vmul.f32 %v2517, %v2605
        %v2619 = vmul.f32 %v2522, %v2605
        %v2620 = vmul.f32 %v2525, %v2605
        %v2621 = vmul.f32 %v2530, %v2605
        %v2622 = vmul.f32 %v2533, %v2605
        %v2623 = vmul.f32 %v2538, %v2605
        %v2624 = vmul.f32 %v2541, %v2605
        %v2625 = vmul.f32 %v2546, %v2605
        %v2626 = vmul.f32 %v2549, %v2605
        %v2627 = vmul.f32 %v2554, %v2605
        %v2628 = vmul.f32 %v2557, %v2605
        %v2629 = vmul.f32 %v2562, %v2605
        %v2630 = vmul.f32 %v2565, %v2605
        %v2631 = vmul.f32 %v2570, %v2605
        %v2632 = vmul.f32 %v2573, %v2605
        %v2633 = vmul.f32 %v2578, %v2605
        %v2634 = vmul.f32 %v2581, %v2605
        %v2635 = vmul.f32 %v2586, %v2605
        %v2636 = vmul.f32 %v2589, %v2605
        %v2637 = vmul.f32 %v2594, %v2605
        %v2638 = vmul.f32 %v2597, %v2605
        %v2639 = vld [vmem:[%s6] sm:$0x1]
        %v2641 = vlaneseq
        %v2642 = vshrl.u32 %v2641, 7
        %v2643 = vsub.s32 0, %v2642
        %v2644 = vrot.slane %v2639, %v2643
        %v2646 = vadd.f32 %v2607, %v2644
        %v2647 = vadd.f32 %v2608, %v2644
        %v2648 = vadd.f32 %v2609, %v2644
        %v2649 = vadd.f32 %v2610, %v2644
        %v2650 = vadd.f32 %v2611, %v2644
        %v2651 = vadd.f32 %v2612, %v2644
        %v2652 = vadd.f32 %v2613, %v2644
        %v2653 = vadd.f32 %v2614, %v2644
        %v2654 = vadd.f32 %v2615, %v2644
        %v2655 = vadd.f32 %v2616, %v2644
        %v2656 = vadd.f32 %v2617, %v2644
        %v2657 = vadd.f32 %v2618, %v2644
        %v2658 = vadd.f32 %v2619, %v2644
        %v2659 = vadd.f32 %v2620, %v2644
        %v2660 = vadd.f32 %v2621, %v2644
        %v2661 = vadd.f32 %v2622, %v2644
        %v2662 = vadd.f32 %v2623, %v2644
        %v2663 = vadd.f32 %v2624, %v2644
        %v2664 = vadd.f32 %v2625, %v2644
        %v2665 = vadd.f32 %v2626, %v2644
        %v2666 = vadd.f32 %v2627, %v2644
        %v2667 = vadd.f32 %v2628, %v2644
        %v2668 = vadd.f32 %v2629, %v2644
        %v2669 = vadd.f32 %v2630, %v2644
        %v2670 = vadd.f32 %v2631, %v2644
        %v2671 = vadd.f32 %v2632, %v2644
        %v2672 = vadd.f32 %v2633, %v2644
        %v2673 = vadd.f32 %v2634, %v2644
        %v2674 = vadd.f32 %v2635, %v2644
        %v2675 = vadd.f32 %v2636, %v2644
        %v2676 = vadd.f32 %v2637, %v2644
        %v2677 = vadd.f32 %v2638, %v2644
        %v2678 = vmax.f32 %v2646, 0.0
        %v2679 = vmax.f32 %v2647, 0.0
        %v2680 = vmax.f32 %v2648, 0.0
        %v2681 = vmax.f32 %v2649, 0.0
        %v2682 = vmax.f32 %v2650, 0.0
        %v2683 = vmax.f32 %v2651, 0.0
        %v2684 = vmax.f32 %v2652, 0.0
        %v2685 = vmax.f32 %v2653, 0.0
        %v2686 = vmax.f32 %v2654, 0.0
        %v2687 = vmax.f32 %v2655, 0.0
        %v2688 = vmax.f32 %v2656, 0.0
        %v2689 = vmax.f32 %v2657, 0.0
        %v2690 = vmax.f32 %v2658, 0.0
        %v2691 = vmax.f32 %v2659, 0.0
        %v2692 = vmax.f32 %v2660, 0.0
        %v2693 = vmax.f32 %v2661, 0.0
        %v2694 = vmax.f32 %v2662, 0.0
        %v2695 = vmax.f32 %v2663, 0.0
        %v2696 = vmax.f32 %v2664, 0.0
        %v2697 = vmax.f32 %v2665, 0.0
        %v2698 = vmax.f32 %v2666, 0.0
        %v2699 = vmax.f32 %v2667, 0.0
        %v2700 = vmax.f32 %v2668, 0.0
        %v2701 = vmax.f32 %v2669, 0.0
        %v2702 = vmax.f32 %v2670, 0.0
        %v2703 = vmax.f32 %v2671, 0.0
        %v2704 = vmax.f32 %v2672, 0.0
        %v2705 = vmax.f32 %v2673, 0.0
        %v2706 = vmax.f32 %v2674, 0.0
        %v2707 = vmax.f32 %v2675, 0.0
        %v2708 = vmax.f32 %v2676, 0.0
        %v2709 = vmax.f32 %v2677, 0.0
        %2710 = vst.msk [vmem:[#allocation3] sm:$0xff] %vm490, 0.0
        %2711 = vst.msk [vmem:[#allocation3 + $0x8] sm:$0xff] %vm490, 0.0
        %vm2712 = vcmask 27648
        %2713 = vst.msk [vmem:[#allocation3 + $0x10] sm:$0xf] %vm2712, 0.0
        %2714 = vst.msk [vmem:[#allocation3 + $0x18] sm:$0xff] %vm490, 0.0
        %2715 = vst.msk [vmem:[#allocation3 + $0x20] sm:$0xff] %vm490, 0.0
        %2716 = vst.msk [vmem:[#allocation3 + $0x28] sm:$0xf] %vm2712, 0.0
        %2717 = vst.msk [vmem:[#allocation3 + $0x30] sm:$0xff] %vm490, 0.0
        %2718 = vst.msk [vmem:[#allocation3 + $0x38] sm:$0xff] %vm490, 0.0
        %2719 = vst.msk [vmem:[#allocation3 + $0x40] sm:$0xf] %vm2712, 0.0
        %2720 = vst.msk [vmem:[#allocation3 + $0x48] sm:$0xff] %vm490, 0.0
        %2721 = vst.msk [vmem:[#allocation3 + $0x50] sm:$0xff] %vm490, 0.0
        %2722 = vst.msk [vmem:[#allocation3 + $0x58] sm:$0xf] %vm2712, 0.0
        %2723 = vst.msk [vmem:[#allocation3 + $0x60] sm:$0xff] %vm490, 0.0
        %2724 = vst.msk [vmem:[#allocation3 + $0x68] sm:$0xff] %vm490, 0.0
        %2725 = vst.msk [vmem:[#allocation3 + $0x70] sm:$0xf] %vm2712, 0.0
        %2726 = vst.msk [vmem:[#allocation3 + $0x78] sm:$0xff] %vm490, 0.0
        %2727 = vst.msk [vmem:[#allocation3 + $0x80] sm:$0xff] %vm490, 0.0
        %2728 = vst.msk [vmem:[#allocation3 + $0x88] sm:$0xf] %vm2712, 0.0
        %2729 = vst.msk [vmem:[#allocation3 + $0x90] sm:$0xff] %vm490, 0.0
        %2730 = vst.msk [vmem:[#allocation3 + $0x98] sm:$0xff] %vm490, 0.0
        %2731 = vst.msk [vmem:[#allocation3 + $0xa0] sm:$0xf] %vm2712, 0.0
        %2732 = vst.msk [vmem:[#allocation3 + $0xa8] sm:$0xff] %vm490, 0.0
        %2733 = vst.msk [vmem:[#allocation3 + $0xb0] sm:$0xff] %vm490, 0.0
        %2734 = vst.msk [vmem:[#allocation3 + $0xb8] sm:$0xf] %vm2712, 0.0
        %2735 = vst.msk [vmem:[#allocation3 + $0xc0] sm:$0xff] %vm490, 0.0
        %2736 = vst.msk [vmem:[#allocation3 + $0xc8] sm:$0xff] %vm490, 0.0
        %2737 = vst.msk [vmem:[#allocation3 + $0xd0] sm:$0xf] %vm2712, 0.0
        %2738 = vst.msk [vmem:[#allocation3 + $0xd8] sm:$0xff] %vm490, 0.0
        %2739 = vst.msk [vmem:[#allocation3 + $0xe0] sm:$0xff] %vm490, 0.0
        %2740 = vst.msk [vmem:[#allocation3 + $0xe8] sm:$0xf] %vm2712, 0.0
        %2741 = vst.msk [vmem:[#allocation3 + $0xf0] sm:$0xff] %vm490, 0.0
        %2742 = vst.msk [vmem:[#allocation3 + $0xf8] sm:$0xff] %vm490, 0.0
        %2743 = vst.msk [vmem:[#allocation3 + $0x100] sm:$0xf] %vm2712, 0.0
        %2744 = vst.msk [vmem:[#allocation3 + $0x108] sm:$0xff] %vm490, 0.0
        %2745 = vst.msk [vmem:[#allocation3 + $0x110] sm:$0xff] %vm490, 0.0
        %2746 = vst.msk [vmem:[#allocation3 + $0x118] sm:$0xf] %vm2712, 0.0
        %2747 = vst.msk [vmem:[#allocation3 + $0x120] sm:$0xff] %vm490, 0.0
        %2748 = vst.msk [vmem:[#allocation3 + $0x128] sm:$0xff] %vm490, 0.0
        %2749 = vst.msk [vmem:[#allocation3 + $0x130] sm:$0xf] %vm2712, 0.0
        %2750 = vst.msk [vmem:[#allocation3 + $0x138] sm:$0xff] %vm490, 0.0
        %2751 = vst.msk [vmem:[#allocation3 + $0x140] sm:$0xff] %vm490, 0.0
        %2752 = vst.msk [vmem:[#allocation3 + $0x148] sm:$0xf] %vm2712, 0.0
        %2753 = vst.msk [vmem:[#allocation3 + $0x150] sm:$0xff] %vm490, 0.0
        %2754 = vst.msk [vmem:[#allocation3 + $0x158] sm:$0xff] %vm490, 0.0
        %2755 = vst.msk [vmem:[#allocation3 + $0x160] sm:$0xf] %vm2712, 0.0
        %2756 = vst.msk [vmem:[#allocation3 + $0x168] sm:$0xff] %vm490, 0.0
        %2757 = vst.msk [vmem:[#allocation3 + $0x170] sm:$0xff] %vm490, 0.0
        %2758 = vst.msk [vmem:[#allocation3 + $0x178] sm:$0xf] %vm2712, 0.0
        %2759 = vst.msk [vmem:[#allocation3 + $0x180] sm:$0xff] %vm490, 0.0
        %2760 = vst.msk [vmem:[#allocation3 + $0x188] sm:$0xff] %vm490, 0.0
        %2761 = vst.msk [vmem:[#allocation3 + $0x190] sm:$0xf] %vm2712, 0.0
        %2762 = vst.msk [vmem:[#allocation3 + $0x198] sm:$0xff] %vm490, 0.0
        %2763 = vst.msk [vmem:[#allocation3 + $0x1a0] sm:$0xff] %vm490, 0.0
        %2764 = vst.msk [vmem:[#allocation3 + $0x1a8] sm:$0xf] %vm2712, 0.0
        %2765 = vst.msk [vmem:[#allocation3 + $0x1b0] sm:$0xff] %vm490, 0.0
        %2766 = vst.msk [vmem:[#allocation3 + $0x1b8] sm:$0xff] %vm490, 0.0
        %2767 = vst.msk [vmem:[#allocation3 + $0x1c0] sm:$0xf] %vm2712, 0.0
        %2768 = vst.msk [vmem:[#allocation3 + $0x1c8] sm:$0xff] %vm490, 0.0
        %2769 = vst.msk [vmem:[#allocation3 + $0x1d0] sm:$0xff] %vm490, 0.0
        %2770 = vst.msk [vmem:[#allocation3 + $0x1d8] sm:$0xf] %vm2712, 0.0
        %2771 = vrot.lane.b32.xlu0 %v782, 116
        %v2772 = vpop.permute.xlu0 %2771
        %2773 = vrot.lane.b32.xlu0 %v783, 116
        %v2774 = vpop.permute.xlu0 %2773
        %2775 = vrot.lane.b32.xlu0 %v784, 116
        %v2776 = vpop.permute.xlu0 %2775
        %2777 = vrot.lane.b32.xlu0 %v785, 116
        %v2778 = vpop.permute.xlu0 %2777
        %2779 = vrot.lane.b32.xlu0 %v786, 116
        %v2780 = vpop.permute.xlu0 %2779
        %2781 = vrot.lane.b32.xlu0 %v787, 116
        %v2782 = vpop.permute.xlu0 %2781
        %2783 = vrot.lane.b32.xlu0 %v788, 116
        %v2784 = vpop.permute.xlu0 %2783
        %2785 = vrot.lane.b32.xlu0 %v789, 116
        %v2786 = vpop.permute.xlu0 %2785
        %2787 = vrot.lane.b32.xlu0 %v790, 116
        %v2788 = vpop.permute.xlu0 %2787
        %2789 = vrot.lane.b32.xlu0 %v791, 116
        %v2790 = vpop.permute.xlu0 %2789
        %2791 = vrot.lane.b32.xlu0 %v792, 116
        %v2792 = vpop.permute.xlu0 %2791
        %2793 = vrot.lane.b32.xlu0 %v793, 116
        %v2794 = vpop.permute.xlu0 %2793
        %2795 = vrot.lane.b32.xlu0 %v794, 116
        %v2796 = vpop.permute.xlu0 %2795
        %2797 = vrot.lane.b32.xlu0 %v795, 116
        %v2798 = vpop.permute.xlu0 %2797
        %2799 = vrot.lane.b32.xlu0 %v796, 116
        %v2800 = vpop.permute.xlu0 %2799
        %2801 = vrot.lane.b32.xlu0 %v797, 116
        %v2802 = vpop.permute.xlu0 %2801
        %2803 = vrot.lane.b32.xlu0 %v798, 116
        %v2804 = vpop.permute.xlu0 %2803
        %2805 = vrot.lane.b32.xlu0 %v799, 116
        %v2806 = vpop.permute.xlu0 %2805
        %2807 = vrot.lane.b32.xlu0 %v800, 116
        %v2808 = vpop.permute.xlu0 %2807
        %2809 = vrot.lane.b32.xlu0 %v801, 116
        %v2810 = vpop.permute.xlu0 %2809
        %2811 = vrot.lane.b32.xlu0 %v802, 116
        %v2812 = vpop.permute.xlu0 %2811
        %2813 = vrot.lane.b32.xlu0 %v803, 116
        %v2814 = vpop.permute.xlu0 %2813
        %2815 = vrot.lane.b32.xlu0 %v804, 116
        %v2816 = vpop.permute.xlu0 %2815
        %2817 = vrot.lane.b32.xlu0 %v805, 116
        %v2818 = vpop.permute.xlu0 %2817
        %2819 = vrot.lane.b32.xlu0 %v806, 116
        %v2820 = vpop.permute.xlu0 %2819
        %2821 = vrot.lane.b32.xlu0 %v807, 116
        %v2822 = vpop.permute.xlu0 %2821
        %2823 = vrot.lane.b32.xlu0 %v808, 116
        %v2824 = vpop.permute.xlu0 %2823
        %2825 = vrot.lane.b32.xlu0 %v809, 116
        %v2826 = vpop.permute.xlu0 %2825
        %2827 = vrot.lane.b32.xlu0 %v810, 116
        %v2828 = vpop.permute.xlu0 %2827
        %2829 = vrot.lane.b32.xlu0 %v811, 116
        %v2830 = vpop.permute.xlu0 %2829
        %2831 = vrot.lane.b32.xlu0 %v812, 116
        %v2832 = vpop.permute.xlu0 %2831
        %2833 = vrot.lane.b32.xlu0 %v813, 116
        %v2834 = vpop.permute.xlu0 %2833
        %s2867 = scalar_lea.vmem [#allocation3], 48
        %2868 = vst.msk [vmem:[%s2867 + $0x2] sm:$0xff] %vm490, %v2772
        %2869 = vst.msk [vmem:[%s2867 + $0xa] sm:$0xff] %vm490, %v2774
        %2870 = vst.msk [vmem:[%s2867 + $0x1a] sm:$0xff] %vm490, %v2776
        %2871 = vst.msk [vmem:[%s2867 + $0x22] sm:$0xff] %vm490, %v2778
        %2872 = vst.msk [vmem:[%s2867 + $0x32] sm:$0xff] %vm490, %v2780
        %2873 = vst.msk [vmem:[%s2867 + $0x3a] sm:$0xff] %vm490, %v2782
        %2874 = vst.msk [vmem:[%s2867 + $0x4a] sm:$0xff] %vm490, %v2784
        %2875 = vst.msk [vmem:[%s2867 + $0x52] sm:$0xff] %vm490, %v2786
        %2876 = vst.msk [vmem:[%s2867 + $0x62] sm:$0xff] %vm490, %v2788
        %2877 = vst.msk [vmem:[%s2867 + $0x6a] sm:$0xff] %vm490, %v2790
        %2878 = vst.msk [vmem:[%s2867 + $0x7a] sm:$0xff] %vm490, %v2792
        %2879 = vst.msk [vmem:[%s2867 + $0x82] sm:$0xff] %vm490, %v2794
        %2880 = vst.msk [vmem:[%s2867 + $0x92] sm:$0xff] %vm490, %v2796
        %2881 = vst.msk [vmem:[%s2867 + $0x9a] sm:$0xff] %vm490, %v2798
        %2882 = vst.msk [vmem:[%s2867 + $0xaa] sm:$0xff] %vm490, %v2800
        %2883 = vst.msk [vmem:[%s2867 + $0xb2] sm:$0xff] %vm490, %v2802
        %2884 = vst.msk [vmem:[%s2867 + $0xc2] sm:$0xff] %vm490, %v2804
        %2885 = vst.msk [vmem:[%s2867 + $0xca] sm:$0xff] %vm490, %v2806
        %2886 = vst.msk [vmem:[%s2867 + $0xda] sm:$0xff] %vm490, %v2808
        %2887 = vst.msk [vmem:[%s2867 + $0xe2] sm:$0xff] %vm490, %v2810
        %2888 = vst.msk [vmem:[%s2867 + $0xf2] sm:$0xff] %vm490, %v2812
        %2889 = vst.msk [vmem:[%s2867 + $0xfa] sm:$0xff] %vm490, %v2814
        %2890 = vst.msk [vmem:[%s2867 + $0x10a] sm:$0xff] %vm490, %v2816
        %2891 = vst.msk [vmem:[%s2867 + $0x112] sm:$0xff] %vm490, %v2818
        %2892 = vst.msk [vmem:[%s2867 + $0x122] sm:$0xff] %vm490, %v2820
        %2893 = vst.msk [vmem:[%s2867 + $0x12a] sm:$0xff] %vm490, %v2822
        %2894 = vst.msk [vmem:[%s2867 + $0x13a] sm:$0xff] %vm490, %v2824
        %2895 = vst.msk [vmem:[%s2867 + $0x142] sm:$0xff] %vm490, %v2826
        %2896 = vst.msk [vmem:[%s2867 + $0x152] sm:$0xff] %vm490, %v2828
        %2897 = vst.msk [vmem:[%s2867 + $0x15a] sm:$0xff] %vm490, %v2830
        %2898 = vst.msk [vmem:[%s2867 + $0x16a] sm:$0xff] %vm490, %v2832
        %2899 = vst.msk [vmem:[%s2867 + $0x172] sm:$0xff] %vm490, %v2834
        %v2900 = vld [vmem:[#allocation3] sm:$0xff]
        %v2901 = vld [vmem:[#allocation3 + $0x8] sm:$0xff]
        %v2902 = vld [vmem:[#allocation3 + $0x10] sm:$0xf]
        %v2903 = vld [vmem:[#allocation3 + $0x18] sm:$0xff]
        %v2904 = vld [vmem:[#allocation3 + $0x20] sm:$0xff]
        %v2905 = vld [vmem:[#allocation3 + $0x28] sm:$0xf]
        %v2906 = vld [vmem:[#allocation3 + $0x30] sm:$0xff]
        %v2907 = vld [vmem:[#allocation3 + $0x38] sm:$0xff]
        %v2908 = vld [vmem:[#allocation3 + $0x40] sm:$0xf]
        %v2909 = vld [vmem:[#allocation3 + $0x48] sm:$0xff]
        %v2910 = vld [vmem:[#allocation3 + $0x50] sm:$0xff]
        %v2911 = vld [vmem:[#allocation3 + $0x58] sm:$0xf]
        %v2912 = vld [vmem:[#allocation3 + $0x60] sm:$0xff]
        %v2913 = vld [vmem:[#allocation3 + $0x68] sm:$0xff]
        %v2914 = vld [vmem:[#allocation3 + $0x70] sm:$0xf]
        %v2915 = vld [vmem:[#allocation3 + $0x78] sm:$0xff]
        %v2916 = vld [vmem:[#allocation3 + $0x80] sm:$0xff]
        %v2917 = vld [vmem:[#allocation3 + $0x88] sm:$0xf]
        %v2918 = vld [vmem:[#allocation3 + $0x90] sm:$0xff]
        %v2919 = vld [vmem:[#allocation3 + $0x98] sm:$0xff]
        %v2920 = vld [vmem:[#allocation3 + $0xa0] sm:$0xf]
        %v2921 = vld [vmem:[#allocation3 + $0xa8] sm:$0xff]
        %v2922 = vld [vmem:[#allocation3 + $0xb0] sm:$0xff]
        %v2923 = vld [vmem:[#allocation3 + $0xb8] sm:$0xf]
        %v2924 = vld [vmem:[#allocation3 + $0xc0] sm:$0xff]
        %v2925 = vld [vmem:[#allocation3 + $0xc8] sm:$0xff]
        %v2926 = vld [vmem:[#allocation3 + $0xd0] sm:$0xf]
        %v2927 = vld [vmem:[#allocation3 + $0xd8] sm:$0xff]
        %v2928 = vld [vmem:[#allocation3 + $0xe0] sm:$0xff]
        %v2929 = vld [vmem:[#allocation3 + $0xe8] sm:$0xf]
        %v2930 = vld [vmem:[#allocation3 + $0xf0] sm:$0xff]
        %v2931 = vld [vmem:[#allocation3 + $0xf8] sm:$0xff]
        %v2932 = vld [vmem:[#allocation3 + $0x100] sm:$0xf]
        %v2933 = vld [vmem:[#allocation3 + $0x108] sm:$0xff]
        %v2934 = vld [vmem:[#allocation3 + $0x110] sm:$0xff]
        %v2935 = vld [vmem:[#allocation3 + $0x118] sm:$0xf]
        %v2936 = vld [vmem:[#allocation3 + $0x120] sm:$0xff]
        %v2937 = vld [vmem:[#allocation3 + $0x128] sm:$0xff]
        %v2938 = vld [vmem:[#allocation3 + $0x130] sm:$0xf]
        %v2939 = vld [vmem:[#allocation3 + $0x138] sm:$0xff]
        %v2940 = vld [vmem:[#allocation3 + $0x140] sm:$0xff]
        %v2941 = vld [vmem:[#allocation3 + $0x148] sm:$0xf]
        %v2942 = vld [vmem:[#allocation3 + $0x150] sm:$0xff]
        %v2943 = vld [vmem:[#allocation3 + $0x158] sm:$0xff]
        %v2944 = vld [vmem:[#allocation3 + $0x160] sm:$0xf]
        %v2945 = vld [vmem:[#allocation3 + $0x168] sm:$0xff]
        %v2946 = vld [vmem:[#allocation3 + $0x170] sm:$0xff]
        %v2947 = vld [vmem:[#allocation3 + $0x178] sm:$0xf]
        %v2948 = vld [vmem:[#allocation3 + $0x180] sm:$0xff]
        %v2949 = vld [vmem:[#allocation3 + $0x188] sm:$0xff]
        %v2950 = vld [vmem:[#allocation3 + $0x190] sm:$0xf]
        %v2951 = vld [vmem:[#allocation3 + $0x198] sm:$0xff]
        %v2952 = vld [vmem:[#allocation3 + $0x1a0] sm:$0xff]
        %v2953 = vld [vmem:[#allocation3 + $0x1a8] sm:$0xf]
        %v2954 = vld [vmem:[#allocation3 + $0x1b0] sm:$0xff]
        %v2955 = vld [vmem:[#allocation3 + $0x1b8] sm:$0xff]
        %v2956 = vld [vmem:[#allocation3 + $0x1c0] sm:$0xf]
        %v2957 = vld [vmem:[#allocation3 + $0x1c8] sm:$0xff]
        %v2958 = vld [vmem:[#allocation3 + $0x1d0] sm:$0xff]
        %v2959 = vld [vmem:[#allocation3 + $0x1d8] sm:$0xf]
        %v3008 = vrot.slane %v2900, 1
        %v3009 = vrot.slane %v2901, 1
        %v3010 = vsel %vm1132, %v3008, %v3009
        %v3011 = vrot.slane %v2902, 1
        %v3012 = vsel %vm1132, %v3009, %v3011
        %v3013 = vrot.slane %v2903, 1
        %v3014 = vrot.slane %v2904, 1
        %v3015 = vsel %vm1132, %v3013, %v3014
        %v3016 = vrot.slane %v2905, 1
        %v3017 = vsel %vm1132, %v3014, %v3016
        %v3018 = vrot.slane %v2906, 1
        %v3019 = vrot.slane %v2907, 1
        %v3020 = vsel %vm1132, %v3018, %v3019
        %v3021 = vrot.slane %v2908, 1
        %v3022 = vsel %vm1132, %v3019, %v3021
        %v3023 = vrot.slane %v2909, 1
        %v3024 = vrot.slane %v2910, 1
        %v3025 = vsel %vm1132, %v3023, %v3024
        %v3026 = vrot.slane %v2911, 1
        %v3027 = vsel %vm1132, %v3024, %v3026
        %v3028 = vrot.slane %v2912, 1
        %v3029 = vrot.slane %v2913, 1
        %v3030 = vsel %vm1132, %v3028, %v3029
        %v3031 = vrot.slane %v2914, 1
        %v3032 = vsel %vm1132, %v3029, %v3031
        %v3033 = vrot.slane %v2915, 1
        %v3034 = vrot.slane %v2916, 1
        %v3035 = vsel %vm1132, %v3033, %v3034
        %v3036 = vrot.slane %v2917, 1
        %v3037 = vsel %vm1132, %v3034, %v3036
        %v3038 = vrot.slane %v2918, 1
        %v3039 = vrot.slane %v2919, 1
        %v3040 = vsel %vm1132, %v3038, %v3039
        %v3041 = vrot.slane %v2920, 1
        %v3042 = vsel %vm1132, %v3039, %v3041
        %v3043 = vrot.slane %v2921, 1
        %v3044 = vrot.slane %v2922, 1
        %v3045 = vsel %vm1132, %v3043, %v3044
        %v3046 = vrot.slane %v2923, 1
        %v3047 = vsel %vm1132, %v3044, %v3046
        %v3048 = vrot.slane %v2924, 1
        %v3049 = vrot.slane %v2925, 1
        %v3050 = vsel %vm1132, %v3048, %v3049
        %v3051 = vrot.slane %v2926, 1
        %v3052 = vsel %vm1132, %v3049, %v3051
        %v3053 = vrot.slane %v2927, 1
        %v3054 = vrot.slane %v2928, 1
        %v3055 = vsel %vm1132, %v3053, %v3054
        %v3056 = vrot.slane %v2929, 1
        %v3057 = vsel %vm1132, %v3054, %v3056
        %v3058 = vrot.slane %v2930, 1
        %v3059 = vrot.slane %v2931, 1
        %v3060 = vsel %vm1132, %v3058, %v3059
        %v3061 = vrot.slane %v2932, 1
        %v3062 = vsel %vm1132, %v3059, %v3061
        %v3063 = vrot.slane %v2933, 1
        %v3064 = vrot.slane %v2934, 1
        %v3065 = vsel %vm1132, %v3063, %v3064
        %v3066 = vrot.slane %v2935, 1
        %v3067 = vsel %vm1132, %v3064, %v3066
        %v3068 = vrot.slane %v2936, 1
        %v3069 = vrot.slane %v2937, 1
        %v3070 = vsel %vm1132, %v3068, %v3069
        %v3071 = vrot.slane %v2938, 1
        %v3072 = vsel %vm1132, %v3069, %v3071
        %v3073 = vrot.slane %v2939, 1
        %v3074 = vrot.slane %v2940, 1
        %v3075 = vsel %vm1132, %v3073, %v3074
        %v3076 = vrot.slane %v2941, 1
        %v3077 = vsel %vm1132, %v3074, %v3076
        %v3078 = vrot.slane %v2942, 1
        %v3079 = vrot.slane %v2943, 1
        %v3080 = vsel %vm1132, %v3078, %v3079
        %v3081 = vrot.slane %v2944, 1
        %v3082 = vsel %vm1132, %v3079, %v3081
        %v3083 = vrot.slane %v2945, 1
        %v3084 = vrot.slane %v2946, 1
        %v3085 = vsel %vm1132, %v3083, %v3084
        %v3086 = vrot.slane %v2947, 1
        %v3087 = vsel %vm1132, %v3084, %v3086
        %v3088 = vrot.slane %v2900, 2
        %v3089 = vrot.slane %v2901, 2
        %v3090 = vsel %vm1213, %v3088, %v3089
        %v3091 = vrot.slane %v2902, 2
        %v3092 = vsel %vm1213, %v3089, %v3091
        %v3093 = vrot.slane %v2903, 2
        %v3094 = vrot.slane %v2904, 2
        %v3095 = vsel %vm1213, %v3093, %v3094
        %v3096 = vrot.slane %v2905, 2
        %v3097 = vsel %vm1213, %v3094, %v3096
        %v3098 = vrot.slane %v2906, 2
        %v3099 = vrot.slane %v2907, 2
        %v3100 = vsel %vm1213, %v3098, %v3099
        %v3101 = vrot.slane %v2908, 2
        %v3102 = vsel %vm1213, %v3099, %v3101
        %v3103 = vrot.slane %v2909, 2
        %v3104 = vrot.slane %v2910, 2
        %v3105 = vsel %vm1213, %v3103, %v3104
        %v3106 = vrot.slane %v2911, 2
        %v3107 = vsel %vm1213, %v3104, %v3106
        %v3108 = vrot.slane %v2912, 2
        %v3109 = vrot.slane %v2913, 2
        %v3110 = vsel %vm1213, %v3108, %v3109
        %v3111 = vrot.slane %v2914, 2
        %v3112 = vsel %vm1213, %v3109, %v3111
        %v3113 = vrot.slane %v2915, 2
        %v3114 = vrot.slane %v2916, 2
        %v3115 = vsel %vm1213, %v3113, %v3114
        %v3116 = vrot.slane %v2917, 2
        %v3117 = vsel %vm1213, %v3114, %v3116
        %v3118 = vrot.slane %v2918, 2
        %v3119 = vrot.slane %v2919, 2
        %v3120 = vsel %vm1213, %v3118, %v3119
        %v3121 = vrot.slane %v2920, 2
        %v3122 = vsel %vm1213, %v3119, %v3121
        %v3123 = vrot.slane %v2921, 2
        %v3124 = vrot.slane %v2922, 2
        %v3125 = vsel %vm1213, %v3123, %v3124
        %v3126 = vrot.slane %v2923, 2
        %v3127 = vsel %vm1213, %v3124, %v3126
        %v3128 = vrot.slane %v2924, 2
        %v3129 = vrot.slane %v2925, 2
        %v3130 = vsel %vm1213, %v3128, %v3129
        %v3131 = vrot.slane %v2926, 2
        %v3132 = vsel %vm1213, %v3129, %v3131
        %v3133 = vrot.slane %v2927, 2
        %v3134 = vrot.slane %v2928, 2
        %v3135 = vsel %vm1213, %v3133, %v3134
        %v3136 = vrot.slane %v2929, 2
        %v3137 = vsel %vm1213, %v3134, %v3136
        %v3138 = vrot.slane %v2930, 2
        %v3139 = vrot.slane %v2931, 2
        %v3140 = vsel %vm1213, %v3138, %v3139
        %v3141 = vrot.slane %v2932, 2
        %v3142 = vsel %vm1213, %v3139, %v3141
        %v3143 = vrot.slane %v2933, 2
        %v3144 = vrot.slane %v2934, 2
        %v3145 = vsel %vm1213, %v3143, %v3144
        %v3146 = vrot.slane %v2935, 2
        %v3147 = vsel %vm1213, %v3144, %v3146
        %v3148 = vrot.slane %v2936, 2
        %v3149 = vrot.slane %v2937, 2
        %v3150 = vsel %vm1213, %v3148, %v3149
        %v3151 = vrot.slane %v2938, 2
        %v3152 = vsel %vm1213, %v3149, %v3151
        %v3153 = vrot.slane %v2939, 2
        %v3154 = vrot.slane %v2940, 2
        %v3155 = vsel %vm1213, %v3153, %v3154
        %v3156 = vrot.slane %v2941, 2
        %v3157 = vsel %vm1213, %v3154, %v3156
        %v3158 = vrot.slane %v2942, 2
        %v3159 = vrot.slane %v2943, 2
        %v3160 = vsel %vm1213, %v3158, %v3159
        %v3161 = vrot.slane %v2944, 2
        %v3162 = vsel %vm1213, %v3159, %v3161
        %v3163 = vrot.slane %v2945, 2
        %v3164 = vrot.slane %v2946, 2
        %v3165 = vsel %vm1213, %v3163, %v3164
        %v3166 = vrot.slane %v2947, 2
        %v3167 = vsel %vm1213, %v3164, %v3166
        %vm3168 = vcmask 1044480
        %v3169 = vrot.slane %v2900, 3
        %v3170 = vrot.slane %v2901, 3
        %v3171 = vsel %vm3168, %v3169, %v3170
        %v3172 = vrot.slane %v2902, 3
        %v3173 = vsel %vm3168, %v3170, %v3172
        %v3174 = vrot.slane %v2903, 3
        %v3175 = vrot.slane %v2904, 3
        %v3176 = vsel %vm3168, %v3174, %v3175
        %v3177 = vrot.slane %v2905, 3
        %v3178 = vsel %vm3168, %v3175, %v3177
        %v3179 = vrot.slane %v2906, 3
        %v3180 = vrot.slane %v2907, 3
        %v3181 = vsel %vm3168, %v3179, %v3180
        %v3182 = vrot.slane %v2908, 3
        %v3183 = vsel %vm3168, %v3180, %v3182
        %v3184 = vrot.slane %v2909, 3
        %v3185 = vrot.slane %v2910, 3
        %v3186 = vsel %vm3168, %v3184, %v3185
        %v3187 = vrot.slane %v2911, 3
        %v3188 = vsel %vm3168, %v3185, %v3187
        %v3189 = vrot.slane %v2912, 3
        %v3190 = vrot.slane %v2913, 3
        %v3191 = vsel %vm3168, %v3189, %v3190
        %v3192 = vrot.slane %v2914, 3
        %v3193 = vsel %vm3168, %v3190, %v3192
        %v3194 = vrot.slane %v2915, 3
        %v3195 = vrot.slane %v2916, 3
        %v3196 = vsel %vm3168, %v3194, %v3195
        %v3197 = vrot.slane %v2917, 3
        %v3198 = vsel %vm3168, %v3195, %v3197
        %v3199 = vrot.slane %v2918, 3
        %v3200 = vrot.slane %v2919, 3
        %v3201 = vsel %vm3168, %v3199, %v3200
        %v3202 = vrot.slane %v2920, 3
        %v3203 = vsel %vm3168, %v3200, %v3202
        %v3204 = vrot.slane %v2921, 3
        %v3205 = vrot.slane %v2922, 3
        %v3206 = vsel %vm3168, %v3204, %v3205
        %v3207 = vrot.slane %v2923, 3
        %v3208 = vsel %vm3168, %v3205, %v3207
        %v3209 = vrot.slane %v2924, 3
        %v3210 = vrot.slane %v2925, 3
        %v3211 = vsel %vm3168, %v3209, %v3210
        %v3212 = vrot.slane %v2926, 3
        %v3213 = vsel %vm3168, %v3210, %v3212
        %v3214 = vrot.slane %v2927, 3
        %v3215 = vrot.slane %v2928, 3
        %v3216 = vsel %vm3168, %v3214, %v3215
        %v3217 = vrot.slane %v2929, 3
        %v3218 = vsel %vm3168, %v3215, %v3217
        %v3219 = vrot.slane %v2930, 3
        %v3220 = vrot.slane %v2931, 3
        %v3221 = vsel %vm3168, %v3219, %v3220
        %v3222 = vrot.slane %v2932, 3
        %v3223 = vsel %vm3168, %v3220, %v3222
        %v3224 = vrot.slane %v2933, 3
        %v3225 = vrot.slane %v2934, 3
        %v3226 = vsel %vm3168, %v3224, %v3225
        %v3227 = vrot.slane %v2935, 3
        %v3228 = vsel %vm3168, %v3225, %v3227
        %v3229 = vrot.slane %v2936, 3
        %v3230 = vrot.slane %v2937, 3
        %v3231 = vsel %vm3168, %v3229, %v3230
        %v3232 = vrot.slane %v2938, 3
        %v3233 = vsel %vm3168, %v3230, %v3232
        %v3234 = vrot.slane %v2939, 3
        %v3235 = vrot.slane %v2940, 3
        %v3236 = vsel %vm3168, %v3234, %v3235
        %v3237 = vrot.slane %v2941, 3
        %v3238 = vsel %vm3168, %v3235, %v3237
        %v3239 = vrot.slane %v2942, 3
        %v3240 = vrot.slane %v2943, 3
        %v3241 = vsel %vm3168, %v3239, %v3240
        %v3242 = vrot.slane %v2944, 3
        %v3243 = vsel %vm3168, %v3240, %v3242
        %v3244 = vrot.slane %v2945, 3
        %v3245 = vrot.slane %v2946, 3
        %v3246 = vsel %vm3168, %v3244, %v3245
        %v3247 = vrot.slane %v2947, 3
        %v3248 = vsel %vm3168, %v3245, %v3247
        %vm3249 = vcmask 1043456
        %v3250 = vrot.slane %v2900, 4
        %v3251 = vrot.slane %v2901, 4
        %v3252 = vsel %vm3249, %v3250, %v3251
        %v3253 = vrot.slane %v2902, 4
        %v3254 = vsel %vm3249, %v3251, %v3253
        %v3255 = vrot.slane %v2903, 4
        %v3256 = vrot.slane %v2904, 4
        %v3257 = vsel %vm3249, %v3255, %v3256
        %v3258 = vrot.slane %v2905, 4
        %v3259 = vsel %vm3249, %v3256, %v3258
        %v3260 = vrot.slane %v2906, 4
        %v3261 = vrot.slane %v2907, 4
        %v3262 = vsel %vm3249, %v3260, %v3261
        %v3263 = vrot.slane %v2908, 4
        %v3264 = vsel %vm3249, %v3261, %v3263
        %v3265 = vrot.slane %v2909, 4
        %v3266 = vrot.slane %v2910, 4
        %v3267 = vsel %vm3249, %v3265, %v3266
        %v3268 = vrot.slane %v2911, 4
        %v3269 = vsel %vm3249, %v3266, %v3268
        %v3270 = vrot.slane %v2912, 4
        %v3271 = vrot.slane %v2913, 4
        %v3272 = vsel %vm3249, %v3270, %v3271
        %v3273 = vrot.slane %v2914, 4
        %v3274 = vsel %vm3249, %v3271, %v3273
        %v3275 = vrot.slane %v2915, 4
        %v3276 = vrot.slane %v2916, 4
        %v3277 = vsel %vm3249, %v3275, %v3276
        %v3278 = vrot.slane %v2917, 4
        %v3279 = vsel %vm3249, %v3276, %v3278
        %v3280 = vrot.slane %v2918, 4
        %v3281 = vrot.slane %v2919, 4
        %v3282 = vsel %vm3249, %v3280, %v3281
        %v3283 = vrot.slane %v2920, 4
        %v3284 = vsel %vm3249, %v3281, %v3283
        %v3285 = vrot.slane %v2921, 4
        %v3286 = vrot.slane %v2922, 4
        %v3287 = vsel %vm3249, %v3285, %v3286
        %v3288 = vrot.slane %v2923, 4
        %v3289 = vsel %vm3249, %v3286, %v3288
        %v3290 = vrot.slane %v2924, 4
        %v3291 = vrot.slane %v2925, 4
        %v3292 = vsel %vm3249, %v3290, %v3291
        %v3293 = vrot.slane %v2926, 4
        %v3294 = vsel %vm3249, %v3291, %v3293
        %v3295 = vrot.slane %v2927, 4
        %v3296 = vrot.slane %v2928, 4
        %v3297 = vsel %vm3249, %v3295, %v3296
        %v3298 = vrot.slane %v2929, 4
        %v3299 = vsel %vm3249, %v3296, %v3298
        %v3300 = vrot.slane %v2930, 4
        %v3301 = vrot.slane %v2931, 4
        %v3302 = vsel %vm3249, %v3300, %v3301
        %v3303 = vrot.slane %v2932, 4
        %v3304 = vsel %vm3249, %v3301, %v3303
        %v3305 = vrot.slane %v2933, 4
        %v3306 = vrot.slane %v2934, 4
        %v3307 = vsel %vm3249, %v3305, %v3306
        %v3308 = vrot.slane %v2935, 4
        %v3309 = vsel %vm3249, %v3306, %v3308
        %v3310 = vrot.slane %v2936, 4
        %v3311 = vrot.slane %v2937, 4
        %v3312 = vsel %vm3249, %v3310, %v3311
        %v3313 = vrot.slane %v2938, 4
        %v3314 = vsel %vm3249, %v3311, %v3313
        %v3315 = vrot.slane %v2939, 4
        %v3316 = vrot.slane %v2940, 4
        %v3317 = vsel %vm3249, %v3315, %v3316
        %v3318 = vrot.slane %v2941, 4
        %v3319 = vsel %vm3249, %v3316, %v3318
        %v3320 = vrot.slane %v2942, 4
        %v3321 = vrot.slane %v2943, 4
        %v3322 = vsel %vm3249, %v3320, %v3321
        %v3323 = vrot.slane %v2944, 4
        %v3324 = vsel %vm3249, %v3321, %v3323
        %v3325 = vrot.slane %v2945, 4
        %v3326 = vrot.slane %v2946, 4
        %v3327 = vsel %vm3249, %v3325, %v3326
        %v3328 = vrot.slane %v2947, 4
        %v3329 = vsel %vm3249, %v3326, %v3328
        %v3333 = vrot.slane %v2948, 1
        %v3334 = vrot.slane %v2949, 1
        %v3335 = vsel %vm1132, %v3333, %v3334
        %v3336 = vrot.slane %v2950, 1
        %v3337 = vsel %vm1132, %v3334, %v3336
        %v3338 = vrot.slane %v2948, 2
        %v3339 = vrot.slane %v2949, 2
        %v3340 = vsel %vm1213, %v3338, %v3339
        %v3341 = vrot.slane %v2950, 2
        %v3342 = vsel %vm1213, %v3339, %v3341
        %v3343 = vrot.slane %v2948, 3
        %v3344 = vrot.slane %v2949, 3
        %v3345 = vsel %vm3168, %v3343, %v3344
        %v3346 = vrot.slane %v2950, 3
        %v3347 = vsel %vm3168, %v3344, %v3346
        %v3348 = vrot.slane %v2948, 4
        %v3349 = vrot.slane %v2949, 4
        %v3350 = vsel %vm3249, %v3348, %v3349
        %v3351 = vrot.slane %v2950, 4
        %v3352 = vsel %vm3249, %v3349, %v3351
        %v3356 = vrot.slane %v2951, 1
        %v3357 = vrot.slane %v2952, 1
        %v3358 = vsel %vm1132, %v3356, %v3357
        %v3359 = vrot.slane %v2953, 1
        %v3360 = vsel %vm1132, %v3357, %v3359
        %v3361 = vrot.slane %v2951, 2
        %v3362 = vrot.slane %v2952, 2
        %v3363 = vsel %vm1213, %v3361, %v3362
        %v3364 = vrot.slane %v2953, 2
        %v3365 = vsel %vm1213, %v3362, %v3364
        %v3366 = vrot.slane %v2951, 3
        %v3367 = vrot.slane %v2952, 3
        %v3368 = vsel %vm3168, %v3366, %v3367
        %v3369 = vrot.slane %v2953, 3
        %v3370 = vsel %vm3168, %v3367, %v3369
        %v3371 = vrot.slane %v2951, 4
        %v3372 = vrot.slane %v2952, 4
        %v3373 = vsel %vm3249, %v3371, %v3372
        %v3374 = vrot.slane %v2953, 4
        %v3375 = vsel %vm3249, %v3372, %v3374
        %v3379 = vrot.slane %v2954, 1
        %v3380 = vrot.slane %v2955, 1
        %v3381 = vsel %vm1132, %v3379, %v3380
        %v3382 = vrot.slane %v2956, 1
        %v3383 = vsel %vm1132, %v3380, %v3382
        %v3416 = vrot.slane %v2954, 2
        %v3417 = vrot.slane %v2955, 2
        %v3418 = vsel %vm1213, %v3416, %v3417
        %v3419 = vrot.slane %v2956, 2
        %v3420 = vsel %vm1213, %v3417, %v3419
        %v3421 = vrot.slane %v2954, 3
        %v3422 = vrot.slane %v2955, 3
        %v3423 = vsel %vm3168, %v3421, %v3422
        %v3424 = vrot.slane %v2956, 3
        %v3425 = vsel %vm3168, %v3422, %v3424
        %v3426 = vrot.slane %v2954, 4
        %v3427 = vrot.slane %v2955, 4
        %v3428 = vsel %vm3249, %v3426, %v3427
        %v3429 = vrot.slane %v2956, 4
        %v3430 = vsel %vm3249, %v3427, %v3429
        %v3434 = vrot.slane %v2957, 1
        %v3435 = vrot.slane %v2958, 1
        %v3436 = vsel %vm1132, %v3434, %v3435
        %v3437 = vrot.slane %v2959, 1
        %v3438 = vsel %vm1132, %v3435, %v3437
        %v3439 = vrot.slane %v2957, 2
        %v3440 = vrot.slane %v2958, 2
        %v3441 = vsel %vm1213, %v3439, %v3440
        %v3442 = vrot.slane %v2959, 2
        %v3443 = vsel %vm1213, %v3440, %v3442
        %v3444 = vrot.slane %v2957, 3
        %v3445 = vrot.slane %v2958, 3
        %v3446 = vsel %vm3168, %v3444, %v3445
        %v3447 = vrot.slane %v2959, 3
        %v3448 = vsel %vm3168, %v3445, %v3447
        %v3449 = vrot.slane %v2957, 4
        %v3450 = vrot.slane %v2958, 4
        %v3451 = vsel %vm3249, %v3449, %v3450
        %v3452 = vrot.slane %v2959, 4
        %v3453 = vsel %vm3249, %v3450, %v3452
        %3454 = vrot.lane.b32.xlu0 %v3010, 4
        %v3455 = vpop.permute.xlu0 %3454
        %3456 = vrot.lane.b32.xlu0 %v3012, 4
        %v3457 = vpop.permute.xlu0 %3456
        %3458 = vrot.lane.b32.xlu0 %v3015, 4
        %v3459 = vpop.permute.xlu0 %3458
        %3460 = vrot.lane.b32.xlu0 %v3017, 4
        %v3461 = vpop.permute.xlu0 %3460
        %3462 = vrot.lane.b32.xlu0 %v3020, 4
        %v3463 = vpop.permute.xlu0 %3462
        %3464 = vrot.lane.b32.xlu0 %v3022, 4
        %v3465 = vpop.permute.xlu0 %3464
        %3466 = vrot.lane.b32.xlu0 %v3025, 4
        %v3467 = vpop.permute.xlu0 %3466
        %3468 = vrot.lane.b32.xlu0 %v3027, 4
        %v3469 = vpop.permute.xlu0 %3468
        %3470 = vrot.lane.b32.xlu0 %v3030, 4
        %v3471 = vpop.permute.xlu0 %3470
        %3472 = vrot.lane.b32.xlu0 %v3032, 4
        %v3473 = vpop.permute.xlu0 %3472
        %3474 = vrot.lane.b32.xlu0 %v3035, 4
        %v3475 = vpop.permute.xlu0 %3474
        %3476 = vrot.lane.b32.xlu0 %v3037, 4
        %v3477 = vpop.permute.xlu0 %3476
        %3478 = vrot.lane.b32.xlu0 %v3040, 4
        %v3479 = vpop.permute.xlu0 %3478
        %3480 = vrot.lane.b32.xlu0 %v3042, 4
        %v3481 = vpop.permute.xlu0 %3480
        %3482 = vrot.lane.b32.xlu0 %v3045, 4
        %v3483 = vpop.permute.xlu0 %3482
        %3484 = vrot.lane.b32.xlu0 %v3047, 4
        %v3485 = vpop.permute.xlu0 %3484
        %3486 = vrot.lane.b32.xlu0 %v3050, 4
        %v3487 = vpop.permute.xlu0 %3486
        %3488 = vrot.lane.b32.xlu0 %v3052, 4
        %v3489 = vpop.permute.xlu0 %3488
        %3490 = vrot.lane.b32.xlu0 %v3055, 4
        %v3491 = vpop.permute.xlu0 %3490
        %3492 = vrot.lane.b32.xlu0 %v3057, 4
        %v3493 = vpop.permute.xlu0 %3492
        %3494 = vrot.lane.b32.xlu0 %v3060, 4
        %v3495 = vpop.permute.xlu0 %3494
        %3496 = vrot.lane.b32.xlu0 %v3062, 4
        %v3497 = vpop.permute.xlu0 %3496
        %3498 = vrot.lane.b32.xlu0 %v3065, 4
        %v3499 = vpop.permute.xlu0 %3498
        %3500 = vrot.lane.b32.xlu0 %v3067, 4
        %v3501 = vpop.permute.xlu0 %3500
        %3502 = vrot.lane.b32.xlu0 %v3070, 4
        %v3503 = vpop.permute.xlu0 %3502
        %3504 = vrot.lane.b32.xlu0 %v3072, 4
        %v3505 = vpop.permute.xlu0 %3504
        %3506 = vrot.lane.b32.xlu0 %v3075, 4
        %v3507 = vpop.permute.xlu0 %3506
        %3508 = vrot.lane.b32.xlu0 %v3077, 4
        %v3509 = vpop.permute.xlu0 %3508
        %3510 = vrot.lane.b32.xlu0 %v3080, 4
        %v3511 = vpop.permute.xlu0 %3510
        %3512 = vrot.lane.b32.xlu0 %v3082, 4
        %v3513 = vpop.permute.xlu0 %3512
        %3514 = vrot.lane.b32.xlu0 %v3085, 4
        %v3515 = vpop.permute.xlu0 %3514
        %3516 = vrot.lane.b32.xlu0 %v3087, 4
        %v3517 = vpop.permute.xlu0 %3516
        %3550 = vrot.lane.b32.xlu0 %v3090, 8
        %v3551 = vpop.permute.xlu0 %3550
        %3552 = vrot.lane.b32.xlu0 %v3092, 8
        %v3553 = vpop.permute.xlu0 %3552
        %3554 = vrot.lane.b32.xlu0 %v3095, 8
        %v3555 = vpop.permute.xlu0 %3554
        %3556 = vrot.lane.b32.xlu0 %v3097, 8
        %v3557 = vpop.permute.xlu0 %3556
        %3558 = vrot.lane.b32.xlu0 %v3100, 8
        %v3559 = vpop.permute.xlu0 %3558
        %3560 = vrot.lane.b32.xlu0 %v3102, 8
        %v3561 = vpop.permute.xlu0 %3560
        %3562 = vrot.lane.b32.xlu0 %v3105, 8
        %v3563 = vpop.permute.xlu0 %3562
        %3564 = vrot.lane.b32.xlu0 %v3107, 8
        %v3565 = vpop.permute.xlu0 %3564
        %3566 = vrot.lane.b32.xlu0 %v3110, 8
        %v3567 = vpop.permute.xlu0 %3566
        %3568 = vrot.lane.b32.xlu0 %v3112, 8
        %v3569 = vpop.permute.xlu0 %3568
        %3570 = vrot.lane.b32.xlu0 %v3115, 8
        %v3571 = vpop.permute.xlu0 %3570
        %3572 = vrot.lane.b32.xlu0 %v3117, 8
        %v3573 = vpop.permute.xlu0 %3572
        %3574 = vrot.lane.b32.xlu0 %v3120, 8
        %v3575 = vpop.permute.xlu0 %3574
        %3576 = vrot.lane.b32.xlu0 %v3122, 8
        %v3577 = vpop.permute.xlu0 %3576
        %3578 = vrot.lane.b32.xlu0 %v3125, 8
        %v3579 = vpop.permute.xlu0 %3578
        %3580 = vrot.lane.b32.xlu0 %v3127, 8
        %v3581 = vpop.permute.xlu0 %3580
        %3582 = vrot.lane.b32.xlu0 %v3130, 8
        %v3583 = vpop.permute.xlu0 %3582
        %3584 = vrot.lane.b32.xlu0 %v3132, 8
        %v3585 = vpop.permute.xlu0 %3584
        %3586 = vrot.lane.b32.xlu0 %v3135, 8
        %v3587 = vpop.permute.xlu0 %3586
        %3588 = vrot.lane.b32.xlu0 %v3137, 8
        %v3589 = vpop.permute.xlu0 %3588
        %3590 = vrot.lane.b32.xlu0 %v3140, 8
        %v3591 = vpop.permute.xlu0 %3590
        %3592 = vrot.lane.b32.xlu0 %v3142, 8
        %v3593 = vpop.permute.xlu0 %3592
        %3594 = vrot.lane.b32.xlu0 %v3145, 8
        %v3595 = vpop.permute.xlu0 %3594
        %3596 = vrot.lane.b32.xlu0 %v3147, 8
        %v3597 = vpop.permute.xlu0 %3596
        %3598 = vrot.lane.b32.xlu0 %v3150, 8
        %v3599 = vpop.permute.xlu0 %3598
        %3600 = vrot.lane.b32.xlu0 %v3152, 8
        %v3601 = vpop.permute.xlu0 %3600
        %3602 = vrot.lane.b32.xlu0 %v3155, 8
        %v3603 = vpop.permute.xlu0 %3602
        %3604 = vrot.lane.b32.xlu0 %v3157, 8
        %v3605 = vpop.permute.xlu0 %3604
        %3606 = vrot.lane.b32.xlu0 %v3160, 8
        %v3607 = vpop.permute.xlu0 %3606
        %3608 = vrot.lane.b32.xlu0 %v3162, 8
        %v3609 = vpop.permute.xlu0 %3608
        %3610 = vrot.lane.b32.xlu0 %v3165, 8
        %v3611 = vpop.permute.xlu0 %3610
        %3612 = vrot.lane.b32.xlu0 %v3167, 8
        %v3613 = vpop.permute.xlu0 %3612
        %3646 = vrot.lane.b32.xlu0 %v3171, 12
        %v3647 = vpop.permute.xlu0 %3646
        %3648 = vrot.lane.b32.xlu0 %v3173, 12
        %v3649 = vpop.permute.xlu0 %3648
        %3650 = vrot.lane.b32.xlu0 %v3176, 12
        %v3651 = vpop.permute.xlu0 %3650
        %3652 = vrot.lane.b32.xlu0 %v3178, 12
        %v3653 = vpop.permute.xlu0 %3652
        %3654 = vrot.lane.b32.xlu0 %v3181, 12
        %v3655 = vpop.permute.xlu0 %3654
        %3656 = vrot.lane.b32.xlu0 %v3183, 12
        %v3657 = vpop.permute.xlu0 %3656
        %3658 = vrot.lane.b32.xlu0 %v3186, 12
        %v3659 = vpop.permute.xlu0 %3658
        %3660 = vrot.lane.b32.xlu0 %v3188, 12
        %v3661 = vpop.permute.xlu0 %3660
        %3662 = vrot.lane.b32.xlu0 %v3191, 12
        %v3663 = vpop.permute.xlu0 %3662
        %3664 = vrot.lane.b32.xlu0 %v3193, 12
        %v3665 = vpop.permute.xlu0 %3664
        %3666 = vrot.lane.b32.xlu0 %v3196, 12
        %v3667 = vpop.permute.xlu0 %3666
        %3668 = vrot.lane.b32.xlu0 %v3198, 12
        %v3669 = vpop.permute.xlu0 %3668
        %3670 = vrot.lane.b32.xlu0 %v3201, 12
        %v3671 = vpop.permute.xlu0 %3670
        %3672 = vrot.lane.b32.xlu0 %v3203, 12
        %v3673 = vpop.permute.xlu0 %3672
        %3674 = vrot.lane.b32.xlu0 %v3206, 12
        %v3675 = vpop.permute.xlu0 %3674
        %3676 = vrot.lane.b32.xlu0 %v3208, 12
        %v3677 = vpop.permute.xlu0 %3676
        %3678 = vrot.lane.b32.xlu0 %v3211, 12
        %v3679 = vpop.permute.xlu0 %3678
        %3680 = vrot.lane.b32.xlu0 %v3213, 12
        %v3681 = vpop.permute.xlu0 %3680
        %3682 = vrot.lane.b32.xlu0 %v3216, 12
        %v3683 = vpop.permute.xlu0 %3682
        %3684 = vrot.lane.b32.xlu0 %v3218, 12
        %v3685 = vpop.permute.xlu0 %3684
        %3686 = vrot.lane.b32.xlu0 %v3221, 12
        %v3687 = vpop.permute.xlu0 %3686
        %3688 = vrot.lane.b32.xlu0 %v3223, 12
        %v3689 = vpop.permute.xlu0 %3688
        %3690 = vrot.lane.b32.xlu0 %v3226, 12
        %v3691 = vpop.permute.xlu0 %3690
        %3692 = vrot.lane.b32.xlu0 %v3228, 12
        %v3693 = vpop.permute.xlu0 %3692
        %3694 = vrot.lane.b32.xlu0 %v3231, 12
        %v3695 = vpop.permute.xlu0 %3694
        %3696 = vrot.lane.b32.xlu0 %v3233, 12
        %v3697 = vpop.permute.xlu0 %3696
        %3698 = vrot.lane.b32.xlu0 %v3236, 12
        %v3699 = vpop.permute.xlu0 %3698
        %3700 = vrot.lane.b32.xlu0 %v3238, 12
        %v3701 = vpop.permute.xlu0 %3700
        %3702 = vrot.lane.b32.xlu0 %v3241, 12
        %v3703 = vpop.permute.xlu0 %3702
        %3704 = vrot.lane.b32.xlu0 %v3243, 12
        %v3705 = vpop.permute.xlu0 %3704
        %3706 = vrot.lane.b32.xlu0 %v3246, 12
        %v3707 = vpop.permute.xlu0 %3706
        %3708 = vrot.lane.b32.xlu0 %v3248, 12
        %v3709 = vpop.permute.xlu0 %3708
        %3742 = vrot.lane.b32.xlu0 %v3252, 16
        %v3743 = vpop.permute.xlu0 %3742
        %3744 = vrot.lane.b32.xlu0 %v3254, 16
        %v3745 = vpop.permute.xlu0 %3744
        %3746 = vrot.lane.b32.xlu0 %v3257, 16
        %v3747 = vpop.permute.xlu0 %3746
        %3748 = vrot.lane.b32.xlu0 %v3259, 16
        %v3749 = vpop.permute.xlu0 %3748
        %3750 = vrot.lane.b32.xlu0 %v3262, 16
        %v3751 = vpop.permute.xlu0 %3750
        %3752 = vrot.lane.b32.xlu0 %v3264, 16
        %v3753 = vpop.permute.xlu0 %3752
        %3754 = vrot.lane.b32.xlu0 %v3267, 16
        %v3755 = vpop.permute.xlu0 %3754
        %3756 = vrot.lane.b32.xlu0 %v3269, 16
        %v3757 = vpop.permute.xlu0 %3756
        %3758 = vrot.lane.b32.xlu0 %v3272, 16
        %v3759 = vpop.permute.xlu0 %3758
        %3760 = vrot.lane.b32.xlu0 %v3274, 16
        %v3761 = vpop.permute.xlu0 %3760
        %3762 = vrot.lane.b32.xlu0 %v3277, 16
        %v3763 = vpop.permute.xlu0 %3762
        %3764 = vrot.lane.b32.xlu0 %v3279, 16
        %v3765 = vpop.permute.xlu0 %3764
        %3766 = vrot.lane.b32.xlu0 %v3282, 16
        %v3767 = vpop.permute.xlu0 %3766
        %3768 = vrot.lane.b32.xlu0 %v3284, 16
        %v3769 = vpop.permute.xlu0 %3768
        %3770 = vrot.lane.b32.xlu0 %v3287, 16
        %v3771 = vpop.permute.xlu0 %3770
        %3772 = vrot.lane.b32.xlu0 %v3289, 16
        %v3773 = vpop.permute.xlu0 %3772
        %3774 = vrot.lane.b32.xlu0 %v3292, 16
        %v3775 = vpop.permute.xlu0 %3774
        %3776 = vrot.lane.b32.xlu0 %v3294, 16
        %v3777 = vpop.permute.xlu0 %3776
        %3778 = vrot.lane.b32.xlu0 %v3297, 16
        %v3779 = vpop.permute.xlu0 %3778
        %3780 = vrot.lane.b32.xlu0 %v3299, 16
        %v3781 = vpop.permute.xlu0 %3780
        %3782 = vrot.lane.b32.xlu0 %v3302, 16
        %v3783 = vpop.permute.xlu0 %3782
        %3784 = vrot.lane.b32.xlu0 %v3304, 16
        %v3785 = vpop.permute.xlu0 %3784
        %3786 = vrot.lane.b32.xlu0 %v3307, 16
        %v3787 = vpop.permute.xlu0 %3786
        %3788 = vrot.lane.b32.xlu0 %v3309, 16
        %v3789 = vpop.permute.xlu0 %3788
        %3790 = vrot.lane.b32.xlu0 %v3312, 16
        %v3791 = vpop.permute.xlu0 %3790
        %3792 = vrot.lane.b32.xlu0 %v3314, 16
        %v3793 = vpop.permute.xlu0 %3792
        %3794 = vrot.lane.b32.xlu0 %v3317, 16
        %v3795 = vpop.permute.xlu0 %3794
        %3796 = vrot.lane.b32.xlu0 %v3319, 16
        %v3797 = vpop.permute.xlu0 %3796
        %3798 = vrot.lane.b32.xlu0 %v3322, 16
        %v3799 = vpop.permute.xlu0 %3798
        %3800 = vrot.lane.b32.xlu0 %v3324, 16
        %v3801 = vpop.permute.xlu0 %3800
        %3802 = vrot.lane.b32.xlu0 %v3327, 16
        %v3803 = vpop.permute.xlu0 %3802
        %3804 = vrot.lane.b32.xlu0 %v3329, 16
        %v3805 = vpop.permute.xlu0 %3804
        %3838 = vrot.lane.b32.xlu0 %v2903, 20
        %v3839 = vpop.permute.xlu0 %3838
        %3840 = vrot.lane.b32.xlu0 %v2904, 20
        %v3841 = vpop.permute.xlu0 %3840
        %3842 = vrot.lane.b32.xlu0 %v2906, 20
        %v3843 = vpop.permute.xlu0 %3842
        %3844 = vrot.lane.b32.xlu0 %v2907, 20
        %v3845 = vpop.permute.xlu0 %3844
        %3846 = vrot.lane.b32.xlu0 %v2909, 20
        %v3847 = vpop.permute.xlu0 %3846
        %3848 = vrot.lane.b32.xlu0 %v2910, 20
        %v3849 = vpop.permute.xlu0 %3848
        %3850 = vrot.lane.b32.xlu0 %v2912, 20
        %v3851 = vpop.permute.xlu0 %3850
        %3852 = vrot.lane.b32.xlu0 %v2913, 20
        %v3853 = vpop.permute.xlu0 %3852
        %3854 = vrot.lane.b32.xlu0 %v2915, 20
        %v3855 = vpop.permute.xlu0 %3854
        %3856 = vrot.lane.b32.xlu0 %v2916, 20
        %v3857 = vpop.permute.xlu0 %3856
        %3858 = vrot.lane.b32.xlu0 %v2918, 20
        %v3859 = vpop.permute.xlu0 %3858
        %3860 = vrot.lane.b32.xlu0 %v2919, 20
        %v3861 = vpop.permute.xlu0 %3860
        %3862 = vrot.lane.b32.xlu0 %v2921, 20
        %v3863 = vpop.permute.xlu0 %3862
        %3864 = vrot.lane.b32.xlu0 %v2922, 20
        %v3865 = vpop.permute.xlu0 %3864
        %3866 = vrot.lane.b32.xlu0 %v2924, 20
        %v3867 = vpop.permute.xlu0 %3866
        %3868 = vrot.lane.b32.xlu0 %v2925, 20
        %v3869 = vpop.permute.xlu0 %3868
        %3870 = vrot.lane.b32.xlu0 %v2927, 20
        %v3871 = vpop.permute.xlu0 %3870
        %3872 = vrot.lane.b32.xlu0 %v2928, 20
        %v3873 = vpop.permute.xlu0 %3872
        %3874 = vrot.lane.b32.xlu0 %v2930, 20
        %v3875 = vpop.permute.xlu0 %3874
        %3876 = vrot.lane.b32.xlu0 %v2931, 20
        %v3877 = vpop.permute.xlu0 %3876
        %3878 = vrot.lane.b32.xlu0 %v2933, 20
        %v3879 = vpop.permute.xlu0 %3878
        %3880 = vrot.lane.b32.xlu0 %v2934, 20
        %v3881 = vpop.permute.xlu0 %3880
        %3882 = vrot.lane.b32.xlu0 %v2936, 20
        %v3883 = vpop.permute.xlu0 %3882
        %3884 = vrot.lane.b32.xlu0 %v2937, 20
        %v3885 = vpop.permute.xlu0 %3884
        %3886 = vrot.lane.b32.xlu0 %v2939, 20
        %v3887 = vpop.permute.xlu0 %3886
        %3888 = vrot.lane.b32.xlu0 %v2940, 20
        %v3889 = vpop.permute.xlu0 %3888
        %3890 = vrot.lane.b32.xlu0 %v2942, 20
        %v3891 = vpop.permute.xlu0 %3890
        %3892 = vrot.lane.b32.xlu0 %v2943, 20
        %v3893 = vpop.permute.xlu0 %3892
        %3894 = vrot.lane.b32.xlu0 %v2945, 20
        %v3895 = vpop.permute.xlu0 %3894
        %3896 = vrot.lane.b32.xlu0 %v2946, 20
        %v3897 = vpop.permute.xlu0 %3896
        %3898 = vrot.lane.b32.xlu0 %v2948, 20
        %v3899 = vpop.permute.xlu0 %3898
        %3900 = vrot.lane.b32.xlu0 %v2949, 20
        %v3901 = vpop.permute.xlu0 %3900
        %3934 = vrot.lane.b32.xlu0 %v3015, 24
        %v3935 = vpop.permute.xlu0 %3934
        %3936 = vrot.lane.b32.xlu0 %v3017, 24
        %v3937 = vpop.permute.xlu0 %3936
        %3938 = vrot.lane.b32.xlu0 %v3020, 24
        %v3939 = vpop.permute.xlu0 %3938
        %3940 = vrot.lane.b32.xlu0 %v3022, 24
        %v3941 = vpop.permute.xlu0 %3940
        %3942 = vrot.lane.b32.xlu0 %v3025, 24
        %v3943 = vpop.permute.xlu0 %3942
        %3944 = vrot.lane.b32.xlu0 %v3027, 24
        %v3945 = vpop.permute.xlu0 %3944
        %3946 = vrot.lane.b32.xlu0 %v3030, 24
        %v3947 = vpop.permute.xlu0 %3946
        %3948 = vrot.lane.b32.xlu0 %v3032, 24
        %v3949 = vpop.permute.xlu0 %3948
        %3950 = vrot.lane.b32.xlu0 %v3035, 24
        %v3951 = vpop.permute.xlu0 %3950
        %3952 = vrot.lane.b32.xlu0 %v3037, 24
        %v3953 = vpop.permute.xlu0 %3952
        %3954 = vrot.lane.b32.xlu0 %v3040, 24
        %v3955 = vpop.permute.xlu0 %3954
        %3956 = vrot.lane.b32.xlu0 %v3042, 24
        %v3957 = vpop.permute.xlu0 %3956
        %3958 = vrot.lane.b32.xlu0 %v3045, 24
        %v3959 = vpop.permute.xlu0 %3958
        %3960 = vrot.lane.b32.xlu0 %v3047, 24
        %v3961 = vpop.permute.xlu0 %3960
        %3962 = vrot.lane.b32.xlu0 %v3050, 24
        %v3963 = vpop.permute.xlu0 %3962
        %3964 = vrot.lane.b32.xlu0 %v3052, 24
        %v3965 = vpop.permute.xlu0 %3964
        %3966 = vrot.lane.b32.xlu0 %v3055, 24
        %v3967 = vpop.permute.xlu0 %3966
        %3968 = vrot.lane.b32.xlu0 %v3057, 24
        %v3969 = vpop.permute.xlu0 %3968
        %3970 = vrot.lane.b32.xlu0 %v3060, 24
        %v3971 = vpop.permute.xlu0 %3970
        %3972 = vrot.lane.b32.xlu0 %v3062, 24
        %v3973 = vpop.permute.xlu0 %3972
        %3974 = vrot.lane.b32.xlu0 %v3065, 24
        %v3975 = vpop.permute.xlu0 %3974
        %3976 = vrot.lane.b32.xlu0 %v3067, 24
        %v3977 = vpop.permute.xlu0 %3976
        %3978 = vrot.lane.b32.xlu0 %v3070, 24
        %v3979 = vpop.permute.xlu0 %3978
        %3980 = vrot.lane.b32.xlu0 %v3072, 24
        %v3981 = vpop.permute.xlu0 %3980
        %3982 = vrot.lane.b32.xlu0 %v3075, 24
        %v3983 = vpop.permute.xlu0 %3982
        %3984 = vrot.lane.b32.xlu0 %v3077, 24
        %v3985 = vpop.permute.xlu0 %3984
        %3986 = vrot.lane.b32.xlu0 %v3080, 24
        %v3987 = vpop.permute.xlu0 %3986
        %3988 = vrot.lane.b32.xlu0 %v3082, 24
        %v3989 = vpop.permute.xlu0 %3988
        %3990 = vrot.lane.b32.xlu0 %v3085, 24
        %v3991 = vpop.permute.xlu0 %3990
        %3992 = vrot.lane.b32.xlu0 %v3087, 24
        %v3993 = vpop.permute.xlu0 %3992
        %3994 = vrot.lane.b32.xlu0 %v3335, 24
        %v3995 = vpop.permute.xlu0 %3994
        %3996 = vrot.lane.b32.xlu0 %v3337, 24
        %v3997 = vpop.permute.xlu0 %3996
        %4030 = vrot.lane.b32.xlu0 %v3095, 28
        %v4031 = vpop.permute.xlu0 %4030
        %4032 = vrot.lane.b32.xlu0 %v3097, 28
        %v4033 = vpop.permute.xlu0 %4032
        %4034 = vrot.lane.b32.xlu0 %v3100, 28
        %v4035 = vpop.permute.xlu0 %4034
        %4036 = vrot.lane.b32.xlu0 %v3102, 28
        %v4037 = vpop.permute.xlu0 %4036
        %4038 = vrot.lane.b32.xlu0 %v3105, 28
        %v4039 = vpop.permute.xlu0 %4038
        %4040 = vrot.lane.b32.xlu0 %v3107, 28
        %v4041 = vpop.permute.xlu0 %4040
        %4042 = vrot.lane.b32.xlu0 %v3110, 28
        %v4043 = vpop.permute.xlu0 %4042
        %4044 = vrot.lane.b32.xlu0 %v3112, 28
        %v4045 = vpop.permute.xlu0 %4044
        %4046 = vrot.lane.b32.xlu0 %v3115, 28
        %v4047 = vpop.permute.xlu0 %4046
        %4048 = vrot.lane.b32.xlu0 %v3117, 28
        %v4049 = vpop.permute.xlu0 %4048
        %4050 = vrot.lane.b32.xlu0 %v3120, 28
        %v4051 = vpop.permute.xlu0 %4050
        %4052 = vrot.lane.b32.xlu0 %v3122, 28
        %v4053 = vpop.permute.xlu0 %4052
        %4054 = vrot.lane.b32.xlu0 %v3125, 28
        %v4055 = vpop.permute.xlu0 %4054
        %4056 = vrot.lane.b32.xlu0 %v3127, 28
        %v4057 = vpop.permute.xlu0 %4056
        %4058 = vrot.lane.b32.xlu0 %v3130, 28
        %v4059 = vpop.permute.xlu0 %4058
        %4060 = vrot.lane.b32.xlu0 %v3132, 28
        %v4061 = vpop.permute.xlu0 %4060
        %4062 = vrot.lane.b32.xlu0 %v3135, 28
        %v4063 = vpop.permute.xlu0 %4062
        %4064 = vrot.lane.b32.xlu0 %v3137, 28
        %v4065 = vpop.permute.xlu0 %4064
        %4066 = vrot.lane.b32.xlu0 %v3140, 28
        %v4067 = vpop.permute.xlu0 %4066
        %4068 = vrot.lane.b32.xlu0 %v3142, 28
        %v4069 = vpop.permute.xlu0 %4068
        %4070 = vrot.lane.b32.xlu0 %v3145, 28
        %v4071 = vpop.permute.xlu0 %4070
        %4072 = vrot.lane.b32.xlu0 %v3147, 28
        %v4073 = vpop.permute.xlu0 %4072
        %4074 = vrot.lane.b32.xlu0 %v3150, 28
        %v4075 = vpop.permute.xlu0 %4074
        %4076 = vrot.lane.b32.xlu0 %v3152, 28
        %v4077 = vpop.permute.xlu0 %4076
        %4078 = vrot.lane.b32.xlu0 %v3155, 28
        %v4079 = vpop.permute.xlu0 %4078
        %4080 = vrot.lane.b32.xlu0 %v3157, 28
        %v4081 = vpop.permute.xlu0 %4080
        %4082 = vrot.lane.b32.xlu0 %v3160, 28
        %v4083 = vpop.permute.xlu0 %4082
        %4084 = vrot.lane.b32.xlu0 %v3162, 28
        %v4085 = vpop.permute.xlu0 %4084
        %4086 = vrot.lane.b32.xlu0 %v3165, 28
        %v4087 = vpop.permute.xlu0 %4086
        %4088 = vrot.lane.b32.xlu0 %v3167, 28
        %v4089 = vpop.permute.xlu0 %4088
        %4090 = vrot.lane.b32.xlu0 %v3340, 28
        %v4091 = vpop.permute.xlu0 %4090
        %4092 = vrot.lane.b32.xlu0 %v3342, 28
        %v4093 = vpop.permute.xlu0 %4092
        %4126 = vrot.lane.b32.xlu0 %v3176, 32
        %v4127 = vpop.permute.xlu0 %4126
        %4128 = vrot.lane.b32.xlu0 %v3178, 32
        %v4129 = vpop.permute.xlu0 %4128
        %4130 = vrot.lane.b32.xlu0 %v3181, 32
        %v4131 = vpop.permute.xlu0 %4130
        %4132 = vrot.lane.b32.xlu0 %v3183, 32
        %v4133 = vpop.permute.xlu0 %4132
        %4134 = vrot.lane.b32.xlu0 %v3186, 32
        %v4135 = vpop.permute.xlu0 %4134
        %4136 = vrot.lane.b32.xlu0 %v3188, 32
        %v4137 = vpop.permute.xlu0 %4136
        %4138 = vrot.lane.b32.xlu0 %v3191, 32
        %v4139 = vpop.permute.xlu0 %4138
        %4140 = vrot.lane.b32.xlu0 %v3193, 32
        %v4141 = vpop.permute.xlu0 %4140
        %4142 = vrot.lane.b32.xlu0 %v3196, 32
        %v4143 = vpop.permute.xlu0 %4142
        %4144 = vrot.lane.b32.xlu0 %v3198, 32
        %v4145 = vpop.permute.xlu0 %4144
        %4146 = vrot.lane.b32.xlu0 %v3201, 32
        %v4147 = vpop.permute.xlu0 %4146
        %4148 = vrot.lane.b32.xlu0 %v3203, 32
        %v4149 = vpop.permute.xlu0 %4148
        %4150 = vrot.lane.b32.xlu0 %v3206, 32
        %v4151 = vpop.permute.xlu0 %4150
        %4152 = vrot.lane.b32.xlu0 %v3208, 32
        %v4153 = vpop.permute.xlu0 %4152
        %4154 = vrot.lane.b32.xlu0 %v3211, 32
        %v4155 = vpop.permute.xlu0 %4154
        %4156 = vrot.lane.b32.xlu0 %v3213, 32
        %v4157 = vpop.permute.xlu0 %4156
        %4158 = vrot.lane.b32.xlu0 %v3216, 32
        %v4159 = vpop.permute.xlu0 %4158
        %4160 = vrot.lane.b32.xlu0 %v3218, 32
        %v4161 = vpop.permute.xlu0 %4160
        %4162 = vrot.lane.b32.xlu0 %v3221, 32
        %v4163 = vpop.permute.xlu0 %4162
        %4164 = vrot.lane.b32.xlu0 %v3223, 32
        %v4165 = vpop.permute.xlu0 %4164
        %4166 = vrot.lane.b32.xlu0 %v3226, 32
        %v4167 = vpop.permute.xlu0 %4166
        %4168 = vrot.lane.b32.xlu0 %v3228, 32
        %v4169 = vpop.permute.xlu0 %4168
        %4170 = vrot.lane.b32.xlu0 %v3231, 32
        %v4171 = vpop.permute.xlu0 %4170
        %4172 = vrot.lane.b32.xlu0 %v3233, 32
        %v4173 = vpop.permute.xlu0 %4172
        %4174 = vrot.lane.b32.xlu0 %v3236, 32
        %v4175 = vpop.permute.xlu0 %4174
        %4176 = vrot.lane.b32.xlu0 %v3238, 32
        %v4177 = vpop.permute.xlu0 %4176
        %4178 = vrot.lane.b32.xlu0 %v3241, 32
        %v4179 = vpop.permute.xlu0 %4178
        %4180 = vrot.lane.b32.xlu0 %v3243, 32
        %v4181 = vpop.permute.xlu0 %4180
        %4182 = vrot.lane.b32.xlu0 %v3246, 32
        %v4183 = vpop.permute.xlu0 %4182
        %4184 = vrot.lane.b32.xlu0 %v3248, 32
        %v4185 = vpop.permute.xlu0 %4184
        %4186 = vrot.lane.b32.xlu0 %v3345, 32
        %v4187 = vpop.permute.xlu0 %4186
        %4188 = vrot.lane.b32.xlu0 %v3347, 32
        %v4189 = vpop.permute.xlu0 %4188
        %4222 = vrot.lane.b32.xlu0 %v3257, 36
        %v4223 = vpop.permute.xlu0 %4222
        %4224 = vrot.lane.b32.xlu0 %v3259, 36
        %v4225 = vpop.permute.xlu0 %4224
        %4226 = vrot.lane.b32.xlu0 %v3262, 36
        %v4227 = vpop.permute.xlu0 %4226
        %4228 = vrot.lane.b32.xlu0 %v3264, 36
        %v4229 = vpop.permute.xlu0 %4228
        %4230 = vrot.lane.b32.xlu0 %v3267, 36
        %v4231 = vpop.permute.xlu0 %4230
        %4232 = vrot.lane.b32.xlu0 %v3269, 36
        %v4233 = vpop.permute.xlu0 %4232
        %4234 = vrot.lane.b32.xlu0 %v3272, 36
        %v4235 = vpop.permute.xlu0 %4234
        %4236 = vrot.lane.b32.xlu0 %v3274, 36
        %v4237 = vpop.permute.xlu0 %4236
        %4238 = vrot.lane.b32.xlu0 %v3277, 36
        %v4239 = vpop.permute.xlu0 %4238
        %4240 = vrot.lane.b32.xlu0 %v3279, 36
        %v4241 = vpop.permute.xlu0 %4240
        %4242 = vrot.lane.b32.xlu0 %v3282, 36
        %v4243 = vpop.permute.xlu0 %4242
        %4244 = vrot.lane.b32.xlu0 %v3284, 36
        %v4245 = vpop.permute.xlu0 %4244
        %4246 = vrot.lane.b32.xlu0 %v3287, 36
        %v4247 = vpop.permute.xlu0 %4246
        %4248 = vrot.lane.b32.xlu0 %v3289, 36
        %v4249 = vpop.permute.xlu0 %4248
        %4250 = vrot.lane.b32.xlu0 %v3292, 36
        %v4251 = vpop.permute.xlu0 %4250
        %4252 = vrot.lane.b32.xlu0 %v3294, 36
        %v4253 = vpop.permute.xlu0 %4252
        %4254 = vrot.lane.b32.xlu0 %v3297, 36
        %v4255 = vpop.permute.xlu0 %4254
        %4256 = vrot.lane.b32.xlu0 %v3299, 36
        %v4257 = vpop.permute.xlu0 %4256
        %4258 = vrot.lane.b32.xlu0 %v3302, 36
        %v4259 = vpop.permute.xlu0 %4258
        %4260 = vrot.lane.b32.xlu0 %v3304, 36
        %v4261 = vpop.permute.xlu0 %4260
        %4262 = vrot.lane.b32.xlu0 %v3307, 36
        %v4263 = vpop.permute.xlu0 %4262
        %4264 = vrot.lane.b32.xlu0 %v3309, 36
        %v4265 = vpop.permute.xlu0 %4264
        %4266 = vrot.lane.b32.xlu0 %v3312, 36
        %v4267 = vpop.permute.xlu0 %4266
        %4268 = vrot.lane.b32.xlu0 %v3314, 36
        %v4269 = vpop.permute.xlu0 %4268
        %4270 = vrot.lane.b32.xlu0 %v3317, 36
        %v4271 = vpop.permute.xlu0 %4270
        %4272 = vrot.lane.b32.xlu0 %v3319, 36
        %v4273 = vpop.permute.xlu0 %4272
        %4274 = vrot.lane.b32.xlu0 %v3322, 36
        %v4275 = vpop.permute.xlu0 %4274
        %4276 = vrot.lane.b32.xlu0 %v3324, 36
        %v4277 = vpop.permute.xlu0 %4276
        %4278 = vrot.lane.b32.xlu0 %v3327, 36
        %v4279 = vpop.permute.xlu0 %4278
        %4280 = vrot.lane.b32.xlu0 %v3329, 36
        %v4281 = vpop.permute.xlu0 %4280
        %4282 = vrot.lane.b32.xlu0 %v3350, 36
        %v4283 = vpop.permute.xlu0 %4282
        %4284 = vrot.lane.b32.xlu0 %v3352, 36
        %v4285 = vpop.permute.xlu0 %4284
        %4318 = vrot.lane.b32.xlu0 %v2906, 40
        %v4319 = vpop.permute.xlu0 %4318
        %4320 = vrot.lane.b32.xlu0 %v2907, 40
        %v4321 = vpop.permute.xlu0 %4320
        %4322 = vrot.lane.b32.xlu0 %v2909, 40
        %v4323 = vpop.permute.xlu0 %4322
        %4324 = vrot.lane.b32.xlu0 %v2910, 40
        %v4325 = vpop.permute.xlu0 %4324
        %4326 = vrot.lane.b32.xlu0 %v2912, 40
        %v4327 = vpop.permute.xlu0 %4326
        %4328 = vrot.lane.b32.xlu0 %v2913, 40
        %v4329 = vpop.permute.xlu0 %4328
        %4330 = vrot.lane.b32.xlu0 %v2915, 40
        %v4331 = vpop.permute.xlu0 %4330
        %4332 = vrot.lane.b32.xlu0 %v2916, 40
        %v4333 = vpop.permute.xlu0 %4332
        %4334 = vrot.lane.b32.xlu0 %v2918, 40
        %v4335 = vpop.permute.xlu0 %4334
        %4336 = vrot.lane.b32.xlu0 %v2919, 40
        %v4337 = vpop.permute.xlu0 %4336
        %4338 = vrot.lane.b32.xlu0 %v2921, 40
        %v4339 = vpop.permute.xlu0 %4338
        %4340 = vrot.lane.b32.xlu0 %v2922, 40
        %v4341 = vpop.permute.xlu0 %4340
        %4342 = vrot.lane.b32.xlu0 %v2924, 40
        %v4343 = vpop.permute.xlu0 %4342
        %4344 = vrot.lane.b32.xlu0 %v2925, 40
        %v4345 = vpop.permute.xlu0 %4344
        %4346 = vrot.lane.b32.xlu0 %v2927, 40
        %v4347 = vpop.permute.xlu0 %4346
        %4348 = vrot.lane.b32.xlu0 %v2928, 40
        %v4349 = vpop.permute.xlu0 %4348
        %4350 = vrot.lane.b32.xlu0 %v2930, 40
        %v4351 = vpop.permute.xlu0 %4350
        %4352 = vrot.lane.b32.xlu0 %v2931, 40
        %v4353 = vpop.permute.xlu0 %4352
        %4354 = vrot.lane.b32.xlu0 %v2933, 40
        %v4355 = vpop.permute.xlu0 %4354
        %4356 = vrot.lane.b32.xlu0 %v2934, 40
        %v4357 = vpop.permute.xlu0 %4356
        %4358 = vrot.lane.b32.xlu0 %v2936, 40
        %v4359 = vpop.permute.xlu0 %4358
        %4360 = vrot.lane.b32.xlu0 %v2937, 40
        %v4361 = vpop.permute.xlu0 %4360
        %4362 = vrot.lane.b32.xlu0 %v2939, 40
        %v4363 = vpop.permute.xlu0 %4362
        %4364 = vrot.lane.b32.xlu0 %v2940, 40
        %v4365 = vpop.permute.xlu0 %4364
        %4366 = vrot.lane.b32.xlu0 %v2942, 40
        %v4367 = vpop.permute.xlu0 %4366
        %4368 = vrot.lane.b32.xlu0 %v2943, 40
        %v4369 = vpop.permute.xlu0 %4368
        %4370 = vrot.lane.b32.xlu0 %v2945, 40
        %v4371 = vpop.permute.xlu0 %4370
        %4372 = vrot.lane.b32.xlu0 %v2946, 40
        %v4373 = vpop.permute.xlu0 %4372
        %4374 = vrot.lane.b32.xlu0 %v2948, 40
        %v4375 = vpop.permute.xlu0 %4374
        %4376 = vrot.lane.b32.xlu0 %v2949, 40
        %v4377 = vpop.permute.xlu0 %4376
        %4378 = vrot.lane.b32.xlu0 %v2951, 40
        %v4379 = vpop.permute.xlu0 %4378
        %4380 = vrot.lane.b32.xlu0 %v2952, 40
        %v4381 = vpop.permute.xlu0 %4380
        %4414 = vrot.lane.b32.xlu0 %v3020, 44
        %v4415 = vpop.permute.xlu0 %4414
        %4416 = vrot.lane.b32.xlu0 %v3022, 44
        %v4417 = vpop.permute.xlu0 %4416
        %4418 = vrot.lane.b32.xlu0 %v3025, 44
        %v4419 = vpop.permute.xlu0 %4418
        %4420 = vrot.lane.b32.xlu0 %v3027, 44
        %v4421 = vpop.permute.xlu0 %4420
        %4422 = vrot.lane.b32.xlu0 %v3030, 44
        %v4423 = vpop.permute.xlu0 %4422
        %4424 = vrot.lane.b32.xlu0 %v3032, 44
        %v4425 = vpop.permute.xlu0 %4424
        %4426 = vrot.lane.b32.xlu0 %v3035, 44
        %v4427 = vpop.permute.xlu0 %4426
        %4428 = vrot.lane.b32.xlu0 %v3037, 44
        %v4429 = vpop.permute.xlu0 %4428
        %4430 = vrot.lane.b32.xlu0 %v3040, 44
        %v4431 = vpop.permute.xlu0 %4430
        %4432 = vrot.lane.b32.xlu0 %v3042, 44
        %v4433 = vpop.permute.xlu0 %4432
        %4434 = vrot.lane.b32.xlu0 %v3045, 44
        %v4435 = vpop.permute.xlu0 %4434
        %4436 = vrot.lane.b32.xlu0 %v3047, 44
        %v4437 = vpop.permute.xlu0 %4436
        %4438 = vrot.lane.b32.xlu0 %v3050, 44
        %v4439 = vpop.permute.xlu0 %4438
        %4440 = vrot.lane.b32.xlu0 %v3052, 44
        %v4441 = vpop.permute.xlu0 %4440
        %4442 = vrot.lane.b32.xlu0 %v3055, 44
        %v4443 = vpop.permute.xlu0 %4442
        %4444 = vrot.lane.b32.xlu0 %v3057, 44
        %v4445 = vpop.permute.xlu0 %4444
        %4446 = vrot.lane.b32.xlu0 %v3060, 44
        %v4447 = vpop.permute.xlu0 %4446
        %4448 = vrot.lane.b32.xlu0 %v3062, 44
        %v4449 = vpop.permute.xlu0 %4448
        %4450 = vrot.lane.b32.xlu0 %v3065, 44
        %v4451 = vpop.permute.xlu0 %4450
        %4452 = vrot.lane.b32.xlu0 %v3067, 44
        %v4453 = vpop.permute.xlu0 %4452
        %4454 = vrot.lane.b32.xlu0 %v3070, 44
        %v4455 = vpop.permute.xlu0 %4454
        %4456 = vrot.lane.b32.xlu0 %v3072, 44
        %v4457 = vpop.permute.xlu0 %4456
        %4458 = vrot.lane.b32.xlu0 %v3075, 44
        %v4459 = vpop.permute.xlu0 %4458
        %4460 = vrot.lane.b32.xlu0 %v3077, 44
        %v4461 = vpop.permute.xlu0 %4460
        %4462 = vrot.lane.b32.xlu0 %v3080, 44
        %v4463 = vpop.permute.xlu0 %4462
        %4464 = vrot.lane.b32.xlu0 %v3082, 44
        %v4465 = vpop.permute.xlu0 %4464
        %4466 = vrot.lane.b32.xlu0 %v3085, 44
        %v4467 = vpop.permute.xlu0 %4466
        %4468 = vrot.lane.b32.xlu0 %v3087, 44
        %v4469 = vpop.permute.xlu0 %4468
        %4470 = vrot.lane.b32.xlu0 %v3335, 44
        %v4471 = vpop.permute.xlu0 %4470
        %4472 = vrot.lane.b32.xlu0 %v3337, 44
        %v4473 = vpop.permute.xlu0 %4472
        %4474 = vrot.lane.b32.xlu0 %v3358, 44
        %v4475 = vpop.permute.xlu0 %4474
        %4476 = vrot.lane.b32.xlu0 %v3360, 44
        %v4477 = vpop.permute.xlu0 %4476
        %4510 = vrot.lane.b32.xlu0 %v3100, 48
        %v4511 = vpop.permute.xlu0 %4510
        %4512 = vrot.lane.b32.xlu0 %v3102, 48
        %v4513 = vpop.permute.xlu0 %4512
        %4514 = vrot.lane.b32.xlu0 %v3105, 48
        %v4515 = vpop.permute.xlu0 %4514
        %4516 = vrot.lane.b32.xlu0 %v3107, 48
        %v4517 = vpop.permute.xlu0 %4516
        %4518 = vrot.lane.b32.xlu0 %v3110, 48
        %v4519 = vpop.permute.xlu0 %4518
        %4520 = vrot.lane.b32.xlu0 %v3112, 48
        %v4521 = vpop.permute.xlu0 %4520
        %4522 = vrot.lane.b32.xlu0 %v3115, 48
        %v4523 = vpop.permute.xlu0 %4522
        %4524 = vrot.lane.b32.xlu0 %v3117, 48
        %v4525 = vpop.permute.xlu0 %4524
        %4526 = vrot.lane.b32.xlu0 %v3120, 48
        %v4527 = vpop.permute.xlu0 %4526
        %4528 = vrot.lane.b32.xlu0 %v3122, 48
        %v4529 = vpop.permute.xlu0 %4528
        %4530 = vrot.lane.b32.xlu0 %v3125, 48
        %v4531 = vpop.permute.xlu0 %4530
        %4532 = vrot.lane.b32.xlu0 %v3127, 48
        %v4533 = vpop.permute.xlu0 %4532
        %4534 = vrot.lane.b32.xlu0 %v3130, 48
        %v4535 = vpop.permute.xlu0 %4534
        %4536 = vrot.lane.b32.xlu0 %v3132, 48
        %v4537 = vpop.permute.xlu0 %4536
        %4538 = vrot.lane.b32.xlu0 %v3135, 48
        %v4539 = vpop.permute.xlu0 %4538
        %4540 = vrot.lane.b32.xlu0 %v3137, 48
        %v4541 = vpop.permute.xlu0 %4540
        %4542 = vrot.lane.b32.xlu0 %v3140, 48
        %v4543 = vpop.permute.xlu0 %4542
        %4544 = vrot.lane.b32.xlu0 %v3142, 48
        %v4545 = vpop.permute.xlu0 %4544
        %4546 = vrot.lane.b32.xlu0 %v3145, 48
        %v4547 = vpop.permute.xlu0 %4546
        %4548 = vrot.lane.b32.xlu0 %v3147, 48
        %v4549 = vpop.permute.xlu0 %4548
        %4550 = vrot.lane.b32.xlu0 %v3150, 48
        %v4551 = vpop.permute.xlu0 %4550
        %4552 = vrot.lane.b32.xlu0 %v3152, 48
        %v4553 = vpop.permute.xlu0 %4552
        %4554 = vrot.lane.b32.xlu0 %v3155, 48
        %v4555 = vpop.permute.xlu0 %4554
        %4556 = vrot.lane.b32.xlu0 %v3157, 48
        %v4557 = vpop.permute.xlu0 %4556
        %4558 = vrot.lane.b32.xlu0 %v3160, 48
        %v4559 = vpop.permute.xlu0 %4558
        %4560 = vrot.lane.b32.xlu0 %v3162, 48
        %v4561 = vpop.permute.xlu0 %4560
        %4562 = vrot.lane.b32.xlu0 %v3165, 48
        %v4563 = vpop.permute.xlu0 %4562
        %4564 = vrot.lane.b32.xlu0 %v3167, 48
        %v4565 = vpop.permute.xlu0 %4564
        %4566 = vrot.lane.b32.xlu0 %v3340, 48
        %v4567 = vpop.permute.xlu0 %4566
        %4568 = vrot.lane.b32.xlu0 %v3342, 48
        %v4569 = vpop.permute.xlu0 %4568
        %4570 = vrot.lane.b32.xlu0 %v3363, 48
        %v4571 = vpop.permute.xlu0 %4570
        %4572 = vrot.lane.b32.xlu0 %v3365, 48
        %v4573 = vpop.permute.xlu0 %4572
        %4606 = vrot.lane.b32.xlu0 %v3181, 52
        %v4607 = vpop.permute.xlu0 %4606
        %4608 = vrot.lane.b32.xlu0 %v3183, 52
        %v4609 = vpop.permute.xlu0 %4608
        %4610 = vrot.lane.b32.xlu0 %v3186, 52
        %v4611 = vpop.permute.xlu0 %4610
        %4612 = vrot.lane.b32.xlu0 %v3188, 52
        %v4613 = vpop.permute.xlu0 %4612
        %4614 = vrot.lane.b32.xlu0 %v3191, 52
        %v4615 = vpop.permute.xlu0 %4614
        %4616 = vrot.lane.b32.xlu0 %v3193, 52
        %v4617 = vpop.permute.xlu0 %4616
        %4618 = vrot.lane.b32.xlu0 %v3196, 52
        %v4619 = vpop.permute.xlu0 %4618
        %4620 = vrot.lane.b32.xlu0 %v3198, 52
        %v4621 = vpop.permute.xlu0 %4620
        %4622 = vrot.lane.b32.xlu0 %v3201, 52
        %v4623 = vpop.permute.xlu0 %4622
        %4624 = vrot.lane.b32.xlu0 %v3203, 52
        %v4625 = vpop.permute.xlu0 %4624
        %4626 = vrot.lane.b32.xlu0 %v3206, 52
        %v4627 = vpop.permute.xlu0 %4626
        %4628 = vrot.lane.b32.xlu0 %v3208, 52
        %v4629 = vpop.permute.xlu0 %4628
        %4630 = vrot.lane.b32.xlu0 %v3211, 52
        %v4631 = vpop.permute.xlu0 %4630
        %4632 = vrot.lane.b32.xlu0 %v3213, 52
        %v4633 = vpop.permute.xlu0 %4632
        %4634 = vrot.lane.b32.xlu0 %v3216, 52
        %v4635 = vpop.permute.xlu0 %4634
        %4636 = vrot.lane.b32.xlu0 %v3218, 52
        %v4637 = vpop.permute.xlu0 %4636
        %4638 = vrot.lane.b32.xlu0 %v3221, 52
        %v4639 = vpop.permute.xlu0 %4638
        %4640 = vrot.lane.b32.xlu0 %v3223, 52
        %v4641 = vpop.permute.xlu0 %4640
        %4642 = vrot.lane.b32.xlu0 %v3226, 52
        %v4643 = vpop.permute.xlu0 %4642
        %4644 = vrot.lane.b32.xlu0 %v3228, 52
        %v4645 = vpop.permute.xlu0 %4644
        %4646 = vrot.lane.b32.xlu0 %v3231, 52
        %v4647 = vpop.permute.xlu0 %4646
        %4648 = vrot.lane.b32.xlu0 %v3233, 52
        %v4649 = vpop.permute.xlu0 %4648
        %4650 = vrot.lane.b32.xlu0 %v3236, 52
        %v4651 = vpop.permute.xlu0 %4650
        %4652 = vrot.lane.b32.xlu0 %v3238, 52
        %v4653 = vpop.permute.xlu0 %4652
        %4654 = vrot.lane.b32.xlu0 %v3241, 52
        %v4655 = vpop.permute.xlu0 %4654
        %4656 = vrot.lane.b32.xlu0 %v3243, 52
        %v4657 = vpop.permute.xlu0 %4656
        %4658 = vrot.lane.b32.xlu0 %v3246, 52
        %v4659 = vpop.permute.xlu0 %4658
        %4660 = vrot.lane.b32.xlu0 %v3248, 52
        %v4661 = vpop.permute.xlu0 %4660
        %4662 = vrot.lane.b32.xlu0 %v3345, 52
        %v4663 = vpop.permute.xlu0 %4662
        %4664 = vrot.lane.b32.xlu0 %v3347, 52
        %v4665 = vpop.permute.xlu0 %4664
        %4666 = vrot.lane.b32.xlu0 %v3368, 52
        %v4667 = vpop.permute.xlu0 %4666
        %4668 = vrot.lane.b32.xlu0 %v3370, 52
        %v4669 = vpop.permute.xlu0 %4668
        %4702 = vrot.lane.b32.xlu0 %v3262, 56
        %v4703 = vpop.permute.xlu0 %4702
        %4704 = vrot.lane.b32.xlu0 %v3264, 56
        %v4705 = vpop.permute.xlu0 %4704
        %4706 = vrot.lane.b32.xlu0 %v3267, 56
        %v4707 = vpop.permute.xlu0 %4706
        %4708 = vrot.lane.b32.xlu0 %v3269, 56
        %v4709 = vpop.permute.xlu0 %4708
        %4710 = vrot.lane.b32.xlu0 %v3272, 56
        %v4711 = vpop.permute.xlu0 %4710
        %4712 = vrot.lane.b32.xlu0 %v3274, 56
        %v4713 = vpop.permute.xlu0 %4712
        %4714 = vrot.lane.b32.xlu0 %v3277, 56
        %v4715 = vpop.permute.xlu0 %4714
        %4716 = vrot.lane.b32.xlu0 %v3279, 56
        %v4717 = vpop.permute.xlu0 %4716
        %4718 = vrot.lane.b32.xlu0 %v3282, 56
        %v4719 = vpop.permute.xlu0 %4718
        %4720 = vrot.lane.b32.xlu0 %v3284, 56
        %v4721 = vpop.permute.xlu0 %4720
        %4722 = vrot.lane.b32.xlu0 %v3287, 56
        %v4723 = vpop.permute.xlu0 %4722
        %4724 = vrot.lane.b32.xlu0 %v3289, 56
        %v4725 = vpop.permute.xlu0 %4724
        %4726 = vrot.lane.b32.xlu0 %v3292, 56
        %v4727 = vpop.permute.xlu0 %4726
        %4728 = vrot.lane.b32.xlu0 %v3294, 56
        %v4729 = vpop.permute.xlu0 %4728
        %4730 = vrot.lane.b32.xlu0 %v3297, 56
        %v4731 = vpop.permute.xlu0 %4730
        %4732 = vrot.lane.b32.xlu0 %v3299, 56
        %v4733 = vpop.permute.xlu0 %4732
        %4734 = vrot.lane.b32.xlu0 %v3302, 56
        %v4735 = vpop.permute.xlu0 %4734
        %4736 = vrot.lane.b32.xlu0 %v3304, 56
        %v4737 = vpop.permute.xlu0 %4736
        %4738 = vrot.lane.b32.xlu0 %v3307, 56
        %v4739 = vpop.permute.xlu0 %4738
        %4740 = vrot.lane.b32.xlu0 %v3309, 56
        %v4741 = vpop.permute.xlu0 %4740
        %4742 = vrot.lane.b32.xlu0 %v3312, 56
        %v4743 = vpop.permute.xlu0 %4742
        %4744 = vrot.lane.b32.xlu0 %v3314, 56
        %v4745 = vpop.permute.xlu0 %4744
        %4746 = vrot.lane.b32.xlu0 %v3317, 56
        %v4747 = vpop.permute.xlu0 %4746
        %4748 = vrot.lane.b32.xlu0 %v3319, 56
        %v4749 = vpop.permute.xlu0 %4748
        %4750 = vrot.lane.b32.xlu0 %v3322, 56
        %v4751 = vpop.permute.xlu0 %4750
        %4752 = vrot.lane.b32.xlu0 %v3324, 56
        %v4753 = vpop.permute.xlu0 %4752
        %4754 = vrot.lane.b32.xlu0 %v3327, 56
        %v4755 = vpop.permute.xlu0 %4754
        %4756 = vrot.lane.b32.xlu0 %v3329, 56
        %v4757 = vpop.permute.xlu0 %4756
        %4758 = vrot.lane.b32.xlu0 %v3350, 56
        %v4759 = vpop.permute.xlu0 %4758
        %4760 = vrot.lane.b32.xlu0 %v3352, 56
        %v4761 = vpop.permute.xlu0 %4760
        %4762 = vrot.lane.b32.xlu0 %v3373, 56
        %v4763 = vpop.permute.xlu0 %4762
        %4764 = vrot.lane.b32.xlu0 %v3375, 56
        %v4765 = vpop.permute.xlu0 %4764
        %4798 = vrot.lane.b32.xlu0 %v2909, 60
        %v4799 = vpop.permute.xlu0 %4798
        %4800 = vrot.lane.b32.xlu0 %v2910, 60
        %v4801 = vpop.permute.xlu0 %4800
        %4802 = vrot.lane.b32.xlu0 %v2912, 60
        %v4803 = vpop.permute.xlu0 %4802
        %4804 = vrot.lane.b32.xlu0 %v2913, 60
        %v4805 = vpop.permute.xlu0 %4804
        %4806 = vrot.lane.b32.xlu0 %v2915, 60
        %v4807 = vpop.permute.xlu0 %4806
        %4808 = vrot.lane.b32.xlu0 %v2916, 60
        %v4809 = vpop.permute.xlu0 %4808
        %4810 = vrot.lane.b32.xlu0 %v2918, 60
        %v4811 = vpop.permute.xlu0 %4810
        %4812 = vrot.lane.b32.xlu0 %v2919, 60
        %v4813 = vpop.permute.xlu0 %4812
        %4814 = vrot.lane.b32.xlu0 %v2921, 60
        %v4815 = vpop.permute.xlu0 %4814
        %4816 = vrot.lane.b32.xlu0 %v2922, 60
        %v4817 = vpop.permute.xlu0 %4816
        %4818 = vrot.lane.b32.xlu0 %v2924, 60
        %v4819 = vpop.permute.xlu0 %4818
        %4820 = vrot.lane.b32.xlu0 %v2925, 60
        %v4821 = vpop.permute.xlu0 %4820
        %4822 = vrot.lane.b32.xlu0 %v2927, 60
        %v4823 = vpop.permute.xlu0 %4822
        %4824 = vrot.lane.b32.xlu0 %v2928, 60
        %v4825 = vpop.permute.xlu0 %4824
        %4826 = vrot.lane.b32.xlu0 %v2930, 60
        %v4827 = vpop.permute.xlu0 %4826
        %4828 = vrot.lane.b32.xlu0 %v2931, 60
        %v4829 = vpop.permute.xlu0 %4828
        %4830 = vrot.lane.b32.xlu0 %v2933, 60
        %v4831 = vpop.permute.xlu0 %4830
        %4832 = vrot.lane.b32.xlu0 %v2934, 60
        %v4833 = vpop.permute.xlu0 %4832
        %4834 = vrot.lane.b32.xlu0 %v2936, 60
        %v4835 = vpop.permute.xlu0 %4834
        %4836 = vrot.lane.b32.xlu0 %v2937, 60
        %v4837 = vpop.permute.xlu0 %4836
        %4838 = vrot.lane.b32.xlu0 %v2939, 60
        %v4839 = vpop.permute.xlu0 %4838
        %4840 = vrot.lane.b32.xlu0 %v2940, 60
        %v4841 = vpop.permute.xlu0 %4840
        %4842 = vrot.lane.b32.xlu0 %v2942, 60
        %v4843 = vpop.permute.xlu0 %4842
        %4844 = vrot.lane.b32.xlu0 %v2943, 60
        %v4845 = vpop.permute.xlu0 %4844
        %4846 = vrot.lane.b32.xlu0 %v2945, 60
        %v4847 = vpop.permute.xlu0 %4846
        %4848 = vrot.lane.b32.xlu0 %v2946, 60
        %v4849 = vpop.permute.xlu0 %4848
        %4850 = vrot.lane.b32.xlu0 %v2948, 60
        %v4851 = vpop.permute.xlu0 %4850
        %4852 = vrot.lane.b32.xlu0 %v2949, 60
        %v4853 = vpop.permute.xlu0 %4852
        %4854 = vrot.lane.b32.xlu0 %v2951, 60
        %v4855 = vpop.permute.xlu0 %4854
        %4856 = vrot.lane.b32.xlu0 %v2952, 60
        %v4857 = vpop.permute.xlu0 %4856
        %4858 = vrot.lane.b32.xlu0 %v2954, 60
        %v4859 = vpop.permute.xlu0 %4858
        %4860 = vrot.lane.b32.xlu0 %v2955, 60
        %v4861 = vpop.permute.xlu0 %4860
        %v4894 = vsel %vm490, %v2900, %v3455
        %v4895 = vsel %vm490, %v2901, %v3457
        %v4896 = vsel %vm490, %v2903, %v3459
        %v4897 = vsel %vm490, %v2904, %v3461
        %v4898 = vsel %vm490, %v2906, %v3463
        %v4899 = vsel %vm490, %v2907, %v3465
        %v4900 = vsel %vm490, %v2909, %v3467
        %v4901 = vsel %vm490, %v2910, %v3469
        %v4902 = vsel %vm490, %v2912, %v3471
        %v4903 = vsel %vm490, %v2913, %v3473
        %v4904 = vsel %vm490, %v2915, %v3475
        %v4905 = vsel %vm490, %v2916, %v3477
        %v4906 = vsel %vm490, %v2918, %v3479
        %v4907 = vsel %vm490, %v2919, %v3481
        %v4908 = vsel %vm490, %v2921, %v3483
        %v4909 = vsel %vm490, %v2922, %v3485
        %v4910 = vsel %vm490, %v2924, %v3487
        %v4911 = vsel %vm490, %v2925, %v3489
        %v4912 = vsel %vm490, %v2927, %v3491
        %v4913 = vsel %vm490, %v2928, %v3493
        %v4914 = vsel %vm490, %v2930, %v3495
        %v4915 = vsel %vm490, %v2931, %v3497
        %v4916 = vsel %vm490, %v2933, %v3499
        %v4917 = vsel %vm490, %v2934, %v3501
        %v4918 = vsel %vm490, %v2936, %v3503
        %v4919 = vsel %vm490, %v2937, %v3505
        %v4920 = vsel %vm490, %v2939, %v3507
        %v4921 = vsel %vm490, %v2940, %v3509
        %v4922 = vsel %vm490, %v2942, %v3511
        %v4923 = vsel %vm490, %v2943, %v3513
        %v4924 = vsel %vm490, %v2945, %v3515
        %v4925 = vsel %vm490, %v2946, %v3517
        %v4926 = vsel %vm2120, %v4894, %v3551
        %v4927 = vsel %vm2120, %v4895, %v3553
        %v4928 = vsel %vm2120, %v4896, %v3555
        %v4929 = vsel %vm2120, %v4897, %v3557
        %v4930 = vsel %vm2120, %v4898, %v3559
        %v4931 = vsel %vm2120, %v4899, %v3561
        %v4932 = vsel %vm2120, %v4900, %v3563
        %v4933 = vsel %vm2120, %v4901, %v3565
        %v4934 = vsel %vm2120, %v4902, %v3567
        %v4935 = vsel %vm2120, %v4903, %v3569
        %v4936 = vsel %vm2120, %v4904, %v3571
        %v4937 = vsel %vm2120, %v4905, %v3573
        %v4938 = vsel %vm2120, %v4906, %v3575
        %v4939 = vsel %vm2120, %v4907, %v3577
        %v4940 = vsel %vm2120, %v4908, %v3579
        %v4941 = vsel %vm2120, %v4909, %v3581
        %v4942 = vsel %vm2120, %v4910, %v3583
        %v4943 = vsel %vm2120, %v4911, %v3585
        %v4944 = vsel %vm2120, %v4912, %v3587
        %v4945 = vsel %vm2120, %v4913, %v3589
        %v4946 = vsel %vm2120, %v4914, %v3591
        %v4947 = vsel %vm2120, %v4915, %v3593
        %v4948 = vsel %vm2120, %v4916, %v3595
        %v4949 = vsel %vm2120, %v4917, %v3597
        %v4950 = vsel %vm2120, %v4918, %v3599
        %v4951 = vsel %vm2120, %v4919, %v3601
        %v4952 = vsel %vm2120, %v4920, %v3603
        %v4953 = vsel %vm2120, %v4921, %v3605
        %v4954 = vsel %vm2120, %v4922, %v3607
        %v4955 = vsel %vm2120, %v4923, %v3609
        %v4956 = vsel %vm2120, %v4924, %v3611
        %v4957 = vsel %vm2120, %v4925, %v3613
        %v4958 = vsel %vm2153, %v4926, %v3647
        %v4959 = vsel %vm2153, %v4927, %v3649
        %v4960 = vsel %vm2153, %v4928, %v3651
        %v4961 = vsel %vm2153, %v4929, %v3653
        %v4962 = vsel %vm2153, %v4930, %v3655
        %v4963 = vsel %vm2153, %v4931, %v3657
        %v4964 = vsel %vm2153, %v4932, %v3659
        %v4965 = vsel %vm2153, %v4933, %v3661
        %v4966 = vsel %vm2153, %v4934, %v3663
        %v4967 = vsel %vm2153, %v4935, %v3665
        %v4968 = vsel %vm2153, %v4936, %v3667
        %v4969 = vsel %vm2153, %v4937, %v3669
        %v4970 = vsel %vm2153, %v4938, %v3671
        %v4971 = vsel %vm2153, %v4939, %v3673
        %v4972 = vsel %vm2153, %v4940, %v3675
        %v4973 = vsel %vm2153, %v4941, %v3677
        %v4974 = vsel %vm2153, %v4942, %v3679
        %v4975 = vsel %vm2153, %v4943, %v3681
        %v4976 = vsel %vm2153, %v4944, %v3683
        %v4977 = vsel %vm2153, %v4945, %v3685
        %v4978 = vsel %vm2153, %v4946, %v3687
        %v4979 = vsel %vm2153, %v4947, %v3689
        %v4980 = vsel %vm2153, %v4948, %v3691
        %v4981 = vsel %vm2153, %v4949, %v3693
        %v4982 = vsel %vm2153, %v4950, %v3695
        %v4983 = vsel %vm2153, %v4951, %v3697
        %v4984 = vsel %vm2153, %v4952, %v3699
        %v4985 = vsel %vm2153, %v4953, %v3701
        %v4986 = vsel %vm2153, %v4954, %v3703
        %v4987 = vsel %vm2153, %v4955, %v3705
        %v4988 = vsel %vm2153, %v4956, %v3707
        %v4989 = vsel %vm2153, %v4957, %v3709
        %v4990 = vsel %vm2186, %v4958, %v3743
        %v4991 = vsel %vm2186, %v4959, %v3745
        %v4992 = vsel %vm2186, %v4960, %v3747
        %v4993 = vsel %vm2186, %v4961, %v3749
        %v4994 = vsel %vm2186, %v4962, %v3751
        %v4995 = vsel %vm2186, %v4963, %v3753
        %v4996 = vsel %vm2186, %v4964, %v3755
        %v4997 = vsel %vm2186, %v4965, %v3757
        %v4998 = vsel %vm2186, %v4966, %v3759
        %v4999 = vsel %vm2186, %v4967, %v3761
        %v5000 = vsel %vm2186, %v4968, %v3763
        %v5001 = vsel %vm2186, %v4969, %v3765
        %v5002 = vsel %vm2186, %v4970, %v3767
        %v5003 = vsel %vm2186, %v4971, %v3769
        %v5004 = vsel %vm2186, %v4972, %v3771
        %v5005 = vsel %vm2186, %v4973, %v3773
        %v5006 = vsel %vm2186, %v4974, %v3775
        %v5007 = vsel %vm2186, %v4975, %v3777
        %v5008 = vsel %vm2186, %v4976, %v3779
        %v5009 = vsel %vm2186, %v4977, %v3781
        %v5010 = vsel %vm2186, %v4978, %v3783
        %v5011 = vsel %vm2186, %v4979, %v3785
        %v5012 = vsel %vm2186, %v4980, %v3787
        %v5013 = vsel %vm2186, %v4981, %v3789
        %v5014 = vsel %vm2186, %v4982, %v3791
        %v5015 = vsel %vm2186, %v4983, %v3793
        %v5016 = vsel %vm2186, %v4984, %v3795
        %v5017 = vsel %vm2186, %v4985, %v3797
        %v5018 = vsel %vm2186, %v4986, %v3799
        %v5019 = vsel %vm2186, %v4987, %v3801
        %v5020 = vsel %vm2186, %v4988, %v3803
        %v5021 = vsel %vm2186, %v4989, %v3805
        %v5022 = vsel %vm2219, %v4990, %v3839
        %v5023 = vsel %vm2219, %v4991, %v3841
        %v5024 = vsel %vm2219, %v4992, %v3843
        %v5025 = vsel %vm2219, %v4993, %v3845
        %v5026 = vsel %vm2219, %v4994, %v3847
        %v5027 = vsel %vm2219, %v4995, %v3849
        %v5028 = vsel %vm2219, %v4996, %v3851
        %v5029 = vsel %vm2219, %v4997, %v3853
        %v5030 = vsel %vm2219, %v4998, %v3855
        %v5031 = vsel %vm2219, %v4999, %v3857
        %v5032 = vsel %vm2219, %v5000, %v3859
        %v5033 = vsel %vm2219, %v5001, %v3861
        %v5034 = vsel %vm2219, %v5002, %v3863
        %v5035 = vsel %vm2219, %v5003, %v3865
        %v5036 = vsel %vm2219, %v5004, %v3867
        %v5037 = vsel %vm2219, %v5005, %v3869
        %v5038 = vsel %vm2219, %v5006, %v3871
        %v5039 = vsel %vm2219, %v5007, %v3873
        %v5040 = vsel %vm2219, %v5008, %v3875
        %v5041 = vsel %vm2219, %v5009, %v3877
        %v5042 = vsel %vm2219, %v5010, %v3879
        %v5043 = vsel %vm2219, %v5011, %v3881
        %v5044 = vsel %vm2219, %v5012, %v3883
        %v5045 = vsel %vm2219, %v5013, %v3885
        %v5046 = vsel %vm2219, %v5014, %v3887
        %v5047 = vsel %vm2219, %v5015, %v3889
        %v5048 = vsel %vm2219, %v5016, %v3891
        %v5049 = vsel %vm2219, %v5017, %v3893
        %v5050 = vsel %vm2219, %v5018, %v3895
        %v5051 = vsel %vm2219, %v5019, %v3897
        %v5052 = vsel %vm2219, %v5020, %v3899
        %v5053 = vsel %vm2219, %v5021, %v3901
        %v5054 = vsel %vm2252, %v5022, %v3935
        %v5055 = vsel %vm2252, %v5023, %v3937
        %v5056 = vsel %vm2252, %v5024, %v3939
        %v5057 = vsel %vm2252, %v5025, %v3941
        %v5058 = vsel %vm2252, %v5026, %v3943
        %v5059 = vsel %vm2252, %v5027, %v3945
        %v5060 = vsel %vm2252, %v5028, %v3947
        %v5061 = vsel %vm2252, %v5029, %v3949
        %v5062 = vsel %vm2252, %v5030, %v3951
        %v5063 = vsel %vm2252, %v5031, %v3953
        %v5064 = vsel %vm2252, %v5032, %v3955
        %v5065 = vsel %vm2252, %v5033, %v3957
        %v5066 = vsel %vm2252, %v5034, %v3959
        %v5067 = vsel %vm2252, %v5035, %v3961
        %v5068 = vsel %vm2252, %v5036, %v3963
        %v5069 = vsel %vm2252, %v5037, %v3965
        %v5070 = vsel %vm2252, %v5038, %v3967
        %v5071 = vsel %vm2252, %v5039, %v3969
        %v5072 = vsel %vm2252, %v5040, %v3971
        %v5073 = vsel %vm2252, %v5041, %v3973
        %v5074 = vsel %vm2252, %v5042, %v3975
        %v5075 = vsel %vm2252, %v5043, %v3977
        %v5076 = vsel %vm2252, %v5044, %v3979
        %v5077 = vsel %vm2252, %v5045, %v3981
        %v5078 = vsel %vm2252, %v5046, %v3983
        %v5079 = vsel %vm2252, %v5047, %v3985
        %v5080 = vsel %vm2252, %v5048, %v3987
        %v5081 = vsel %vm2252, %v5049, %v3989
        %v5082 = vsel %vm2252, %v5050, %v3991
        %v5083 = vsel %vm2252, %v5051, %v3993
        %v5084 = vsel %vm2252, %v5052, %v3995
        %v5085 = vsel %vm2252, %v5053, %v3997
        %v5086 = vsel %vm2285, %v5054, %v4031
        %v5087 = vsel %vm2285, %v5055, %v4033
        %v5088 = vsel %vm2285, %v5056, %v4035
        %v5089 = vsel %vm2285, %v5057, %v4037
        %v5090 = vsel %vm2285, %v5058, %v4039
        %v5091 = vsel %vm2285, %v5059, %v4041
        %v5092 = vsel %vm2285, %v5060, %v4043
        %v5093 = vsel %vm2285, %v5061, %v4045
        %v5094 = vsel %vm2285, %v5062, %v4047
        %v5095 = vsel %vm2285, %v5063, %v4049
        %v5096 = vsel %vm2285, %v5064, %v4051
        %v5097 = vsel %vm2285, %v5065, %v4053
        %v5098 = vsel %vm2285, %v5066, %v4055
        %v5099 = vsel %vm2285, %v5067, %v4057
        %v5100 = vsel %vm2285, %v5068, %v4059
        %v5101 = vsel %vm2285, %v5069, %v4061
        %v5102 = vsel %vm2285, %v5070, %v4063
        %v5103 = vsel %vm2285, %v5071, %v4065
        %v5104 = vsel %vm2285, %v5072, %v4067
        %v5105 = vsel %vm2285, %v5073, %v4069
        %v5106 = vsel %vm2285, %v5074, %v4071
        %v5107 = vsel %vm2285, %v5075, %v4073
        %v5108 = vsel %vm2285, %v5076, %v4075
        %v5109 = vsel %vm2285, %v5077, %v4077
        %v5110 = vsel %vm2285, %v5078, %v4079
        %v5111 = vsel %vm2285, %v5079, %v4081
        %v5112 = vsel %vm2285, %v5080, %v4083
        %v5113 = vsel %vm2285, %v5081, %v4085
        %v5114 = vsel %vm2285, %v5082, %v4087
        %v5115 = vsel %vm2285, %v5083, %v4089
        %v5116 = vsel %vm2285, %v5084, %v4091
        %v5117 = vsel %vm2285, %v5085, %v4093
        %v5118 = vsel %vm2318, %v5086, %v4127
        %v5119 = vsel %vm2318, %v5087, %v4129
        %v5120 = vsel %vm2318, %v5088, %v4131
        %v5121 = vsel %vm2318, %v5089, %v4133
        %v5122 = vsel %vm2318, %v5090, %v4135
        %v5123 = vsel %vm2318, %v5091, %v4137
        %v5124 = vsel %vm2318, %v5092, %v4139
        %v5125 = vsel %vm2318, %v5093, %v4141
        %v5126 = vsel %vm2318, %v5094, %v4143
        %v5127 = vsel %vm2318, %v5095, %v4145
        %v5128 = vsel %vm2318, %v5096, %v4147
        %v5129 = vsel %vm2318, %v5097, %v4149
        %v5130 = vsel %vm2318, %v5098, %v4151
        %v5131 = vsel %vm2318, %v5099, %v4153
        %v5132 = vsel %vm2318, %v5100, %v4155
        %v5133 = vsel %vm2318, %v5101, %v4157
        %v5134 = vsel %vm2318, %v5102, %v4159
        %v5135 = vsel %vm2318, %v5103, %v4161
        %v5136 = vsel %vm2318, %v5104, %v4163
        %v5137 = vsel %vm2318, %v5105, %v4165
        %v5138 = vsel %vm2318, %v5106, %v4167
        %v5139 = vsel %vm2318, %v5107, %v4169
        %v5140 = vsel %vm2318, %v5108, %v4171
        %v5141 = vsel %vm2318, %v5109, %v4173
        %v5142 = vsel %vm2318, %v5110, %v4175
        %v5143 = vsel %vm2318, %v5111, %v4177
        %v5144 = vsel %vm2318, %v5112, %v4179
        %v5145 = vsel %vm2318, %v5113, %v4181
        %v5146 = vsel %vm2318, %v5114, %v4183
        %v5147 = vsel %vm2318, %v5115, %v4185
        %v5148 = vsel %vm2318, %v5116, %v4187
        %v5149 = vsel %vm2318, %v5117, %v4189
        %v5150 = vsel %vm2387, %v5118, %v4223
        %v5151 = vsel %vm2387, %v5119, %v4225
        %v5152 = vsel %vm2387, %v5120, %v4227
        %v5153 = vsel %vm2387, %v5121, %v4229
        %v5154 = vsel %vm2387, %v5122, %v4231
        %v5155 = vsel %vm2387, %v5123, %v4233
        %v5156 = vsel %vm2387, %v5124, %v4235
        %v5157 = vsel %vm2387, %v5125, %v4237
        %v5158 = vsel %vm2387, %v5126, %v4239
        %v5159 = vsel %vm2387, %v5127, %v4241
        %v5160 = vsel %vm2387, %v5128, %v4243
        %v5161 = vsel %vm2387, %v5129, %v4245
        %v5162 = vsel %vm2387, %v5130, %v4247
        %v5163 = vsel %vm2387, %v5131, %v4249
        %v5164 = vsel %vm2387, %v5132, %v4251
        %v5165 = vsel %vm2387, %v5133, %v4253
        %v5166 = vsel %vm2387, %v5134, %v4255
        %v5167 = vsel %vm2387, %v5135, %v4257
        %v5168 = vsel %vm2387, %v5136, %v4259
        %v5169 = vsel %vm2387, %v5137, %v4261
        %v5170 = vsel %vm2387, %v5138, %v4263
        %v5171 = vsel %vm2387, %v5139, %v4265
        %v5172 = vsel %vm2387, %v5140, %v4267
        %v5173 = vsel %vm2387, %v5141, %v4269
        %v5174 = vsel %vm2387, %v5142, %v4271
        %v5175 = vsel %vm2387, %v5143, %v4273
        %v5176 = vsel %vm2387, %v5144, %v4275
        %v5177 = vsel %vm2387, %v5145, %v4277
        %v5178 = vsel %vm2387, %v5146, %v4279
        %v5179 = vsel %vm2387, %v5147, %v4281
        %v5180 = vsel %vm2387, %v5148, %v4283
        %v5181 = vsel %vm2387, %v5149, %v4285
        %vm5182 = vcmask 326656
        %v5183 = vsel %vm5182, %v5150, %v4319
        %v5184 = vsel %vm5182, %v5151, %v4321
        %v5185 = vsel %vm5182, %v5152, %v4323
        %v5186 = vsel %vm5182, %v5153, %v4325
        %v5187 = vsel %vm5182, %v5154, %v4327
        %v5188 = vsel %vm5182, %v5155, %v4329
        %v5189 = vsel %vm5182, %v5156, %v4331
        %v5190 = vsel %vm5182, %v5157, %v4333
        %v5191 = vsel %vm5182, %v5158, %v4335
        %v5192 = vsel %vm5182, %v5159, %v4337
        %v5193 = vsel %vm5182, %v5160, %v4339
        %v5194 = vsel %vm5182, %v5161, %v4341
        %v5195 = vsel %vm5182, %v5162, %v4343
        %v5196 = vsel %vm5182, %v5163, %v4345
        %v5197 = vsel %vm5182, %v5164, %v4347
        %v5198 = vsel %vm5182, %v5165, %v4349
        %v5199 = vsel %vm5182, %v5166, %v4351
        %v5200 = vsel %vm5182, %v5167, %v4353
        %v5201 = vsel %vm5182, %v5168, %v4355
        %v5202 = vsel %vm5182, %v5169, %v4357
        %v5203 = vsel %vm5182, %v5170, %v4359
        %v5204 = vsel %vm5182, %v5171, %v4361
        %v5205 = vsel %vm5182, %v5172, %v4363
        %v5206 = vsel %vm5182, %v5173, %v4365
        %v5207 = vsel %vm5182, %v5174, %v4367
        %v5208 = vsel %vm5182, %v5175, %v4369
        %v5209 = vsel %vm5182, %v5176, %v4371
        %v5210 = vsel %vm5182, %v5177, %v4373
        %v5211 = vsel %vm5182, %v5178, %v4375
        %v5212 = vsel %vm5182, %v5179, %v4377
        %v5213 = vsel %vm5182, %v5180, %v4379
        %v5214 = vsel %vm5182, %v5181, %v4381
        %vm5215 = vcmask 359424
        %v5216 = vsel %vm5215, %v5183, %v4415
        %v5217 = vsel %vm5215, %v5184, %v4417
        %v5218 = vsel %vm5215, %v5185, %v4419
        %v5219 = vsel %vm5215, %v5186, %v4421
        %v5220 = vsel %vm5215, %v5187, %v4423
        %v5221 = vsel %vm5215, %v5188, %v4425
        %v5222 = vsel %vm5215, %v5189, %v4427
        %v5223 = vsel %vm5215, %v5190, %v4429
        %v5224 = vsel %vm5215, %v5191, %v4431
        %v5225 = vsel %vm5215, %v5192, %v4433
        %v5226 = vsel %vm5215, %v5193, %v4435
        %v5227 = vsel %vm5215, %v5194, %v4437
        %v5228 = vsel %vm5215, %v5195, %v4439
        %v5229 = vsel %vm5215, %v5196, %v4441
        %v5230 = vsel %vm5215, %v5197, %v4443
        %v5231 = vsel %vm5215, %v5198, %v4445
        %v5232 = vsel %vm5215, %v5199, %v4447
        %v5233 = vsel %vm5215, %v5200, %v4449
        %v5234 = vsel %vm5215, %v5201, %v4451
        %v5235 = vsel %vm5215, %v5202, %v4453
        %v5236 = vsel %vm5215, %v5203, %v4455
        %v5237 = vsel %vm5215, %v5204, %v4457
        %v5238 = vsel %vm5215, %v5205, %v4459
        %v5239 = vsel %vm5215, %v5206, %v4461
        %v5240 = vsel %vm5215, %v5207, %v4463
        %v5241 = vsel %vm5215, %v5208, %v4465
        %v5242 = vsel %vm5215, %v5209, %v4467
        %v5243 = vsel %vm5215, %v5210, %v4469
        %v5244 = vsel %vm5215, %v5211, %v4471
        %v5245 = vsel %vm5215, %v5212, %v4473
        %v5246 = vsel %vm5215, %v5213, %v4475
        %v5247 = vsel %vm5215, %v5214, %v4477
        %vm5248 = vcmask 392192
        %v5249 = vsel %vm5248, %v5216, %v4511
        %v5250 = vsel %vm5248, %v5217, %v4513
        %v5251 = vsel %vm5248, %v5218, %v4515
        %v5252 = vsel %vm5248, %v5219, %v4517
        %v5253 = vsel %vm5248, %v5220, %v4519
        %v5254 = vsel %vm5248, %v5221, %v4521
        %v5255 = vsel %vm5248, %v5222, %v4523
        %v5256 = vsel %vm5248, %v5223, %v4525
        %v5257 = vsel %vm5248, %v5224, %v4527
        %v5258 = vsel %vm5248, %v5225, %v4529
        %v5259 = vsel %vm5248, %v5226, %v4531
        %v5260 = vsel %vm5248, %v5227, %v4533
        %v5261 = vsel %vm5248, %v5228, %v4535
        %v5262 = vsel %vm5248, %v5229, %v4537
        %v5263 = vsel %vm5248, %v5230, %v4539
        %v5264 = vsel %vm5248, %v5231, %v4541
        %v5265 = vsel %vm5248, %v5232, %v4543
        %v5266 = vsel %vm5248, %v5233, %v4545
        %v5267 = vsel %vm5248, %v5234, %v4547
        %v5268 = vsel %vm5248, %v5235, %v4549
        %v5269 = vsel %vm5248, %v5236, %v4551
        %v5270 = vsel %vm5248, %v5237, %v4553
        %v5271 = vsel %vm5248, %v5238, %v4555
        %v5272 = vsel %vm5248, %v5239, %v4557
        %v5273 = vsel %vm5248, %v5240, %v4559
        %v5274 = vsel %vm5248, %v5241, %v4561
        %v5275 = vsel %vm5248, %v5242, %v4563
        %v5276 = vsel %vm5248, %v5243, %v4565
        %v5277 = vsel %vm5248, %v5244, %v4567
        %v5278 = vsel %vm5248, %v5245, %v4569
        %v5279 = vsel %vm5248, %v5246, %v4571
        %v5280 = vsel %vm5248, %v5247, %v4573
        %vm5281 = vcmask 424960
        %v5282 = vsel %vm5281, %v5249, %v4607
        %v5283 = vsel %vm5281, %v5250, %v4609
        %v5284 = vsel %vm5281, %v5251, %v4611
        %v5285 = vsel %vm5281, %v5252, %v4613
        %v5286 = vsel %vm5281, %v5253, %v4615
        %v5287 = vsel %vm5281, %v5254, %v4617
        %v5288 = vsel %vm5281, %v5255, %v4619
        %v5289 = vsel %vm5281, %v5256, %v4621
        %v5290 = vsel %vm5281, %v5257, %v4623
        %v5291 = vsel %vm5281, %v5258, %v4625
        %v5292 = vsel %vm5281, %v5259, %v4627
        %v5293 = vsel %vm5281, %v5260, %v4629
        %v5294 = vsel %vm5281, %v5261, %v4631
        %v5295 = vsel %vm5281, %v5262, %v4633
        %v5296 = vsel %vm5281, %v5263, %v4635
        %v5297 = vsel %vm5281, %v5264, %v4637
        %v5298 = vsel %vm5281, %v5265, %v4639
        %v5299 = vsel %vm5281, %v5266, %v4641
        %v5300 = vsel %vm5281, %v5267, %v4643
        %v5301 = vsel %vm5281, %v5268, %v4645
        %v5302 = vsel %vm5281, %v5269, %v4647
        %v5303 = vsel %vm5281, %v5270, %v4649
        %v5304 = vsel %vm5281, %v5271, %v4651
        %v5305 = vsel %vm5281, %v5272, %v4653
        %v5306 = vsel %vm5281, %v5273, %v4655
        %v5307 = vsel %vm5281, %v5274, %v4657
        %v5308 = vsel %vm5281, %v5275, %v4659
        %v5309 = vsel %vm5281, %v5276, %v4661
        %v5310 = vsel %vm5281, %v5277, %v4663
        %v5311 = vsel %vm5281, %v5278, %v4665
        %v5312 = vsel %vm5281, %v5279, %v4667
        %v5313 = vsel %vm5281, %v5280, %v4669
        %vm5314 = vcmask 457728
        %v5315 = vsel %vm5314, %v5282, %v4703
        %v5316 = vsel %vm5314, %v5283, %v4705
        %v5317 = vsel %vm5314, %v5284, %v4707
        %v5318 = vsel %vm5314, %v5285, %v4709
        %v5319 = vsel %vm5314, %v5286, %v4711
        %v5320 = vsel %vm5314, %v5287, %v4713
        %v5321 = vsel %vm5314, %v5288, %v4715
        %v5322 = vsel %vm5314, %v5289, %v4717
        %v5323 = vsel %vm5314, %v5290, %v4719
        %v5324 = vsel %vm5314, %v5291, %v4721
        %v5325 = vsel %vm5314, %v5292, %v4723
        %v5326 = vsel %vm5314, %v5293, %v4725
        %v5327 = vsel %vm5314, %v5294, %v4727
        %v5328 = vsel %vm5314, %v5295, %v4729
        %v5329 = vsel %vm5314, %v5296, %v4731
        %v5330 = vsel %vm5314, %v5297, %v4733
        %v5331 = vsel %vm5314, %v5298, %v4735
        %v5332 = vsel %vm5314, %v5299, %v4737
        %v5333 = vsel %vm5314, %v5300, %v4739
        %v5334 = vsel %vm5314, %v5301, %v4741
        %v5335 = vsel %vm5314, %v5302, %v4743
        %v5336 = vsel %vm5314, %v5303, %v4745
        %v5337 = vsel %vm5314, %v5304, %v4747
        %v5338 = vsel %vm5314, %v5305, %v4749
        %v5339 = vsel %vm5314, %v5306, %v4751
        %v5340 = vsel %vm5314, %v5307, %v4753
        %v5341 = vsel %vm5314, %v5308, %v4755
        %v5342 = vsel %vm5314, %v5309, %v4757
        %v5343 = vsel %vm5314, %v5310, %v4759
        %v5344 = vsel %vm5314, %v5311, %v4761
        %v5345 = vsel %vm5314, %v5312, %v4763
        %v5346 = vsel %vm5314, %v5313, %v4765
        %vm5347 = vcmask 490496
        %v5348 = vsel %vm5347, %v5315, %v4799
        %v5349 = vsel %vm5347, %v5316, %v4801
        %v5350 = vsel %vm5347, %v5317, %v4803
        %v5351 = vsel %vm5347, %v5318, %v4805
        %v5352 = vsel %vm5347, %v5319, %v4807
        %v5353 = vsel %vm5347, %v5320, %v4809
        %v5354 = vsel %vm5347, %v5321, %v4811
        %v5355 = vsel %vm5347, %v5322, %v4813
        %v5356 = vsel %vm5347, %v5323, %v4815
        %v5357 = vsel %vm5347, %v5324, %v4817
        %v5358 = vsel %vm5347, %v5325, %v4819
        %v5359 = vsel %vm5347, %v5326, %v4821
        %v5360 = vsel %vm5347, %v5327, %v4823
        %v5361 = vsel %vm5347, %v5328, %v4825
        %v5362 = vsel %vm5347, %v5329, %v4827
        %v5363 = vsel %vm5347, %v5330, %v4829
        %v5364 = vsel %vm5347, %v5331, %v4831
        %v5365 = vsel %vm5347, %v5332, %v4833
        %v5366 = vsel %vm5347, %v5333, %v4835
        %v5367 = vsel %vm5347, %v5334, %v4837
        %v5368 = vsel %vm5347, %v5335, %v4839
        %v5369 = vsel %vm5347, %v5336, %v4841
        %v5370 = vsel %vm5347, %v5337, %v4843
        %v5371 = vsel %vm5347, %v5338, %v4845
        %v5372 = vsel %vm5347, %v5339, %v4847
        %v5373 = vsel %vm5347, %v5340, %v4849
        %v5374 = vsel %vm5347, %v5341, %v4851
        %v5375 = vsel %vm5347, %v5342, %v4853
        %v5376 = vsel %vm5347, %v5343, %v4855
        %v5377 = vsel %vm5347, %v5344, %v4857
        %v5378 = vsel %vm5347, %v5345, %v4859
        %v5379 = vsel %vm5347, %v5346, %v4861
        %5380 = vrot.lane.b32.xlu0 %v3105, 4
        %v5381 = vpop.permute.xlu0 %5380
        %5382 = vrot.lane.b32.xlu0 %v3107, 4
        %v5383 = vpop.permute.xlu0 %5382
        %5384 = vrot.lane.b32.xlu0 %v3110, 4
        %v5385 = vpop.permute.xlu0 %5384
        %5386 = vrot.lane.b32.xlu0 %v3112, 4
        %v5387 = vpop.permute.xlu0 %5386
        %5388 = vrot.lane.b32.xlu0 %v3115, 4
        %v5389 = vpop.permute.xlu0 %5388
        %5390 = vrot.lane.b32.xlu0 %v3117, 4
        %v5391 = vpop.permute.xlu0 %5390
        %5392 = vrot.lane.b32.xlu0 %v3120, 4
        %v5393 = vpop.permute.xlu0 %5392
        %5394 = vrot.lane.b32.xlu0 %v3122, 4
        %v5395 = vpop.permute.xlu0 %5394
        %5396 = vrot.lane.b32.xlu0 %v3125, 4
        %v5397 = vpop.permute.xlu0 %5396
        %5398 = vrot.lane.b32.xlu0 %v3127, 4
        %v5399 = vpop.permute.xlu0 %5398
        %5400 = vrot.lane.b32.xlu0 %v3130, 4
        %v5401 = vpop.permute.xlu0 %5400
        %5402 = vrot.lane.b32.xlu0 %v3132, 4
        %v5403 = vpop.permute.xlu0 %5402
        %5404 = vrot.lane.b32.xlu0 %v3135, 4
        %v5405 = vpop.permute.xlu0 %5404
        %5406 = vrot.lane.b32.xlu0 %v3137, 4
        %v5407 = vpop.permute.xlu0 %5406
        %5408 = vrot.lane.b32.xlu0 %v3140, 4
        %v5409 = vpop.permute.xlu0 %5408
        %5410 = vrot.lane.b32.xlu0 %v3142, 4
        %v5411 = vpop.permute.xlu0 %5410
        %5412 = vrot.lane.b32.xlu0 %v3145, 4
        %v5413 = vpop.permute.xlu0 %5412
        %5414 = vrot.lane.b32.xlu0 %v3147, 4
        %v5415 = vpop.permute.xlu0 %5414
        %5416 = vrot.lane.b32.xlu0 %v3150, 4
        %v5417 = vpop.permute.xlu0 %5416
        %5418 = vrot.lane.b32.xlu0 %v3152, 4
        %v5419 = vpop.permute.xlu0 %5418
        %5420 = vrot.lane.b32.xlu0 %v3155, 4
        %v5421 = vpop.permute.xlu0 %5420
        %5422 = vrot.lane.b32.xlu0 %v3157, 4
        %v5423 = vpop.permute.xlu0 %5422
        %5424 = vrot.lane.b32.xlu0 %v3160, 4
        %v5425 = vpop.permute.xlu0 %5424
        %5426 = vrot.lane.b32.xlu0 %v3162, 4
        %v5427 = vpop.permute.xlu0 %5426
        %5428 = vrot.lane.b32.xlu0 %v3165, 4
        %v5429 = vpop.permute.xlu0 %5428
        %5430 = vrot.lane.b32.xlu0 %v3167, 4
        %v5431 = vpop.permute.xlu0 %5430
        %5432 = vrot.lane.b32.xlu0 %v3340, 4
        %v5433 = vpop.permute.xlu0 %5432
        %5434 = vrot.lane.b32.xlu0 %v3342, 4
        %v5435 = vpop.permute.xlu0 %5434
        %5436 = vrot.lane.b32.xlu0 %v3363, 4
        %v5437 = vpop.permute.xlu0 %5436
        %5438 = vrot.lane.b32.xlu0 %v3365, 4
        %v5439 = vpop.permute.xlu0 %5438
        %5440 = vrot.lane.b32.xlu0 %v3418, 4
        %v5441 = vpop.permute.xlu0 %5440
        %5442 = vrot.lane.b32.xlu0 %v3420, 4
        %v5443 = vpop.permute.xlu0 %5442
        %5476 = vrot.lane.b32.xlu0 %v3186, 8
        %v5477 = vpop.permute.xlu0 %5476
        %5478 = vrot.lane.b32.xlu0 %v3188, 8
        %v5479 = vpop.permute.xlu0 %5478
        %5480 = vrot.lane.b32.xlu0 %v3191, 8
        %v5481 = vpop.permute.xlu0 %5480
        %5482 = vrot.lane.b32.xlu0 %v3193, 8
        %v5483 = vpop.permute.xlu0 %5482
        %5484 = vrot.lane.b32.xlu0 %v3196, 8
        %v5485 = vpop.permute.xlu0 %5484
        %5486 = vrot.lane.b32.xlu0 %v3198, 8
        %v5487 = vpop.permute.xlu0 %5486
        %5488 = vrot.lane.b32.xlu0 %v3201, 8
        %v5489 = vpop.permute.xlu0 %5488
        %5490 = vrot.lane.b32.xlu0 %v3203, 8
        %v5491 = vpop.permute.xlu0 %5490
        %5492 = vrot.lane.b32.xlu0 %v3206, 8
        %v5493 = vpop.permute.xlu0 %5492
        %5494 = vrot.lane.b32.xlu0 %v3208, 8
        %v5495 = vpop.permute.xlu0 %5494
        %5496 = vrot.lane.b32.xlu0 %v3211, 8
        %v5497 = vpop.permute.xlu0 %5496
        %5498 = vrot.lane.b32.xlu0 %v3213, 8
        %v5499 = vpop.permute.xlu0 %5498
        %5500 = vrot.lane.b32.xlu0 %v3216, 8
        %v5501 = vpop.permute.xlu0 %5500
        %5502 = vrot.lane.b32.xlu0 %v3218, 8
        %v5503 = vpop.permute.xlu0 %5502
        %5504 = vrot.lane.b32.xlu0 %v3221, 8
        %v5505 = vpop.permute.xlu0 %5504
        %5506 = vrot.lane.b32.xlu0 %v3223, 8
        %v5507 = vpop.permute.xlu0 %5506
        %5508 = vrot.lane.b32.xlu0 %v3226, 8
        %v5509 = vpop.permute.xlu0 %5508
        %5510 = vrot.lane.b32.xlu0 %v3228, 8
        %v5511 = vpop.permute.xlu0 %5510
        %5512 = vrot.lane.b32.xlu0 %v3231, 8
        %v5513 = vpop.permute.xlu0 %5512
        %5514 = vrot.lane.b32.xlu0 %v3233, 8
        %v5515 = vpop.permute.xlu0 %5514
        %5516 = vrot.lane.b32.xlu0 %v3236, 8
        %v5517 = vpop.permute.xlu0 %5516
        %5518 = vrot.lane.b32.xlu0 %v3238, 8
        %v5519 = vpop.permute.xlu0 %5518
        %5520 = vrot.lane.b32.xlu0 %v3241, 8
        %v5521 = vpop.permute.xlu0 %5520
        %5522 = vrot.lane.b32.xlu0 %v3243, 8
        %v5523 = vpop.permute.xlu0 %5522
        %5524 = vrot.lane.b32.xlu0 %v3246, 8
        %v5525 = vpop.permute.xlu0 %5524
        %5526 = vrot.lane.b32.xlu0 %v3248, 8
        %v5527 = vpop.permute.xlu0 %5526
        %5528 = vrot.lane.b32.xlu0 %v3345, 8
        %v5529 = vpop.permute.xlu0 %5528
        %5530 = vrot.lane.b32.xlu0 %v3347, 8
        %v5531 = vpop.permute.xlu0 %5530
        %5532 = vrot.lane.b32.xlu0 %v3368, 8
        %v5533 = vpop.permute.xlu0 %5532
        %5534 = vrot.lane.b32.xlu0 %v3370, 8
        %v5535 = vpop.permute.xlu0 %5534
        %5536 = vrot.lane.b32.xlu0 %v3423, 8
        %v5537 = vpop.permute.xlu0 %5536
        %5538 = vrot.lane.b32.xlu0 %v3425, 8
        %v5539 = vpop.permute.xlu0 %5538
        %5572 = vrot.lane.b32.xlu0 %v3267, 12
        %v5573 = vpop.permute.xlu0 %5572
        %5574 = vrot.lane.b32.xlu0 %v3269, 12
        %v5575 = vpop.permute.xlu0 %5574
        %5576 = vrot.lane.b32.xlu0 %v3272, 12
        %v5577 = vpop.permute.xlu0 %5576
        %5578 = vrot.lane.b32.xlu0 %v3274, 12
        %v5579 = vpop.permute.xlu0 %5578
        %5580 = vrot.lane.b32.xlu0 %v3277, 12
        %v5581 = vpop.permute.xlu0 %5580
        %5582 = vrot.lane.b32.xlu0 %v3279, 12
        %v5583 = vpop.permute.xlu0 %5582
        %5584 = vrot.lane.b32.xlu0 %v3282, 12
        %v5585 = vpop.permute.xlu0 %5584
        %5586 = vrot.lane.b32.xlu0 %v3284, 12
        %v5587 = vpop.permute.xlu0 %5586
        %5588 = vrot.lane.b32.xlu0 %v3287, 12
        %v5589 = vpop.permute.xlu0 %5588
        %5590 = vrot.lane.b32.xlu0 %v3289, 12
        %v5591 = vpop.permute.xlu0 %5590
        %5592 = vrot.lane.b32.xlu0 %v3292, 12
        %v5593 = vpop.permute.xlu0 %5592
        %5594 = vrot.lane.b32.xlu0 %v3294, 12
        %v5595 = vpop.permute.xlu0 %5594
        %5596 = vrot.lane.b32.xlu0 %v3297, 12
        %v5597 = vpop.permute.xlu0 %5596
        %5598 = vrot.lane.b32.xlu0 %v3299, 12
        %v5599 = vpop.permute.xlu0 %5598
        %5600 = vrot.lane.b32.xlu0 %v3302, 12
        %v5601 = vpop.permute.xlu0 %5600
        %5602 = vrot.lane.b32.xlu0 %v3304, 12
        %v5603 = vpop.permute.xlu0 %5602
        %5604 = vrot.lane.b32.xlu0 %v3307, 12
        %v5605 = vpop.permute.xlu0 %5604
        %5606 = vrot.lane.b32.xlu0 %v3309, 12
        %v5607 = vpop.permute.xlu0 %5606
        %5608 = vrot.lane.b32.xlu0 %v3312, 12
        %v5609 = vpop.permute.xlu0 %5608
        %5610 = vrot.lane.b32.xlu0 %v3314, 12
        %v5611 = vpop.permute.xlu0 %5610
        %5612 = vrot.lane.b32.xlu0 %v3317, 12
        %v5613 = vpop.permute.xlu0 %5612
        %5614 = vrot.lane.b32.xlu0 %v3319, 12
        %v5615 = vpop.permute.xlu0 %5614
        %5616 = vrot.lane.b32.xlu0 %v3322, 12
        %v5617 = vpop.permute.xlu0 %5616
        %5618 = vrot.lane.b32.xlu0 %v3324, 12
        %v5619 = vpop.permute.xlu0 %5618
        %5620 = vrot.lane.b32.xlu0 %v3327, 12
        %v5621 = vpop.permute.xlu0 %5620
        %5622 = vrot.lane.b32.xlu0 %v3329, 12
        %v5623 = vpop.permute.xlu0 %5622
        %5624 = vrot.lane.b32.xlu0 %v3350, 12
        %v5625 = vpop.permute.xlu0 %5624
        %5626 = vrot.lane.b32.xlu0 %v3352, 12
        %v5627 = vpop.permute.xlu0 %5626
        %5628 = vrot.lane.b32.xlu0 %v3373, 12
        %v5629 = vpop.permute.xlu0 %5628
        %5630 = vrot.lane.b32.xlu0 %v3375, 12
        %v5631 = vpop.permute.xlu0 %5630
        %5632 = vrot.lane.b32.xlu0 %v3428, 12
        %v5633 = vpop.permute.xlu0 %5632
        %5634 = vrot.lane.b32.xlu0 %v3430, 12
        %v5635 = vpop.permute.xlu0 %5634
        %5668 = vrot.lane.b32.xlu0 %v2912, 16
        %v5669 = vpop.permute.xlu0 %5668
        %5670 = vrot.lane.b32.xlu0 %v2913, 16
        %v5671 = vpop.permute.xlu0 %5670
        %5672 = vrot.lane.b32.xlu0 %v2915, 16
        %v5673 = vpop.permute.xlu0 %5672
        %5674 = vrot.lane.b32.xlu0 %v2916, 16
        %v5675 = vpop.permute.xlu0 %5674
        %5676 = vrot.lane.b32.xlu0 %v2918, 16
        %v5677 = vpop.permute.xlu0 %5676
        %5678 = vrot.lane.b32.xlu0 %v2919, 16
        %v5679 = vpop.permute.xlu0 %5678
        %5680 = vrot.lane.b32.xlu0 %v2921, 16
        %v5681 = vpop.permute.xlu0 %5680
        %5682 = vrot.lane.b32.xlu0 %v2922, 16
        %v5683 = vpop.permute.xlu0 %5682
        %5684 = vrot.lane.b32.xlu0 %v2924, 16
        %v5685 = vpop.permute.xlu0 %5684
        %5686 = vrot.lane.b32.xlu0 %v2925, 16
        %v5687 = vpop.permute.xlu0 %5686
        %5688 = vrot.lane.b32.xlu0 %v2927, 16
        %v5689 = vpop.permute.xlu0 %5688
        %5690 = vrot.lane.b32.xlu0 %v2928, 16
        %v5691 = vpop.permute.xlu0 %5690
        %5692 = vrot.lane.b32.xlu0 %v2930, 16
        %v5693 = vpop.permute.xlu0 %5692
        %5694 = vrot.lane.b32.xlu0 %v2931, 16
        %v5695 = vpop.permute.xlu0 %5694
        %5696 = vrot.lane.b32.xlu0 %v2933, 16
        %v5697 = vpop.permute.xlu0 %5696
        %5698 = vrot.lane.b32.xlu0 %v2934, 16
        %v5699 = vpop.permute.xlu0 %5698
        %5700 = vrot.lane.b32.xlu0 %v2936, 16
        %v5701 = vpop.permute.xlu0 %5700
        %5702 = vrot.lane.b32.xlu0 %v2937, 16
        %v5703 = vpop.permute.xlu0 %5702
        %5704 = vrot.lane.b32.xlu0 %v2939, 16
        %v5705 = vpop.permute.xlu0 %5704
        %5706 = vrot.lane.b32.xlu0 %v2940, 16
        %v5707 = vpop.permute.xlu0 %5706
        %5708 = vrot.lane.b32.xlu0 %v2942, 16
        %v5709 = vpop.permute.xlu0 %5708
        %5710 = vrot.lane.b32.xlu0 %v2943, 16
        %v5711 = vpop.permute.xlu0 %5710
        %5712 = vrot.lane.b32.xlu0 %v2945, 16
        %v5713 = vpop.permute.xlu0 %5712
        %5714 = vrot.lane.b32.xlu0 %v2946, 16
        %v5715 = vpop.permute.xlu0 %5714
        %5716 = vrot.lane.b32.xlu0 %v2948, 16
        %v5717 = vpop.permute.xlu0 %5716
        %5718 = vrot.lane.b32.xlu0 %v2949, 16
        %v5719 = vpop.permute.xlu0 %5718
        %5720 = vrot.lane.b32.xlu0 %v2951, 16
        %v5721 = vpop.permute.xlu0 %5720
        %5722 = vrot.lane.b32.xlu0 %v2952, 16
        %v5723 = vpop.permute.xlu0 %5722
        %5724 = vrot.lane.b32.xlu0 %v2954, 16
        %v5725 = vpop.permute.xlu0 %5724
        %5726 = vrot.lane.b32.xlu0 %v2955, 16
        %v5727 = vpop.permute.xlu0 %5726
        %5728 = vrot.lane.b32.xlu0 %v2957, 16
        %v5729 = vpop.permute.xlu0 %5728
        %5730 = vrot.lane.b32.xlu0 %v2958, 16
        %v5731 = vpop.permute.xlu0 %5730
        %5764 = vrot.lane.b32.xlu0 %v3030, 20
        %v5765 = vpop.permute.xlu0 %5764
        %5766 = vrot.lane.b32.xlu0 %v3032, 20
        %v5767 = vpop.permute.xlu0 %5766
        %5768 = vrot.lane.b32.xlu0 %v3035, 20
        %v5769 = vpop.permute.xlu0 %5768
        %5770 = vrot.lane.b32.xlu0 %v3037, 20
        %v5771 = vpop.permute.xlu0 %5770
        %5772 = vrot.lane.b32.xlu0 %v3040, 20
        %v5773 = vpop.permute.xlu0 %5772
        %5774 = vrot.lane.b32.xlu0 %v3042, 20
        %v5775 = vpop.permute.xlu0 %5774
        %5776 = vrot.lane.b32.xlu0 %v3045, 20
        %v5777 = vpop.permute.xlu0 %5776
        %5778 = vrot.lane.b32.xlu0 %v3047, 20
        %v5779 = vpop.permute.xlu0 %5778
        %5780 = vrot.lane.b32.xlu0 %v3050, 20
        %v5781 = vpop.permute.xlu0 %5780
        %5782 = vrot.lane.b32.xlu0 %v3052, 20
        %v5783 = vpop.permute.xlu0 %5782
        %5784 = vrot.lane.b32.xlu0 %v3055, 20
        %v5785 = vpop.permute.xlu0 %5784
        %5786 = vrot.lane.b32.xlu0 %v3057, 20
        %v5787 = vpop.permute.xlu0 %5786
        %5788 = vrot.lane.b32.xlu0 %v3060, 20
        %v5789 = vpop.permute.xlu0 %5788
        %5790 = vrot.lane.b32.xlu0 %v3062, 20
        %v5791 = vpop.permute.xlu0 %5790
        %5792 = vrot.lane.b32.xlu0 %v3065, 20
        %v5793 = vpop.permute.xlu0 %5792
        %5794 = vrot.lane.b32.xlu0 %v3067, 20
        %v5795 = vpop.permute.xlu0 %5794
        %5796 = vrot.lane.b32.xlu0 %v3070, 20
        %v5797 = vpop.permute.xlu0 %5796
        %5798 = vrot.lane.b32.xlu0 %v3072, 20
        %v5799 = vpop.permute.xlu0 %5798
        %5800 = vrot.lane.b32.xlu0 %v3075, 20
        %v5801 = vpop.permute.xlu0 %5800
        %5802 = vrot.lane.b32.xlu0 %v3077, 20
        %v5803 = vpop.permute.xlu0 %5802
        %5804 = vrot.lane.b32.xlu0 %v3080, 20
        %v5805 = vpop.permute.xlu0 %5804
        %5806 = vrot.lane.b32.xlu0 %v3082, 20
        %v5807 = vpop.permute.xlu0 %5806
        %5808 = vrot.lane.b32.xlu0 %v3085, 20
        %v5809 = vpop.permute.xlu0 %5808
        %5810 = vrot.lane.b32.xlu0 %v3087, 20
        %v5811 = vpop.permute.xlu0 %5810
        %5812 = vrot.lane.b32.xlu0 %v3335, 20
        %v5813 = vpop.permute.xlu0 %5812
        %5814 = vrot.lane.b32.xlu0 %v3337, 20
        %v5815 = vpop.permute.xlu0 %5814
        %5816 = vrot.lane.b32.xlu0 %v3358, 20
        %v5817 = vpop.permute.xlu0 %5816
        %5818 = vrot.lane.b32.xlu0 %v3360, 20
        %v5819 = vpop.permute.xlu0 %5818
        %5820 = vrot.lane.b32.xlu0 %v3381, 20
        %v5821 = vpop.permute.xlu0 %5820
        %5822 = vrot.lane.b32.xlu0 %v3383, 20
        %v5823 = vpop.permute.xlu0 %5822
        %5824 = vrot.lane.b32.xlu0 %v3436, 20
        %v5825 = vpop.permute.xlu0 %5824
        %5826 = vrot.lane.b32.xlu0 %v3438, 20
        %v5827 = vpop.permute.xlu0 %5826
        %5860 = vrot.lane.b32.xlu0 %v3110, 24
        %v5861 = vpop.permute.xlu0 %5860
        %5862 = vrot.lane.b32.xlu0 %v3112, 24
        %v5863 = vpop.permute.xlu0 %5862
        %5864 = vrot.lane.b32.xlu0 %v3115, 24
        %v5865 = vpop.permute.xlu0 %5864
        %5866 = vrot.lane.b32.xlu0 %v3117, 24
        %v5867 = vpop.permute.xlu0 %5866
        %5868 = vrot.lane.b32.xlu0 %v3120, 24
        %v5869 = vpop.permute.xlu0 %5868
        %5870 = vrot.lane.b32.xlu0 %v3122, 24
        %v5871 = vpop.permute.xlu0 %5870
        %5872 = vrot.lane.b32.xlu0 %v3125, 24
        %v5873 = vpop.permute.xlu0 %5872
        %5874 = vrot.lane.b32.xlu0 %v3127, 24
        %v5875 = vpop.permute.xlu0 %5874
        %5876 = vrot.lane.b32.xlu0 %v3130, 24
        %v5877 = vpop.permute.xlu0 %5876
        %5878 = vrot.lane.b32.xlu0 %v3132, 24
        %v5879 = vpop.permute.xlu0 %5878
        %5880 = vrot.lane.b32.xlu0 %v3135, 24
        %v5881 = vpop.permute.xlu0 %5880
        %5882 = vrot.lane.b32.xlu0 %v3137, 24
        %v5883 = vpop.permute.xlu0 %5882
        %5884 = vrot.lane.b32.xlu0 %v3140, 24
        %v5885 = vpop.permute.xlu0 %5884
        %5886 = vrot.lane.b32.xlu0 %v3142, 24
        %v5887 = vpop.permute.xlu0 %5886
        %5888 = vrot.lane.b32.xlu0 %v3145, 24
        %v5889 = vpop.permute.xlu0 %5888
        %5890 = vrot.lane.b32.xlu0 %v3147, 24
        %v5891 = vpop.permute.xlu0 %5890
        %5892 = vrot.lane.b32.xlu0 %v3150, 24
        %v5893 = vpop.permute.xlu0 %5892
        %5894 = vrot.lane.b32.xlu0 %v3152, 24
        %v5895 = vpop.permute.xlu0 %5894
        %5896 = vrot.lane.b32.xlu0 %v3155, 24
        %v5897 = vpop.permute.xlu0 %5896
        %5898 = vrot.lane.b32.xlu0 %v3157, 24
        %v5899 = vpop.permute.xlu0 %5898
        %5900 = vrot.lane.b32.xlu0 %v3160, 24
        %v5901 = vpop.permute.xlu0 %5900
        %5902 = vrot.lane.b32.xlu0 %v3162, 24
        %v5903 = vpop.permute.xlu0 %5902
        %5904 = vrot.lane.b32.xlu0 %v3165, 24
        %v5905 = vpop.permute.xlu0 %5904
        %5906 = vrot.lane.b32.xlu0 %v3167, 24
        %v5907 = vpop.permute.xlu0 %5906
        %5908 = vrot.lane.b32.xlu0 %v3340, 24
        %v5909 = vpop.permute.xlu0 %5908
        %5910 = vrot.lane.b32.xlu0 %v3342, 24
        %v5911 = vpop.permute.xlu0 %5910
        %5912 = vrot.lane.b32.xlu0 %v3363, 24
        %v5913 = vpop.permute.xlu0 %5912
        %5914 = vrot.lane.b32.xlu0 %v3365, 24
        %v5915 = vpop.permute.xlu0 %5914
        %5916 = vrot.lane.b32.xlu0 %v3418, 24
        %v5917 = vpop.permute.xlu0 %5916
        %5918 = vrot.lane.b32.xlu0 %v3420, 24
        %v5919 = vpop.permute.xlu0 %5918
        %5920 = vrot.lane.b32.xlu0 %v3441, 24
        %v5921 = vpop.permute.xlu0 %5920
        %5922 = vrot.lane.b32.xlu0 %v3443, 24
        %v5923 = vpop.permute.xlu0 %5922
        %5956 = vrot.lane.b32.xlu0 %v3191, 28
        %v5957 = vpop.permute.xlu0 %5956
        %5958 = vrot.lane.b32.xlu0 %v3193, 28
        %v5959 = vpop.permute.xlu0 %5958
        %5960 = vrot.lane.b32.xlu0 %v3196, 28
        %v5961 = vpop.permute.xlu0 %5960
        %5962 = vrot.lane.b32.xlu0 %v3198, 28
        %v5963 = vpop.permute.xlu0 %5962
        %5964 = vrot.lane.b32.xlu0 %v3201, 28
        %v5965 = vpop.permute.xlu0 %5964
        %5966 = vrot.lane.b32.xlu0 %v3203, 28
        %v5967 = vpop.permute.xlu0 %5966
        %5968 = vrot.lane.b32.xlu0 %v3206, 28
        %v5969 = vpop.permute.xlu0 %5968
        %5970 = vrot.lane.b32.xlu0 %v3208, 28
        %v5971 = vpop.permute.xlu0 %5970
        %5972 = vrot.lane.b32.xlu0 %v3211, 28
        %v5973 = vpop.permute.xlu0 %5972
        %5974 = vrot.lane.b32.xlu0 %v3213, 28
        %v5975 = vpop.permute.xlu0 %5974
        %5976 = vrot.lane.b32.xlu0 %v3216, 28
        %v5977 = vpop.permute.xlu0 %5976
        %5978 = vrot.lane.b32.xlu0 %v3218, 28
        %v5979 = vpop.permute.xlu0 %5978
        %5980 = vrot.lane.b32.xlu0 %v3221, 28
        %v5981 = vpop.permute.xlu0 %5980
        %5982 = vrot.lane.b32.xlu0 %v3223, 28
        %v5983 = vpop.permute.xlu0 %5982
        %5984 = vrot.lane.b32.xlu0 %v3226, 28
        %v5985 = vpop.permute.xlu0 %5984
        %5986 = vrot.lane.b32.xlu0 %v3228, 28
        %v5987 = vpop.permute.xlu0 %5986
        %5988 = vrot.lane.b32.xlu0 %v3231, 28
        %v5989 = vpop.permute.xlu0 %5988
        %5990 = vrot.lane.b32.xlu0 %v3233, 28
        %v5991 = vpop.permute.xlu0 %5990
        %5992 = vrot.lane.b32.xlu0 %v3236, 28
        %v5993 = vpop.permute.xlu0 %5992
        %5994 = vrot.lane.b32.xlu0 %v3238, 28
        %v5995 = vpop.permute.xlu0 %5994
        %5996 = vrot.lane.b32.xlu0 %v3241, 28
        %v5997 = vpop.permute.xlu0 %5996
        %5998 = vrot.lane.b32.xlu0 %v3243, 28
        %v5999 = vpop.permute.xlu0 %5998
        %6000 = vrot.lane.b32.xlu0 %v3246, 28
        %v6001 = vpop.permute.xlu0 %6000
        %6002 = vrot.lane.b32.xlu0 %v3248, 28
        %v6003 = vpop.permute.xlu0 %6002
        %6004 = vrot.lane.b32.xlu0 %v3345, 28
        %v6005 = vpop.permute.xlu0 %6004
        %6006 = vrot.lane.b32.xlu0 %v3347, 28
        %v6007 = vpop.permute.xlu0 %6006
        %6008 = vrot.lane.b32.xlu0 %v3368, 28
        %v6009 = vpop.permute.xlu0 %6008
        %6010 = vrot.lane.b32.xlu0 %v3370, 28
        %v6011 = vpop.permute.xlu0 %6010
        %6012 = vrot.lane.b32.xlu0 %v3423, 28
        %v6013 = vpop.permute.xlu0 %6012
        %6014 = vrot.lane.b32.xlu0 %v3425, 28
        %v6015 = vpop.permute.xlu0 %6014
        %6016 = vrot.lane.b32.xlu0 %v3446, 28
        %v6017 = vpop.permute.xlu0 %6016
        %6018 = vrot.lane.b32.xlu0 %v3448, 28
        %v6019 = vpop.permute.xlu0 %6018
        %6052 = vrot.lane.b32.xlu0 %v3272, 32
        %v6053 = vpop.permute.xlu0 %6052
        %6054 = vrot.lane.b32.xlu0 %v3274, 32
        %v6055 = vpop.permute.xlu0 %6054
        %6056 = vrot.lane.b32.xlu0 %v3277, 32
        %v6057 = vpop.permute.xlu0 %6056
        %6058 = vrot.lane.b32.xlu0 %v3279, 32
        %v6059 = vpop.permute.xlu0 %6058
        %6060 = vrot.lane.b32.xlu0 %v3282, 32
        %v6061 = vpop.permute.xlu0 %6060
        %6062 = vrot.lane.b32.xlu0 %v3284, 32
        %v6063 = vpop.permute.xlu0 %6062
        %6064 = vrot.lane.b32.xlu0 %v3287, 32
        %v6065 = vpop.permute.xlu0 %6064
        %6066 = vrot.lane.b32.xlu0 %v3289, 32
        %v6067 = vpop.permute.xlu0 %6066
        %6068 = vrot.lane.b32.xlu0 %v3292, 32
        %v6069 = vpop.permute.xlu0 %6068
        %6070 = vrot.lane.b32.xlu0 %v3294, 32
        %v6071 = vpop.permute.xlu0 %6070
        %6072 = vrot.lane.b32.xlu0 %v3297, 32
        %v6073 = vpop.permute.xlu0 %6072
        %6074 = vrot.lane.b32.xlu0 %v3299, 32
        %v6075 = vpop.permute.xlu0 %6074
        %6076 = vrot.lane.b32.xlu0 %v3302, 32
        %v6077 = vpop.permute.xlu0 %6076
        %6078 = vrot.lane.b32.xlu0 %v3304, 32
        %v6079 = vpop.permute.xlu0 %6078
        %6080 = vrot.lane.b32.xlu0 %v3307, 32
        %v6081 = vpop.permute.xlu0 %6080
        %6082 = vrot.lane.b32.xlu0 %v3309, 32
        %v6083 = vpop.permute.xlu0 %6082
        %6084 = vrot.lane.b32.xlu0 %v3312, 32
        %v6085 = vpop.permute.xlu0 %6084
        %6086 = vrot.lane.b32.xlu0 %v3314, 32
        %v6087 = vpop.permute.xlu0 %6086
        %6088 = vrot.lane.b32.xlu0 %v3317, 32
        %v6089 = vpop.permute.xlu0 %6088
        %6090 = vrot.lane.b32.xlu0 %v3319, 32
        %v6091 = vpop.permute.xlu0 %6090
        %6092 = vrot.lane.b32.xlu0 %v3322, 32
        %v6093 = vpop.permute.xlu0 %6092
        %6094 = vrot.lane.b32.xlu0 %v3324, 32
        %v6095 = vpop.permute.xlu0 %6094
        %6096 = vrot.lane.b32.xlu0 %v3327, 32
        %v6097 = vpop.permute.xlu0 %6096
        %6098 = vrot.lane.b32.xlu0 %v3329, 32
        %v6099 = vpop.permute.xlu0 %6098
        %6100 = vrot.lane.b32.xlu0 %v3350, 32
        %v6101 = vpop.permute.xlu0 %6100
        %6102 = vrot.lane.b32.xlu0 %v3352, 32
        %v6103 = vpop.permute.xlu0 %6102
        %6104 = vrot.lane.b32.xlu0 %v3373, 32
        %v6105 = vpop.permute.xlu0 %6104
        %6106 = vrot.lane.b32.xlu0 %v3375, 32
        %v6107 = vpop.permute.xlu0 %6106
        %6108 = vrot.lane.b32.xlu0 %v3428, 32
        %v6109 = vpop.permute.xlu0 %6108
        %6110 = vrot.lane.b32.xlu0 %v3430, 32
        %v6111 = vpop.permute.xlu0 %6110
        %6112 = vrot.lane.b32.xlu0 %v3451, 32
        %v6113 = vpop.permute.xlu0 %6112
        %6114 = vrot.lane.b32.xlu0 %v3453, 32
        %v6115 = vpop.permute.xlu0 %6114
        %v6148 = vsel %vm490, %v3025, %v5381
        %v6149 = vsel %vm490, %v3027, %v5383
        %v6150 = vsel %vm490, %v3030, %v5385
        %v6151 = vsel %vm490, %v3032, %v5387
        %v6152 = vsel %vm490, %v3035, %v5389
        %v6153 = vsel %vm490, %v3037, %v5391
        %v6154 = vsel %vm490, %v3040, %v5393
        %v6155 = vsel %vm490, %v3042, %v5395
        %v6156 = vsel %vm490, %v3045, %v5397
        %v6157 = vsel %vm490, %v3047, %v5399
        %v6158 = vsel %vm490, %v3050, %v5401
        %v6159 = vsel %vm490, %v3052, %v5403
        %v6160 = vsel %vm490, %v3055, %v5405
        %v6161 = vsel %vm490, %v3057, %v5407
        %v6162 = vsel %vm490, %v3060, %v5409
        %v6163 = vsel %vm490, %v3062, %v5411
        %v6164 = vsel %vm490, %v3065, %v5413
        %v6165 = vsel %vm490, %v3067, %v5415
        %v6166 = vsel %vm490, %v3070, %v5417
        %v6167 = vsel %vm490, %v3072, %v5419
        %v6168 = vsel %vm490, %v3075, %v5421
        %v6169 = vsel %vm490, %v3077, %v5423
        %v6170 = vsel %vm490, %v3080, %v5425
        %v6171 = vsel %vm490, %v3082, %v5427
        %v6172 = vsel %vm490, %v3085, %v5429
        %v6173 = vsel %vm490, %v3087, %v5431
        %v6174 = vsel %vm490, %v3335, %v5433
        %v6175 = vsel %vm490, %v3337, %v5435
        %v6176 = vsel %vm490, %v3358, %v5437
        %v6177 = vsel %vm490, %v3360, %v5439
        %v6178 = vsel %vm490, %v3381, %v5441
        %v6179 = vsel %vm490, %v3383, %v5443
        %v6180 = vsel %vm2120, %v6148, %v5477
        %v6181 = vsel %vm2120, %v6149, %v5479
        %v6182 = vsel %vm2120, %v6150, %v5481
        %v6183 = vsel %vm2120, %v6151, %v5483
        %v6184 = vsel %vm2120, %v6152, %v5485
        %v6185 = vsel %vm2120, %v6153, %v5487
        %v6186 = vsel %vm2120, %v6154, %v5489
        %v6187 = vsel %vm2120, %v6155, %v5491
        %v6188 = vsel %vm2120, %v6156, %v5493
        %v6189 = vsel %vm2120, %v6157, %v5495
        %v6190 = vsel %vm2120, %v6158, %v5497
        %v6191 = vsel %vm2120, %v6159, %v5499
        %v6192 = vsel %vm2120, %v6160, %v5501
        %v6193 = vsel %vm2120, %v6161, %v5503
        %v6194 = vsel %vm2120, %v6162, %v5505
        %v6195 = vsel %vm2120, %v6163, %v5507
        %v6196 = vsel %vm2120, %v6164, %v5509
        %v6197 = vsel %vm2120, %v6165, %v5511
        %v6198 = vsel %vm2120, %v6166, %v5513
        %v6199 = vsel %vm2120, %v6167, %v5515
        %v6200 = vsel %vm2120, %v6168, %v5517
        %v6201 = vsel %vm2120, %v6169, %v5519
        %v6202 = vsel %vm2120, %v6170, %v5521
        %v6203 = vsel %vm2120, %v6171, %v5523
        %v6204 = vsel %vm2120, %v6172, %v5525
        %v6205 = vsel %vm2120, %v6173, %v5527
        %v6206 = vsel %vm2120, %v6174, %v5529
        %v6207 = vsel %vm2120, %v6175, %v5531
        %v6208 = vsel %vm2120, %v6176, %v5533
        %v6209 = vsel %vm2120, %v6177, %v5535
        %v6210 = vsel %vm2120, %v6178, %v5537
        %v6211 = vsel %vm2120, %v6179, %v5539
        %v6212 = vsel %vm2153, %v6180, %v5573
        %v6213 = vsel %vm2153, %v6181, %v5575
        %v6214 = vsel %vm2153, %v6182, %v5577
        %v6215 = vsel %vm2153, %v6183, %v5579
        %v6216 = vsel %vm2153, %v6184, %v5581
        %v6217 = vsel %vm2153, %v6185, %v5583
        %v6218 = vsel %vm2153, %v6186, %v5585
        %v6219 = vsel %vm2153, %v6187, %v5587
        %v6220 = vsel %vm2153, %v6188, %v5589
        %v6221 = vsel %vm2153, %v6189, %v5591
        %v6222 = vsel %vm2153, %v6190, %v5593
        %v6223 = vsel %vm2153, %v6191, %v5595
        %v6224 = vsel %vm2153, %v6192, %v5597
        %v6225 = vsel %vm2153, %v6193, %v5599
        %v6226 = vsel %vm2153, %v6194, %v5601
        %v6227 = vsel %vm2153, %v6195, %v5603
        %v6228 = vsel %vm2153, %v6196, %v5605
        %v6229 = vsel %vm2153, %v6197, %v5607
        %v6230 = vsel %vm2153, %v6198, %v5609
        %v6231 = vsel %vm2153, %v6199, %v5611
        %v6232 = vsel %vm2153, %v6200, %v5613
        %v6233 = vsel %vm2153, %v6201, %v5615
        %v6234 = vsel %vm2153, %v6202, %v5617
        %v6235 = vsel %vm2153, %v6203, %v5619
        %v6236 = vsel %vm2153, %v6204, %v5621
        %v6237 = vsel %vm2153, %v6205, %v5623
        %v6238 = vsel %vm2153, %v6206, %v5625
        %v6239 = vsel %vm2153, %v6207, %v5627
        %v6240 = vsel %vm2153, %v6208, %v5629
        %v6241 = vsel %vm2153, %v6209, %v5631
        %v6242 = vsel %vm2153, %v6210, %v5633
        %v6243 = vsel %vm2153, %v6211, %v5635
        %v6244 = vsel %vm2186, %v6212, %v5669
        %v6245 = vsel %vm2186, %v6213, %v5671
        %v6246 = vsel %vm2186, %v6214, %v5673
        %v6247 = vsel %vm2186, %v6215, %v5675
        %v6248 = vsel %vm2186, %v6216, %v5677
        %v6249 = vsel %vm2186, %v6217, %v5679
        %v6250 = vsel %vm2186, %v6218, %v5681
        %v6251 = vsel %vm2186, %v6219, %v5683
        %v6252 = vsel %vm2186, %v6220, %v5685
        %v6253 = vsel %vm2186, %v6221, %v5687
        %v6254 = vsel %vm2186, %v6222, %v5689
        %v6255 = vsel %vm2186, %v6223, %v5691
        %v6256 = vsel %vm2186, %v6224, %v5693
        %v6257 = vsel %vm2186, %v6225, %v5695
        %v6258 = vsel %vm2186, %v6226, %v5697
        %v6259 = vsel %vm2186, %v6227, %v5699
        %v6260 = vsel %vm2186, %v6228, %v5701
        %v6261 = vsel %vm2186, %v6229, %v5703
        %v6262 = vsel %vm2186, %v6230, %v5705
        %v6263 = vsel %vm2186, %v6231, %v5707
        %v6264 = vsel %vm2186, %v6232, %v5709
        %v6265 = vsel %vm2186, %v6233, %v5711
        %v6266 = vsel %vm2186, %v6234, %v5713
        %v6267 = vsel %vm2186, %v6235, %v5715
        %v6268 = vsel %vm2186, %v6236, %v5717
        %v6269 = vsel %vm2186, %v6237, %v5719
        %v6270 = vsel %vm2186, %v6238, %v5721
        %v6271 = vsel %vm2186, %v6239, %v5723
        %v6272 = vsel %vm2186, %v6240, %v5725
        %v6273 = vsel %vm2186, %v6241, %v5727
        %v6274 = vsel %vm2186, %v6242, %v5729
        %v6275 = vsel %vm2186, %v6243, %v5731
        %v6276 = vsel %vm2219, %v6244, %v5765
        %v6277 = vsel %vm2219, %v6245, %v5767
        %v6278 = vsel %vm2219, %v6246, %v5769
        %v6279 = vsel %vm2219, %v6247, %v5771
        %v6280 = vsel %vm2219, %v6248, %v5773
        %v6281 = vsel %vm2219, %v6249, %v5775
        %v6282 = vsel %vm2219, %v6250, %v5777
        %v6283 = vsel %vm2219, %v6251, %v5779
        %v6284 = vsel %vm2219, %v6252, %v5781
        %v6285 = vsel %vm2219, %v6253, %v5783
        %v6286 = vsel %vm2219, %v6254, %v5785
        %v6287 = vsel %vm2219, %v6255, %v5787
        %v6288 = vsel %vm2219, %v6256, %v5789
        %v6289 = vsel %vm2219, %v6257, %v5791
        %v6290 = vsel %vm2219, %v6258, %v5793
        %v6291 = vsel %vm2219, %v6259, %v5795
        %v6292 = vsel %vm2219, %v6260, %v5797
        %v6293 = vsel %vm2219, %v6261, %v5799
        %v6294 = vsel %vm2219, %v6262, %v5801
        %v6295 = vsel %vm2219, %v6263, %v5803
        %v6296 = vsel %vm2219, %v6264, %v5805
        %v6297 = vsel %vm2219, %v6265, %v5807
        %v6298 = vsel %vm2219, %v6266, %v5809
        %v6299 = vsel %vm2219, %v6267, %v5811
        %v6300 = vsel %vm2219, %v6268, %v5813
        %v6301 = vsel %vm2219, %v6269, %v5815
        %v6302 = vsel %vm2219, %v6270, %v5817
        %v6303 = vsel %vm2219, %v6271, %v5819
        %v6304 = vsel %vm2219, %v6272, %v5821
        %v6305 = vsel %vm2219, %v6273, %v5823
        %v6306 = vsel %vm2219, %v6274, %v5825
        %v6307 = vsel %vm2219, %v6275, %v5827
        %v6308 = vsel %vm2252, %v6276, %v5861
        %v6309 = vsel %vm2252, %v6277, %v5863
        %v6310 = vsel %vm2252, %v6278, %v5865
        %v6311 = vsel %vm2252, %v6279, %v5867
        %v6312 = vsel %vm2252, %v6280, %v5869
        %v6313 = vsel %vm2252, %v6281, %v5871
        %v6314 = vsel %vm2252, %v6282, %v5873
        %v6315 = vsel %vm2252, %v6283, %v5875
        %v6316 = vsel %vm2252, %v6284, %v5877
        %v6317 = vsel %vm2252, %v6285, %v5879
        %v6318 = vsel %vm2252, %v6286, %v5881
        %v6319 = vsel %vm2252, %v6287, %v5883
        %v6320 = vsel %vm2252, %v6288, %v5885
        %v6321 = vsel %vm2252, %v6289, %v5887
        %v6322 = vsel %vm2252, %v6290, %v5889
        %v6323 = vsel %vm2252, %v6291, %v5891
        %v6324 = vsel %vm2252, %v6292, %v5893
        %v6325 = vsel %vm2252, %v6293, %v5895
        %v6326 = vsel %vm2252, %v6294, %v5897
        %v6327 = vsel %vm2252, %v6295, %v5899
        %v6328 = vsel %vm2252, %v6296, %v5901
        %v6329 = vsel %vm2252, %v6297, %v5903
        %v6330 = vsel %vm2252, %v6298, %v5905
        %v6331 = vsel %vm2252, %v6299, %v5907
        %v6332 = vsel %vm2252, %v6300, %v5909
        %v6333 = vsel %vm2252, %v6301, %v5911
        %v6334 = vsel %vm2252, %v6302, %v5913
        %v6335 = vsel %vm2252, %v6303, %v5915
        %v6336 = vsel %vm2252, %v6304, %v5917
        %v6337 = vsel %vm2252, %v6305, %v5919
        %v6338 = vsel %vm2252, %v6306, %v5921
        %v6339 = vsel %vm2252, %v6307, %v5923
        %v6340 = vsel %vm2285, %v6308, %v5957
        %v6341 = vsel %vm2285, %v6309, %v5959
        %v6342 = vsel %vm2285, %v6310, %v5961
        %v6343 = vsel %vm2285, %v6311, %v5963
        %v6344 = vsel %vm2285, %v6312, %v5965
        %v6345 = vsel %vm2285, %v6313, %v5967
        %v6346 = vsel %vm2285, %v6314, %v5969
        %v6347 = vsel %vm2285, %v6315, %v5971
        %v6348 = vsel %vm2285, %v6316, %v5973
        %v6349 = vsel %vm2285, %v6317, %v5975
        %v6350 = vsel %vm2285, %v6318, %v5977
        %v6351 = vsel %vm2285, %v6319, %v5979
        %v6352 = vsel %vm2285, %v6320, %v5981
        %v6353 = vsel %vm2285, %v6321, %v5983
        %v6354 = vsel %vm2285, %v6322, %v5985
        %v6355 = vsel %vm2285, %v6323, %v5987
        %v6356 = vsel %vm2285, %v6324, %v5989
        %v6357 = vsel %vm2285, %v6325, %v5991
        %v6358 = vsel %vm2285, %v6326, %v5993
        %v6359 = vsel %vm2285, %v6327, %v5995
        %v6360 = vsel %vm2285, %v6328, %v5997
        %v6361 = vsel %vm2285, %v6329, %v5999
        %v6362 = vsel %vm2285, %v6330, %v6001
        %v6363 = vsel %vm2285, %v6331, %v6003
        %v6364 = vsel %vm2285, %v6332, %v6005
        %v6365 = vsel %vm2285, %v6333, %v6007
        %v6366 = vsel %vm2285, %v6334, %v6009
        %v6367 = vsel %vm2285, %v6335, %v6011
        %v6368 = vsel %vm2285, %v6336, %v6013
        %v6369 = vsel %vm2285, %v6337, %v6015
        %v6370 = vsel %vm2285, %v6338, %v6017
        %v6371 = vsel %vm2285, %v6339, %v6019
        %v6372 = vsel %vm2318, %v6340, %v6053
        %v6373 = vsel %vm2318, %v6341, %v6055
        %v6374 = vsel %vm2318, %v6342, %v6057
        %v6375 = vsel %vm2318, %v6343, %v6059
        %v6376 = vsel %vm2318, %v6344, %v6061
        %v6377 = vsel %vm2318, %v6345, %v6063
        %v6378 = vsel %vm2318, %v6346, %v6065
        %v6379 = vsel %vm2318, %v6347, %v6067
        %v6380 = vsel %vm2318, %v6348, %v6069
        %v6381 = vsel %vm2318, %v6349, %v6071
        %v6382 = vsel %vm2318, %v6350, %v6073
        %v6383 = vsel %vm2318, %v6351, %v6075
        %v6384 = vsel %vm2318, %v6352, %v6077
        %v6385 = vsel %vm2318, %v6353, %v6079
        %v6386 = vsel %vm2318, %v6354, %v6081
        %v6387 = vsel %vm2318, %v6355, %v6083
        %v6388 = vsel %vm2318, %v6356, %v6085
        %v6389 = vsel %vm2318, %v6357, %v6087
        %v6390 = vsel %vm2318, %v6358, %v6089
        %v6391 = vsel %vm2318, %v6359, %v6091
        %v6392 = vsel %vm2318, %v6360, %v6093
        %v6393 = vsel %vm2318, %v6361, %v6095
        %v6394 = vsel %vm2318, %v6362, %v6097
        %v6395 = vsel %vm2318, %v6363, %v6099
        %v6396 = vsel %vm2318, %v6364, %v6101
        %v6397 = vsel %vm2318, %v6365, %v6103
        %v6398 = vsel %vm2318, %v6366, %v6105
        %v6399 = vsel %vm2318, %v6367, %v6107
        %v6400 = vsel %vm2318, %v6368, %v6109
        %v6401 = vsel %vm2318, %v6369, %v6111
        %v6402 = vsel %vm2318, %v6370, %v6113
        %v6403 = vsel %vm2318, %v6371, %v6115
        %6436 = vrot.lane.b32.xlu0 %v6372, 64
        %v6437 = vpop.permute.xlu0 %6436
        %6438 = vrot.lane.b32.xlu0 %v6373, 64
        %v6439 = vpop.permute.xlu0 %6438
        %6440 = vrot.lane.b32.xlu0 %v6374, 64
        %v6441 = vpop.permute.xlu0 %6440
        %6442 = vrot.lane.b32.xlu0 %v6375, 64
        %v6443 = vpop.permute.xlu0 %6442
        %6444 = vrot.lane.b32.xlu0 %v6376, 64
        %v6445 = vpop.permute.xlu0 %6444
        %6446 = vrot.lane.b32.xlu0 %v6377, 64
        %v6447 = vpop.permute.xlu0 %6446
        %6448 = vrot.lane.b32.xlu0 %v6378, 64
        %v6449 = vpop.permute.xlu0 %6448
        %6450 = vrot.lane.b32.xlu0 %v6379, 64
        %v6451 = vpop.permute.xlu0 %6450
        %6452 = vrot.lane.b32.xlu0 %v6380, 64
        %v6453 = vpop.permute.xlu0 %6452
        %6454 = vrot.lane.b32.xlu0 %v6381, 64
        %v6455 = vpop.permute.xlu0 %6454
        %6456 = vrot.lane.b32.xlu0 %v6382, 64
        %v6457 = vpop.permute.xlu0 %6456
        %6458 = vrot.lane.b32.xlu0 %v6383, 64
        %v6459 = vpop.permute.xlu0 %6458
        %6460 = vrot.lane.b32.xlu0 %v6384, 64
        %v6461 = vpop.permute.xlu0 %6460
        %6462 = vrot.lane.b32.xlu0 %v6385, 64
        %v6463 = vpop.permute.xlu0 %6462
        %6464 = vrot.lane.b32.xlu0 %v6386, 64
        %v6465 = vpop.permute.xlu0 %6464
        %6466 = vrot.lane.b32.xlu0 %v6387, 64
        %v6467 = vpop.permute.xlu0 %6466
        %6468 = vrot.lane.b32.xlu0 %v6388, 64
        %v6469 = vpop.permute.xlu0 %6468
        %6470 = vrot.lane.b32.xlu0 %v6389, 64
        %v6471 = vpop.permute.xlu0 %6470
        %6472 = vrot.lane.b32.xlu0 %v6390, 64
        %v6473 = vpop.permute.xlu0 %6472
        %6474 = vrot.lane.b32.xlu0 %v6391, 64
        %v6475 = vpop.permute.xlu0 %6474
        %6476 = vrot.lane.b32.xlu0 %v6392, 64
        %v6477 = vpop.permute.xlu0 %6476
        %6478 = vrot.lane.b32.xlu0 %v6393, 64
        %v6479 = vpop.permute.xlu0 %6478
        %6480 = vrot.lane.b32.xlu0 %v6394, 64
        %v6481 = vpop.permute.xlu0 %6480
        %6482 = vrot.lane.b32.xlu0 %v6395, 64
        %v6483 = vpop.permute.xlu0 %6482
        %6484 = vrot.lane.b32.xlu0 %v6396, 64
        %v6485 = vpop.permute.xlu0 %6484
        %6486 = vrot.lane.b32.xlu0 %v6397, 64
        %v6487 = vpop.permute.xlu0 %6486
        %6488 = vrot.lane.b32.xlu0 %v6398, 64
        %v6489 = vpop.permute.xlu0 %6488
        %6490 = vrot.lane.b32.xlu0 %v6399, 64
        %v6491 = vpop.permute.xlu0 %6490
        %6492 = vrot.lane.b32.xlu0 %v6400, 64
        %v6493 = vpop.permute.xlu0 %6492
        %6494 = vrot.lane.b32.xlu0 %v6401, 64
        %v6495 = vpop.permute.xlu0 %6494
        %6496 = vrot.lane.b32.xlu0 %v6402, 64
        %v6497 = vpop.permute.xlu0 %6496
        %6498 = vrot.lane.b32.xlu0 %v6403, 64
        %v6499 = vpop.permute.xlu0 %6498
        %vm6532 = vcmask 523264
        %v6533 = vsel %vm6532, %v5348, %v6437
        %v6534 = vsel %vm6532, %v5349, %v6439
        %v6535 = vsel %vm6532, %v5350, %v6441
        %v6536 = vsel %vm6532, %v5351, %v6443
        %v6537 = vsel %vm6532, %v5352, %v6445
        %v6538 = vsel %vm6532, %v5353, %v6447
        %v6539 = vsel %vm6532, %v5354, %v6449
        %v6540 = vsel %vm6532, %v5355, %v6451
        %v6541 = vsel %vm6532, %v5356, %v6453
        %v6542 = vsel %vm6532, %v5357, %v6455
        %v6543 = vsel %vm6532, %v5358, %v6457
        %v6544 = vsel %vm6532, %v5359, %v6459
        %v6545 = vsel %vm6532, %v5360, %v6461
        %v6546 = vsel %vm6532, %v5361, %v6463
        %v6547 = vsel %vm6532, %v5362, %v6465
        %v6548 = vsel %vm6532, %v5363, %v6467
        %v6549 = vsel %vm6532, %v5364, %v6469
        %v6550 = vsel %vm6532, %v5365, %v6471
        %v6551 = vsel %vm6532, %v5366, %v6473
        %v6552 = vsel %vm6532, %v5367, %v6475
        %v6553 = vsel %vm6532, %v5368, %v6477
        %v6554 = vsel %vm6532, %v5369, %v6479
        %v6555 = vsel %vm6532, %v5370, %v6481
        %v6556 = vsel %vm6532, %v5371, %v6483
        %v6557 = vsel %vm6532, %v5372, %v6485
        %v6558 = vsel %vm6532, %v5373, %v6487
        %v6559 = vsel %vm6532, %v5374, %v6489
        %v6560 = vsel %vm6532, %v5375, %v6491
        %v6561 = vsel %vm6532, %v5376, %v6493
        %v6562 = vsel %vm6532, %v5377, %v6495
        %v6563 = vsel %vm6532, %v5378, %v6497
        %v6564 = vsel %vm6532, %v5379, %v6499
        %v6565 = vpack.c.bf16 %v6534, %v6533
        %v6566 = vpack.c.bf16 %v6536, %v6535
        %v6567 = vpack.c.bf16 %v6538, %v6537
        %v6568 = vpack.c.bf16 %v6540, %v6539
        %v6569 = vpack.c.bf16 %v6542, %v6541
        %v6570 = vpack.c.bf16 %v6544, %v6543
        %v6571 = vpack.c.bf16 %v6546, %v6545
        %v6572 = vpack.c.bf16 %v6548, %v6547
        %v6573 = vpack.c.bf16 %v6550, %v6549
        %v6574 = vpack.c.bf16 %v6552, %v6551
        %v6575 = vpack.c.bf16 %v6554, %v6553
        %v6576 = vpack.c.bf16 %v6556, %v6555
        %v6577 = vpack.c.bf16 %v6558, %v6557
        %v6578 = vpack.c.bf16 %v6560, %v6559
        %v6579 = vpack.c.bf16 %v6562, %v6561
        %v6580 = vpack.c.bf16 %v6564, %v6563
        %v6581 = vld [vmem:[%s7] sm:$0xf]
        %v6582 = vld [vmem:[%s7 + $0x4] sm:$0xf]
        %v6583 = vld [vmem:[%s7 + $0x8] sm:$0xf]
        %v6584 = vld [vmem:[%s7 + $0xc] sm:$0xf]
        %v6585 = vld [vmem:[%s7 + $0x10] sm:$0xf]
        %v6586 = vld [vmem:[%s7 + $0x14] sm:$0xf]
        %v6587 = vld [vmem:[%s7 + $0x18] sm:$0xf]
        %v6588 = vld [vmem:[%s7 + $0x1c] sm:$0xf]
        %v6589 = vld [vmem:[%s7 + $0x20] sm:$0xf]
        %v6590 = vld [vmem:[%s7 + $0x24] sm:$0xf]
        %v6591 = vld [vmem:[%s7 + $0x28] sm:$0xf]
        %v6592 = vld [vmem:[%s7 + $0x2c] sm:$0xf]
        %v6593 = vld [vmem:[%s7 + $0x30] sm:$0x3]
        %v6607 = vunpack.c.l.b16 %v6581
        %v6608 = vunpack.c.l.b16 %v6582
        %v6609 = vunpack.c.l.b16 %v6583
        %v6610 = vunpack.c.l.b16 %v6584
        %v6611 = vunpack.c.l.b16 %v6585
        %v6612 = vunpack.c.l.b16 %v6586
        %v6613 = vunpack.c.l.b16 %v6587
        %v6614 = vunpack.c.l.b16 %v6588
        %v6615 = vunpack.c.l.b16 %v6589
        %v6616 = vunpack.c.l.b16 %v6590
        %v6617 = vunpack.c.l.b16 %v6591
        %v6618 = vunpack.c.l.b16 %v6592
        %v6619 = vunpack.c.l.b16 %v6593
        %v6620 = vpack.c.b16 %v6608, %v6607
        %v6621 = vpack.c.b16 %v6610, %v6609
        %v6622 = vpack.c.b16 %v6612, %v6611
        %v6623 = vpack.c.b16 %v6614, %v6613
        %v6624 = vpack.c.b16 %v6616, %v6615
        %v6625 = vpack.c.b16 %v6618, %v6617
        %v6626 = vpack.c.b16 %v6619, %v6619
        %vm6633 = vcmask 818176
        %v6635 = vsel %vm6633, %v6565, 0
        %v6638 = vsel %vm6633, %v6566, 0
        %v6641 = vsel %vm6633, %v6567, 0
        %v6644 = vsel %vm6633, %v6568, 0
        %v6647 = vsel %vm6633, %v6569, 0
        %v6650 = vsel %vm6633, %v6570, 0
        %v6653 = vsel %vm6633, %v6571, 0
        %v6656 = vsel %vm6633, %v6572, 0
        %v6659 = vsel %vm6633, %v6573, 0
        %v6662 = vsel %vm6633, %v6574, 0
        %v6665 = vsel %vm6633, %v6575, 0
        %v6668 = vsel %vm6633, %v6576, 0
        %v6671 = vsel %vm6633, %v6577, 0
        %v6674 = vsel %vm6633, %v6578, 0
        %v6677 = vsel %vm6633, %v6579, 0
        %v6680 = vsel %vm6633, %v6580, 0
        %v6683 = vsel %vm539, %v6626, 0
        %6685 = vmatprep.subr.bf16.mxu0 0
        %6686 = vmatpush1.bf16.msra.mxu0 0
        %6687 = vmatprep.subr.bf16.mxu0 0
        %6688 = vmatpush1.bf16.msra.mxu0 %v6683
        %6689 = vmatprep.subr.bf16.mxu0 0
        %6690 = vmatpush1.bf16.msra.mxu0 %v6625
        %6691 = vmatprep.subr.bf16.mxu0 0
        %6692 = vmatpush1.bf16.msra.mxu0 %v6624
        %6693 = vmatprep.subr.bf16.mxu0 0
        %6694 = vmatpush1.bf16.msra.mxu0 %v6623
        %6695 = vmatprep.subr.bf16.mxu0 0
        %6696 = vmatpush1.bf16.msra.mxu0 %v6622
        %6697 = vmatprep.subr.bf16.mxu0 0
        %6698 = vmatpush1.bf16.msra.mxu0 %v6621
        %6699 = vmatprep.subr.bf16.mxu0 0
        %6700 = vmatpush1.bf16.msra.mxu0 %v6620
        %6701 = vmatprep.subr.bf16.mxu0 0
        %6702 = vmatpush2.bf16.msra.mxu0 0
        %6703 = vmatprep.subr.bf16.mxu0 0
        %6704 = vmatpush2.bf16.msra.mxu0 0
        %6705 = vmatprep.subr.bf16.mxu0 0
        %6706 = vmatpush2.bf16.msra.mxu0 0
        %6707 = vmatprep.subr.bf16.mxu0 0
        %6708 = vmatpush2.bf16.msra.mxu0 0
        %6709 = vmatprep.subr.bf16.mxu0 0
        %6710 = vmatpush2.bf16.msra.mxu0 0
        %6711 = vmatprep.subr.bf16.mxu0 0
        %6712 = vmatpush2.bf16.msra.mxu0 0
        %6713 = vmatprep.subr.bf16.mxu0 0
        %6714 = vmatpush2.bf16.msra.mxu0 0
        %6715 = vmatprep.subr.bf16.mxu0 0
        %6716 = vmatpush2.bf16.msra.mxu0 0
        %6717 = vmatprep.mubr.bf16.mxu0 0
        %6718 = vmatmul.mubr.bf16.gmra.mxu0 %v6635
        %v6719 = vpop.f32.mrf.mxu0
        %v6720 = vadd.f32 0.0, %v6719
        %v6721 = vpop.f32.mrf.mxu0
        %v6722 = vpop.f32.mrf.mxu0
        %v6723 = vadd.f32 0.0, %v6722
        %v6724 = vpop.f32.mrf.mxu0
        %6725 = vmatprep.mubr.bf16.mxu0 0
        %6726 = vmatmul.mubr.bf16.gmra.mxu0 %v6638
        %v6727 = vpop.f32.mrf.mxu0
        %v6728 = vadd.f32 0.0, %v6727
        %v6729 = vpop.f32.mrf.mxu0
        %v6730 = vpop.f32.mrf.mxu0
        %v6731 = vadd.f32 0.0, %v6730
        %v6732 = vpop.f32.mrf.mxu0
        %6733 = vmatprep.mubr.bf16.mxu0 0
        %6734 = vmatmul.mubr.bf16.gmra.mxu0 %v6641
        %v6735 = vpop.f32.mrf.mxu0
        %v6736 = vadd.f32 0.0, %v6735
        %v6737 = vpop.f32.mrf.mxu0
        %v6738 = vpop.f32.mrf.mxu0
        %v6739 = vadd.f32 0.0, %v6738
        %v6740 = vpop.f32.mrf.mxu0
        %6741 = vmatprep.mubr.bf16.mxu0 0
        %6742 = vmatmul.mubr.bf16.gmra.mxu0 %v6644
        %v6743 = vpop.f32.mrf.mxu0
        %v6744 = vadd.f32 0.0, %v6743
        %v6745 = vpop.f32.mrf.mxu0
        %v6746 = vpop.f32.mrf.mxu0
        %v6747 = vadd.f32 0.0, %v6746
        %v6748 = vpop.f32.mrf.mxu0
        %6749 = vmatprep.mubr.bf16.mxu0 0
        %6750 = vmatmul.mubr.bf16.gmra.mxu0 %v6647
        %v6751 = vpop.f32.mrf.mxu0
        %v6752 = vadd.f32 0.0, %v6751
        %v6753 = vpop.f32.mrf.mxu0
        %v6754 = vpop.f32.mrf.mxu0
        %v6755 = vadd.f32 0.0, %v6754
        %v6756 = vpop.f32.mrf.mxu0
        %6757 = vmatprep.mubr.bf16.mxu0 0
        %6758 = vmatmul.mubr.bf16.gmra.mxu0 %v6650
        %v6759 = vpop.f32.mrf.mxu0
        %v6760 = vadd.f32 0.0, %v6759
        %v6761 = vpop.f32.mrf.mxu0
        %v6762 = vpop.f32.mrf.mxu0
        %v6763 = vadd.f32 0.0, %v6762
        %v6764 = vpop.f32.mrf.mxu0
        %6765 = vmatprep.mubr.bf16.mxu0 0
        %6766 = vmatmul.mubr.bf16.gmra.mxu0 %v6653
        %v6767 = vpop.f32.mrf.mxu0
        %v6768 = vadd.f32 0.0, %v6767
        %v6769 = vpop.f32.mrf.mxu0
        %v6770 = vpop.f32.mrf.mxu0
        %v6771 = vadd.f32 0.0, %v6770
        %v6772 = vpop.f32.mrf.mxu0
        %6773 = vmatprep.mubr.bf16.mxu0 0
        %6774 = vmatmul.mubr.bf16.gmra.mxu0 %v6656
        %v6775 = vpop.f32.mrf.mxu0
        %v6776 = vadd.f32 0.0, %v6775
        %v6777 = vpop.f32.mrf.mxu0
        %v6778 = vpop.f32.mrf.mxu0
        %v6779 = vadd.f32 0.0, %v6778
        %v6780 = vpop.f32.mrf.mxu0
        %6781 = vmatprep.mubr.bf16.mxu0 0
        %6782 = vmatmul.mubr.bf16.gmra.mxu0 %v6659
        %v6783 = vpop.f32.mrf.mxu0
        %v6784 = vadd.f32 0.0, %v6783
        %v6785 = vpop.f32.mrf.mxu0
        %v6786 = vpop.f32.mrf.mxu0
        %v6787 = vadd.f32 0.0, %v6786
        %v6788 = vpop.f32.mrf.mxu0
        %6789 = vmatprep.mubr.bf16.mxu0 0
        %6790 = vmatmul.mubr.bf16.gmra.mxu0 %v6662
        %v6791 = vpop.f32.mrf.mxu0
        %v6792 = vadd.f32 0.0, %v6791
        %v6793 = vpop.f32.mrf.mxu0
        %v6794 = vpop.f32.mrf.mxu0
        %v6795 = vadd.f32 0.0, %v6794
        %v6796 = vpop.f32.mrf.mxu0
        %6797 = vmatprep.mubr.bf16.mxu0 0
        %6798 = vmatmul.mubr.bf16.gmra.mxu0 %v6665
        %v6799 = vpop.f32.mrf.mxu0
        %v6800 = vadd.f32 0.0, %v6799
        %v6801 = vpop.f32.mrf.mxu0
        %v6802 = vpop.f32.mrf.mxu0
        %v6803 = vadd.f32 0.0, %v6802
        %v6804 = vpop.f32.mrf.mxu0
        %6805 = vmatprep.mubr.bf16.mxu0 0
        %6806 = vmatmul.mubr.bf16.gmra.mxu0 %v6668
        %v6807 = vpop.f32.mrf.mxu0
        %v6808 = vadd.f32 0.0, %v6807
        %v6809 = vpop.f32.mrf.mxu0
        %v6810 = vpop.f32.mrf.mxu0
        %v6811 = vadd.f32 0.0, %v6810
        %v6812 = vpop.f32.mrf.mxu0
        %6813 = vmatprep.mubr.bf16.mxu0 0
        %6814 = vmatmul.mubr.bf16.gmra.mxu0 %v6671
        %v6815 = vpop.f32.mrf.mxu0
        %v6816 = vadd.f32 0.0, %v6815
        %v6817 = vpop.f32.mrf.mxu0
        %v6818 = vpop.f32.mrf.mxu0
        %v6819 = vadd.f32 0.0, %v6818
        %v6820 = vpop.f32.mrf.mxu0
        %6821 = vmatprep.mubr.bf16.mxu0 0
        %6822 = vmatmul.mubr.bf16.gmra.mxu0 %v6674
        %v6823 = vpop.f32.mrf.mxu0
        %v6824 = vadd.f32 0.0, %v6823
        %v6825 = vpop.f32.mrf.mxu0
        %v6826 = vpop.f32.mrf.mxu0
        %v6827 = vadd.f32 0.0, %v6826
        %v6828 = vpop.f32.mrf.mxu0
        %6829 = vmatprep.mubr.bf16.mxu0 0
        %6830 = vmatmul.mubr.bf16.gmra.mxu0 %v6677
        %v6831 = vpop.f32.mrf.mxu0
        %v6832 = vadd.f32 0.0, %v6831
        %v6833 = vpop.f32.mrf.mxu0
        %v6834 = vpop.f32.mrf.mxu0
        %v6835 = vadd.f32 0.0, %v6834
        %v6836 = vpop.f32.mrf.mxu0
        %6837 = vmatprep.mubr.bf16.mxu0 0
        %6838 = vmatmul.mubr.bf16.gmra.mxu0 %v6680
        %v6839 = vpop.f32.mrf.mxu0
        %v6840 = vadd.f32 0.0, %v6839
        %v6841 = vpop.f32.mrf.mxu0
        %v6842 = vpop.f32.mrf.mxu0
        %v6843 = vadd.f32 0.0, %v6842
        %v6844 = vpop.f32.mrf.mxu0
        %6845 = vdwg.mxu0
        %v6846 = vld [vmem:[%s8] sm:$0x1]
        %v6848 = vlaneseq
        %v6849 = vshrl.u32 %v6848, 7
        %v6850 = vsub.s32 0, %v6849
        %v6851 = vrot.slane %v6846, %v6850
        %v6853 = vmul.f32 %v6720, %v6851
        %v6854 = vmul.f32 %v6723, %v6851
        %v6855 = vmul.f32 %v6728, %v6851
        %v6856 = vmul.f32 %v6731, %v6851
        %v6857 = vmul.f32 %v6736, %v6851
        %v6858 = vmul.f32 %v6739, %v6851
        %v6859 = vmul.f32 %v6744, %v6851
        %v6860 = vmul.f32 %v6747, %v6851
        %v6861 = vmul.f32 %v6752, %v6851
        %v6862 = vmul.f32 %v6755, %v6851
        %v6863 = vmul.f32 %v6760, %v6851
        %v6864 = vmul.f32 %v6763, %v6851
        %v6865 = vmul.f32 %v6768, %v6851
        %v6866 = vmul.f32 %v6771, %v6851
        %v6867 = vmul.f32 %v6776, %v6851
        %v6868 = vmul.f32 %v6779, %v6851
        %v6869 = vmul.f32 %v6784, %v6851
        %v6870 = vmul.f32 %v6787, %v6851
        %v6871 = vmul.f32 %v6792, %v6851
        %v6872 = vmul.f32 %v6795, %v6851
        %v6873 = vmul.f32 %v6800, %v6851
        %v6874 = vmul.f32 %v6803, %v6851
        %v6875 = vmul.f32 %v6808, %v6851
        %v6876 = vmul.f32 %v6811, %v6851
        %v6877 = vmul.f32 %v6816, %v6851
        %v6878 = vmul.f32 %v6819, %v6851
        %v6879 = vmul.f32 %v6824, %v6851
        %v6880 = vmul.f32 %v6827, %v6851
        %v6881 = vmul.f32 %v6832, %v6851
        %v6882 = vmul.f32 %v6835, %v6851
        %v6883 = vmul.f32 %v6840, %v6851
        %v6884 = vmul.f32 %v6843, %v6851
        %v6885 = vld [vmem:[%s9] sm:$0x1]
        %v6887 = vlaneseq
        %v6888 = vshrl.u32 %v6887, 7
        %v6889 = vsub.s32 0, %v6888
        %v6890 = vrot.slane %v6885, %v6889
        %v6892 = vadd.f32 %v6853, %v6890
        %v6893 = vadd.f32 %v6854, %v6890
        %v6894 = vadd.f32 %v6855, %v6890
        %v6895 = vadd.f32 %v6856, %v6890
        %v6896 = vadd.f32 %v6857, %v6890
        %v6897 = vadd.f32 %v6858, %v6890
        %v6898 = vadd.f32 %v6859, %v6890
        %v6899 = vadd.f32 %v6860, %v6890
        %v6900 = vadd.f32 %v6861, %v6890
        %v6901 = vadd.f32 %v6862, %v6890
        %v6902 = vadd.f32 %v6863, %v6890
        %v6903 = vadd.f32 %v6864, %v6890
        %v6904 = vadd.f32 %v6865, %v6890
        %v6905 = vadd.f32 %v6866, %v6890
        %v6906 = vadd.f32 %v6867, %v6890
        %v6907 = vadd.f32 %v6868, %v6890
        %v6908 = vadd.f32 %v6869, %v6890
        %v6909 = vadd.f32 %v6870, %v6890
        %v6910 = vadd.f32 %v6871, %v6890
        %v6911 = vadd.f32 %v6872, %v6890
        %v6912 = vadd.f32 %v6873, %v6890
        %v6913 = vadd.f32 %v6874, %v6890
        %v6914 = vadd.f32 %v6875, %v6890
        %v6915 = vadd.f32 %v6876, %v6890
        %v6916 = vadd.f32 %v6877, %v6890
        %v6917 = vadd.f32 %v6878, %v6890
        %v6918 = vadd.f32 %v6879, %v6890
        %v6919 = vadd.f32 %v6880, %v6890
        %v6920 = vadd.f32 %v6881, %v6890
        %v6921 = vadd.f32 %v6882, %v6890
        %v6922 = vadd.f32 %v6883, %v6890
        %v6923 = vadd.f32 %v6884, %v6890
        %v6924 = vmax.f32 %v6892, 0.0
        %v6925 = vmax.f32 %v6893, 0.0
        %v6926 = vmax.f32 %v6894, 0.0
        %v6927 = vmax.f32 %v6895, 0.0
        %v6928 = vmax.f32 %v6896, 0.0
        %v6929 = vmax.f32 %v6897, 0.0
        %v6930 = vmax.f32 %v6898, 0.0
        %v6931 = vmax.f32 %v6899, 0.0
        %v6932 = vmax.f32 %v6900, 0.0
        %v6933 = vmax.f32 %v6901, 0.0
        %v6934 = vmax.f32 %v6902, 0.0
        %v6935 = vmax.f32 %v6903, 0.0
        %v6936 = vmax.f32 %v6904, 0.0
        %v6937 = vmax.f32 %v6905, 0.0
        %v6938 = vmax.f32 %v6906, 0.0
        %v6939 = vmax.f32 %v6907, 0.0
        %v6940 = vmax.f32 %v6908, 0.0
        %v6941 = vmax.f32 %v6909, 0.0
        %v6942 = vmax.f32 %v6910, 0.0
        %v6943 = vmax.f32 %v6911, 0.0
        %v6944 = vmax.f32 %v6912, 0.0
        %v6945 = vmax.f32 %v6913, 0.0
        %v6946 = vmax.f32 %v6914, 0.0
        %v6947 = vmax.f32 %v6915, 0.0
        %v6948 = vmax.f32 %v6916, 0.0
        %v6949 = vmax.f32 %v6917, 0.0
        %v6950 = vmax.f32 %v6918, 0.0
        %v6951 = vmax.f32 %v6919, 0.0
        %v6952 = vmax.f32 %v6920, 0.0
        %v6953 = vmax.f32 %v6921, 0.0
        %v6954 = vmax.f32 %v6922, 0.0
        %v6955 = vmax.f32 %v6923, 0.0
        %6956 = vst.msk [vmem:[#allocation4] sm:$0xff] %vm490, -inf
        %6957 = vst.msk [vmem:[#allocation4 + $0x8] sm:$0xff] %vm490, -inf
        %6958 = vst.msk [vmem:[#allocation4 + $0x10] sm:$0x3] %vm816, -inf
        %6959 = vst.msk [vmem:[#allocation4 + $0x18] sm:$0xff] %vm490, -inf
        %6960 = vst.msk [vmem:[#allocation4 + $0x20] sm:$0xff] %vm490, -inf
        %6961 = vst.msk [vmem:[#allocation4 + $0x28] sm:$0x3] %vm816, -inf
        %6962 = vst.msk [vmem:[#allocation4 + $0x30] sm:$0xff] %vm490, -inf
        %6963 = vst.msk [vmem:[#allocation4 + $0x38] sm:$0xff] %vm490, -inf
        %6964 = vst.msk [vmem:[#allocation4 + $0x40] sm:$0x3] %vm816, -inf
        %6965 = vst.msk [vmem:[#allocation4 + $0x48] sm:$0xff] %vm490, -inf
        %6966 = vst.msk [vmem:[#allocation4 + $0x50] sm:$0xff] %vm490, -inf
        %6967 = vst.msk [vmem:[#allocation4 + $0x58] sm:$0x3] %vm816, -inf
        %6968 = vst.msk [vmem:[#allocation4 + $0x60] sm:$0xff] %vm490, -inf
        %6969 = vst.msk [vmem:[#allocation4 + $0x68] sm:$0xff] %vm490, -inf
        %6970 = vst.msk [vmem:[#allocation4 + $0x70] sm:$0x3] %vm816, -inf
        %6971 = vst.msk [vmem:[#allocation4 + $0x78] sm:$0xff] %vm490, -inf
        %6972 = vst.msk [vmem:[#allocation4 + $0x80] sm:$0xff] %vm490, -inf
        %6973 = vst.msk [vmem:[#allocation4 + $0x88] sm:$0x3] %vm816, -inf
        %6974 = vst.msk [vmem:[#allocation4 + $0x90] sm:$0xff] %vm490, -inf
        %6975 = vst.msk [vmem:[#allocation4 + $0x98] sm:$0xff] %vm490, -inf
        %6976 = vst.msk [vmem:[#allocation4 + $0xa0] sm:$0x3] %vm816, -inf
        %6977 = vst.msk [vmem:[#allocation4 + $0xa8] sm:$0xff] %vm490, -inf
        %6978 = vst.msk [vmem:[#allocation4 + $0xb0] sm:$0xff] %vm490, -inf
        %6979 = vst.msk [vmem:[#allocation4 + $0xb8] sm:$0x3] %vm816, -inf
        %6980 = vst.msk [vmem:[#allocation4 + $0xc0] sm:$0xff] %vm490, -inf
        %6981 = vst.msk [vmem:[#allocation4 + $0xc8] sm:$0xff] %vm490, -inf
        %6982 = vst.msk [vmem:[#allocation4 + $0xd0] sm:$0x3] %vm816, -inf
        %6983 = vst.msk [vmem:[#allocation4 + $0xd8] sm:$0xff] %vm490, -inf
        %6984 = vst.msk [vmem:[#allocation4 + $0xe0] sm:$0xff] %vm490, -inf
        %6985 = vst.msk [vmem:[#allocation4 + $0xe8] sm:$0x3] %vm816, -inf
        %6986 = vst.msk [vmem:[#allocation4 + $0xf0] sm:$0xff] %vm490, -inf
        %6987 = vst.msk [vmem:[#allocation4 + $0xf8] sm:$0xff] %vm490, -inf
        %6988 = vst.msk [vmem:[#allocation4 + $0x100] sm:$0x3] %vm816, -inf
        %6989 = vst.msk [vmem:[#allocation4 + $0x108] sm:$0xff] %vm490, -inf
        %6990 = vst.msk [vmem:[#allocation4 + $0x110] sm:$0xff] %vm490, -inf
        %6991 = vst.msk [vmem:[#allocation4 + $0x118] sm:$0x3] %vm816, -inf
        %6992 = vst.msk [vmem:[#allocation4 + $0x120] sm:$0xff] %vm490, -inf
        %6993 = vst.msk [vmem:[#allocation4 + $0x128] sm:$0xff] %vm490, -inf
        %6994 = vst.msk [vmem:[#allocation4 + $0x130] sm:$0x3] %vm816, -inf
        %6995 = vst.msk [vmem:[#allocation4 + $0x138] sm:$0xff] %vm490, -inf
        %6996 = vst.msk [vmem:[#allocation4 + $0x140] sm:$0xff] %vm490, -inf
        %6997 = vst.msk [vmem:[#allocation4 + $0x148] sm:$0x3] %vm816, -inf
        %6998 = vst.msk [vmem:[#allocation4 + $0x150] sm:$0xff] %vm490, -inf
        %6999 = vst.msk [vmem:[#allocation4 + $0x158] sm:$0xff] %vm490, -inf
        %7000 = vst.msk [vmem:[#allocation4 + $0x160] sm:$0x3] %vm816, -inf
        %7001 = vst.msk [vmem:[#allocation4 + $0x168] sm:$0xff] %vm490, -inf
        %7002 = vst.msk [vmem:[#allocation4 + $0x170] sm:$0xff] %vm490, -inf
        %7003 = vst.msk [vmem:[#allocation4 + $0x178] sm:$0x3] %vm816, -inf
        %7004 = vst.msk [vmem:[#allocation4 + $0x180] sm:$0xff] %vm490, -inf
        %7005 = vst.msk [vmem:[#allocation4 + $0x188] sm:$0xff] %vm490, -inf
        %7006 = vst.msk [vmem:[#allocation4 + $0x190] sm:$0x3] %vm816, -inf
        %7007 = vst.msk [vmem:[#allocation4 + $0x198] sm:$0xff] %vm490, -inf
        %7008 = vst.msk [vmem:[#allocation4 + $0x1a0] sm:$0xff] %vm490, -inf
        %7009 = vst.msk [vmem:[#allocation4 + $0x1a8] sm:$0x3] %vm816, -inf
        %s7010 = scalar_lea.vmem [#allocation4], 24
        %7011 = vst.msk [vmem:[%s7010 + $0x1] sm:$0xff] %vm490, %v441
        %7012 = vst.msk [vmem:[%s7010 + $0x9] sm:$0xff] %vm490, %v442
        %7013 = vst.msk [vmem:[%s7010 + $0x19] sm:$0xff] %vm490, %v443
        %7014 = vst.msk [vmem:[%s7010 + $0x21] sm:$0xff] %vm490, %v444
        %7015 = vst.msk [vmem:[%s7010 + $0x31] sm:$0xff] %vm490, %v445
        %7016 = vst.msk [vmem:[%s7010 + $0x39] sm:$0xff] %vm490, %v446
        %7017 = vst.msk [vmem:[%s7010 + $0x49] sm:$0xff] %vm490, %v447
        %7018 = vst.msk [vmem:[%s7010 + $0x51] sm:$0xff] %vm490, %v448
        %7019 = vst.msk [vmem:[%s7010 + $0x61] sm:$0xff] %vm490, %v449
        %7020 = vst.msk [vmem:[%s7010 + $0x69] sm:$0xff] %vm490, %v450
        %7021 = vst.msk [vmem:[%s7010 + $0x79] sm:$0xff] %vm490, %v451
        %7022 = vst.msk [vmem:[%s7010 + $0x81] sm:$0xff] %vm490, %v452
        %7023 = vst.msk [vmem:[%s7010 + $0x91] sm:$0xff] %vm490, %v453
        %7024 = vst.msk [vmem:[%s7010 + $0x99] sm:$0xff] %vm490, %v454
        %7025 = vst.msk [vmem:[%s7010 + $0xa9] sm:$0xff] %vm490, %v455
        %7026 = vst.msk [vmem:[%s7010 + $0xb1] sm:$0xff] %vm490, %v456
        %7027 = vst.msk [vmem:[%s7010 + $0xc1] sm:$0xff] %vm490, %v457
        %7028 = vst.msk [vmem:[%s7010 + $0xc9] sm:$0xff] %vm490, %v458
        %7029 = vst.msk [vmem:[%s7010 + $0xd9] sm:$0xff] %vm490, %v459
        %7030 = vst.msk [vmem:[%s7010 + $0xe1] sm:$0xff] %vm490, %v460
        %7031 = vst.msk [vmem:[%s7010 + $0xf1] sm:$0xff] %vm490, %v461
        %7032 = vst.msk [vmem:[%s7010 + $0xf9] sm:$0xff] %vm490, %v462
        %7033 = vst.msk [vmem:[%s7010 + $0x109] sm:$0xff] %vm490, %v463
        %7034 = vst.msk [vmem:[%s7010 + $0x111] sm:$0xff] %vm490, %v464
        %7035 = vst.msk [vmem:[%s7010 + $0x121] sm:$0xff] %vm490, %v465
        %7036 = vst.msk [vmem:[%s7010 + $0x129] sm:$0xff] %vm490, %v466
        %7037 = vst.msk [vmem:[%s7010 + $0x139] sm:$0xff] %vm490, %v467
        %7038 = vst.msk [vmem:[%s7010 + $0x141] sm:$0xff] %vm490, %v468
        %7039 = vst.msk [vmem:[%s7010 + $0x151] sm:$0xff] %vm490, %v469
        %7040 = vst.msk [vmem:[%s7010 + $0x159] sm:$0xff] %vm490, %v470
        %7041 = vst.msk [vmem:[%s7010 + $0x169] sm:$0xff] %vm490, %v471
        %7042 = vst.msk [vmem:[%s7010 + $0x171] sm:$0xff] %vm490, %v472
        %v7043 = vld [vmem:[#allocation4] sm:$0xff]
        %v7044 = vld [vmem:[#allocation4 + $0x8] sm:$0xff]
        %v7045 = vld [vmem:[#allocation4 + $0x10] sm:$0x3]
        %v7046 = vld [vmem:[#allocation4 + $0x18] sm:$0xff]
        %v7047 = vld [vmem:[#allocation4 + $0x20] sm:$0xff]
        %v7048 = vld [vmem:[#allocation4 + $0x28] sm:$0x3]
        %v7049 = vld [vmem:[#allocation4 + $0x30] sm:$0xff]
        %v7050 = vld [vmem:[#allocation4 + $0x38] sm:$0xff]
        %v7051 = vld [vmem:[#allocation4 + $0x40] sm:$0x3]
        %v7052 = vld [vmem:[#allocation4 + $0x48] sm:$0xff]
        %v7053 = vld [vmem:[#allocation4 + $0x50] sm:$0xff]
        %v7054 = vld [vmem:[#allocation4 + $0x58] sm:$0x3]
        %v7055 = vld [vmem:[#allocation4 + $0x60] sm:$0xff]
        %v7056 = vld [vmem:[#allocation4 + $0x68] sm:$0xff]
        %v7057 = vld [vmem:[#allocation4 + $0x70] sm:$0x3]
        %v7058 = vld [vmem:[#allocation4 + $0x78] sm:$0xff]
        %v7059 = vld [vmem:[#allocation4 + $0x80] sm:$0xff]
        %v7060 = vld [vmem:[#allocation4 + $0x88] sm:$0x3]
        %v7061 = vld [vmem:[#allocation4 + $0x90] sm:$0xff]
        %v7062 = vld [vmem:[#allocation4 + $0x98] sm:$0xff]
        %v7063 = vld [vmem:[#allocation4 + $0xa0] sm:$0x3]
        %v7064 = vld [vmem:[#allocation4 + $0xa8] sm:$0xff]
        %v7065 = vld [vmem:[#allocation4 + $0xb0] sm:$0xff]
        %v7066 = vld [vmem:[#allocation4 + $0xb8] sm:$0x3]
        %v7067 = vld [vmem:[#allocation4 + $0xc0] sm:$0xff]
        %v7068 = vld [vmem:[#allocation4 + $0xc8] sm:$0xff]
        %v7069 = vld [vmem:[#allocation4 + $0xd0] sm:$0x3]
        %v7070 = vld [vmem:[#allocation4 + $0xd8] sm:$0xff]
        %v7071 = vld [vmem:[#allocation4 + $0xe0] sm:$0xff]
        %v7072 = vld [vmem:[#allocation4 + $0xe8] sm:$0x3]
        %v7073 = vld [vmem:[#allocation4 + $0xf0] sm:$0xff]
        %v7074 = vld [vmem:[#allocation4 + $0xf8] sm:$0xff]
        %v7075 = vld [vmem:[#allocation4 + $0x100] sm:$0x3]
        %v7076 = vld [vmem:[#allocation4 + $0x108] sm:$0xff]
        %v7077 = vld [vmem:[#allocation4 + $0x110] sm:$0xff]
        %v7078 = vld [vmem:[#allocation4 + $0x118] sm:$0x3]
        %v7079 = vld [vmem:[#allocation4 + $0x120] sm:$0xff]
        %v7080 = vld [vmem:[#allocation4 + $0x128] sm:$0xff]
        %v7081 = vld [vmem:[#allocation4 + $0x130] sm:$0x3]
        %v7082 = vld [vmem:[#allocation4 + $0x138] sm:$0xff]
        %v7083 = vld [vmem:[#allocation4 + $0x140] sm:$0xff]
        %v7084 = vld [vmem:[#allocation4 + $0x148] sm:$0x3]
        %v7085 = vld [vmem:[#allocation4 + $0x150] sm:$0xff]
        %v7086 = vld [vmem:[#allocation4 + $0x158] sm:$0xff]
        %v7087 = vld [vmem:[#allocation4 + $0x160] sm:$0x3]
        %v7088 = vld [vmem:[#allocation4 + $0x168] sm:$0xff]
        %v7089 = vld [vmem:[#allocation4 + $0x170] sm:$0xff]
        %v7090 = vld [vmem:[#allocation4 + $0x178] sm:$0x3]
        %v7091 = vld [vmem:[#allocation4 + $0x180] sm:$0xff]
        %v7092 = vld [vmem:[#allocation4 + $0x188] sm:$0xff]
        %v7093 = vld [vmem:[#allocation4 + $0x190] sm:$0x3]
        %v7094 = vld [vmem:[#allocation4 + $0x198] sm:$0xff]
        %v7095 = vld [vmem:[#allocation4 + $0x1a0] sm:$0xff]
        %v7096 = vld [vmem:[#allocation4 + $0x1a8] sm:$0x3]
        %v7145 = vrot.slane %v7043, 1
        %v7146 = vrot.slane %v7044, 1
        %v7147 = vsel %vm1132, %v7145, %v7146
        %v7148 = vrot.slane %v7045, 1
        %v7149 = vsel %vm1132, %v7146, %v7148
        %v7150 = vrot.slane %v7046, 1
        %v7151 = vrot.slane %v7047, 1
        %v7152 = vsel %vm1132, %v7150, %v7151
        %v7153 = vrot.slane %v7048, 1
        %v7154 = vsel %vm1132, %v7151, %v7153
        %v7155 = vrot.slane %v7049, 1
        %v7156 = vrot.slane %v7050, 1
        %v7157 = vsel %vm1132, %v7155, %v7156
        %v7158 = vrot.slane %v7051, 1
        %v7159 = vsel %vm1132, %v7156, %v7158
        %v7160 = vrot.slane %v7052, 1
        %v7161 = vrot.slane %v7053, 1
        %v7162 = vsel %vm1132, %v7160, %v7161
        %v7163 = vrot.slane %v7054, 1
        %v7164 = vsel %vm1132, %v7161, %v7163
        %v7165 = vrot.slane %v7055, 1
        %v7166 = vrot.slane %v7056, 1
        %v7167 = vsel %vm1132, %v7165, %v7166
        %v7168 = vrot.slane %v7057, 1
        %v7169 = vsel %vm1132, %v7166, %v7168
        %v7170 = vrot.slane %v7058, 1
        %v7171 = vrot.slane %v7059, 1
        %v7172 = vsel %vm1132, %v7170, %v7171
        %v7173 = vrot.slane %v7060, 1
        %v7174 = vsel %vm1132, %v7171, %v7173
        %v7175 = vrot.slane %v7061, 1
        %v7176 = vrot.slane %v7062, 1
        %v7177 = vsel %vm1132, %v7175, %v7176
        %v7178 = vrot.slane %v7063, 1
        %v7179 = vsel %vm1132, %v7176, %v7178
        %v7180 = vrot.slane %v7064, 1
        %v7181 = vrot.slane %v7065, 1
        %v7182 = vsel %vm1132, %v7180, %v7181
        %v7183 = vrot.slane %v7066, 1
        %v7184 = vsel %vm1132, %v7181, %v7183
        %v7185 = vrot.slane %v7067, 1
        %v7186 = vrot.slane %v7068, 1
        %v7187 = vsel %vm1132, %v7185, %v7186
        %v7188 = vrot.slane %v7069, 1
        %v7189 = vsel %vm1132, %v7186, %v7188
        %v7190 = vrot.slane %v7070, 1
        %v7191 = vrot.slane %v7071, 1
        %v7192 = vsel %vm1132, %v7190, %v7191
        %v7193 = vrot.slane %v7072, 1
        %v7194 = vsel %vm1132, %v7191, %v7193
        %v7195 = vrot.slane %v7073, 1
        %v7196 = vrot.slane %v7074, 1
        %v7197 = vsel %vm1132, %v7195, %v7196
        %v7198 = vrot.slane %v7075, 1
        %v7199 = vsel %vm1132, %v7196, %v7198
        %v7200 = vrot.slane %v7076, 1
        %v7201 = vrot.slane %v7077, 1
        %v7202 = vsel %vm1132, %v7200, %v7201
        %v7203 = vrot.slane %v7078, 1
        %v7204 = vsel %vm1132, %v7201, %v7203
        %v7205 = vrot.slane %v7079, 1
        %v7206 = vrot.slane %v7080, 1
        %v7207 = vsel %vm1132, %v7205, %v7206
        %v7208 = vrot.slane %v7081, 1
        %v7209 = vsel %vm1132, %v7206, %v7208
        %v7210 = vrot.slane %v7082, 1
        %v7211 = vrot.slane %v7083, 1
        %v7212 = vsel %vm1132, %v7210, %v7211
        %v7213 = vrot.slane %v7084, 1
        %v7214 = vsel %vm1132, %v7211, %v7213
        %v7215 = vrot.slane %v7085, 1
        %v7216 = vrot.slane %v7086, 1
        %v7217 = vsel %vm1132, %v7215, %v7216
        %v7218 = vrot.slane %v7087, 1
        %v7219 = vsel %vm1132, %v7216, %v7218
        %v7220 = vrot.slane %v7088, 1
        %v7221 = vrot.slane %v7089, 1
        %v7222 = vsel %vm1132, %v7220, %v7221
        %v7223 = vrot.slane %v7090, 1
        %v7224 = vsel %vm1132, %v7221, %v7223
        %v7257 = vmax.f32 %v7043, %v7147
        %v7258 = vmax.f32 %v7044, %v7149
        %v7259 = vmax.f32 %v7046, %v7152
        %v7260 = vmax.f32 %v7047, %v7154
        %v7261 = vmax.f32 %v7049, %v7157
        %v7262 = vmax.f32 %v7050, %v7159
        %v7263 = vmax.f32 %v7052, %v7162
        %v7264 = vmax.f32 %v7053, %v7164
        %v7265 = vmax.f32 %v7055, %v7167
        %v7266 = vmax.f32 %v7056, %v7169
        %v7267 = vmax.f32 %v7058, %v7172
        %v7268 = vmax.f32 %v7059, %v7174
        %v7269 = vmax.f32 %v7061, %v7177
        %v7270 = vmax.f32 %v7062, %v7179
        %v7271 = vmax.f32 %v7064, %v7182
        %v7272 = vmax.f32 %v7065, %v7184
        %v7273 = vmax.f32 %v7067, %v7187
        %v7274 = vmax.f32 %v7068, %v7189
        %v7275 = vmax.f32 %v7070, %v7192
        %v7276 = vmax.f32 %v7071, %v7194
        %v7277 = vmax.f32 %v7073, %v7197
        %v7278 = vmax.f32 %v7074, %v7199
        %v7279 = vmax.f32 %v7076, %v7202
        %v7280 = vmax.f32 %v7077, %v7204
        %v7281 = vmax.f32 %v7079, %v7207
        %v7282 = vmax.f32 %v7080, %v7209
        %v7283 = vmax.f32 %v7082, %v7212
        %v7284 = vmax.f32 %v7083, %v7214
        %v7285 = vmax.f32 %v7085, %v7217
        %v7286 = vmax.f32 %v7086, %v7219
        %v7287 = vmax.f32 %v7088, %v7222
        %v7288 = vmax.f32 %v7089, %v7224
        %v7289 = vrot.slane %v7043, 2
        %v7290 = vrot.slane %v7044, 2
        %v7291 = vsel %vm1213, %v7289, %v7290
        %v7292 = vrot.slane %v7045, 2
        %v7293 = vsel %vm1213, %v7290, %v7292
        %v7294 = vrot.slane %v7046, 2
        %v7295 = vrot.slane %v7047, 2
        %v7296 = vsel %vm1213, %v7294, %v7295
        %v7297 = vrot.slane %v7048, 2
        %v7298 = vsel %vm1213, %v7295, %v7297
        %v7299 = vrot.slane %v7049, 2
        %v7300 = vrot.slane %v7050, 2
        %v7301 = vsel %vm1213, %v7299, %v7300
        %v7302 = vrot.slane %v7051, 2
        %v7303 = vsel %vm1213, %v7300, %v7302
        %v7304 = vrot.slane %v7052, 2
        %v7305 = vrot.slane %v7053, 2
        %v7306 = vsel %vm1213, %v7304, %v7305
        %v7307 = vrot.slane %v7054, 2
        %v7308 = vsel %vm1213, %v7305, %v7307
        %v7309 = vrot.slane %v7055, 2
        %v7310 = vrot.slane %v7056, 2
        %v7311 = vsel %vm1213, %v7309, %v7310
        %v7312 = vrot.slane %v7057, 2
        %v7313 = vsel %vm1213, %v7310, %v7312
        %v7314 = vrot.slane %v7058, 2
        %v7315 = vrot.slane %v7059, 2
        %v7316 = vsel %vm1213, %v7314, %v7315
        %v7317 = vrot.slane %v7060, 2
        %v7318 = vsel %vm1213, %v7315, %v7317
        %v7319 = vrot.slane %v7061, 2
        %v7320 = vrot.slane %v7062, 2
        %v7321 = vsel %vm1213, %v7319, %v7320
        %v7322 = vrot.slane %v7063, 2
        %v7323 = vsel %vm1213, %v7320, %v7322
        %v7324 = vrot.slane %v7064, 2
        %v7325 = vrot.slane %v7065, 2
        %v7326 = vsel %vm1213, %v7324, %v7325
        %v7327 = vrot.slane %v7066, 2
        %v7328 = vsel %vm1213, %v7325, %v7327
        %v7329 = vrot.slane %v7067, 2
        %v7330 = vrot.slane %v7068, 2
        %v7331 = vsel %vm1213, %v7329, %v7330
        %v7332 = vrot.slane %v7069, 2
        %v7333 = vsel %vm1213, %v7330, %v7332
        %v7334 = vrot.slane %v7070, 2
        %v7335 = vrot.slane %v7071, 2
        %v7336 = vsel %vm1213, %v7334, %v7335
        %v7337 = vrot.slane %v7072, 2
        %v7338 = vsel %vm1213, %v7335, %v7337
        %v7339 = vrot.slane %v7073, 2
        %v7340 = vrot.slane %v7074, 2
        %v7341 = vsel %vm1213, %v7339, %v7340
        %v7342 = vrot.slane %v7075, 2
        %v7343 = vsel %vm1213, %v7340, %v7342
        %v7344 = vrot.slane %v7076, 2
        %v7345 = vrot.slane %v7077, 2
        %v7346 = vsel %vm1213, %v7344, %v7345
        %v7347 = vrot.slane %v7078, 2
        %v7348 = vsel %vm1213, %v7345, %v7347
        %v7349 = vrot.slane %v7079, 2
        %v7350 = vrot.slane %v7080, 2
        %v7351 = vsel %vm1213, %v7349, %v7350
        %v7352 = vrot.slane %v7081, 2
        %v7353 = vsel %vm1213, %v7350, %v7352
        %v7354 = vrot.slane %v7082, 2
        %v7355 = vrot.slane %v7083, 2
        %v7356 = vsel %vm1213, %v7354, %v7355
        %v7357 = vrot.slane %v7084, 2
        %v7358 = vsel %vm1213, %v7355, %v7357
        %v7359 = vrot.slane %v7085, 2
        %v7360 = vrot.slane %v7086, 2
        %v7361 = vsel %vm1213, %v7359, %v7360
        %v7362 = vrot.slane %v7087, 2
        %v7363 = vsel %vm1213, %v7360, %v7362
        %v7364 = vrot.slane %v7088, 2
        %v7365 = vrot.slane %v7089, 2
        %v7366 = vsel %vm1213, %v7364, %v7365
        %v7367 = vrot.slane %v7090, 2
        %v7368 = vsel %vm1213, %v7365, %v7367
        %v7401 = vmax.f32 %v7257, %v7291
        %v7402 = vmax.f32 %v7258, %v7293
        %v7403 = vmax.f32 %v7259, %v7296
        %v7404 = vmax.f32 %v7260, %v7298
        %v7405 = vmax.f32 %v7261, %v7301
        %v7406 = vmax.f32 %v7262, %v7303
        %v7407 = vmax.f32 %v7263, %v7306
        %v7408 = vmax.f32 %v7264, %v7308
        %v7409 = vmax.f32 %v7265, %v7311
        %v7410 = vmax.f32 %v7266, %v7313
        %v7411 = vmax.f32 %v7267, %v7316
        %v7412 = vmax.f32 %v7268, %v7318
        %v7413 = vmax.f32 %v7269, %v7321
        %v7414 = vmax.f32 %v7270, %v7323
        %v7415 = vmax.f32 %v7271, %v7326
        %v7416 = vmax.f32 %v7272, %v7328
        %v7417 = vmax.f32 %v7273, %v7331
        %v7418 = vmax.f32 %v7274, %v7333
        %v7419 = vmax.f32 %v7275, %v7336
        %v7420 = vmax.f32 %v7276, %v7338
        %v7421 = vmax.f32 %v7277, %v7341
        %v7422 = vmax.f32 %v7278, %v7343
        %v7423 = vmax.f32 %v7279, %v7346
        %v7424 = vmax.f32 %v7280, %v7348
        %v7425 = vmax.f32 %v7281, %v7351
        %v7426 = vmax.f32 %v7282, %v7353
        %v7427 = vmax.f32 %v7283, %v7356
        %v7428 = vmax.f32 %v7284, %v7358
        %v7429 = vmax.f32 %v7285, %v7361
        %v7430 = vmax.f32 %v7286, %v7363
        %v7431 = vmax.f32 %v7287, %v7366
        %v7432 = vmax.f32 %v7288, %v7368
        %v7433 = vmax.f32 %v7401, %v7046
        %v7434 = vmax.f32 %v7402, %v7047
        %v7435 = vmax.f32 %v7403, %v7049
        %v7436 = vmax.f32 %v7404, %v7050
        %v7437 = vmax.f32 %v7405, %v7052
        %v7438 = vmax.f32 %v7406, %v7053
        %v7439 = vmax.f32 %v7407, %v7055
        %v7440 = vmax.f32 %v7408, %v7056
        %v7441 = vmax.f32 %v7409, %v7058
        %v7442 = vmax.f32 %v7410, %v7059
        %v7443 = vmax.f32 %v7411, %v7061
        %v7444 = vmax.f32 %v7412, %v7062
        %v7445 = vmax.f32 %v7413, %v7064
        %v7446 = vmax.f32 %v7414, %v7065
        %v7447 = vmax.f32 %v7415, %v7067
        %v7448 = vmax.f32 %v7416, %v7068
        %v7449 = vmax.f32 %v7417, %v7070
        %v7450 = vmax.f32 %v7418, %v7071
        %v7451 = vmax.f32 %v7419, %v7073
        %v7452 = vmax.f32 %v7420, %v7074
        %v7453 = vmax.f32 %v7421, %v7076
        %v7454 = vmax.f32 %v7422, %v7077
        %v7455 = vmax.f32 %v7423, %v7079
        %v7456 = vmax.f32 %v7424, %v7080
        %v7457 = vmax.f32 %v7425, %v7082
        %v7458 = vmax.f32 %v7426, %v7083
        %v7459 = vmax.f32 %v7427, %v7085
        %v7460 = vmax.f32 %v7428, %v7086
        %v7461 = vmax.f32 %v7429, %v7088
        %v7462 = vmax.f32 %v7430, %v7089
        %v7463 = vmax.f32 %v7431, %v7091
        %v7464 = vmax.f32 %v7432, %v7092
        %v7468 = vrot.slane %v7091, 1
        %v7469 = vrot.slane %v7092, 1
        %v7470 = vsel %vm1132, %v7468, %v7469
        %v7471 = vrot.slane %v7093, 1
        %v7472 = vsel %vm1132, %v7469, %v7471
        %v7475 = vmax.f32 %v7433, %v7152
        %v7476 = vmax.f32 %v7434, %v7154
        %v7477 = vmax.f32 %v7435, %v7157
        %v7478 = vmax.f32 %v7436, %v7159
        %v7479 = vmax.f32 %v7437, %v7162
        %v7480 = vmax.f32 %v7438, %v7164
        %v7481 = vmax.f32 %v7439, %v7167
        %v7482 = vmax.f32 %v7440, %v7169
        %v7483 = vmax.f32 %v7441, %v7172
        %v7484 = vmax.f32 %v7442, %v7174
        %v7485 = vmax.f32 %v7443, %v7177
        %v7486 = vmax.f32 %v7444, %v7179
        %v7487 = vmax.f32 %v7445, %v7182
        %v7488 = vmax.f32 %v7446, %v7184
        %v7489 = vmax.f32 %v7447, %v7187
        %v7490 = vmax.f32 %v7448, %v7189
        %v7491 = vmax.f32 %v7449, %v7192
        %v7492 = vmax.f32 %v7450, %v7194
        %v7493 = vmax.f32 %v7451, %v7197
        %v7494 = vmax.f32 %v7452, %v7199
        %v7495 = vmax.f32 %v7453, %v7202
        %v7496 = vmax.f32 %v7454, %v7204
        %v7497 = vmax.f32 %v7455, %v7207
        %v7498 = vmax.f32 %v7456, %v7209
        %v7499 = vmax.f32 %v7457, %v7212
        %v7500 = vmax.f32 %v7458, %v7214
        %v7501 = vmax.f32 %v7459, %v7217
        %v7502 = vmax.f32 %v7460, %v7219
        %v7503 = vmax.f32 %v7461, %v7222
        %v7504 = vmax.f32 %v7462, %v7224
        %v7505 = vmax.f32 %v7463, %v7470
        %v7506 = vmax.f32 %v7464, %v7472
        %v7507 = vrot.slane %v7091, 2
        %v7508 = vrot.slane %v7092, 2
        %v7509 = vsel %vm1213, %v7507, %v7508
        %v7510 = vrot.slane %v7093, 2
        %v7511 = vsel %vm1213, %v7508, %v7510
        %v7514 = vmax.f32 %v7475, %v7296
        %v7515 = vmax.f32 %v7476, %v7298
        %v7516 = vmax.f32 %v7477, %v7301
        %v7517 = vmax.f32 %v7478, %v7303
        %v7518 = vmax.f32 %v7479, %v7306
        %v7519 = vmax.f32 %v7480, %v7308
        %v7520 = vmax.f32 %v7481, %v7311
        %v7521 = vmax.f32 %v7482, %v7313
        %v7522 = vmax.f32 %v7483, %v7316
        %v7523 = vmax.f32 %v7484, %v7318
        %v7524 = vmax.f32 %v7485, %v7321
        %v7525 = vmax.f32 %v7486, %v7323
        %v7526 = vmax.f32 %v7487, %v7326
        %v7527 = vmax.f32 %v7488, %v7328
        %v7528 = vmax.f32 %v7489, %v7331
        %v7529 = vmax.f32 %v7490, %v7333
        %v7530 = vmax.f32 %v7491, %v7336
        %v7531 = vmax.f32 %v7492, %v7338
        %v7532 = vmax.f32 %v7493, %v7341
        %v7533 = vmax.f32 %v7494, %v7343
        %v7534 = vmax.f32 %v7495, %v7346
        %v7535 = vmax.f32 %v7496, %v7348
        %v7536 = vmax.f32 %v7497, %v7351
        %v7537 = vmax.f32 %v7498, %v7353
        %v7538 = vmax.f32 %v7499, %v7356
        %v7539 = vmax.f32 %v7500, %v7358
        %v7540 = vmax.f32 %v7501, %v7361
        %v7541 = vmax.f32 %v7502, %v7363
        %v7542 = vmax.f32 %v7503, %v7366
        %v7543 = vmax.f32 %v7504, %v7368
        %v7544 = vmax.f32 %v7505, %v7509
        %v7545 = vmax.f32 %v7506, %v7511
        %v7546 = vmax.f32 %v7514, %v7049
        %v7547 = vmax.f32 %v7515, %v7050
        %v7548 = vmax.f32 %v7516, %v7052
        %v7549 = vmax.f32 %v7517, %v7053
        %v7550 = vmax.f32 %v7518, %v7055
        %v7551 = vmax.f32 %v7519, %v7056
        %v7552 = vmax.f32 %v7520, %v7058
        %v7553 = vmax.f32 %v7521, %v7059
        %v7554 = vmax.f32 %v7522, %v7061
        %v7555 = vmax.f32 %v7523, %v7062
        %v7556 = vmax.f32 %v7524, %v7064
        %v7557 = vmax.f32 %v7525, %v7065
        %v7558 = vmax.f32 %v7526, %v7067
        %v7559 = vmax.f32 %v7527, %v7068
        %v7560 = vmax.f32 %v7528, %v7070
        %v7561 = vmax.f32 %v7529, %v7071
        %v7562 = vmax.f32 %v7530, %v7073
        %v7563 = vmax.f32 %v7531, %v7074
        %v7564 = vmax.f32 %v7532, %v7076
        %v7565 = vmax.f32 %v7533, %v7077
        %v7566 = vmax.f32 %v7534, %v7079
        %v7567 = vmax.f32 %v7535, %v7080
        %v7568 = vmax.f32 %v7536, %v7082
        %v7569 = vmax.f32 %v7537, %v7083
        %v7570 = vmax.f32 %v7538, %v7085
        %v7571 = vmax.f32 %v7539, %v7086
        %v7572 = vmax.f32 %v7540, %v7088
        %v7573 = vmax.f32 %v7541, %v7089
        %v7574 = vmax.f32 %v7542, %v7091
        %v7575 = vmax.f32 %v7543, %v7092
        %v7576 = vmax.f32 %v7544, %v7094
        %v7577 = vmax.f32 %v7545, %v7095
        %v7581 = vrot.slane %v7094, 1
        %v7582 = vrot.slane %v7095, 1
        %v7583 = vsel %vm1132, %v7581, %v7582
        %v7584 = vrot.slane %v7096, 1
        %v7585 = vsel %vm1132, %v7582, %v7584
        %v7588 = vmax.f32 %v7546, %v7157
        %v7589 = vmax.f32 %v7547, %v7159
        %v7590 = vmax.f32 %v7548, %v7162
        %v7591 = vmax.f32 %v7549, %v7164
        %v7592 = vmax.f32 %v7550, %v7167
        %v7593 = vmax.f32 %v7551, %v7169
        %v7594 = vmax.f32 %v7552, %v7172
        %v7595 = vmax.f32 %v7553, %v7174
        %v7596 = vmax.f32 %v7554, %v7177
        %v7597 = vmax.f32 %v7555, %v7179
        %v7598 = vmax.f32 %v7556, %v7182
        %v7599 = vmax.f32 %v7557, %v7184
        %v7600 = vmax.f32 %v7558, %v7187
        %v7601 = vmax.f32 %v7559, %v7189
        %v7602 = vmax.f32 %v7560, %v7192
        %v7603 = vmax.f32 %v7561, %v7194
        %v7604 = vmax.f32 %v7562, %v7197
        %v7605 = vmax.f32 %v7563, %v7199
        %v7606 = vmax.f32 %v7564, %v7202
        %v7607 = vmax.f32 %v7565, %v7204
        %v7608 = vmax.f32 %v7566, %v7207
        %v7609 = vmax.f32 %v7567, %v7209
        %v7610 = vmax.f32 %v7568, %v7212
        %v7611 = vmax.f32 %v7569, %v7214
        %v7612 = vmax.f32 %v7570, %v7217
        %v7613 = vmax.f32 %v7571, %v7219
        %v7614 = vmax.f32 %v7572, %v7222
        %v7615 = vmax.f32 %v7573, %v7224
        %v7616 = vmax.f32 %v7574, %v7470
        %v7617 = vmax.f32 %v7575, %v7472
        %v7618 = vmax.f32 %v7576, %v7583
        %v7619 = vmax.f32 %v7577, %v7585
        %v7620 = vrot.slane %v7094, 2
        %v7621 = vrot.slane %v7095, 2
        %v7622 = vsel %vm1213, %v7620, %v7621
        %v7623 = vrot.slane %v7096, 2
        %v7624 = vsel %vm1213, %v7621, %v7623
        %v7627 = vmax.f32 %v7588, %v7301
        %v7628 = vmax.f32 %v7589, %v7303
        %v7629 = vmax.f32 %v7590, %v7306
        %v7630 = vmax.f32 %v7591, %v7308
        %v7631 = vmax.f32 %v7592, %v7311
        %v7632 = vmax.f32 %v7593, %v7313
        %v7633 = vmax.f32 %v7594, %v7316
        %v7634 = vmax.f32 %v7595, %v7318
        %v7635 = vmax.f32 %v7596, %v7321
        %v7636 = vmax.f32 %v7597, %v7323
        %v7637 = vmax.f32 %v7598, %v7326
        %v7638 = vmax.f32 %v7599, %v7328
        %v7639 = vmax.f32 %v7600, %v7331
        %v7640 = vmax.f32 %v7601, %v7333
        %v7641 = vmax.f32 %v7602, %v7336
        %v7642 = vmax.f32 %v7603, %v7338
        %v7643 = vmax.f32 %v7604, %v7341
        %v7644 = vmax.f32 %v7605, %v7343
        %v7645 = vmax.f32 %v7606, %v7346
        %v7646 = vmax.f32 %v7607, %v7348
        %v7647 = vmax.f32 %v7608, %v7351
        %v7648 = vmax.f32 %v7609, %v7353
        %v7649 = vmax.f32 %v7610, %v7356
        %v7650 = vmax.f32 %v7611, %v7358
        %v7651 = vmax.f32 %v7612, %v7361
        %v7652 = vmax.f32 %v7613, %v7363
        %v7653 = vmax.f32 %v7614, %v7366
        %v7654 = vmax.f32 %v7615, %v7368
        %v7655 = vmax.f32 %v7616, %v7509
        %v7656 = vmax.f32 %v7617, %v7511
        %v7657 = vmax.f32 %v7618, %v7622
        %v7658 = vmax.f32 %v7619, %v7624
        %v7659 = vpack.c.bf16 %v7628, %v7627
        %v7660 = vpack.c.bf16 %v7630, %v7629
        %v7661 = vpack.c.bf16 %v7632, %v7631
        %v7662 = vpack.c.bf16 %v7634, %v7633
        %v7663 = vpack.c.bf16 %v7636, %v7635
        %v7664 = vpack.c.bf16 %v7638, %v7637
        %v7665 = vpack.c.bf16 %v7640, %v7639
        %v7666 = vpack.c.bf16 %v7642, %v7641
        %v7667 = vpack.c.bf16 %v7644, %v7643
        %v7668 = vpack.c.bf16 %v7646, %v7645
        %v7669 = vpack.c.bf16 %v7648, %v7647
        %v7670 = vpack.c.bf16 %v7650, %v7649
        %v7671 = vpack.c.bf16 %v7652, %v7651
        %v7672 = vpack.c.bf16 %v7654, %v7653
        %v7673 = vpack.c.bf16 %v7656, %v7655
        %v7674 = vpack.c.bf16 %v7658, %v7657
        %v7675 = vld [vmem:[%s10] sm:$0x3]
        %v7677 = vsel %vm490, %v7659, 0
        %v7680 = vsel %vm490, %v7660, 0
        %v7683 = vsel %vm490, %v7661, 0
        %v7686 = vsel %vm490, %v7662, 0
        %v7689 = vsel %vm490, %v7663, 0
        %v7692 = vsel %vm490, %v7664, 0
        %v7695 = vsel %vm490, %v7665, 0
        %v7698 = vsel %vm490, %v7666, 0
        %v7701 = vsel %vm490, %v7667, 0
        %v7704 = vsel %vm490, %v7668, 0
        %v7707 = vsel %vm490, %v7669, 0
        %v7710 = vsel %vm490, %v7670, 0
        %v7713 = vsel %vm490, %v7671, 0
        %v7716 = vsel %vm490, %v7672, 0
        %v7719 = vsel %vm490, %v7673, 0
        %v7722 = vsel %vm490, %v7674, 0
        %v7725 = vsel %vm539, %v7675, 0
        %7727 = vmatprep.subr.bf16.mxu0 0
        %7728 = vmatpush1.bf16.msra.mxu0 0
        %7729 = vmatprep.subr.bf16.mxu0 0
        %7730 = vmatpush1.bf16.msra.mxu0 0
        %7731 = vmatprep.subr.bf16.mxu0 0
        %7732 = vmatpush1.bf16.msra.mxu0 0
        %7733 = vmatprep.subr.bf16.mxu0 0
        %7734 = vmatpush1.bf16.msra.mxu0 0
        %7735 = vmatprep.subr.bf16.mxu0 0
        %7736 = vmatpush1.bf16.msra.mxu0 0
        %7737 = vmatprep.subr.bf16.mxu0 0
        %7738 = vmatpush1.bf16.msra.mxu0 0
        %7739 = vmatprep.subr.bf16.mxu0 0
        %7740 = vmatpush1.bf16.msra.mxu0 0
        %7741 = vmatprep.subr.bf16.mxu0 0
        %7742 = vmatpush1.bf16.msra.mxu0 %v7725
        %7743 = vmatprep.subr.bf16.mxu0 0
        %7744 = vmatpush2.bf16.msra.mxu0 0
        %7745 = vmatprep.subr.bf16.mxu0 0
        %7746 = vmatpush2.bf16.msra.mxu0 0
        %7747 = vmatprep.subr.bf16.mxu0 0
        %7748 = vmatpush2.bf16.msra.mxu0 0
        %7749 = vmatprep.subr.bf16.mxu0 0
        %7750 = vmatpush2.bf16.msra.mxu0 0
        %7751 = vmatprep.subr.bf16.mxu0 0
        %7752 = vmatpush2.bf16.msra.mxu0 0
        %7753 = vmatprep.subr.bf16.mxu0 0
        %7754 = vmatpush2.bf16.msra.mxu0 0
        %7755 = vmatprep.subr.bf16.mxu0 0
        %7756 = vmatpush2.bf16.msra.mxu0 0
        %7757 = vmatprep.subr.bf16.mxu0 0
        %7758 = vmatpush2.bf16.msra.mxu0 0
        %7759 = vmatprep.mubr.bf16.mxu0 0
        %7760 = vmatmul.mubr.bf16.gmra.mxu0 %v7677
        %v7761 = vpop.f32.mrf.mxu0
        %v7762 = vadd.f32 0.0, %v7761
        %v7763 = vpop.f32.mrf.mxu0
        %v7764 = vpop.f32.mrf.mxu0
        %v7765 = vadd.f32 0.0, %v7764
        %v7766 = vpop.f32.mrf.mxu0
        %7767 = vmatprep.mubr.bf16.mxu0 0
        %7768 = vmatmul.mubr.bf16.gmra.mxu0 %v7680
        %v7769 = vpop.f32.mrf.mxu0
        %v7770 = vadd.f32 0.0, %v7769
        %v7771 = vpop.f32.mrf.mxu0
        %v7772 = vpop.f32.mrf.mxu0
        %v7773 = vadd.f32 0.0, %v7772
        %v7774 = vpop.f32.mrf.mxu0
        %7775 = vmatprep.mubr.bf16.mxu0 0
        %7776 = vmatmul.mubr.bf16.gmra.mxu0 %v7683
        %v7777 = vpop.f32.mrf.mxu0
        %v7778 = vadd.f32 0.0, %v7777
        %v7779 = vpop.f32.mrf.mxu0
        %v7780 = vpop.f32.mrf.mxu0
        %v7781 = vadd.f32 0.0, %v7780
        %v7782 = vpop.f32.mrf.mxu0
        %7783 = vmatprep.mubr.bf16.mxu0 0
        %7784 = vmatmul.mubr.bf16.gmra.mxu0 %v7686
        %v7785 = vpop.f32.mrf.mxu0
        %v7786 = vadd.f32 0.0, %v7785
        %v7787 = vpop.f32.mrf.mxu0
        %v7788 = vpop.f32.mrf.mxu0
        %v7789 = vadd.f32 0.0, %v7788
        %v7790 = vpop.f32.mrf.mxu0
        %7791 = vmatprep.mubr.bf16.mxu0 0
        %7792 = vmatmul.mubr.bf16.gmra.mxu0 %v7689
        %v7793 = vpop.f32.mrf.mxu0
        %v7794 = vadd.f32 0.0, %v7793
        %v7795 = vpop.f32.mrf.mxu0
        %v7796 = vpop.f32.mrf.mxu0
        %v7797 = vadd.f32 0.0, %v7796
        %v7798 = vpop.f32.mrf.mxu0
        %7799 = vmatprep.mubr.bf16.mxu0 0
        %7800 = vmatmul.mubr.bf16.gmra.mxu0 %v7692
        %v7801 = vpop.f32.mrf.mxu0
        %v7802 = vadd.f32 0.0, %v7801
        %v7803 = vpop.f32.mrf.mxu0
        %v7804 = vpop.f32.mrf.mxu0
        %v7805 = vadd.f32 0.0, %v7804
        %v7806 = vpop.f32.mrf.mxu0
        %7807 = vmatprep.mubr.bf16.mxu0 0
        %7808 = vmatmul.mubr.bf16.gmra.mxu0 %v7695
        %v7809 = vpop.f32.mrf.mxu0
        %v7810 = vadd.f32 0.0, %v7809
        %v7811 = vpop.f32.mrf.mxu0
        %v7812 = vpop.f32.mrf.mxu0
        %v7813 = vadd.f32 0.0, %v7812
        %v7814 = vpop.f32.mrf.mxu0
        %7815 = vmatprep.mubr.bf16.mxu0 0
        %7816 = vmatmul.mubr.bf16.gmra.mxu0 %v7698
        %v7817 = vpop.f32.mrf.mxu0
        %v7818 = vadd.f32 0.0, %v7817
        %v7819 = vpop.f32.mrf.mxu0
        %v7820 = vpop.f32.mrf.mxu0
        %v7821 = vadd.f32 0.0, %v7820
        %v7822 = vpop.f32.mrf.mxu0
        %7823 = vmatprep.mubr.bf16.mxu0 0
        %7824 = vmatmul.mubr.bf16.gmra.mxu0 %v7701
        %v7825 = vpop.f32.mrf.mxu0
        %v7826 = vadd.f32 0.0, %v7825
        %v7827 = vpop.f32.mrf.mxu0
        %v7828 = vpop.f32.mrf.mxu0
        %v7829 = vadd.f32 0.0, %v7828
        %v7830 = vpop.f32.mrf.mxu0
        %7831 = vmatprep.mubr.bf16.mxu0 0
        %7832 = vmatmul.mubr.bf16.gmra.mxu0 %v7704
        %v7833 = vpop.f32.mrf.mxu0
        %v7834 = vadd.f32 0.0, %v7833
        %v7835 = vpop.f32.mrf.mxu0
        %v7836 = vpop.f32.mrf.mxu0
        %v7837 = vadd.f32 0.0, %v7836
        %v7838 = vpop.f32.mrf.mxu0
        %7839 = vmatprep.mubr.bf16.mxu0 0
        %7840 = vmatmul.mubr.bf16.gmra.mxu0 %v7707
        %v7841 = vpop.f32.mrf.mxu0
        %v7842 = vadd.f32 0.0, %v7841
        %v7843 = vpop.f32.mrf.mxu0
        %v7844 = vpop.f32.mrf.mxu0
        %v7845 = vadd.f32 0.0, %v7844
        %v7846 = vpop.f32.mrf.mxu0
        %7847 = vmatprep.mubr.bf16.mxu0 0
        %7848 = vmatmul.mubr.bf16.gmra.mxu0 %v7710
        %v7849 = vpop.f32.mrf.mxu0
        %v7850 = vadd.f32 0.0, %v7849
        %v7851 = vpop.f32.mrf.mxu0
        %v7852 = vpop.f32.mrf.mxu0
        %v7853 = vadd.f32 0.0, %v7852
        %v7854 = vpop.f32.mrf.mxu0
        %7855 = vmatprep.mubr.bf16.mxu0 0
        %7856 = vmatmul.mubr.bf16.gmra.mxu0 %v7713
        %v7857 = vpop.f32.mrf.mxu0
        %v7858 = vadd.f32 0.0, %v7857
        %v7859 = vpop.f32.mrf.mxu0
        %v7860 = vpop.f32.mrf.mxu0
        %v7861 = vadd.f32 0.0, %v7860
        %v7862 = vpop.f32.mrf.mxu0
        %7863 = vmatprep.mubr.bf16.mxu0 0
        %7864 = vmatmul.mubr.bf16.gmra.mxu0 %v7716
        %v7865 = vpop.f32.mrf.mxu0
        %v7866 = vadd.f32 0.0, %v7865
        %v7867 = vpop.f32.mrf.mxu0
        %v7868 = vpop.f32.mrf.mxu0
        %v7869 = vadd.f32 0.0, %v7868
        %v7870 = vpop.f32.mrf.mxu0
        %7871 = vmatprep.mubr.bf16.mxu0 0
        %7872 = vmatmul.mubr.bf16.gmra.mxu0 %v7719
        %v7873 = vpop.f32.mrf.mxu0
        %v7874 = vadd.f32 0.0, %v7873
        %v7875 = vpop.f32.mrf.mxu0
        %v7876 = vpop.f32.mrf.mxu0
        %v7877 = vadd.f32 0.0, %v7876
        %v7878 = vpop.f32.mrf.mxu0
        %7879 = vmatprep.mubr.bf16.mxu0 0
        %7880 = vmatmul.mubr.bf16.gmra.mxu0 %v7722
        %v7881 = vpop.f32.mrf.mxu0
        %v7882 = vadd.f32 0.0, %v7881
        %v7883 = vpop.f32.mrf.mxu0
        %v7884 = vpop.f32.mrf.mxu0
        %v7885 = vadd.f32 0.0, %v7884
        %v7886 = vpop.f32.mrf.mxu0
        %7887 = vdwg.mxu0
        %v7888 = vld [vmem:[%s11] sm:$0x1]
        %v7890 = vlaneseq
        %v7891 = vshrl.u32 %v7890, 7
        %v7892 = vsub.s32 0, %v7891
        %v7893 = vrot.slane %v7888, %v7892
        %v7895 = vmul.f32 %v7762, %v7893
        %v7896 = vmul.f32 %v7765, %v7893
        %v7897 = vmul.f32 %v7770, %v7893
        %v7898 = vmul.f32 %v7773, %v7893
        %v7899 = vmul.f32 %v7778, %v7893
        %v7900 = vmul.f32 %v7781, %v7893
        %v7901 = vmul.f32 %v7786, %v7893
        %v7902 = vmul.f32 %v7789, %v7893
        %v7903 = vmul.f32 %v7794, %v7893
        %v7904 = vmul.f32 %v7797, %v7893
        %v7905 = vmul.f32 %v7802, %v7893
        %v7906 = vmul.f32 %v7805, %v7893
        %v7907 = vmul.f32 %v7810, %v7893
        %v7908 = vmul.f32 %v7813, %v7893
        %v7909 = vmul.f32 %v7818, %v7893
        %v7910 = vmul.f32 %v7821, %v7893
        %v7911 = vmul.f32 %v7826, %v7893
        %v7912 = vmul.f32 %v7829, %v7893
        %v7913 = vmul.f32 %v7834, %v7893
        %v7914 = vmul.f32 %v7837, %v7893
        %v7915 = vmul.f32 %v7842, %v7893
        %v7916 = vmul.f32 %v7845, %v7893
        %v7917 = vmul.f32 %v7850, %v7893
        %v7918 = vmul.f32 %v7853, %v7893
        %v7919 = vmul.f32 %v7858, %v7893
        %v7920 = vmul.f32 %v7861, %v7893
        %v7921 = vmul.f32 %v7866, %v7893
        %v7922 = vmul.f32 %v7869, %v7893
        %v7923 = vmul.f32 %v7874, %v7893
        %v7924 = vmul.f32 %v7877, %v7893
        %v7925 = vmul.f32 %v7882, %v7893
        %v7926 = vmul.f32 %v7885, %v7893
        %v7927 = vld [vmem:[%s12] sm:$0x1]
        %v7929 = vlaneseq
        %v7930 = vshrl.u32 %v7929, 7
        %v7931 = vsub.s32 0, %v7930
        %v7932 = vrot.slane %v7927, %v7931
        %v7934 = vadd.f32 %v7895, %v7932
        %v7935 = vadd.f32 %v7896, %v7932
        %v7936 = vadd.f32 %v7897, %v7932
        %v7937 = vadd.f32 %v7898, %v7932
        %v7938 = vadd.f32 %v7899, %v7932
        %v7939 = vadd.f32 %v7900, %v7932
        %v7940 = vadd.f32 %v7901, %v7932
        %v7941 = vadd.f32 %v7902, %v7932
        %v7942 = vadd.f32 %v7903, %v7932
        %v7943 = vadd.f32 %v7904, %v7932
        %v7944 = vadd.f32 %v7905, %v7932
        %v7945 = vadd.f32 %v7906, %v7932
        %v7946 = vadd.f32 %v7907, %v7932
        %v7947 = vadd.f32 %v7908, %v7932
        %v7948 = vadd.f32 %v7909, %v7932
        %v7949 = vadd.f32 %v7910, %v7932
        %v7950 = vadd.f32 %v7911, %v7932
        %v7951 = vadd.f32 %v7912, %v7932
        %v7952 = vadd.f32 %v7913, %v7932
        %v7953 = vadd.f32 %v7914, %v7932
        %v7954 = vadd.f32 %v7915, %v7932
        %v7955 = vadd.f32 %v7916, %v7932
        %v7956 = vadd.f32 %v7917, %v7932
        %v7957 = vadd.f32 %v7918, %v7932
        %v7958 = vadd.f32 %v7919, %v7932
        %v7959 = vadd.f32 %v7920, %v7932
        %v7960 = vadd.f32 %v7921, %v7932
        %v7961 = vadd.f32 %v7922, %v7932
        %v7962 = vadd.f32 %v7923, %v7932
        %v7963 = vadd.f32 %v7924, %v7932
        %v7964 = vadd.f32 %v7925, %v7932
        %v7965 = vadd.f32 %v7926, %v7932
        %v7966 = vmax.f32 %v7934, 0.0
        %v7967 = vmax.f32 %v7935, 0.0
        %v7968 = vmax.f32 %v7936, 0.0
        %v7969 = vmax.f32 %v7937, 0.0
        %v7970 = vmax.f32 %v7938, 0.0
        %v7971 = vmax.f32 %v7939, 0.0
        %v7972 = vmax.f32 %v7940, 0.0
        %v7973 = vmax.f32 %v7941, 0.0
        %v7974 = vmax.f32 %v7942, 0.0
        %v7975 = vmax.f32 %v7943, 0.0
        %v7976 = vmax.f32 %v7944, 0.0
        %v7977 = vmax.f32 %v7945, 0.0
        %v7978 = vmax.f32 %v7946, 0.0
        %v7979 = vmax.f32 %v7947, 0.0
        %v7980 = vmax.f32 %v7948, 0.0
        %v7981 = vmax.f32 %v7949, 0.0
        %v7982 = vmax.f32 %v7950, 0.0
        %v7983 = vmax.f32 %v7951, 0.0
        %v7984 = vmax.f32 %v7952, 0.0
        %v7985 = vmax.f32 %v7953, 0.0
        %v7986 = vmax.f32 %v7954, 0.0
        %v7987 = vmax.f32 %v7955, 0.0
        %v7988 = vmax.f32 %v7956, 0.0
        %v7989 = vmax.f32 %v7957, 0.0
        %v7990 = vmax.f32 %v7958, 0.0
        %v7991 = vmax.f32 %v7959, 0.0
        %v7992 = vmax.f32 %v7960, 0.0
        %v7993 = vmax.f32 %v7961, 0.0
        %v7994 = vmax.f32 %v7962, 0.0
        %v7995 = vmax.f32 %v7963, 0.0
        %v7996 = vmax.f32 %v7964, 0.0
        %v7997 = vmax.f32 %v7965, 0.0
        %8030 = vrot.lane.b32.xlu0 %v2678, 8
        %v8031 = vpop.permute.xlu0 %8030
        %8032 = vrot.lane.b32.xlu0 %v2679, 8
        %v8033 = vpop.permute.xlu0 %8032
        %8034 = vrot.lane.b32.xlu0 %v2680, 8
        %v8035 = vpop.permute.xlu0 %8034
        %8036 = vrot.lane.b32.xlu0 %v2681, 8
        %v8037 = vpop.permute.xlu0 %8036
        %8038 = vrot.lane.b32.xlu0 %v2682, 8
        %v8039 = vpop.permute.xlu0 %8038
        %8040 = vrot.lane.b32.xlu0 %v2683, 8
        %v8041 = vpop.permute.xlu0 %8040
        %8042 = vrot.lane.b32.xlu0 %v2684, 8
        %v8043 = vpop.permute.xlu0 %8042
        %8044 = vrot.lane.b32.xlu0 %v2685, 8
        %v8045 = vpop.permute.xlu0 %8044
        %8046 = vrot.lane.b32.xlu0 %v2686, 8
        %v8047 = vpop.permute.xlu0 %8046
        %8048 = vrot.lane.b32.xlu0 %v2687, 8
        %v8049 = vpop.permute.xlu0 %8048
        %8050 = vrot.lane.b32.xlu0 %v2688, 8
        %v8051 = vpop.permute.xlu0 %8050
        %8052 = vrot.lane.b32.xlu0 %v2689, 8
        %v8053 = vpop.permute.xlu0 %8052
        %8054 = vrot.lane.b32.xlu0 %v2690, 8
        %v8055 = vpop.permute.xlu0 %8054
        %8056 = vrot.lane.b32.xlu0 %v2691, 8
        %v8057 = vpop.permute.xlu0 %8056
        %8058 = vrot.lane.b32.xlu0 %v2692, 8
        %v8059 = vpop.permute.xlu0 %8058
        %8060 = vrot.lane.b32.xlu0 %v2693, 8
        %v8061 = vpop.permute.xlu0 %8060
        %8062 = vrot.lane.b32.xlu0 %v2694, 8
        %v8063 = vpop.permute.xlu0 %8062
        %8064 = vrot.lane.b32.xlu0 %v2695, 8
        %v8065 = vpop.permute.xlu0 %8064
        %8066 = vrot.lane.b32.xlu0 %v2696, 8
        %v8067 = vpop.permute.xlu0 %8066
        %8068 = vrot.lane.b32.xlu0 %v2697, 8
        %v8069 = vpop.permute.xlu0 %8068
        %8070 = vrot.lane.b32.xlu0 %v2698, 8
        %v8071 = vpop.permute.xlu0 %8070
        %8072 = vrot.lane.b32.xlu0 %v2699, 8
        %v8073 = vpop.permute.xlu0 %8072
        %8074 = vrot.lane.b32.xlu0 %v2700, 8
        %v8075 = vpop.permute.xlu0 %8074
        %8076 = vrot.lane.b32.xlu0 %v2701, 8
        %v8077 = vpop.permute.xlu0 %8076
        %8078 = vrot.lane.b32.xlu0 %v2702, 8
        %v8079 = vpop.permute.xlu0 %8078
        %8080 = vrot.lane.b32.xlu0 %v2703, 8
        %v8081 = vpop.permute.xlu0 %8080
        %8082 = vrot.lane.b32.xlu0 %v2704, 8
        %v8083 = vpop.permute.xlu0 %8082
        %8084 = vrot.lane.b32.xlu0 %v2705, 8
        %v8085 = vpop.permute.xlu0 %8084
        %8086 = vrot.lane.b32.xlu0 %v2706, 8
        %v8087 = vpop.permute.xlu0 %8086
        %8088 = vrot.lane.b32.xlu0 %v2707, 8
        %v8089 = vpop.permute.xlu0 %8088
        %8090 = vrot.lane.b32.xlu0 %v2708, 8
        %v8091 = vpop.permute.xlu0 %8090
        %8092 = vrot.lane.b32.xlu0 %v2709, 8
        %v8093 = vpop.permute.xlu0 %8092
        %8158 = vrot.lane.b32.xlu0 %v6924, 16
        %v8159 = vpop.permute.xlu0 %8158
        %8160 = vrot.lane.b32.xlu0 %v6925, 16
        %v8161 = vpop.permute.xlu0 %8160
        %8162 = vrot.lane.b32.xlu0 %v6926, 16
        %v8163 = vpop.permute.xlu0 %8162
        %8164 = vrot.lane.b32.xlu0 %v6927, 16
        %v8165 = vpop.permute.xlu0 %8164
        %8166 = vrot.lane.b32.xlu0 %v6928, 16
        %v8167 = vpop.permute.xlu0 %8166
        %8168 = vrot.lane.b32.xlu0 %v6929, 16
        %v8169 = vpop.permute.xlu0 %8168
        %8170 = vrot.lane.b32.xlu0 %v6930, 16
        %v8171 = vpop.permute.xlu0 %8170
        %8172 = vrot.lane.b32.xlu0 %v6931, 16
        %v8173 = vpop.permute.xlu0 %8172
        %8174 = vrot.lane.b32.xlu0 %v6932, 16
        %v8175 = vpop.permute.xlu0 %8174
        %8176 = vrot.lane.b32.xlu0 %v6933, 16
        %v8177 = vpop.permute.xlu0 %8176
        %8178 = vrot.lane.b32.xlu0 %v6934, 16
        %v8179 = vpop.permute.xlu0 %8178
        %8180 = vrot.lane.b32.xlu0 %v6935, 16
        %v8181 = vpop.permute.xlu0 %8180
        %8182 = vrot.lane.b32.xlu0 %v6936, 16
        %v8183 = vpop.permute.xlu0 %8182
        %8184 = vrot.lane.b32.xlu0 %v6937, 16
        %v8185 = vpop.permute.xlu0 %8184
        %8186 = vrot.lane.b32.xlu0 %v6938, 16
        %v8187 = vpop.permute.xlu0 %8186
        %8188 = vrot.lane.b32.xlu0 %v6939, 16
        %v8189 = vpop.permute.xlu0 %8188
        %8190 = vrot.lane.b32.xlu0 %v6940, 16
        %v8191 = vpop.permute.xlu0 %8190
        %8192 = vrot.lane.b32.xlu0 %v6941, 16
        %v8193 = vpop.permute.xlu0 %8192
        %8194 = vrot.lane.b32.xlu0 %v6942, 16
        %v8195 = vpop.permute.xlu0 %8194
        %8196 = vrot.lane.b32.xlu0 %v6943, 16
        %v8197 = vpop.permute.xlu0 %8196
        %8198 = vrot.lane.b32.xlu0 %v6944, 16
        %v8199 = vpop.permute.xlu0 %8198
        %8200 = vrot.lane.b32.xlu0 %v6945, 16
        %v8201 = vpop.permute.xlu0 %8200
        %8202 = vrot.lane.b32.xlu0 %v6946, 16
        %v8203 = vpop.permute.xlu0 %8202
        %8204 = vrot.lane.b32.xlu0 %v6947, 16
        %v8205 = vpop.permute.xlu0 %8204
        %8206 = vrot.lane.b32.xlu0 %v6948, 16
        %v8207 = vpop.permute.xlu0 %8206
        %8208 = vrot.lane.b32.xlu0 %v6949, 16
        %v8209 = vpop.permute.xlu0 %8208
        %8210 = vrot.lane.b32.xlu0 %v6950, 16
        %v8211 = vpop.permute.xlu0 %8210
        %8212 = vrot.lane.b32.xlu0 %v6951, 16
        %v8213 = vpop.permute.xlu0 %8212
        %8214 = vrot.lane.b32.xlu0 %v6952, 16
        %v8215 = vpop.permute.xlu0 %8214
        %8216 = vrot.lane.b32.xlu0 %v6953, 16
        %v8217 = vpop.permute.xlu0 %8216
        %8218 = vrot.lane.b32.xlu0 %v6954, 16
        %v8219 = vpop.permute.xlu0 %8218
        %8220 = vrot.lane.b32.xlu0 %v6955, 16
        %v8221 = vpop.permute.xlu0 %8220
        %8286 = vrot.lane.b32.xlu0 %v7966, 24
        %v8287 = vpop.permute.xlu0 %8286
        %8288 = vrot.lane.b32.xlu0 %v7967, 24
        %v8289 = vpop.permute.xlu0 %8288
        %8290 = vrot.lane.b32.xlu0 %v7968, 24
        %v8291 = vpop.permute.xlu0 %8290
        %8292 = vrot.lane.b32.xlu0 %v7969, 24
        %v8293 = vpop.permute.xlu0 %8292
        %8294 = vrot.lane.b32.xlu0 %v7970, 24
        %v8295 = vpop.permute.xlu0 %8294
        %8296 = vrot.lane.b32.xlu0 %v7971, 24
        %v8297 = vpop.permute.xlu0 %8296
        %8298 = vrot.lane.b32.xlu0 %v7972, 24
        %v8299 = vpop.permute.xlu0 %8298
        %8300 = vrot.lane.b32.xlu0 %v7973, 24
        %v8301 = vpop.permute.xlu0 %8300
        %8302 = vrot.lane.b32.xlu0 %v7974, 24
        %v8303 = vpop.permute.xlu0 %8302
        %8304 = vrot.lane.b32.xlu0 %v7975, 24
        %v8305 = vpop.permute.xlu0 %8304
        %8306 = vrot.lane.b32.xlu0 %v7976, 24
        %v8307 = vpop.permute.xlu0 %8306
        %8308 = vrot.lane.b32.xlu0 %v7977, 24
        %v8309 = vpop.permute.xlu0 %8308
        %8310 = vrot.lane.b32.xlu0 %v7978, 24
        %v8311 = vpop.permute.xlu0 %8310
        %8312 = vrot.lane.b32.xlu0 %v7979, 24
        %v8313 = vpop.permute.xlu0 %8312
        %8314 = vrot.lane.b32.xlu0 %v7980, 24
        %v8315 = vpop.permute.xlu0 %8314
        %8316 = vrot.lane.b32.xlu0 %v7981, 24
        %v8317 = vpop.permute.xlu0 %8316
        %8318 = vrot.lane.b32.xlu0 %v7982, 24
        %v8319 = vpop.permute.xlu0 %8318
        %8320 = vrot.lane.b32.xlu0 %v7983, 24
        %v8321 = vpop.permute.xlu0 %8320
        %8322 = vrot.lane.b32.xlu0 %v7984, 24
        %v8323 = vpop.permute.xlu0 %8322
        %8324 = vrot.lane.b32.xlu0 %v7985, 24
        %v8325 = vpop.permute.xlu0 %8324
        %8326 = vrot.lane.b32.xlu0 %v7986, 24
        %v8327 = vpop.permute.xlu0 %8326
        %8328 = vrot.lane.b32.xlu0 %v7987, 24
        %v8329 = vpop.permute.xlu0 %8328
        %8330 = vrot.lane.b32.xlu0 %v7988, 24
        %v8331 = vpop.permute.xlu0 %8330
        %8332 = vrot.lane.b32.xlu0 %v7989, 24
        %v8333 = vpop.permute.xlu0 %8332
        %8334 = vrot.lane.b32.xlu0 %v7990, 24
        %v8335 = vpop.permute.xlu0 %8334
        %8336 = vrot.lane.b32.xlu0 %v7991, 24
        %v8337 = vpop.permute.xlu0 %8336
        %8338 = vrot.lane.b32.xlu0 %v7992, 24
        %v8339 = vpop.permute.xlu0 %8338
        %8340 = vrot.lane.b32.xlu0 %v7993, 24
        %v8341 = vpop.permute.xlu0 %8340
        %8342 = vrot.lane.b32.xlu0 %v7994, 24
        %v8343 = vpop.permute.xlu0 %8342
        %8344 = vrot.lane.b32.xlu0 %v7995, 24
        %v8345 = vpop.permute.xlu0 %8344
        %8346 = vrot.lane.b32.xlu0 %v7996, 24
        %v8347 = vpop.permute.xlu0 %8346
        %8348 = vrot.lane.b32.xlu0 %v7997, 24
        %v8349 = vpop.permute.xlu0 %8348
        %v8382 = vsel %vm2120, %v782, %v8031
        %v8383 = vsel %vm2120, %v783, %v8033
        %v8384 = vsel %vm2120, %v784, %v8035
        %v8385 = vsel %vm2120, %v785, %v8037
        %v8386 = vsel %vm2120, %v786, %v8039
        %v8387 = vsel %vm2120, %v787, %v8041
        %v8388 = vsel %vm2120, %v788, %v8043
        %v8389 = vsel %vm2120, %v789, %v8045
        %v8390 = vsel %vm2120, %v790, %v8047
        %v8391 = vsel %vm2120, %v791, %v8049
        %v8392 = vsel %vm2120, %v792, %v8051
        %v8393 = vsel %vm2120, %v793, %v8053
        %v8394 = vsel %vm2120, %v794, %v8055
        %v8395 = vsel %vm2120, %v795, %v8057
        %v8396 = vsel %vm2120, %v796, %v8059
        %v8397 = vsel %vm2120, %v797, %v8061
        %v8398 = vsel %vm2120, %v798, %v8063
        %v8399 = vsel %vm2120, %v799, %v8065
        %v8400 = vsel %vm2120, %v800, %v8067
        %v8401 = vsel %vm2120, %v801, %v8069
        %v8402 = vsel %vm2120, %v802, %v8071
        %v8403 = vsel %vm2120, %v803, %v8073
        %v8404 = vsel %vm2120, %v804, %v8075
        %v8405 = vsel %vm2120, %v805, %v8077
        %v8406 = vsel %vm2120, %v806, %v8079
        %v8407 = vsel %vm2120, %v807, %v8081
        %v8408 = vsel %vm2120, %v808, %v8083
        %v8409 = vsel %vm2120, %v809, %v8085
        %v8410 = vsel %vm2120, %v810, %v8087
        %v8411 = vsel %vm2120, %v811, %v8089
        %v8412 = vsel %vm2120, %v812, %v8091
        %v8413 = vsel %vm2120, %v813, %v8093
        %v8414 = vsel %vm2186, %v8382, %v8159
        %v8415 = vsel %vm2186, %v8383, %v8161
        %v8416 = vsel %vm2186, %v8384, %v8163
        %v8417 = vsel %vm2186, %v8385, %v8165
        %v8418 = vsel %vm2186, %v8386, %v8167
        %v8419 = vsel %vm2186, %v8387, %v8169
        %v8420 = vsel %vm2186, %v8388, %v8171
        %v8421 = vsel %vm2186, %v8389, %v8173
        %v8422 = vsel %vm2186, %v8390, %v8175
        %v8423 = vsel %vm2186, %v8391, %v8177
        %v8424 = vsel %vm2186, %v8392, %v8179
        %v8425 = vsel %vm2186, %v8393, %v8181
        %v8426 = vsel %vm2186, %v8394, %v8183
        %v8427 = vsel %vm2186, %v8395, %v8185
        %v8428 = vsel %vm2186, %v8396, %v8187
        %v8429 = vsel %vm2186, %v8397, %v8189
        %v8430 = vsel %vm2186, %v8398, %v8191
        %v8431 = vsel %vm2186, %v8399, %v8193
        %v8432 = vsel %vm2186, %v8400, %v8195
        %v8433 = vsel %vm2186, %v8401, %v8197
        %v8434 = vsel %vm2186, %v8402, %v8199
        %v8435 = vsel %vm2186, %v8403, %v8201
        %v8436 = vsel %vm2186, %v8404, %v8203
        %v8437 = vsel %vm2186, %v8405, %v8205
        %v8438 = vsel %vm2186, %v8406, %v8207
        %v8439 = vsel %vm2186, %v8407, %v8209
        %v8440 = vsel %vm2186, %v8408, %v8211
        %v8441 = vsel %vm2186, %v8409, %v8213
        %v8442 = vsel %vm2186, %v8410, %v8215
        %v8443 = vsel %vm2186, %v8411, %v8217
        %v8444 = vsel %vm2186, %v8412, %v8219
        %v8445 = vsel %vm2186, %v8413, %v8221
        %v8446 = vsel %vm2252, %v8414, %v8287
        %v8447 = vsel %vm2252, %v8415, %v8289
        %v8448 = vsel %vm2252, %v8416, %v8291
        %v8449 = vsel %vm2252, %v8417, %v8293
        %v8450 = vsel %vm2252, %v8418, %v8295
        %v8451 = vsel %vm2252, %v8419, %v8297
        %v8452 = vsel %vm2252, %v8420, %v8299
        %v8453 = vsel %vm2252, %v8421, %v8301
        %v8454 = vsel %vm2252, %v8422, %v8303
        %v8455 = vsel %vm2252, %v8423, %v8305
        %v8456 = vsel %vm2252, %v8424, %v8307
        %v8457 = vsel %vm2252, %v8425, %v8309
        %v8458 = vsel %vm2252, %v8426, %v8311
        %v8459 = vsel %vm2252, %v8427, %v8313
        %v8460 = vsel %vm2252, %v8428, %v8315
        %v8461 = vsel %vm2252, %v8429, %v8317
        %v8462 = vsel %vm2252, %v8430, %v8319
        %v8463 = vsel %vm2252, %v8431, %v8321
        %v8464 = vsel %vm2252, %v8432, %v8323
        %v8465 = vsel %vm2252, %v8433, %v8325
        %v8466 = vsel %vm2252, %v8434, %v8327
        %v8467 = vsel %vm2252, %v8435, %v8329
        %v8468 = vsel %vm2252, %v8436, %v8331
        %v8469 = vsel %vm2252, %v8437, %v8333
        %v8470 = vsel %vm2252, %v8438, %v8335
        %v8471 = vsel %vm2252, %v8439, %v8337
        %v8472 = vsel %vm2252, %v8440, %v8339
        %v8473 = vsel %vm2252, %v8441, %v8341
        %v8474 = vsel %vm2252, %v8442, %v8343
        %v8475 = vsel %vm2252, %v8443, %v8345
        %v8476 = vsel %vm2252, %v8444, %v8347
        %v8477 = vsel %vm2252, %v8445, %v8349
        %8478 = vst.msk [vmem:[%s433] sm:$0xff] %vm2318, %v8446
        %8479 = vst.msk [vmem:[%s433 + $0x8] sm:$0xff] %vm2318, %v8447
        %8480 = vst.msk [vmem:[%s433 + $0x10] sm:$0xff] %vm2318, %v8448
        %8481 = vst.msk [vmem:[%s433 + $0x18] sm:$0xff] %vm2318, %v8449
        %8482 = vst.msk [vmem:[%s433 + $0x20] sm:$0xff] %vm2318, %v8450
        %8483 = vst.msk [vmem:[%s433 + $0x28] sm:$0xff] %vm2318, %v8451
        %8484 = vst.msk [vmem:[%s433 + $0x30] sm:$0xff] %vm2318, %v8452
        %8485 = vst.msk [vmem:[%s433 + $0x38] sm:$0xff] %vm2318, %v8453
        %8486 = vst.msk [vmem:[%s433 + $0x40] sm:$0xff] %vm2318, %v8454
        %8487 = vst.msk [vmem:[%s433 + $0x48] sm:$0xff] %vm2318, %v8455
        %8488 = vst.msk [vmem:[%s433 + $0x50] sm:$0xff] %vm2318, %v8456
        %8489 = vst.msk [vmem:[%s433 + $0x58] sm:$0xff] %vm2318, %v8457
        %8490 = vst.msk [vmem:[%s433 + $0x60] sm:$0xff] %vm2318, %v8458
        %8491 = vst.msk [vmem:[%s433 + $0x68] sm:$0xff] %vm2318, %v8459
        %8492 = vst.msk [vmem:[%s433 + $0x70] sm:$0xff] %vm2318, %v8460
        %8493 = vst.msk [vmem:[%s433 + $0x78] sm:$0xff] %vm2318, %v8461
        %8494 = vst.msk [vmem:[%s433 + $0x80] sm:$0xff] %vm2318, %v8462
        %8495 = vst.msk [vmem:[%s433 + $0x88] sm:$0xff] %vm2318, %v8463
        %8496 = vst.msk [vmem:[%s433 + $0x90] sm:$0xff] %vm2318, %v8464
        %8497 = vst.msk [vmem:[%s433 + $0x98] sm:$0xff] %vm2318, %v8465
        %8498 = vst.msk [vmem:[%s433 + $0xa0] sm:$0xff] %vm2318, %v8466
        %8499 = vst.msk [vmem:[%s433 + $0xa8] sm:$0xff] %vm2318, %v8467
        %8500 = vst.msk [vmem:[%s433 + $0xb0] sm:$0xff] %vm2318, %v8468
        %8501 = vst.msk [vmem:[%s433 + $0xb8] sm:$0xff] %vm2318, %v8469
        %8502 = vst.msk [vmem:[%s433 + $0xc0] sm:$0xff] %vm2318, %v8470
        %8503 = vst.msk [vmem:[%s433 + $0xc8] sm:$0xff] %vm2318, %v8471
        %8504 = vst.msk [vmem:[%s433 + $0xd0] sm:$0xff] %vm2318, %v8472
        %8505 = vst.msk [vmem:[%s433 + $0xd8] sm:$0xff] %vm2318, %v8473
        %8506 = vst.msk [vmem:[%s433 + $0xe0] sm:$0xff] %vm2318, %v8474
        %8507 = vst.msk [vmem:[%s433 + $0xe8] sm:$0xff] %vm2318, %v8475
        %8508 = vst.msk [vmem:[%s433 + $0xf0] sm:$0xff] %vm2318, %v8476
        %8509 = vst.msk [vmem:[%s433 + $0xf8] sm:$0xff] %vm2318, %v8477
        %s8510 = sand.u32 %s313, 1
        %s8511 = scalar_lea.sflag [#allocation6], %s8510
        %s8512 = sand.u32 %s313, 1
        %s8513 = smul.addr %s8512, 256
        %s8514 = scalar_lea.vmem [#allocation5], %s8513
        // Predicated region
        $region73: #{inception_forward.1} parent=71 // pred_check
          %p8515 = pneg %p323
        $region74: #{inception_forward.1} parent=71 // pred_check_branch
          %8517 = sbr.rel (%p8515) target = $region76
        $region75: #{inception_forward.1} parent=71 // pred_region
          %s8518 = smul.u32 32, %s27
          %s8520 = ssub.s32 4096, 4096
          %8521 = vsyncadd %s8511, %s8520
          %s8522 = smul.addr %s8518, 128
          %s8523 = scalar_lea.hbm %s13, %s8522
          %s8524 = sshll.u32 %s8514, 4
          %s8525 = int_to_ptr.vmem [resolvable:$true] %s8524
          %8530 = dma.vmem_to_hbm [thread:$0]  %s8525, 4096, %s8523, %s8511, 128, 128, 8
        $region76: #{inception_forward.1} parent=71 // pred_fallthru
          _
      $region72: #{inception_forward.1} parent=5 // pred_fallthru
        _
      %p8531 = scmp.le.s32.totalorder 2, %s22
      // Predicated region
      $region77: #{inception_forward.1} parent=5 // pred_check
        %p8532 = pneg %p8531
      $region78: #{inception_forward.1} parent=5 // pred_check_branch
        %8534 = sbr.rel (%p8532) target = $region80
      $region79: #{inception_forward.1} parent=5 // pred_region
        %s8535 = ssub.s32 %s22, 2
        // Predicated region
        $region81: #{inception_forward.1} parent=79 // pred_check
          %p8536 = pneg %p329
        $region82: #{inception_forward.1} parent=79 // pred_check_branch
          %8538 = sbr.rel (%p8536) target = $region84
        $region83: #{inception_forward.1} parent=79 // pred_region
          %s8539 = sand.u32 %s314, 1
          %s8540 = scalar_lea.sflag [#allocation6], %s8539
          %s8541 = sand.u32 %s314, 1
          %s8542 = smul.addr %s8541, 256
          %s8543 = scalar_lea.vmem [#allocation5], %s8542
          %8544 = dma.done %s8540, 4096
        $region84: #{inception_forward.1} parent=79 // pred_fallthru
          _
      $region80: #{inception_forward.1} parent=5 // pred_fallthru
        _
    $region6: #{inception_forward.1} parent=1 // loop_footer
      %s26 = sadd.s32 1, %s22
    $region7: #{inception_forward.1} parent=1 // loop_footer_branch
      %21 = sbr.rel target = $region3
    $region8: #{inception_forward.1} parent=1 // loop_exit
      _
    %8545 = vsyncpa [#allocation6], 1
    %s8546 = scalar_lea.sflag [#allocation6], 1
    %8547 = vsyncpa %s8546, 1

</llo_original>
